<compile_context>
chip_gen: v5e
topology: v5e:2x2
jax: 0.10.0
libtpu: 0.0.40
codegen_flags: <defaults>
</compile_context>

<pallas_src>
import functools
import math

import numpy as np

import jax
import jax.numpy as jnp
from jax.experimental import pallas as pl
from jax.experimental.pallas import tpu as pltpu


# ----------------------------------------------------------------------------
# In-kernel helpers (slices / leading<->sublane reshapes / broadcasts / dots,
# which lower robustly in Mosaic).
# ----------------------------------------------------------------------------
def _upsample2(x):
    """(h, w, c) -> (2h, 2w, c), nearest-neighbour."""
    h, w, c = x.shape
    x = jnp.broadcast_to(x[:, None, :, :], (h, 2, w, c)).reshape(2 * h, w, c)
    x = jnp.broadcast_to(x[:, :, None, :], (2 * h, w, 2, c)).reshape(2 * h, 2 * w, c)
    return x


def _avgpool2(x):
    """(2h, 2w, c) -> (h, w, c) f32, 2x2 stride-2 average pool (accumulates in f32)."""
    h2, w2, c = x.shape
    x = x.astype(jnp.float32)
    x = x.reshape(h2 // 2, 2, w2, c)
    x = x[:, 0] + x[:, 1]                                    # vertical pairs
    x = x.reshape(h2 // 2, w2 // 2, 2, c)
    x = x[:, :, 0:1, :] + x[:, :, 1:2, :]                    # horizontal pairs
    return x.reshape(h2 // 2, w2 // 2, c) * 0.25


def _write_padded(pad_ref, x):
    """Write x into the interior of a (h+2, w+2, c) scratch; zero ONLY the 1-wide halo.

    The interior [1:h+1, 1:w+1, :] is fully overwritten every call, so the halo ring is
    the only part that needs zeroing -- this replaces the previous full-buffer zero store
    (which doubled vst traffic over every padded buffer).  The ring is re-zeroed every
    grid step on purpose: with the batch axis "parallel", grid steps may be sharded
    across TensorCores with per-core scratch, so a program_id==0 guard would leave other
    cores' halos uninitialised.
    """
    h, w, _ = x.shape
    c = pad_ref.shape[-1]
    zrow = jnp.zeros((1, w + 2, c), pad_ref.dtype)
    zcol = jnp.zeros((h, 1, c), pad_ref.dtype)
    pad_ref[0:1, :, :] = zrow                                # top row (incl. corners)
    pad_ref[h + 1:h + 2, :, :] = zrow                        # bottom row (incl. corners)
    pad_ref[1:h + 1, 0:1, :] = zcol                          # left column
    pad_ref[1:h + 1, w + 1:w + 2, :] = zcol                  # right column
    pad_ref[1:h + 1, 1:w + 1, :] = x.astype(pad_ref.dtype)   # interior (full rewrite)


def _conv3x3(pad_ref, w_ref, h, w, acc=None):
    """3x3 SAME conv without materialising a full (HW, 9*Cin) im2col.

    pad_ref: (h+2, w+2, cin) zero-halo input scratch; w_ref: (9*cin, cout) packed HWIO
    weights (row order dy, dx, ci).  `acc` (optional, f32 (h*w, cout)) is used as the
    initial accumulator so residual adds (l2h upsample, h2l) come for free.

    cin >= 128: 9 accumulating (HW, cin) @ (cin, cout) matmuls -- no lane concat, and on
    v7x the MRB accumulates successive vmatmuls in place.
    cin  < 128: dy-loop with a 3-tap lane concat, 3 accumulating (HW, 3*cin) matmuls
    (keeps K >= 3*cin so MXU fill does not collapse for small channel counts).
    """
    cin = pad_ref.shape[-1]
    cout = w_ref.shape[-1]
    if acc is None:
        acc = jnp.zeros((h * w, cout), jnp.float32)
    if cin >= 128:
        for dy in range(3):
            for dx in range(3):
                tap = pad_ref[dy:dy + h, dx:dx + w, :].reshape(h * w, cin)
                wslc = w_ref[(dy * 3 + dx) * cin:(dy * 3 + dx + 1) * cin, :]
                acc = acc + jnp.dot(tap, wslc, preferred_element_type=jnp.float32)
    else:
        for dy in range(3):
            row = pad_ref[dy:dy + h, :, :]                   # (h, w+2, cin)
            taps = jnp.concatenate(
                [row[:, dx:dx + w, :] for dx in range(3)], axis=-1
            ).reshape(h * w, 3 * cin)                        # (h*w, 3*cin)
            wslc = w_ref[dy * 3 * cin:(dy + 1) * 3 * cin, :]
            acc = acc + jnp.dot(taps, wslc, preferred_element_type=jnp.float32)
    return acc


def _bn_relu(acc, sb_ref, relu=True):
    """acc: (rows, c) f32; sb_ref: (2, c) = [folded BN scale; folded BN bias]."""
    y = acc * sb_ref[0:1, :] + sb_ref[1:2, :]
    return jnp.maximum(y, 0.0) if relu else y


# ----------------------------------------------------------------------------
# Fused kernel: whole FirstOctaveDecoderBlock for one batch element.
# ----------------------------------------------------------------------------
def _octave_block_kernel(*refs, has_skip):
    if has_skip:
        (x_ref, skip_ref,
         w1h_ref, w1l_ref, w2h_ref, w2lo_ref, w2hl_ref,
         sb1h_ref, sb1l_ref, sb2h_ref, sb2l_ref,
         yh_ref, yl_ref,
         p1h, p1l, p2h, p2xl, p2xh) = refs
    else:
        skip_ref = None
        (x_ref,
         w1h_ref, w1l_ref, w2h_ref, w2lo_ref, w2hl_ref,
         sb1h_ref, sb1l_ref, sb2h_ref, sb2l_ref,
         yh_ref, yl_ref,
         p1h, p1l, p2h, p2xl, p2xh) = refs

    hh, wh = p1h.shape[0] - 2, p1h.shape[1] - 2      # high-res spatial (2H, 2W)
    hl, wl = hh // 2, wh // 2                        # low-res spatial (H, W)
    out_h = p2h.shape[-1]
    out_l = yl_ref.shape[1]

    # ---- x = nearest_up2(x); x = concat([x, skip], channel) -------------------
    xh = _upsample2(x_ref[0])
    if has_skip:
        xh = jnp.concatenate([xh, skip_ref[0]], axis=-1)      # (2H, 2W, Cin)

    # ---- FirstOctaveConv2ReLU --------------------------------------------------
    _write_padded(p1h, xh)
    x_h = _bn_relu(_conv3x3(p1h, w1h_ref, hh, wh), sb1h_ref)      # (4HW, out_h) f32
    _write_padded(p1l, _avgpool2(xh))
    x_l = _bn_relu(_conv3x3(p1l, w1l_ref, hl, wl), sb1l_ref)      # (HW,  out_l) f32

    # ---- OctaveConv2ReLU --------------------------------------------------------
    x_h3 = x_h.reshape(hh, wh, out_h)                             # f32

    # Low-res X_l branch: l2h & l2l share the same padded input / patches, so they are
    # one matmul with stacked output columns [l2h | l2l]  (no structural-zero block).
    _write_padded(p2xl, x_l.reshape(hl, wl, out_l))
    acc_lo = _conv3x3(p2xl, w2lo_ref, hl, wl)                     # (HW, out_h + out_l)
    l2h = acc_lo[:, :out_h]                                       # raw, feeds Y_h

    # Low-res h2l branch: conv over pool(X_h), accumulated straight into the l2l columns.
    _write_padded(p2xh, _avgpool2(x_h3))
    y_l_pre = _conv3x3(p2xh, w2hl_ref, hl, wl, acc=acc_lo[:, out_h:])
    y_l = _bn_relu(y_l_pre, sb2l_ref)                             # (HW, out_l)
    # Lane-dense NCHW-flat store: (out_l, H*W), bf16.
    yl_ref[0] = jnp.transpose(y_l, (1, 0)).astype(yl_ref.dtype)

    # High-res branch: Y_h = ReLU(BN(conv_h2h(X_h) + up2(l2h))); the upsampled l2h seeds
    # the conv accumulator, so the residual add is folded into the matmul accumulation.
    _write_padded(p2h, x_h3)
    l2h_up = _upsample2(l2h.reshape(hl, wl, out_h)).reshape(hh * wh, out_h)
    acc_hi = _conv3x3(p2h, w2h_ref, hh, wh, acc=l2h_up)           # (4HW, out_h)
    y_h = _bn_relu(acc_hi, sb2h_ref)
    yh_ref[0] = jnp.transpose(y_h, (1, 0)).astype(yh_ref.dtype)   # (out_h, 4*H*W)


# ----------------------------------------------------------------------------
# One-time parameter packing (hoisted out of the per-call path).
# ----------------------------------------------------------------------------
def pack_params(params, compute_dtype=jnp.bfloat16):
    """Pack conv weights HWIO (3,3,ci,co) -> matmul-ready (9*ci, co) bf16 and fold BN.
    Call ONCE at parameter-load time; do not rebuild inside every forward."""
    def pack(wt):
        wt = jnp.asarray(wt)
        return wt.reshape(9 * wt.shape[2], wt.shape[3]).astype(compute_dtype)

    def sb(s, b):
        return jnp.stack([jnp.asarray(s), jnp.asarray(b)]).astype(jnp.float32)

    out_h = params["w1_h2h"].shape[-1]
    out_l = params["w1_h2l"].shape[-1]
    # l2h & l2l share X_l as input: fuse output columns [l2h | l2l] (no zero block).
    w2_lo = jnp.concatenate([params["w2_l2h"], params["w2_l2l"]], axis=-1)
    return {
        "out_h": out_h, "out_l": out_l,
        "w1_h": pack(params["w1_h2h"]), "w1_l": pack(params["w1_h2l"]),
        "w2_h": pack(params["w2_h2h"]), "w2_lo": pack(w2_lo), "w2_hl": pack(params["w2_h2l"]),
        "sb1_h": sb(params["s1_h"], params["b1_h"]), "sb1_l": sb(params["s1_l"], params["b1_l"]),
        "sb2_h": sb(params["s2_h"], params["b2_h"]), "sb2_l": sb(params["s2_l"], params["b2_l"]),
    }


# ----------------------------------------------------------------------------
# Wrapper: NCHW boundary, pallas_call.
# ----------------------------------------------------------------------------
def _nbytes(shape, dtype):
    return math.prod(shape) * np.dtype(dtype).itemsize


def first_octave_decoder_block(x, skip, packed, *, compute_dtype=jnp.bfloat16,
                               out_dtype=jnp.bfloat16):
    """x: (N, Cx, H, W) NCHW; skip: (N, Cskip, 2H, 2W) NCHW or None.
    Returns (Y_h, Y_l) NCHW: (N, out_h, 2H, 2W), (N, out_l, H, W) in `out_dtype`."""
    n, cx, h, w = x.shape
    out_h, out_l = packed["out_h"], packed["out_l"]
    has_skip = skip is not None
    h2, w2 = 2 * h, 2 * w

    # TODO(synk): in a full decoder keep activations NHWC between blocks and drop these
    # boundary transposes (each is an extra HBM round trip outside the fused kernel).
    x_nhwc = jnp.transpose(x, (0, 2, 3, 1)).astype(compute_dtype)
    inputs = [x_nhwc]
    in_specs = [pl.BlockSpec((1, h, w, cx), lambda i: (i, 0, 0, 0))]
    blk_bytes = _nbytes((1, h, w, cx), compute_dtype)
    cin = cx
    if has_skip:
        _, cs, h2s, w2s = skip.shape
        assert (h2s, w2s) == (h2, w2), "skip must be at 2x resolution"
        skip_nhwc = jnp.transpose(skip, (0, 2, 3, 1)).astype(compute_dtype)
        inputs.append(skip_nhwc)
        in_specs.append(pl.BlockSpec((1, h2, w2, cs), lambda i: (i, 0, 0, 0)))
        blk_bytes += _nbytes((1, h2, w2, cs), compute_dtype)
        cin += cs

    # Constant operands (weights + folded BN). TODO(synk): pipeline_mode=pl.Buffered(1)
    # on these specs would drop their second pipeline copy from VMEM.
    consts = [packed["w1_h"], packed["w1_l"], packed["w2_h"], packed["w2_lo"], packed["w2_hl"],
              packed["sb1_h"], packed["sb1_l"], packed["sb2_h"], packed["sb2_l"]]
    inputs += consts
    in_specs += [pl.BlockSpec(c.shape, lambda i: (0, 0)) for c in consts]
    blk_bytes += sum(_nbytes(tuple(c.shape), c.dtype) for c in consts)

    # NCHW-flat, lane-dense, bf16 outputs (wrapper reshape to NCHW is free).
    out_shape = (jax.ShapeDtypeStruct((n, out_h, h2 * w2), out_dtype),
                 jax.ShapeDtypeStruct((n, out_l, h * w), out_dtype))
    out_specs = (pl.BlockSpec((1, out_h, h2 * w2), lambda i: (i, 0, 0)),
                 pl.BlockSpec((1, out_l, h * w), lambda i: (i, 0, 0)))
    blk_bytes += _nbytes((1, out_h, h2 * w2), out_dtype) + _nbytes((1, out_l, h * w), out_dtype)

    scratch_defs = [
        ((h2 + 2, w2 + 2, cin), compute_dtype),    # padded up(x) ++ skip
        ((h + 2, w + 2, cin), compute_dtype),      # padded pool(up(x) ++ skip)
        ((h2 + 2, w2 + 2, out_h), compute_dtype),  # padded X_h
        ((h + 2, w + 2, out_l), compute_dtype),    # padded X_l
        ((h + 2, w + 2, out_h), compute_dtype),    # padded pool(X_h)
    ]
    scratch_shapes = [pltpu.VMEM(s, d) for s, d in scratch_defs]
    scratch_bytes = sum(_nbytes(s, d) for s, d in scratch_defs)

    # VMEM budget from the actual buffer set (2x double-buffered blocks + scratch), with
    # headroom for conv taps / f32 accumulators, clamped to the chip's physical VMEM.
    try:
        vmem_cap = int(pltpu.get_tpu_info().vmem_capacity_bytes)
    except Exception:
        vmem_cap = 128 * 1024 * 1024
    vmem_limit = int(min(int(0.8 * vmem_cap),
                         max(32 * 1024 * 1024,
                             2 * (2 * blk_bytes + scratch_bytes) + (8 << 20))))

    kernel = functools.partial(_octave_block_kernel, has_skip=has_skip)
    # TODO(synk): for large decoder resolutions on v7x (64 MiB VMEM), add a second
    # parallel grid axis over high-res row strips (1-row halo) so the per-step working
    # set shrinks and both TensorCores get work even at N=1.
    y_h, y_l = pl.pallas_call(
        kernel,
        out_shape=out_shape,
        grid=(n,),
        in_specs=in_specs,
        out_specs=out_specs,
        scratch_shapes=scratch_shapes,
        compiler_params=pltpu.CompilerParams(
            dimension_semantics=("parallel",),
            vmem_limit_bytes=vmem_limit,
        ),
    )(*inputs)

    # NCHW-flat -> NCHW is a pure (free) reshape; no post-kernel transpose.
    return y_h.reshape(n, out_h, h2, w2), y_l.reshape(n, out_l, h, w)


# ----------------------------------------------------------------------------
# Pure-JAX f32 reference (for the in-script self-check).
# ----------------------------------------------------------------------------
def _reference_block(x, skip, params):
    conv = lambda t, wt: jax.lax.conv_general_dilated(
        t, wt, (1, 1), "SAME", dimension_numbers=("NHWC", "HWIO", "NHWC"))
    pool = lambda t: t.reshape(t.shape[0], t.shape[1] // 2, 2,
                               t.shape[2] // 2, 2, t.shape[3]).mean(axis=(2, 4))
    up = lambda t: jnp.repeat(jnp.repeat(t, 2, axis=1), 2, axis=2)
    bn = lambda t, s, b: t * s + b

    xh = up(jnp.transpose(x, (0, 2, 3, 1)).astype(jnp.float32))
    if skip is not None:
        xh = jnp.concatenate(
            [xh, jnp.transpose(skip, (0, 2, 3, 1)).astype(jnp.float32)], axis=-1)
    x_h = jax.nn.relu(bn(conv(xh, params["w1_h2h"]), params["s1_h"], params["b1_h"]))
    x_l = jax.nn.relu(bn(conv(pool(xh), params["w1_h2l"]), params["s1_l"], params["b1_l"]))
    y_h = jax.nn.relu(bn(conv(x_h, params["w2_h2h"]) + up(conv(x_l, params["w2_l2h"])),
                         params["s2_h"], params["b2_h"]))
    y_l = jax.nn.relu(bn(conv(pool(x_h), params["w2_h2l"]) + conv(x_l, params["w2_l2l"]),
                         params["s2_l"], params["b2_l"]))
    return jnp.transpose(y_h, (0, 3, 1, 2)), jnp.transpose(y_l, (0, 3, 1, 2))


# ----------------------------------------------------------------------------
# Deterministic parameter init (shapes follow the PyTorch module, alpha=0.5).
# ----------------------------------------------------------------------------
def init_params(key, in_channels, out_channels, alpha=0.5):
    out_l = int(alpha * out_channels)
    out_h = out_channels - out_l
    in_l, in_h = out_l, out_h
    keys = jax.random.split(key, 10)

    def conv_w(k, cout, cin):
        wt = jax.random.normal(k, (cout, cin, 3, 3), jnp.float32) / jnp.sqrt(cin * 9.0)
        return jnp.transpose(wt, (2, 3, 1, 0))       # OIHW -> HWIO

    def bn(k, c, eps=1e-5):
        kg, kb = jax.random.split(k)
        gamma = 1.0 + 0.1 * jax.random.normal(kg, (c,), jnp.float32)
        beta = 0.1 * jax.random.normal(kb, (c,), jnp.float32)
        mean = jnp.zeros((c,), jnp.float32)
        var = jnp.ones((c,), jnp.float32)
        scale = gamma / jnp.sqrt(var + eps)
        return scale, beta - mean * scale

    p = {}
    p["w1_h2h"] = conv_w(keys[0], out_h, in_channels)
    p["w1_h2l"] = conv_w(keys[1], out_l, in_channels)
    p["s1_h"], p["b1_h"] = bn(keys[2], out_h)
    p["s1_l"], p["b1_l"] = bn(keys[3], out_l)
    p["w2_h2h"] = conv_w(keys[4], out_h, in_h)
    p["w2_l2h"] = conv_w(keys[5], out_h, in_l)
    p["w2_h2l"] = conv_w(keys[6], out_l, in_h)
    p["w2_l2l"] = conv_w(keys[7], out_l, in_l)
    p["s2_h"], p["b2_h"] = bn(keys[8], out_h)
    p["s2_l"], p["b2_l"] = bn(keys[9], out_l)
    return p


if __name__ == "__main__":
    key = jax.random.PRNGKey(0)
    kx, ks, kp = jax.random.split(key, 3)

    n, c_x, h, w = 2, 4, 8, 8        # low-res decoder input
    c_skip = 4                       # skip connection at 2x resolution
    out_channels = 8
    in_channels = c_x + c_skip

    x = jax.random.normal(kx, (n, c_x, h, w), jnp.float32)
    skip = jax.random.normal(ks, (n, c_skip, 2 * h, 2 * w), jnp.float32)
    params = init_params(kp, in_channels, out_channels)
    packed = pack_params(params)     # packed ONCE, not per forward (hoisted per review)

    fwd = jax.jit(lambda a, b: first_octave_decoder_block(a, b, packed))
    y_h, y_l = fwd(x, skip)
    jax.block_until_ready((y_h, y_l))

    out_l = out_channels // 2
    out_h = out_channels - out_l
    assert y_h.shape == (n, out_h, 2 * h, 2 * w), y_h.shape
    assert y_l.shape == (n, out_l, h, w), y_l.shape
    assert bool(jnp.all(jnp.isfinite(y_h))) and bool(jnp.all(jnp.isfinite(y_l)))

    # Self-check against a pure-JAX f32 reference (kernel uses bf16 MXU inputs and bf16
    # outputs, so allow a generous absolute tolerance; structural bugs give O(1) errors).
    ref_h, ref_l = _reference_block(x, skip, params)
    err_h = float(jnp.max(jnp.abs(y_h.astype(jnp.float32) - ref_h)))
    err_l = float(jnp.max(jnp.abs(y_l.astype(jnp.float32) - ref_l)))
    assert err_h < 0.35 and err_l < 0.35, (err_h, err_l)

    print("KERNEL_OK")
</pallas_src>

<mosaic_0001>
module attributes {stable_mosaic.version = 11 : i64} {
  func.func @_octave_block_kernel(%arg0: i32, %arg1: memref<1x8x8x4xbf16, #tpu.memory_space<vmem>>, %arg2: memref<1x16x16x4xbf16, #tpu.memory_space<vmem>>, %arg3: memref<72x4xbf16, #tpu.memory_space<vmem>>, %arg4: memref<72x4xbf16, #tpu.memory_space<vmem>>, %arg5: memref<36x4xbf16, #tpu.memory_space<vmem>>, %arg6: memref<36x8xbf16, #tpu.memory_space<vmem>>, %arg7: memref<36x4xbf16, #tpu.memory_space<vmem>>, %arg8: memref<2x4xf32, #tpu.memory_space<vmem>>, %arg9: memref<2x4xf32, #tpu.memory_space<vmem>>, %arg10: memref<2x4xf32, #tpu.memory_space<vmem>>, %arg11: memref<2x4xf32, #tpu.memory_space<vmem>>, %arg12: memref<1x4x256xbf16, #tpu.memory_space<vmem>>, %arg13: memref<1x4x64xbf16, #tpu.memory_space<vmem>>, %arg14: memref<18x18x8xbf16, #tpu.memory_space<vmem>>, %arg15: memref<10x10x8xbf16, #tpu.memory_space<vmem>>, %arg16: memref<18x18x4xbf16, #tpu.memory_space<vmem>>, %arg17: memref<10x10x4xbf16, #tpu.memory_space<vmem>>, %arg18: memref<10x10x4xbf16, #tpu.memory_space<vmem>>) attributes {dimension_semantics = [#tpu.dimension_semantics<parallel>], iteration_bounds = array<i64: 2>, scalar_prefetch = 0 : i64, scratch_operands = 5 : i64, tpu.core_type = #tpu.core_type<tc>, window_params = [{transform_indices = @transform_0, window_bounds = array<i64: 1, 8, 8, 4>}, {transform_indices = @transform_1, window_bounds = array<i64: 1, 16, 16, 4>}, {pipeline_mode = #tpu.pipeline_mode<synchronous>, transform_indices = @transform_2, window_bounds = array<i64: 72, 4>}, {pipeline_mode = #tpu.pipeline_mode<synchronous>, transform_indices = @transform_3, window_bounds = array<i64: 72, 4>}, {pipeline_mode = #tpu.pipeline_mode<synchronous>, transform_indices = @transform_4, window_bounds = array<i64: 36, 4>}, {pipeline_mode = #tpu.pipeline_mode<synchronous>, transform_indices = @transform_5, window_bounds = array<i64: 36, 8>}, {pipeline_mode = #tpu.pipeline_mode<synchronous>, transform_indices = @transform_6, window_bounds = array<i64: 36, 4>}, {pipeline_mode = #tpu.pipeline_mode<synchronous>, transform_indices = @transform_7, window_bounds = array<i64: 2, 4>}, {pipeline_mode = #tpu.pipeline_mode<synchronous>, transform_indices = @transform_8, window_bounds = array<i64: 2, 4>}, {pipeline_mode = #tpu.pipeline_mode<synchronous>, transform_indices = @transform_9, window_bounds = array<i64: 2, 4>}, {pipeline_mode = #tpu.pipeline_mode<synchronous>, transform_indices = @transform_10, window_bounds = array<i64: 2, 4>}, {transform_indices = @transform_11, window_bounds = array<i64: 1, 4, 256>}, {transform_indices = @transform_12, window_bounds = array<i64: 1, 4, 64>}]} {
    %c0 = arith.constant 0 : index
    %c0_0 = arith.constant 0 : index
    %c0_1 = arith.constant 0 : index
    %c0_2 = arith.constant 0 : index
    %0 = vector.load %arg1[%c0, %c0_0, %c0_1, %c0_2] : memref<1x8x8x4xbf16, #tpu.memory_space<vmem>>, vector<1x8x8x4xbf16>
    %1 = vector.shape_cast %0 : vector<1x8x8x4xbf16> to vector<8x8x4xbf16>
    %2 = vector.shape_cast %1 : vector<8x8x4xbf16> to vector<8x1x8x4xbf16>
    %3 = vector.shape_cast %2 : vector<8x1x8x4xbf16> to vector<8x1x8x4xbf16>
    %4 = vector.broadcast %3 : vector<8x1x8x4xbf16> to vector<8x2x8x4xbf16>
    %5 = vector.shape_cast %4 : vector<8x2x8x4xbf16> to vector<16x8x4xbf16>
    %6 = vector.shape_cast %5 : vector<16x8x4xbf16> to vector<16x8x1x4xbf16>
    %7 = vector.shape_cast %6 : vector<16x8x1x4xbf16> to vector<16x8x1x4xbf16>
    %8 = vector.broadcast %7 : vector<16x8x1x4xbf16> to vector<16x8x2x4xbf16>
    %9 = vector.shape_cast %8 : vector<16x8x2x4xbf16> to vector<16x16x4xbf16>
    %c0_3 = arith.constant 0 : index
    %c0_4 = arith.constant 0 : index
    %c0_5 = arith.constant 0 : index
    %c0_6 = arith.constant 0 : index
    %10 = vector.load %arg2[%c0_3, %c0_4, %c0_5, %c0_6] : memref<1x16x16x4xbf16, #tpu.memory_space<vmem>>, vector<1x16x16x4xbf16>
    %11 = vector.shape_cast %10 : vector<1x16x16x4xbf16> to vector<16x16x4xbf16>
    %12 = tpu.concatenate %9, %11 in 2 : vector<16x16x4xbf16>, vector<16x16x4xbf16> -> vector<16x16x8xbf16>
    %cst = arith.constant 0.000000e+00 : bf16
    %13 = vector.broadcast %cst : bf16 to vector<1x18x8xbf16>
    %cst_7 = arith.constant 0.000000e+00 : bf16
    %14 = vector.broadcast %cst_7 : bf16 to vector<16x1x8xbf16>
    %c0_8 = arith.constant 0 : index
    %c0_9 = arith.constant 0 : index
    %c0_10 = arith.constant 0 : index
    %15 = vector.load %arg14[%c0_8, %c0_9, %c0_10] : memref<18x18x8xbf16, #tpu.memory_space<vmem>>, vector<1x18x8xbf16>
    tpu.vector_store %arg14[%c0_8, %c0_9, %c0_10], %13 {strides = array<i32>} : memref<18x18x8xbf16, #tpu.memory_space<vmem>>, vector<1x18x8xbf16>,
    %c17 = arith.constant 17 : index
    %c0_11 = arith.constant 0 : index
    %c0_12 = arith.constant 0 : index
    %16 = vector.load %arg14[%c17, %c0_11, %c0_12] : memref<18x18x8xbf16, #tpu.memory_space<vmem>>, vector<1x18x8xbf16>
    tpu.vector_store %arg14[%c17, %c0_11, %c0_12], %13 {strides = array<i32>} : memref<18x18x8xbf16, #tpu.memory_space<vmem>>, vector<1x18x8xbf16>,
    %c1 = arith.constant 1 : index
    %c0_13 = arith.constant 0 : index
    %c0_14 = arith.constant 0 : index
    %17 = vector.load %arg14[%c1, %c0_13, %c0_14] : memref<18x18x8xbf16, #tpu.memory_space<vmem>>, vector<16x1x8xbf16>
    tpu.vector_store %arg14[%c1, %c0_13, %c0_14], %14 {strides = array<i32>} : memref<18x18x8xbf16, #tpu.memory_space<vmem>>, vector<16x1x8xbf16>,
    %c1_15 = arith.constant 1 : index
    %c17_16 = arith.constant 17 : index
    %c0_17 = arith.constant 0 : index
    %18 = vector.load %arg14[%c1_15, %c17_16, %c0_17] : memref<18x18x8xbf16, #tpu.memory_space<vmem>>, vector<16x1x8xbf16>
    tpu.vector_store %arg14[%c1_15, %c17_16, %c0_17], %14 {strides = array<i32>} : memref<18x18x8xbf16, #tpu.memory_space<vmem>>, vector<16x1x8xbf16>,
    %c1_18 = arith.constant 1 : index
    %c1_19 = arith.constant 1 : index
    %c0_20 = arith.constant 0 : index
    %19 = vector.load %arg14[%c1_18, %c1_19, %c0_20] : memref<18x18x8xbf16, #tpu.memory_space<vmem>>, vector<16x16x8xbf16>
    tpu.vector_store %arg14[%c1_18, %c1_19, %c0_20], %12 {strides = array<i32>} : memref<18x18x8xbf16, #tpu.memory_space<vmem>>, vector<16x16x8xbf16>,
    %cst_21 = arith.constant 0.000000e+00 : f32
    %20 = vector.broadcast %cst_21 : f32 to vector<256x4xf32>
    %c0_22 = arith.constant 0 : index
    %c0_23 = arith.constant 0 : index
    %c0_24 = arith.constant 0 : index
    %21 = vector.load %arg14[%c0_22, %c0_23, %c0_24] : memref<18x18x8xbf16, #tpu.memory_space<vmem>>, vector<16x18x8xbf16>
    %22 = vector.extract_strided_slice %21 {offsets = [0, 0, 0], sizes = [16, 16, 8], strides = [1, 1, 1]} : vector<16x18x8xbf16> to vector<16x16x8xbf16>
    %23 = vector.extract_strided_slice %21 {offsets = [0, 1, 0], sizes = [16, 16, 8], strides = [1, 1, 1]} : vector<16x18x8xbf16> to vector<16x16x8xbf16>
    %24 = vector.extract_strided_slice %21 {offsets = [0, 2, 0], sizes = [16, 16, 8], strides = [1, 1, 1]} : vector<16x18x8xbf16> to vector<16x16x8xbf16>
    %25 = tpu.concatenate %22, %23, %24 in 2 : vector<16x16x8xbf16>, vector<16x16x8xbf16>, vector<16x16x8xbf16> -> vector<16x16x24xbf16>
    %26 = vector.shape_cast %25 : vector<16x16x24xbf16> to vector<256x24xbf16>
    %c0_25 = arith.constant 0 : index
    %c0_26 = arith.constant 0 : index
    %27 = vector.load %arg3[%c0_25, %c0_26] : memref<72x4xbf16, #tpu.memory_space<vmem>>, vector<24x4xbf16>
    %cst_27 = arith.constant dense<0.000000e+00> : vector<256x4xf32>
    %28 = tpu.matmul %26, %27, %cst_27 {dimension_numbers = #tpu.dot_dimension_numbers<[1], [0], [0], [1], [0, 0, 1, 1], [], []>} : vector<256x24xbf16>, vector<24x4xbf16>, vector<256x4xf32> -> vector<256x4xf32>
    %29 = arith.addf %20, %28 : vector<256x4xf32>
    %c1_28 = arith.constant 1 : index
    %c0_29 = arith.constant 0 : index
    %c0_30 = arith.constant 0 : index
    %30 = vector.load %arg14[%c1_28, %c0_29, %c0_30] : memref<18x18x8xbf16, #tpu.memory_space<vmem>>, vector<16x18x8xbf16>
    %31 = vector.extract_strided_slice %30 {offsets = [0, 0, 0], sizes = [16, 16, 8], strides = [1, 1, 1]} : vector<16x18x8xbf16> to vector<16x16x8xbf16>
    %32 = vector.extract_strided_slice %30 {offsets = [0, 1, 0], sizes = [16, 16, 8], strides = [1, 1, 1]} : vector<16x18x8xbf16> to vector<16x16x8xbf16>
    %33 = vector.extract_strided_slice %30 {offsets = [0, 2, 0], sizes = [16, 16, 8], strides = [1, 1, 1]} : vector<16x18x8xbf16> to vector<16x16x8xbf16>
    %34 = tpu.concatenate %31, %32, %33 in 2 : vector<16x16x8xbf16>, vector<16x16x8xbf16>, vector<16x16x8xbf16> -> vector<16x16x24xbf16>
    %35 = vector.shape_cast %34 : vector<16x16x24xbf16> to vector<256x24xbf16>
    %c24 = arith.constant 24 : index
    %c0_31 = arith.constant 0 : index
    %36 = vector.load %arg3[%c24, %c0_31] : memref<72x4xbf16, #tpu.memory_space<vmem>>, vector<24x4xbf16>
    %cst_32 = arith.constant dense<0.000000e+00> : vector<256x4xf32>
    %37 = tpu.matmul %35, %36, %cst_32 {dimension_numbers = #tpu.dot_dimension_numbers<[1], [0], [0], [1], [0, 0, 1, 1], [], []>} : vector<256x24xbf16>, vector<24x4xbf16>, vector<256x4xf32> -> vector<256x4xf32>
    %38 = arith.addf %29, %37 : vector<256x4xf32>
    %c2 = arith.constant 2 : index
    %c0_33 = arith.constant 0 : index
    %c0_34 = arith.constant 0 : index
    %39 = vector.load %arg14[%c2, %c0_33, %c0_34] : memref<18x18x8xbf16, #tpu.memory_space<vmem>>, vector<16x18x8xbf16>
    %40 = vector.extract_strided_slice %39 {offsets = [0, 0, 0], sizes = [16, 16, 8], strides = [1, 1, 1]} : vector<16x18x8xbf16> to vector<16x16x8xbf16>
    %41 = vector.extract_strided_slice %39 {offsets = [0, 1, 0], sizes = [16, 16, 8], strides = [1, 1, 1]} : vector<16x18x8xbf16> to vector<16x16x8xbf16>
    %42 = vector.extract_strided_slice %39 {offsets = [0, 2, 0], sizes = [16, 16, 8], strides = [1, 1, 1]} : vector<16x18x8xbf16> to vector<16x16x8xbf16>
    %43 = tpu.concatenate %40, %41, %42 in 2 : vector<16x16x8xbf16>, vector<16x16x8xbf16>, vector<16x16x8xbf16> -> vector<16x16x24xbf16>
    %44 = vector.shape_cast %43 : vector<16x16x24xbf16> to vector<256x24xbf16>
    %c48 = arith.constant 48 : index
    %c0_35 = arith.constant 0 : index
    %45 = vector.load %arg3[%c48, %c0_35] : memref<72x4xbf16, #tpu.memory_space<vmem>>, vector<24x4xbf16>
    %cst_36 = arith.constant dense<0.000000e+00> : vector<256x4xf32>
    %46 = tpu.matmul %44, %45, %cst_36 {dimension_numbers = #tpu.dot_dimension_numbers<[1], [0], [0], [1], [0, 0, 1, 1], [], []>} : vector<256x24xbf16>, vector<24x4xbf16>, vector<256x4xf32> -> vector<256x4xf32>
    %47 = arith.addf %38, %46 : vector<256x4xf32>
    %c0_37 = arith.constant 0 : index
    %c0_38 = arith.constant 0 : index
    %48 = vector.load %arg8[%c0_37, %c0_38] : memref<2x4xf32, #tpu.memory_space<vmem>>, vector<1x4xf32>
    %49 = vector.broadcast %48 : vector<1x4xf32> to vector<256x4xf32>
    %50 = arith.mulf %47, %49 : vector<256x4xf32>
    %c1_39 = arith.constant 1 : index
    %c0_40 = arith.constant 0 : index
    %51 = vector.load %arg8[%c1_39, %c0_40] : memref<2x4xf32, #tpu.memory_space<vmem>>, vector<1x4xf32>
    %52 = vector.broadcast %51 : vector<1x4xf32> to vector<256x4xf32>
    %53 = arith.addf %50, %52 : vector<256x4xf32>
    %cst_41 = arith.constant 0.000000e+00 : f32
    %54 = vector.broadcast %cst_41 : f32 to vector<256x4xf32>
    %55 = arith.maximumf %53, %54 : vector<256x4xf32>
    %56 = arith.extf %12 : vector<16x16x8xbf16> to vector<16x16x8xf32>
    %57 = vector.shape_cast %56 : vector<16x16x8xf32> to vector<8x2x16x8xf32>
    %58 = vector.extract_strided_slice %57 {offsets = [0, 0, 0, 0], sizes = [8, 1, 16, 8], strides = [1, 1, 1, 1]} : vector<8x2x16x8xf32> to vector<8x1x16x8xf32>
    %59 = vector.shape_cast %58 : vector<8x1x16x8xf32> to vector<8x16x8xf32>
    %60 = vector.extract_strided_slice %57 {offsets = [0, 1, 0, 0], sizes = [8, 1, 16, 8], strides = [1, 1, 1, 1]} : vector<8x2x16x8xf32> to vector<8x1x16x8xf32>
    %61 = vector.shape_cast %60 : vector<8x1x16x8xf32> to vector<8x16x8xf32>
    %62 = arith.addf %59, %61 : vector<8x16x8xf32>
    %63 = vector.shape_cast %62 : vector<8x16x8xf32> to vector<8x8x2x8xf32>
    %64 = vector.extract_strided_slice %63 {offsets = [0, 0, 0, 0], sizes = [8, 8, 1, 8], strides = [1, 1, 1, 1]} : vector<8x8x2x8xf32> to vector<8x8x1x8xf32>
    %65 = vector.extract_strided_slice %63 {offsets = [0, 0, 1, 0], sizes = [8, 8, 1, 8], strides = [1, 1, 1, 1]} : vector<8x8x2x8xf32> to vector<8x8x1x8xf32>
    %66 = arith.addf %64, %65 : vector<8x8x1x8xf32>
    %67 = vector.shape_cast %66 : vector<8x8x1x8xf32> to vector<8x8x8xf32>
    %cst_42 = arith.constant 2.500000e-01 : f32
    %68 = vector.broadcast %cst_42 : f32 to vector<8x8x8xf32>
    %69 = arith.mulf %67, %68 : vector<8x8x8xf32>
    %cst_43 = arith.constant 0.000000e+00 : bf16
    %70 = vector.broadcast %cst_43 : bf16 to vector<1x10x8xbf16>
    %cst_44 = arith.constant 0.000000e+00 : bf16
    %71 = vector.broadcast %cst_44 : bf16 to vector<8x1x8xbf16>
    %c0_45 = arith.constant 0 : index
    %c0_46 = arith.constant 0 : index
    %c0_47 = arith.constant 0 : index
    %72 = vector.load %arg15[%c0_45, %c0_46, %c0_47] : memref<10x10x8xbf16, #tpu.memory_space<vmem>>, vector<1x10x8xbf16>
    tpu.vector_store %arg15[%c0_45, %c0_46, %c0_47], %70 {strides = array<i32>} : memref<10x10x8xbf16, #tpu.memory_space<vmem>>, vector<1x10x8xbf16>,
    %c9 = arith.constant 9 : index
    %c0_48 = arith.constant 0 : index
    %c0_49 = arith.constant 0 : index
    %73 = vector.load %arg15[%c9, %c0_48, %c0_49] : memref<10x10x8xbf16, #tpu.memory_space<vmem>>, vector<1x10x8xbf16>
    tpu.vector_store %arg15[%c9, %c0_48, %c0_49], %70 {strides = array<i32>} : memref<10x10x8xbf16, #tpu.memory_space<vmem>>, vector<1x10x8xbf16>,
    %c1_50 = arith.constant 1 : index
    %c0_51 = arith.constant 0 : index
    %c0_52 = arith.constant 0 : index
    %74 = vector.load %arg15[%c1_50, %c0_51, %c0_52] : memref<10x10x8xbf16, #tpu.memory_space<vmem>>, vector<8x1x8xbf16>
    tpu.vector_store %arg15[%c1_50, %c0_51, %c0_52], %71 {strides = array<i32>} : memref<10x10x8xbf16, #tpu.memory_space<vmem>>, vector<8x1x8xbf16>,
    %c1_53 = arith.constant 1 : index
    %c9_54 = arith.constant 9 : index
    %c0_55 = arith.constant 0 : index
    %75 = vector.load %arg15[%c1_53, %c9_54, %c0_55] : memref<10x10x8xbf16, #tpu.memory_space<vmem>>, vector<8x1x8xbf16>
    tpu.vector_store %arg15[%c1_53, %c9_54, %c0_55], %71 {strides = array<i32>} : memref<10x10x8xbf16, #tpu.memory_space<vmem>>, vector<8x1x8xbf16>,
    %76 = arith.truncf %69 : vector<8x8x8xf32> to vector<8x8x8xbf16>
    %c1_56 = arith.constant 1 : index
    %c1_57 = arith.constant 1 : index
    %c0_58 = arith.constant 0 : index
    %77 = vector.load %arg15[%c1_56, %c1_57, %c0_58] : memref<10x10x8xbf16, #tpu.memory_space<vmem>>, vector<8x8x8xbf16>
    tpu.vector_store %arg15[%c1_56, %c1_57, %c0_58], %76 {strides = array<i32>} : memref<10x10x8xbf16, #tpu.memory_space<vmem>>, vector<8x8x8xbf16>,
    %cst_59 = arith.constant 0.000000e+00 : f32
    %78 = vector.broadcast %cst_59 : f32 to vector<64x4xf32>
    %c0_60 = arith.constant 0 : index
    %c0_61 = arith.constant 0 : index
    %c0_62 = arith.constant 0 : index
    %79 = vector.load %arg15[%c0_60, %c0_61, %c0_62] : memref<10x10x8xbf16, #tpu.memory_space<vmem>>, vector<8x10x8xbf16>
    %80 = vector.extract_strided_slice %79 {offsets = [0, 0, 0], sizes = [8, 8, 8], strides = [1, 1, 1]} : vector<8x10x8xbf16> to vector<8x8x8xbf16>
    %81 = vector.extract_strided_slice %79 {offsets = [0, 1, 0], sizes = [8, 8, 8], strides = [1, 1, 1]} : vector<8x10x8xbf16> to vector<8x8x8xbf16>
    %82 = vector.extract_strided_slice %79 {offsets = [0, 2, 0], sizes = [8, 8, 8], strides = [1, 1, 1]} : vector<8x10x8xbf16> to vector<8x8x8xbf16>
    %83 = tpu.concatenate %80, %81, %82 in 2 : vector<8x8x8xbf16>, vector<8x8x8xbf16>, vector<8x8x8xbf16> -> vector<8x8x24xbf16>
    %84 = vector.shape_cast %83 : vector<8x8x24xbf16> to vector<64x24xbf16>
    %c0_63 = arith.constant 0 : index
    %c0_64 = arith.constant 0 : index
    %85 = vector.load %arg4[%c0_63, %c0_64] : memref<72x4xbf16, #tpu.memory_space<vmem>>, vector<24x4xbf16>
    %cst_65 = arith.constant dense<0.000000e+00> : vector<64x4xf32>
    %86 = tpu.matmul %84, %85, %cst_65 {dimension_numbers = #tpu.dot_dimension_numbers<[1], [0], [0], [1], [0, 0, 1, 1], [], []>} : vector<64x24xbf16>, vector<24x4xbf16>, vector<64x4xf32> -> vector<64x4xf32>
    %87 = arith.addf %78, %86 : vector<64x4xf32>
    %c1_66 = arith.constant 1 : index
    %c0_67 = arith.constant 0 : index
    %c0_68 = arith.constant 0 : index
    %88 = vector.load %arg15[%c1_66, %c0_67, %c0_68] : memref<10x10x8xbf16, #tpu.memory_space<vmem>>, vector<8x10x8xbf16>
    %89 = vector.extract_strided_slice %88 {offsets = [0, 0, 0], sizes = [8, 8, 8], strides = [1, 1, 1]} : vector<8x10x8xbf16> to vector<8x8x8xbf16>
    %90 = vector.extract_strided_slice %88 {offsets = [0, 1, 0], sizes = [8, 8, 8], strides = [1, 1, 1]} : vector<8x10x8xbf16> to vector<8x8x8xbf16>
    %91 = vector.extract_strided_slice %88 {offsets = [0, 2, 0], sizes = [8, 8, 8], strides = [1, 1, 1]} : vector<8x10x8xbf16> to vector<8x8x8xbf16>
    %92 = tpu.concatenate %89, %90, %91 in 2 : vector<8x8x8xbf16>, vector<8x8x8xbf16>, vector<8x8x8xbf16> -> vector<8x8x24xbf16>
    %93 = vector.shape_cast %92 : vector<8x8x24xbf16> to vector<64x24xbf16>
    %c24_69 = arith.constant 24 : index
    %c0_70 = arith.constant 0 : index
    %94 = vector.load %arg4[%c24_69, %c0_70] : memref<72x4xbf16, #tpu.memory_space<vmem>>, vector<24x4xbf16>
    %cst_71 = arith.constant dense<0.000000e+00> : vector<64x4xf32>
    %95 = tpu.matmul %93, %94, %cst_71 {dimension_numbers = #tpu.dot_dimension_numbers<[1], [0], [0], [1], [0, 0, 1, 1], [], []>} : vector<64x24xbf16>, vector<24x4xbf16>, vector<64x4xf32> -> vector<64x4xf32>
    %96 = arith.addf %87, %95 : vector<64x4xf32>
    %c2_72 = arith.constant 2 : index
    %c0_73 = arith.constant 0 : index
    %c0_74 = arith.constant 0 : index
    %97 = vector.load %arg15[%c2_72, %c0_73, %c0_74] : memref<10x10x8xbf16, #tpu.memory_space<vmem>>, vector<8x10x8xbf16>
    %98 = vector.extract_strided_slice %97 {offsets = [0, 0, 0], sizes = [8, 8, 8], strides = [1, 1, 1]} : vector<8x10x8xbf16> to vector<8x8x8xbf16>
    %99 = vector.extract_strided_slice %97 {offsets = [0, 1, 0], sizes = [8, 8, 8], strides = [1, 1, 1]} : vector<8x10x8xbf16> to vector<8x8x8xbf16>
    %100 = vector.extract_strided_slice %97 {offsets = [0, 2, 0], sizes = [8, 8, 8], strides = [1, 1, 1]} : vector<8x10x8xbf16> to vector<8x8x8xbf16>
    %101 = tpu.concatenate %98, %99, %100 in 2 : vector<8x8x8xbf16>, vector<8x8x8xbf16>, vector<8x8x8xbf16> -> vector<8x8x24xbf16>
    %102 = vector.shape_cast %101 : vector<8x8x24xbf16> to vector<64x24xbf16>
    %c48_75 = arith.constant 48 : index
    %c0_76 = arith.constant 0 : index
    %103 = vector.load %arg4[%c48_75, %c0_76] : memref<72x4xbf16, #tpu.memory_space<vmem>>, vector<24x4xbf16>
    %cst_77 = arith.constant dense<0.000000e+00> : vector<64x4xf32>
    %104 = tpu.matmul %102, %103, %cst_77 {dimension_numbers = #tpu.dot_dimension_numbers<[1], [0], [0], [1], [0, 0, 1, 1], [], []>} : vector<64x24xbf16>, vector<24x4xbf16>, vector<64x4xf32> -> vector<64x4xf32>
    %105 = arith.addf %96, %104 : vector<64x4xf32>
    %c0_78 = arith.constant 0 : index
    %c0_79 = arith.constant 0 : index
    %106 = vector.load %arg9[%c0_78, %c0_79] : memref<2x4xf32, #tpu.memory_space<vmem>>, vector<1x4xf32>
    %107 = vector.broadcast %106 : vector<1x4xf32> to vector<64x4xf32>
    %108 = arith.mulf %105, %107 : vector<64x4xf32>
    %c1_80 = arith.constant 1 : index
    %c0_81 = arith.constant 0 : index
    %109 = vector.load %arg9[%c1_80, %c0_81] : memref<2x4xf32, #tpu.memory_space<vmem>>, vector<1x4xf32>
    %110 = vector.broadcast %109 : vector<1x4xf32> to vector<64x4xf32>
    %111 = arith.addf %108, %110 : vector<64x4xf32>
    %cst_82 = arith.constant 0.000000e+00 : f32
    %112 = vector.broadcast %cst_82 : f32 to vector<64x4xf32>
    %113 = arith.maximumf %111, %112 : vector<64x4xf32>
    %114 = vector.shape_cast %55 : vector<256x4xf32> to vector<16x16x4xf32>
    %115 = vector.shape_cast %113 : vector<64x4xf32> to vector<8x8x4xf32>
    %cst_83 = arith.constant 0.000000e+00 : bf16
    %116 = vector.broadcast %cst_83 : bf16 to vector<1x10x4xbf16>
    %cst_84 = arith.constant 0.000000e+00 : bf16
    %117 = vector.broadcast %cst_84 : bf16 to vector<8x1x4xbf16>
    %c0_85 = arith.constant 0 : index
    %c0_86 = arith.constant 0 : index
    %c0_87 = arith.constant 0 : index
    %118 = vector.load %arg17[%c0_85, %c0_86, %c0_87] : memref<10x10x4xbf16, #tpu.memory_space<vmem>>, vector<1x10x4xbf16>
    tpu.vector_store %arg17[%c0_85, %c0_86, %c0_87], %116 {strides = array<i32>} : memref<10x10x4xbf16, #tpu.memory_space<vmem>>, vector<1x10x4xbf16>,
    %c9_88 = arith.constant 9 : index
    %c0_89 = arith.constant 0 : index
    %c0_90 = arith.constant 0 : index
    %119 = vector.load %arg17[%c9_88, %c0_89, %c0_90] : memref<10x10x4xbf16, #tpu.memory_space<vmem>>, vector<1x10x4xbf16>
    tpu.vector_store %arg17[%c9_88, %c0_89, %c0_90], %116 {strides = array<i32>} : memref<10x10x4xbf16, #tpu.memory_space<vmem>>, vector<1x10x4xbf16>,
    %c1_91 = arith.constant 1 : index
    %c0_92 = arith.constant 0 : index
    %c0_93 = arith.constant 0 : index
    %120 = vector.load %arg17[%c1_91, %c0_92, %c0_93] : memref<10x10x4xbf16, #tpu.memory_space<vmem>>, vector<8x1x4xbf16>
    tpu.vector_store %arg17[%c1_91, %c0_92, %c0_93], %117 {strides = array<i32>} : memref<10x10x4xbf16, #tpu.memory_space<vmem>>, vector<8x1x4xbf16>,
    %c1_94 = arith.constant 1 : index
    %c9_95 = arith.constant 9 : index
    %c0_96 = arith.constant 0 : index
    %121 = vector.load %arg17[%c1_94, %c9_95, %c0_96] : memref<10x10x4xbf16, #tpu.memory_space<vmem>>, vector<8x1x4xbf16>
    tpu.vector_store %arg17[%c1_94, %c9_95, %c0_96], %117 {strides = array<i32>} : memref<10x10x4xbf16, #tpu.memory_space<vmem>>, vector<8x1x4xbf16>,
    %122 = arith.truncf %115 : vector<8x8x4xf32> to vector<8x8x4xbf16>
    %c1_97 = arith.constant 1 : index
    %c1_98 = arith.constant 1 : index
    %c0_99 = arith.constant 0 : index
    %123 = vector.load %arg17[%c1_97, %c1_98, %c0_99] : memref<10x10x4xbf16, #tpu.memory_space<vmem>>, vector<8x8x4xbf16>
    tpu.vector_store %arg17[%c1_97, %c1_98, %c0_99], %122 {strides = array<i32>} : memref<10x10x4xbf16, #tpu.memory_space<vmem>>, vector<8x8x4xbf16>,
    %cst_100 = arith.constant 0.000000e+00 : f32
    %124 = vector.broadcast %cst_100 : f32 to vector<64x8xf32>
    %c0_101 = arith.constant 0 : index
    %c0_102 = arith.constant 0 : index
    %c0_103 = arith.constant 0 : index
    %125 = vector.load %arg17[%c0_101, %c0_102, %c0_103] : memref<10x10x4xbf16, #tpu.memory_space<vmem>>, vector<8x10x4xbf16>
    %126 = vector.extract_strided_slice %125 {offsets = [0, 0, 0], sizes = [8, 8, 4], strides = [1, 1, 1]} : vector<8x10x4xbf16> to vector<8x8x4xbf16>
    %127 = vector.extract_strided_slice %125 {offsets = [0, 1, 0], sizes = [8, 8, 4], strides = [1, 1, 1]} : vector<8x10x4xbf16> to vector<8x8x4xbf16>
    %128 = vector.extract_strided_slice %125 {offsets = [0, 2, 0], sizes = [8, 8, 4], strides = [1, 1, 1]} : vector<8x10x4xbf16> to vector<8x8x4xbf16>
    %129 = tpu.concatenate %126, %127, %128 in 2 : vector<8x8x4xbf16>, vector<8x8x4xbf16>, vector<8x8x4xbf16> -> vector<8x8x12xbf16>
    %130 = vector.shape_cast %129 : vector<8x8x12xbf16> to vector<64x12xbf16>
    %c0_104 = arith.constant 0 : index
    %c0_105 = arith.constant 0 : index
    %131 = vector.load %arg6[%c0_104, %c0_105] : memref<36x8xbf16, #tpu.memory_space<vmem>>, vector<12x8xbf16>
    %cst_106 = arith.constant dense<0.000000e+00> : vector<64x8xf32>
    %132 = tpu.matmul %130, %131, %cst_106 {dimension_numbers = #tpu.dot_dimension_numbers<[1], [0], [0], [1], [0, 0, 1, 1], [], []>} : vector<64x12xbf16>, vector<12x8xbf16>, vector<64x8xf32> -> vector<64x8xf32>
    %133 = arith.addf %124, %132 : vector<64x8xf32>
    %c1_107 = arith.constant 1 : index
    %c0_108 = arith.constant 0 : index
    %c0_109 = arith.constant 0 : index
    %134 = vector.load %arg17[%c1_107, %c0_108, %c0_109] : memref<10x10x4xbf16, #tpu.memory_space<vmem>>, vector<8x10x4xbf16>
    %135 = vector.extract_strided_slice %134 {offsets = [0, 0, 0], sizes = [8, 8, 4], strides = [1, 1, 1]} : vector<8x10x4xbf16> to vector<8x8x4xbf16>
    %136 = vector.extract_strided_slice %134 {offsets = [0, 1, 0], sizes = [8, 8, 4], strides = [1, 1, 1]} : vector<8x10x4xbf16> to vector<8x8x4xbf16>
    %137 = vector.extract_strided_slice %134 {offsets = [0, 2, 0], sizes = [8, 8, 4], strides = [1, 1, 1]} : vector<8x10x4xbf16> to vector<8x8x4xbf16>
    %138 = tpu.concatenate %135, %136, %137 in 2 : vector<8x8x4xbf16>, vector<8x8x4xbf16>, vector<8x8x4xbf16> -> vector<8x8x12xbf16>
    %139 = vector.shape_cast %138 : vector<8x8x12xbf16> to vector<64x12xbf16>
    %c12 = arith.constant 12 : index
    %c0_110 = arith.constant 0 : index
    %140 = vector.load %arg6[%c12, %c0_110] : memref<36x8xbf16, #tpu.memory_space<vmem>>, vector<12x8xbf16>
    %cst_111 = arith.constant dense<0.000000e+00> : vector<64x8xf32>
    %141 = tpu.matmul %139, %140, %cst_111 {dimension_numbers = #tpu.dot_dimension_numbers<[1], [0], [0], [1], [0, 0, 1, 1], [], []>} : vector<64x12xbf16>, vector<12x8xbf16>, vector<64x8xf32> -> vector<64x8xf32>
    %142 = arith.addf %133, %141 : vector<64x8xf32>
    %c2_112 = arith.constant 2 : index
    %c0_113 = arith.constant 0 : index
    %c0_114 = arith.constant 0 : index
    %143 = vector.load %arg17[%c2_112, %c0_113, %c0_114] : memref<10x10x4xbf16, #tpu.memory_space<vmem>>, vector<8x10x4xbf16>
    %144 = vector.extract_strided_slice %143 {offsets = [0, 0, 0], sizes = [8, 8, 4], strides = [1, 1, 1]} : vector<8x10x4xbf16> to vector<8x8x4xbf16>
    %145 = vector.extract_strided_slice %143 {offsets = [0, 1, 0], sizes = [8, 8, 4], strides = [1, 1, 1]} : vector<8x10x4xbf16> to vector<8x8x4xbf16>
    %146 = vector.extract_strided_slice %143 {offsets = [0, 2, 0], sizes = [8, 8, 4], strides = [1, 1, 1]} : vector<8x10x4xbf16> to vector<8x8x4xbf16>
    %147 = tpu.concatenate %144, %145, %146 in 2 : vector<8x8x4xbf16>, vector<8x8x4xbf16>, vector<8x8x4xbf16> -> vector<8x8x12xbf16>
    %148 = vector.shape_cast %147 : vector<8x8x12xbf16> to vector<64x12xbf16>
    %c24_115 = arith.constant 24 : index
    %c0_116 = arith.constant 0 : index
    %149 = vector.load %arg6[%c24_115, %c0_116] : memref<36x8xbf16, #tpu.memory_space<vmem>>, vector<12x8xbf16>
    %cst_117 = arith.constant dense<0.000000e+00> : vector<64x8xf32>
    %150 = tpu.matmul %148, %149, %cst_117 {dimension_numbers = #tpu.dot_dimension_numbers<[1], [0], [0], [1], [0, 0, 1, 1], [], []>} : vector<64x12xbf16>, vector<12x8xbf16>, vector<64x8xf32> -> vector<64x8xf32>
    %151 = arith.addf %142, %150 : vector<64x8xf32>
    %152 = vector.extract_strided_slice %151 {offsets = [0, 0], sizes = [64, 4], strides = [1, 1]} : vector<64x8xf32> to vector<64x4xf32>
    %153 = vector.shape_cast %114 : vector<16x16x4xf32> to vector<8x2x16x4xf32>
    %154 = vector.extract_strided_slice %153 {offsets = [0, 0, 0, 0], sizes = [8, 1, 16, 4], strides = [1, 1, 1, 1]} : vector<8x2x16x4xf32> to vector<8x1x16x4xf32>
    %155 = vector.shape_cast %154 : vector<8x1x16x4xf32> to vector<8x16x4xf32>
    %156 = vector.extract_strided_slice %153 {offsets = [0, 1, 0, 0], sizes = [8, 1, 16, 4], strides = [1, 1, 1, 1]} : vector<8x2x16x4xf32> to vector<8x1x16x4xf32>
    %157 = vector.shape_cast %156 : vector<8x1x16x4xf32> to vector<8x16x4xf32>
    %158 = arith.addf %155, %157 : vector<8x16x4xf32>
    %159 = vector.shape_cast %158 : vector<8x16x4xf32> to vector<8x8x2x4xf32>
    %160 = vector.extract_strided_slice %159 {offsets = [0, 0, 0, 0], sizes = [8, 8, 1, 4], strides = [1, 1, 1, 1]} : vector<8x8x2x4xf32> to vector<8x8x1x4xf32>
    %161 = vector.extract_strided_slice %159 {offsets = [0, 0, 1, 0], sizes = [8, 8, 1, 4], strides = [1, 1, 1, 1]} : vector<8x8x2x4xf32> to vector<8x8x1x4xf32>
    %162 = arith.addf %160, %161 : vector<8x8x1x4xf32>
    %163 = vector.shape_cast %162 : vector<8x8x1x4xf32> to vector<8x8x4xf32>
    %cst_118 = arith.constant 2.500000e-01 : f32
    %164 = vector.broadcast %cst_118 : f32 to vector<8x8x4xf32>
    %165 = arith.mulf %163, %164 : vector<8x8x4xf32>
    %cst_119 = arith.constant 0.000000e+00 : bf16
    %166 = vector.broadcast %cst_119 : bf16 to vector<1x10x4xbf16>
    %cst_120 = arith.constant 0.000000e+00 : bf16
    %167 = vector.broadcast %cst_120 : bf16 to vector<8x1x4xbf16>
    %c0_121 = arith.constant 0 : index
    %c0_122 = arith.constant 0 : index
    %c0_123 = arith.constant 0 : index
    %168 = vector.load %arg18[%c0_121, %c0_122, %c0_123] : memref<10x10x4xbf16, #tpu.memory_space<vmem>>, vector<1x10x4xbf16>
    tpu.vector_store %arg18[%c0_121, %c0_122, %c0_123], %166 {strides = array<i32>} : memref<10x10x4xbf16, #tpu.memory_space<vmem>>, vector<1x10x4xbf16>,
    %c9_124 = arith.constant 9 : index
    %c0_125 = arith.constant 0 : index
    %c0_126 = arith.constant 0 : index
    %169 = vector.load %arg18[%c9_124, %c0_125, %c0_126] : memref<10x10x4xbf16, #tpu.memory_space<vmem>>, vector<1x10x4xbf16>
    tpu.vector_store %arg18[%c9_124, %c0_125, %c0_126], %166 {strides = array<i32>} : memref<10x10x4xbf16, #tpu.memory_space<vmem>>, vector<1x10x4xbf16>,
    %c1_127 = arith.constant 1 : index
    %c0_128 = arith.constant 0 : index
    %c0_129 = arith.constant 0 : index
    %170 = vector.load %arg18[%c1_127, %c0_128, %c0_129] : memref<10x10x4xbf16, #tpu.memory_space<vmem>>, vector<8x1x4xbf16>
    tpu.vector_store %arg18[%c1_127, %c0_128, %c0_129], %167 {strides = array<i32>} : memref<10x10x4xbf16, #tpu.memory_space<vmem>>, vector<8x1x4xbf16>,
    %c1_130 = arith.constant 1 : index
    %c9_131 = arith.constant 9 : index
    %c0_132 = arith.constant 0 : index
    %171 = vector.load %arg18[%c1_130, %c9_131, %c0_132] : memref<10x10x4xbf16, #tpu.memory_space<vmem>>, vector<8x1x4xbf16>
    tpu.vector_store %arg18[%c1_130, %c9_131, %c0_132], %167 {strides = array<i32>} : memref<10x10x4xbf16, #tpu.memory_space<vmem>>, vector<8x1x4xbf16>,
    %172 = arith.truncf %165 : vector<8x8x4xf32> to vector<8x8x4xbf16>
    %c1_133 = arith.constant 1 : index
    %c1_134 = arith.constant 1 : index
    %c0_135 = arith.constant 0 : index
    %173 = vector.load %arg18[%c1_133, %c1_134, %c0_135] : memref<10x10x4xbf16, #tpu.memory_space<vmem>>, vector<8x8x4xbf16>
    tpu.vector_store %arg18[%c1_133, %c1_134, %c0_135], %172 {strides = array<i32>} : memref<10x10x4xbf16, #tpu.memory_space<vmem>>, vector<8x8x4xbf16>,
    %174 = vector.extract_strided_slice %151 {offsets = [0, 4], sizes = [64, 4], strides = [1, 1]} : vector<64x8xf32> to vector<64x4xf32>
    %c0_136 = arith.constant 0 : index
    %c0_137 = arith.constant 0 : index
    %c0_138 = arith.constant 0 : index
    %175 = vector.load %arg18[%c0_136, %c0_137, %c0_138] : memref<10x10x4xbf16, #tpu.memory_space<vmem>>, vector<8x10x4xbf16>
    %176 = vector.extract_strided_slice %175 {offsets = [0, 0, 0], sizes = [8, 8, 4], strides = [1, 1, 1]} : vector<8x10x4xbf16> to vector<8x8x4xbf16>
    %177 = vector.extract_strided_slice %175 {offsets = [0, 1, 0], sizes = [8, 8, 4], strides = [1, 1, 1]} : vector<8x10x4xbf16> to vector<8x8x4xbf16>
    %178 = vector.extract_strided_slice %175 {offsets = [0, 2, 0], sizes = [8, 8, 4], strides = [1, 1, 1]} : vector<8x10x4xbf16> to vector<8x8x4xbf16>
    %179 = tpu.concatenate %176, %177, %178 in 2 : vector<8x8x4xbf16>, vector<8x8x4xbf16>, vector<8x8x4xbf16> -> vector<8x8x12xbf16>
    %180 = vector.shape_cast %179 : vector<8x8x12xbf16> to vector<64x12xbf16>
    %c0_139 = arith.constant 0 : index
    %c0_140 = arith.constant 0 : index
    %181 = vector.load %arg7[%c0_139, %c0_140] : memref<36x4xbf16, #tpu.memory_space<vmem>>, vector<12x4xbf16>
    %cst_141 = arith.constant dense<0.000000e+00> : vector<64x4xf32>
    %182 = tpu.matmul %180, %181, %cst_141 {dimension_numbers = #tpu.dot_dimension_numbers<[1], [0], [0], [1], [0, 0, 1, 1], [], []>} : vector<64x12xbf16>, vector<12x4xbf16>, vector<64x4xf32> -> vector<64x4xf32>
    %183 = arith.addf %174, %182 : vector<64x4xf32>
    %c1_142 = arith.constant 1 : index
    %c0_143 = arith.constant 0 : index
    %c0_144 = arith.constant 0 : index
    %184 = vector.load %arg18[%c1_142, %c0_143, %c0_144] : memref<10x10x4xbf16, #tpu.memory_space<vmem>>, vector<8x10x4xbf16>
    %185 = vector.extract_strided_slice %184 {offsets = [0, 0, 0], sizes = [8, 8, 4], strides = [1, 1, 1]} : vector<8x10x4xbf16> to vector<8x8x4xbf16>
    %186 = vector.extract_strided_slice %184 {offsets = [0, 1, 0], sizes = [8, 8, 4], strides = [1, 1, 1]} : vector<8x10x4xbf16> to vector<8x8x4xbf16>
    %187 = vector.extract_strided_slice %184 {offsets = [0, 2, 0], sizes = [8, 8, 4], strides = [1, 1, 1]} : vector<8x10x4xbf16> to vector<8x8x4xbf16>
    %188 = tpu.concatenate %185, %186, %187 in 2 : vector<8x8x4xbf16>, vector<8x8x4xbf16>, vector<8x8x4xbf16> -> vector<8x8x12xbf16>
    %189 = vector.shape_cast %188 : vector<8x8x12xbf16> to vector<64x12xbf16>
    %c12_145 = arith.constant 12 : index
    %c0_146 = arith.constant 0 : index
    %190 = vector.load %arg7[%c12_145, %c0_146] : memref<36x4xbf16, #tpu.memory_space<vmem>>, vector<12x4xbf16>
    %cst_147 = arith.constant dense<0.000000e+00> : vector<64x4xf32>
    %191 = tpu.matmul %189, %190, %cst_147 {dimension_numbers = #tpu.dot_dimension_numbers<[1], [0], [0], [1], [0, 0, 1, 1], [], []>} : vector<64x12xbf16>, vector<12x4xbf16>, vector<64x4xf32> -> vector<64x4xf32>
    %192 = arith.addf %183, %191 : vector<64x4xf32>
    %c2_148 = arith.constant 2 : index
    %c0_149 = arith.constant 0 : index
    %c0_150 = arith.constant 0 : index
    %193 = vector.load %arg18[%c2_148, %c0_149, %c0_150] : memref<10x10x4xbf16, #tpu.memory_space<vmem>>, vector<8x10x4xbf16>
    %194 = vector.extract_strided_slice %193 {offsets = [0, 0, 0], sizes = [8, 8, 4], strides = [1, 1, 1]} : vector<8x10x4xbf16> to vector<8x8x4xbf16>
    %195 = vector.extract_strided_slice %193 {offsets = [0, 1, 0], sizes = [8, 8, 4], strides = [1, 1, 1]} : vector<8x10x4xbf16> to vector<8x8x4xbf16>
    %196 = vector.extract_strided_slice %193 {offsets = [0, 2, 0], sizes = [8, 8, 4], strides = [1, 1, 1]} : vector<8x10x4xbf16> to vector<8x8x4xbf16>
    %197 = tpu.concatenate %194, %195, %196 in 2 : vector<8x8x4xbf16>, vector<8x8x4xbf16>, vector<8x8x4xbf16> -> vector<8x8x12xbf16>
    %198 = vector.shape_cast %197 : vector<8x8x12xbf16> to vector<64x12xbf16>
    %c24_151 = arith.constant 24 : index
    %c0_152 = arith.constant 0 : index
    %199 = vector.load %arg7[%c24_151, %c0_152] : memref<36x4xbf16, #tpu.memory_space<vmem>>, vector<12x4xbf16>
    %cst_153 = arith.constant dense<0.000000e+00> : vector<64x4xf32>
    %200 = tpu.matmul %198, %199, %cst_153 {dimension_numbers = #tpu.dot_dimension_numbers<[1], [0], [0], [1], [0, 0, 1, 1], [], []>} : vector<64x12xbf16>, vector<12x4xbf16>, vector<64x4xf32> -> vector<64x4xf32>
    %201 = arith.addf %192, %200 : vector<64x4xf32>
    %c0_154 = arith.constant 0 : index
    %c0_155 = arith.constant 0 : index
    %202 = vector.load %arg11[%c0_154, %c0_155] : memref<2x4xf32, #tpu.memory_space<vmem>>, vector<1x4xf32>
    %203 = vector.broadcast %202 : vector<1x4xf32> to vector<64x4xf32>
    %204 = arith.mulf %201, %203 : vector<64x4xf32>
    %c1_156 = arith.constant 1 : index
    %c0_157 = arith.constant 0 : index
    %205 = vector.load %arg11[%c1_156, %c0_157] : memref<2x4xf32, #tpu.memory_space<vmem>>, vector<1x4xf32>
    %206 = vector.broadcast %205 : vector<1x4xf32> to vector<64x4xf32>
    %207 = arith.addf %204, %206 : vector<64x4xf32>
    %cst_158 = arith.constant 0.000000e+00 : f32
    %208 = vector.broadcast %cst_158 : f32 to vector<64x4xf32>
    %209 = arith.maximumf %207, %208 : vector<64x4xf32>
    %210 = tpu.transpose %209, [1, 0] : vector<64x4xf32> -> vector<4x64xf32>
    %211 = arith.truncf %210 : vector<4x64xf32> to vector<4x64xbf16>
    %c0_159 = arith.constant 0 : index
    %c0_160 = arith.constant 0 : index
    %c0_161 = arith.constant 0 : index
    %212 = vector.load %arg13[%c0_159, %c0_160, %c0_161] : memref<1x4x64xbf16, #tpu.memory_space<vmem>>, vector<1x4x64xbf16>
    %213 = vector.shape_cast %212 : vector<1x4x64xbf16> to vector<4x64xbf16>
    %214 = vector.shape_cast %211 : vector<4x64xbf16> to vector<1x4x64xbf16>
    tpu.vector_store %arg13[%c0_159, %c0_160, %c0_161], %214 {strides = array<i32>} : memref<1x4x64xbf16, #tpu.memory_space<vmem>>, vector<1x4x64xbf16>,
    %cst_162 = arith.constant 0.000000e+00 : bf16
    %215 = vector.broadcast %cst_162 : bf16 to vector<1x18x4xbf16>
    %cst_163 = arith.constant 0.000000e+00 : bf16
    %216 = vector.broadcast %cst_163 : bf16 to vector<16x1x4xbf16>
    %c0_164 = arith.constant 0 : index
    %c0_165 = arith.constant 0 : index
    %c0_166 = arith.constant 0 : index
    %217 = vector.load %arg16[%c0_164, %c0_165, %c0_166] : memref<18x18x4xbf16, #tpu.memory_space<vmem>>, vector<1x18x4xbf16>
    tpu.vector_store %arg16[%c0_164, %c0_165, %c0_166], %215 {strides = array<i32>} : memref<18x18x4xbf16, #tpu.memory_space<vmem>>, vector<1x18x4xbf16>,
    %c17_167 = arith.constant 17 : index
    %c0_168 = arith.constant 0 : index
    %c0_169 = arith.constant 0 : index
    %218 = vector.load %arg16[%c17_167, %c0_168, %c0_169] : memref<18x18x4xbf16, #tpu.memory_space<vmem>>, vector<1x18x4xbf16>
    tpu.vector_store %arg16[%c17_167, %c0_168, %c0_169], %215 {strides = array<i32>} : memref<18x18x4xbf16, #tpu.memory_space<vmem>>, vector<1x18x4xbf16>,
    %c1_170 = arith.constant 1 : index
    %c0_171 = arith.constant 0 : index
    %c0_172 = arith.constant 0 : index
    %219 = vector.load %arg16[%c1_170, %c0_171, %c0_172] : memref<18x18x4xbf16, #tpu.memory_space<vmem>>, vector<16x1x4xbf16>
    tpu.vector_store %arg16[%c1_170, %c0_171, %c0_172], %216 {strides = array<i32>} : memref<18x18x4xbf16, #tpu.memory_space<vmem>>, vector<16x1x4xbf16>,
    %c1_173 = arith.constant 1 : index
    %c17_174 = arith.constant 17 : index
    %c0_175 = arith.constant 0 : index
    %220 = vector.load %arg16[%c1_173, %c17_174, %c0_175] : memref<18x18x4xbf16, #tpu.memory_space<vmem>>, vector<16x1x4xbf16>
    tpu.vector_store %arg16[%c1_173, %c17_174, %c0_175], %216 {strides = array<i32>} : memref<18x18x4xbf16, #tpu.memory_space<vmem>>, vector<16x1x4xbf16>,
    %221 = arith.truncf %114 : vector<16x16x4xf32> to vector<16x16x4xbf16>
    %c1_176 = arith.constant 1 : index
    %c1_177 = arith.constant 1 : index
    %c0_178 = arith.constant 0 : index
    %222 = vector.load %arg16[%c1_176, %c1_177, %c0_178] : memref<18x18x4xbf16, #tpu.memory_space<vmem>>, vector<16x16x4xbf16>
    tpu.vector_store %arg16[%c1_176, %c1_177, %c0_178], %221 {strides = array<i32>} : memref<18x18x4xbf16, #tpu.memory_space<vmem>>, vector<16x16x4xbf16>,
    %223 = vector.shape_cast %152 : vector<64x4xf32> to vector<8x8x4xf32>
    %224 = vector.shape_cast %223 : vector<8x8x4xf32> to vector<8x1x8x4xf32>
    %225 = vector.shape_cast %224 : vector<8x1x8x4xf32> to vector<8x1x8x4xf32>
    %226 = vector.broadcast %225 : vector<8x1x8x4xf32> to vector<8x2x8x4xf32>
    %227 = vector.shape_cast %226 : vector<8x2x8x4xf32> to vector<16x8x4xf32>
    %228 = vector.shape_cast %227 : vector<16x8x4xf32> to vector<16x8x1x4xf32>
    %229 = vector.shape_cast %228 : vector<16x8x1x4xf32> to vector<16x8x1x4xf32>
    %230 = vector.broadcast %229 : vector<16x8x1x4xf32> to vector<16x8x2x4xf32>
    %231 = vector.shape_cast %230 : vector<16x8x2x4xf32> to vector<16x16x4xf32>
    %232 = vector.shape_cast %231 : vector<16x16x4xf32> to vector<256x4xf32>
    %c0_179 = arith.constant 0 : index
    %c0_180 = arith.constant 0 : index
    %c0_181 = arith.constant 0 : index
    %233 = vector.load %arg16[%c0_179, %c0_180, %c0_181] : memref<18x18x4xbf16, #tpu.memory_space<vmem>>, vector<16x18x4xbf16>
    %234 = vector.extract_strided_slice %233 {offsets = [0, 0, 0], sizes = [16, 16, 4], strides = [1, 1, 1]} : vector<16x18x4xbf16> to vector<16x16x4xbf16>
    %235 = vector.extract_strided_slice %233 {offsets = [0, 1, 0], sizes = [16, 16, 4], strides = [1, 1, 1]} : vector<16x18x4xbf16> to vector<16x16x4xbf16>
    %236 = vector.extract_strided_slice %233 {offsets = [0, 2, 0], sizes = [16, 16, 4], strides = [1, 1, 1]} : vector<16x18x4xbf16> to vector<16x16x4xbf16>
    %237 = tpu.concatenate %234, %235, %236 in 2 : vector<16x16x4xbf16>, vector<16x16x4xbf16>, vector<16x16x4xbf16> -> vector<16x16x12xbf16>
    %238 = vector.shape_cast %237 : vector<16x16x12xbf16> to vector<256x12xbf16>
    %c0_182 = arith.constant 0 : index
    %c0_183 = arith.constant 0 : index
    %239 = vector.load %arg5[%c0_182, %c0_183] : memref<36x4xbf16, #tpu.memory_space<vmem>>, vector<12x4xbf16>
    %cst_184 = arith.constant dense<0.000000e+00> : vector<256x4xf32>
    %240 = tpu.matmul %238, %239, %cst_184 {dimension_numbers = #tpu.dot_dimension_numbers<[1], [0], [0], [1], [0, 0, 1, 1], [], []>} : vector<256x12xbf16>, vector<12x4xbf16>, vector<256x4xf32> -> vector<256x4xf32>
    %241 = arith.addf %232, %240 : vector<256x4xf32>
    %c1_185 = arith.constant 1 : index
    %c0_186 = arith.constant 0 : index
    %c0_187 = arith.constant 0 : index
    %242 = vector.load %arg16[%c1_185, %c0_186, %c0_187] : memref<18x18x4xbf16, #tpu.memory_space<vmem>>, vector<16x18x4xbf16>
    %243 = vector.extract_strided_slice %242 {offsets = [0, 0, 0], sizes = [16, 16, 4], strides = [1, 1, 1]} : vector<16x18x4xbf16> to vector<16x16x4xbf16>
    %244 = vector.extract_strided_slice %242 {offsets = [0, 1, 0], sizes = [16, 16, 4], strides = [1, 1, 1]} : vector<16x18x4xbf16> to vector<16x16x4xbf16>
    %245 = vector.extract_strided_slice %242 {offsets = [0, 2, 0], sizes = [16, 16, 4], strides = [1, 1, 1]} : vector<16x18x4xbf16> to vector<16x16x4xbf16>
    %246 = tpu.concatenate %243, %244, %245 in 2 : vector<16x16x4xbf16>, vector<16x16x4xbf16>, vector<16x16x4xbf16> -> vector<16x16x12xbf16>
    %247 = vector.shape_cast %246 : vector<16x16x12xbf16> to vector<256x12xbf16>
    %c12_188 = arith.constant 12 : index
    %c0_189 = arith.constant 0 : index
    %248 = vector.load %arg5[%c12_188, %c0_189] : memref<36x4xbf16, #tpu.memory_space<vmem>>, vector<12x4xbf16>
    %cst_190 = arith.constant dense<0.000000e+00> : vector<256x4xf32>
    %249 = tpu.matmul %247, %248, %cst_190 {dimension_numbers = #tpu.dot_dimension_numbers<[1], [0], [0], [1], [0, 0, 1, 1], [], []>} : vector<256x12xbf16>, vector<12x4xbf16>, vector<256x4xf32> -> vector<256x4xf32>
    %250 = arith.addf %241, %249 : vector<256x4xf32>
    %c2_191 = arith.constant 2 : index
    %c0_192 = arith.constant 0 : index
    %c0_193 = arith.constant 0 : index
    %251 = vector.load %arg16[%c2_191, %c0_192, %c0_193] : memref<18x18x4xbf16, #tpu.memory_space<vmem>>, vector<16x18x4xbf16>
    %252 = vector.extract_strided_slice %251 {offsets = [0, 0, 0], sizes = [16, 16, 4], strides = [1, 1, 1]} : vector<16x18x4xbf16> to vector<16x16x4xbf16>
    %253 = vector.extract_strided_slice %251 {offsets = [0, 1, 0], sizes = [16, 16, 4], strides = [1, 1, 1]} : vector<16x18x4xbf16> to vector<16x16x4xbf16>
    %254 = vector.extract_strided_slice %251 {offsets = [0, 2, 0], sizes = [16, 16, 4], strides = [1, 1, 1]} : vector<16x18x4xbf16> to vector<16x16x4xbf16>
    %255 = tpu.concatenate %252, %253, %254 in 2 : vector<16x16x4xbf16>, vector<16x16x4xbf16>, vector<16x16x4xbf16> -> vector<16x16x12xbf16>
    %256 = vector.shape_cast %255 : vector<16x16x12xbf16> to vector<256x12xbf16>
    %c24_194 = arith.constant 24 : index
    %c0_195 = arith.constant 0 : index
    %257 = vector.load %arg5[%c24_194, %c0_195] : memref<36x4xbf16, #tpu.memory_space<vmem>>, vector<12x4xbf16>
    %cst_196 = arith.constant dense<0.000000e+00> : vector<256x4xf32>
    %258 = tpu.matmul %256, %257, %cst_196 {dimension_numbers = #tpu.dot_dimension_numbers<[1], [0], [0], [1], [0, 0, 1, 1], [], []>} : vector<256x12xbf16>, vector<12x4xbf16>, vector<256x4xf32> -> vector<256x4xf32>
    %259 = arith.addf %250, %258 : vector<256x4xf32>
    %c0_197 = arith.constant 0 : index
    %c0_198 = arith.constant 0 : index
    %260 = vector.load %arg10[%c0_197, %c0_198] : memref<2x4xf32, #tpu.memory_space<vmem>>, vector<1x4xf32>
    %261 = vector.broadcast %260 : vector<1x4xf32> to vector<256x4xf32>
    %262 = arith.mulf %259, %261 : vector<256x4xf32>
    %c1_199 = arith.constant 1 : index
    %c0_200 = arith.constant 0 : index
    %263 = vector.load %arg10[%c1_199, %c0_200] : memref<2x4xf32, #tpu.memory_space<vmem>>, vector<1x4xf32>
    %264 = vector.broadcast %263 : vector<1x4xf32> to vector<256x4xf32>
    %265 = arith.addf %262, %264 : vector<256x4xf32>
    %cst_201 = arith.constant 0.000000e+00 : f32
    %266 = vector.broadcast %cst_201 : f32 to vector<256x4xf32>
    %267 = arith.maximumf %265, %266 : vector<256x4xf32>
    %268 = tpu.transpose %267, [1, 0] : vector<256x4xf32> -> vector<4x256xf32>
    %269 = arith.truncf %268 : vector<4x256xf32> to vector<4x256xbf16>
    %c0_202 = arith.constant 0 : index
    %c0_203 = arith.constant 0 : index
    %c0_204 = arith.constant 0 : index
    %270 = vector.load %arg12[%c0_202, %c0_203, %c0_204] : memref<1x4x256xbf16, #tpu.memory_space<vmem>>, vector<1x4x256xbf16>
    %271 = vector.shape_cast %270 : vector<1x4x256xbf16> to vector<4x256xbf16>
    %272 = vector.shape_cast %269 : vector<4x256xbf16> to vector<1x4x256xbf16>
    tpu.vector_store %arg12[%c0_202, %c0_203, %c0_204], %272 {strides = array<i32>} : memref<1x4x256xbf16, #tpu.memory_space<vmem>>, vector<1x4x256xbf16>,
    return
  }
  func.func @transform_0(%arg0: i32) -> (i32, i32, i32, i32) {
    %c0_i32 = arith.constant 0 : i32
    %c0_i32_0 = arith.constant 0 : i32
    %c0_i32_1 = arith.constant 0 : i32
    %c0_i32_2 = arith.constant 0 : i32
    return %arg0, %c0_i32, %c0_i32_0, %c0_i32_1 : i32, i32, i32, i32
  }
  func.func @transform_1(%arg0: i32) -> (i32, i32, i32, i32) {
    %c0_i32 = arith.constant 0 : i32
    %c0_i32_0 = arith.constant 0 : i32
    %c0_i32_1 = arith.constant 0 : i32
    %c0_i32_2 = arith.constant 0 : i32
    return %arg0, %c0_i32, %c0_i32_0, %c0_i32_1 : i32, i32, i32, i32
  }
  func.func @transform_2(%arg0: i32) -> (i32, i32) {
    %c0_i32 = arith.constant 0 : i32
    %c0_i32_0 = arith.constant 0 : i32
    %c0_i32_1 = arith.constant 0 : i32
    return %c0_i32, %c0_i32_0 : i32, i32
  }
  func.func @transform_3(%arg0: i32) -> (i32, i32) {
    %c0_i32 = arith.constant 0 : i32
    %c0_i32_0 = arith.constant 0 : i32
    %c0_i32_1 = arith.constant 0 : i32
    return %c0_i32, %c0_i32_0 : i32, i32
  }
  func.func @transform_4(%arg0: i32) -> (i32, i32) {
    %c0_i32 = arith.constant 0 : i32
    %c0_i32_0 = arith.constant 0 : i32
    %c0_i32_1 = arith.constant 0 : i32
    return %c0_i32, %c0_i32_0 : i32, i32
  }
  func.func @transform_5(%arg0: i32) -> (i32, i32) {
    %c0_i32 = arith.constant 0 : i32
    %c0_i32_0 = arith.constant 0 : i32
    %c0_i32_1 = arith.constant 0 : i32
    return %c0_i32, %c0_i32_0 : i32, i32
  }
  func.func @transform_6(%arg0: i32) -> (i32, i32) {
    %c0_i32 = arith.constant 0 : i32
    %c0_i32_0 = arith.constant 0 : i32
    %c0_i32_1 = arith.constant 0 : i32
    return %c0_i32, %c0_i32_0 : i32, i32
  }
  func.func @transform_7(%arg0: i32) -> (i32, i32) {
    %c0_i32 = arith.constant 0 : i32
    %c0_i32_0 = arith.constant 0 : i32
    %c0_i32_1 = arith.constant 0 : i32
    return %c0_i32, %c0_i32_0 : i32, i32
  }
  func.func @transform_8(%arg0: i32) -> (i32, i32) {
    %c0_i32 = arith.constant 0 : i32
    %c0_i32_0 = arith.constant 0 : i32
    %c0_i32_1 = arith.constant 0 : i32
    return %c0_i32, %c0_i32_0 : i32, i32
  }
  func.func @transform_9(%arg0: i32) -> (i32, i32) {
    %c0_i32 = arith.constant 0 : i32
    %c0_i32_0 = arith.constant 0 : i32
    %c0_i32_1 = arith.constant 0 : i32
    return %c0_i32, %c0_i32_0 : i32, i32
  }
  func.func @transform_10(%arg0: i32) -> (i32, i32) {
    %c0_i32 = arith.constant 0 : i32
    %c0_i32_0 = arith.constant 0 : i32
    %c0_i32_1 = arith.constant 0 : i32
    return %c0_i32, %c0_i32_0 : i32, i32
  }
  func.func @transform_11(%arg0: i32) -> (i32, i32, i32) {
    %c0_i32 = arith.constant 0 : i32
    %c0_i32_0 = arith.constant 0 : i32
    %c0_i32_1 = arith.constant 0 : i32
    return %arg0, %c0_i32, %c0_i32_0 : i32, i32, i32
  }
  func.func @transform_12(%arg0: i32) -> (i32, i32, i32) {
    %c0_i32 = arith.constant 0 : i32
    %c0_i32_0 = arith.constant 0 : i32
    %c0_i32_1 = arith.constant 0 : i32
    return %arg0, %c0_i32, %c0_i32_0 : i32, i32, i32
  }
}

</mosaic_0001>

<llo_original>
// kernel: _lambda_.1
$region0: #{_lambda_.1}
  #allocation0 [shape = 'u32[]', space=smem, size = 0x4, offset = 0x4, fixed_abs, tag = 'smem constant byte address 0x4 - core index']
  #allocation1 [shape = 'u32[72,128]{1,0:T(1,128)}', space=vmem, size = 0x9000, scoped, tag = 'internal scratch']
  #allocation2 [shape = 'bf16[18,18,8]{2,1,0:T(8,128)(2,1)}', space=vmem, size = 0x1b000, scoped, tag = 'scratch operand']
  #allocation3 [shape = 'bf16[10,10,8]{2,1,0:T(8,128)(2,1)}', space=vmem, size = 0xa000, scoped, tag = 'scratch operand']
  #allocation4 [shape = 'bf16[18,18,4]{2,1,0:T(8,128)(2,1)}', space=vmem, size = 0x1b000, scoped, tag = 'scratch operand']
  #allocation5 [shape = 'bf16[10,10,4]{2,1,0:T(8,128)(2,1)}', space=vmem, size = 0xa000, scoped, tag = 'scratch operand']
  #allocation6 [shape = 'bf16[10,10,4]{2,1,0:T(8,128)(2,1)}', space=vmem, size = 0xa000, scoped, tag = 'scratch operand']
  %s0 = inlined_call_operand.vmem [shape: bf16[2,8,8,4], index: 0, kind: input, shape index: {}]
  %s1 = inlined_call_operand.vmem [shape: bf16[2,16,16,4], index: 1, kind: input, shape index: {}]
  %s2 = inlined_call_operand.vmem [shape: bf16[72,4], index: 2, kind: input, shape index: {}]
  %s3 = inlined_call_operand.vmem [shape: bf16[72,4], index: 3, kind: input, shape index: {}]
  %s4 = inlined_call_operand.vmem [shape: bf16[36,4], index: 4, kind: input, shape index: {}]
  %s5 = inlined_call_operand.vmem [shape: bf16[36,8], index: 5, kind: input, shape index: {}]
  %s6 = inlined_call_operand.vmem [shape: bf16[36,4], index: 6, kind: input, shape index: {}]
  %s7 = inlined_call_operand.vmem [shape: f32[2,4], index: 7, kind: input, shape index: {}]
  %s8 = inlined_call_operand.vmem [shape: f32[2,4], index: 8, kind: input, shape index: {}]
  %s9 = inlined_call_operand.vmem [shape: f32[2,4], index: 9, kind: input, shape index: {}]
  %s10 = inlined_call_operand.vmem [shape: f32[2,4], index: 10, kind: input, shape index: {}]
  %s11 = inlined_call_operand.vmem [shape: bf16[2,4,256], index: 11, kind: output, shape index: {0}]
  %s12 = inlined_call_operand.vmem [shape: bf16[2,4,64], index: 12, kind: output, shape index: {1}]
  %13 = xla_tuple %s11, %s12
  %s14 = sld [smem:[#allocation0]]
  $region85: #{_lambda_.1} parent=0
    _
  %s16 = ssub.s32 1, %s14
  %s17 = scalar_select 0, %s16, %s14
  loop: start=0, step=1, limit=4
  $region2: #{_lambda_.1} parent=0 // loop_pre_header
    _
  $region3: #{_lambda_.1} parent=0 // loop_header
    %s19 = sphi 0, %s23
    %p20 = scmp.ge.s32.totalorder %s19, 4
    %s29 = sphi 0, %s31
    %s32 = sphi 0, %s29
    %s33 = sphi 0, %s32
    %s49 = sphi 0, %s33
    %s55 = sphi 0, %s57
    %s58 = sphi 0, %s55
    %s59 = sphi 0, %s58
    %s75 = sphi 0, %s59
    %s79 = sphi 0, %s79
    %s81 = sphi 0, %s79
    %s82 = sphi 0, %s81
    %s96 = sphi 0, %s82
    %s100 = sphi 0, %s100
    %s102 = sphi 0, %s100
    %s103 = sphi 0, %s102
    %s117 = sphi 0, %s103
    %s121 = sphi 0, %s121
    %s123 = sphi 0, %s121
    %s124 = sphi 0, %s123
    %s138 = sphi 0, %s124
    %s142 = sphi 0, %s142
    %s144 = sphi 0, %s142
    %s145 = sphi 0, %s144
    %s159 = sphi 0, %s145
    %s163 = sphi 0, %s163
    %s165 = sphi 0, %s163
    %s166 = sphi 0, %s165
    %s180 = sphi 0, %s166
    %s184 = sphi 0, %s184
    %s186 = sphi 0, %s184
    %s187 = sphi 0, %s186
    %s201 = sphi 0, %s187
    %s205 = sphi 0, %s205
    %s207 = sphi 0, %s205
    %s208 = sphi 0, %s207
    %s222 = sphi 0, %s208
    %s226 = sphi 0, %s226
    %s228 = sphi 0, %s226
    %s229 = sphi 0, %s228
    %s243 = sphi 0, %s229
    %s247 = sphi 0, %s247
    %s249 = sphi 0, %s247
    %s250 = sphi 0, %s249
    %s264 = sphi 0, %s250
    %s270 = sphi 0, %s272
    %s273 = sphi 0, %s270
    %s274 = sphi 0, %s273
    %s290 = sphi 0, %s274
    %s296 = sphi 0, %s298
    %s299 = sphi 0, %s296
    %s300 = sphi 0, %s299
    %s316 = sphi 0, %s300
  $region4: #{_lambda_.1} parent=0 // loop_header_branch
    %22 = sbr.rel (%p20) target = $region8
  $region5: #{_lambda_.1} parent=0 // loop_body
    %s24 = ssub.s32 %s19, 1
    %s25 = ssub.s32 %s19, 2
    %s26 = sadd.s32 %s19, 1
    %s27 = ssub.s32 %s19, %s26
    %p28 = scmp.eq.s32.totalorder %s27, 0
    %s30 = sadd.s32 %s29, 1
    %s31 = scalar_select %p28, %s29, %s30
    %p34 = pneg %p28
    %p35 = scmp.eq.s32.totalorder %s19, 1
    %p36 = por %p34, %p35
    %p37 = scmp.ne.s32.totalorder %s29, %s32
    %p38 = scmp.eq.s32.totalorder %s19, 0
    %p39 = por %p37, %p38
    %p40 = scmp.ne.s32.totalorder %s29, %s32
    %p41 = scmp.eq.s32.totalorder %s24, 1
    %p42 = por %p40, %p41
    %p43 = scmp.ne.s32.totalorder %s32, %s33
    %p44 = scmp.eq.s32.totalorder %s24, 0
    %p45 = por %p43, %p44
    %p46 = scmp.ne.s32.totalorder %s32, %s33
    %p47 = scmp.eq.s32.totalorder %s25, 1
    %p48 = por %p46, %p47
    %p50 = scmp.ne.s32.totalorder %s33, %s49
    %p51 = scmp.eq.s32.totalorder %s25, 0
    %p52 = por %p50, %p51
    %s53 = ssub.s32 %s19, %s26
    %p54 = scmp.eq.s32.totalorder %s53, 0
    %s56 = sadd.s32 %s55, 1
    %s57 = scalar_select %p54, %s55, %s56
    %p60 = pneg %p54
    %p61 = scmp.eq.s32.totalorder %s19, 1
    %p62 = por %p60, %p61
    %p63 = scmp.ne.s32.totalorder %s55, %s58
    %p64 = scmp.eq.s32.totalorder %s19, 0
    %p65 = por %p63, %p64
    %p66 = scmp.ne.s32.totalorder %s55, %s58
    %p67 = scmp.eq.s32.totalorder %s24, 1
    %p68 = por %p66, %p67
    %p69 = scmp.ne.s32.totalorder %s58, %s59
    %p70 = scmp.eq.s32.totalorder %s24, 0
    %p71 = por %p69, %p70
    %p72 = scmp.ne.s32.totalorder %s58, %s59
    %p73 = scmp.eq.s32.totalorder %s25, 1
    %p74 = por %p72, %p73
    %p76 = scmp.ne.s32.totalorder %s59, %s75
    %p77 = scmp.eq.s32.totalorder %s25, 0
    %p78 = por %p76, %p77
    %s80 = sadd.s32 %s79, 1
    %p83 = scmp.eq.s32.totalorder %s19, 1
    %p84 = scmp.ne.s32.totalorder %s79, %s81
    %p85 = scmp.eq.s32.totalorder %s19, 0
    %p86 = por %p84, %p85
    %p87 = scmp.ne.s32.totalorder %s79, %s81
    %p88 = scmp.eq.s32.totalorder %s24, 1
    %p89 = por %p87, %p88
    %p90 = scmp.ne.s32.totalorder %s81, %s82
    %p91 = scmp.eq.s32.totalorder %s24, 0
    %p92 = por %p90, %p91
    %p93 = scmp.ne.s32.totalorder %s81, %s82
    %p94 = scmp.eq.s32.totalorder %s25, 1
    %p95 = por %p93, %p94
    %p97 = scmp.ne.s32.totalorder %s82, %s96
    %p98 = scmp.eq.s32.totalorder %s25, 0
    %p99 = por %p97, %p98
    %s101 = sadd.s32 %s100, 1
    %p104 = scmp.eq.s32.totalorder %s19, 1
    %p105 = scmp.ne.s32.totalorder %s100, %s102
    %p106 = scmp.eq.s32.totalorder %s19, 0
    %p107 = por %p105, %p106
    %p108 = scmp.ne.s32.totalorder %s100, %s102
    %p109 = scmp.eq.s32.totalorder %s24, 1
    %p110 = por %p108, %p109
    %p111 = scmp.ne.s32.totalorder %s102, %s103
    %p112 = scmp.eq.s32.totalorder %s24, 0
    %p113 = por %p111, %p112
    %p114 = scmp.ne.s32.totalorder %s102, %s103
    %p115 = scmp.eq.s32.totalorder %s25, 1
    %p116 = por %p114, %p115
    %p118 = scmp.ne.s32.totalorder %s103, %s117
    %p119 = scmp.eq.s32.totalorder %s25, 0
    %p120 = por %p118, %p119
    %s122 = sadd.s32 %s121, 1
    %p125 = scmp.eq.s32.totalorder %s19, 1
    %p126 = scmp.ne.s32.totalorder %s121, %s123
    %p127 = scmp.eq.s32.totalorder %s19, 0
    %p128 = por %p126, %p127
    %p129 = scmp.ne.s32.totalorder %s121, %s123
    %p130 = scmp.eq.s32.totalorder %s24, 1
    %p131 = por %p129, %p130
    %p132 = scmp.ne.s32.totalorder %s123, %s124
    %p133 = scmp.eq.s32.totalorder %s24, 0
    %p134 = por %p132, %p133
    %p135 = scmp.ne.s32.totalorder %s123, %s124
    %p136 = scmp.eq.s32.totalorder %s25, 1
    %p137 = por %p135, %p136
    %p139 = scmp.ne.s32.totalorder %s124, %s138
    %p140 = scmp.eq.s32.totalorder %s25, 0
    %p141 = por %p139, %p140
    %s143 = sadd.s32 %s142, 1
    %p146 = scmp.eq.s32.totalorder %s19, 1
    %p147 = scmp.ne.s32.totalorder %s142, %s144
    %p148 = scmp.eq.s32.totalorder %s19, 0
    %p149 = por %p147, %p148
    %p150 = scmp.ne.s32.totalorder %s142, %s144
    %p151 = scmp.eq.s32.totalorder %s24, 1
    %p152 = por %p150, %p151
    %p153 = scmp.ne.s32.totalorder %s144, %s145
    %p154 = scmp.eq.s32.totalorder %s24, 0
    %p155 = por %p153, %p154
    %p156 = scmp.ne.s32.totalorder %s144, %s145
    %p157 = scmp.eq.s32.totalorder %s25, 1
    %p158 = por %p156, %p157
    %p160 = scmp.ne.s32.totalorder %s145, %s159
    %p161 = scmp.eq.s32.totalorder %s25, 0
    %p162 = por %p160, %p161
    %s164 = sadd.s32 %s163, 1
    %p167 = scmp.eq.s32.totalorder %s19, 1
    %p168 = scmp.ne.s32.totalorder %s163, %s165
    %p169 = scmp.eq.s32.totalorder %s19, 0
    %p170 = por %p168, %p169
    %p171 = scmp.ne.s32.totalorder %s163, %s165
    %p172 = scmp.eq.s32.totalorder %s24, 1
    %p173 = por %p171, %p172
    %p174 = scmp.ne.s32.totalorder %s165, %s166
    %p175 = scmp.eq.s32.totalorder %s24, 0
    %p176 = por %p174, %p175
    %p177 = scmp.ne.s32.totalorder %s165, %s166
    %p178 = scmp.eq.s32.totalorder %s25, 1
    %p179 = por %p177, %p178
    %p181 = scmp.ne.s32.totalorder %s166, %s180
    %p182 = scmp.eq.s32.totalorder %s25, 0
    %p183 = por %p181, %p182
    %s185 = sadd.s32 %s184, 1
    %p188 = scmp.eq.s32.totalorder %s19, 1
    %p189 = scmp.ne.s32.totalorder %s184, %s186
    %p190 = scmp.eq.s32.totalorder %s19, 0
    %p191 = por %p189, %p190
    %p192 = scmp.ne.s32.totalorder %s184, %s186
    %p193 = scmp.eq.s32.totalorder %s24, 1
    %p194 = por %p192, %p193
    %p195 = scmp.ne.s32.totalorder %s186, %s187
    %p196 = scmp.eq.s32.totalorder %s24, 0
    %p197 = por %p195, %p196
    %p198 = scmp.ne.s32.totalorder %s186, %s187
    %p199 = scmp.eq.s32.totalorder %s25, 1
    %p200 = por %p198, %p199
    %p202 = scmp.ne.s32.totalorder %s187, %s201
    %p203 = scmp.eq.s32.totalorder %s25, 0
    %p204 = por %p202, %p203
    %s206 = sadd.s32 %s205, 1
    %p209 = scmp.eq.s32.totalorder %s19, 1
    %p210 = scmp.ne.s32.totalorder %s205, %s207
    %p211 = scmp.eq.s32.totalorder %s19, 0
    %p212 = por %p210, %p211
    %p213 = scmp.ne.s32.totalorder %s205, %s207
    %p214 = scmp.eq.s32.totalorder %s24, 1
    %p215 = por %p213, %p214
    %p216 = scmp.ne.s32.totalorder %s207, %s208
    %p217 = scmp.eq.s32.totalorder %s24, 0
    %p218 = por %p216, %p217
    %p219 = scmp.ne.s32.totalorder %s207, %s208
    %p220 = scmp.eq.s32.totalorder %s25, 1
    %p221 = por %p219, %p220
    %p223 = scmp.ne.s32.totalorder %s208, %s222
    %p224 = scmp.eq.s32.totalorder %s25, 0
    %p225 = por %p223, %p224
    %s227 = sadd.s32 %s226, 1
    %p230 = scmp.eq.s32.totalorder %s19, 1
    %p231 = scmp.ne.s32.totalorder %s226, %s228
    %p232 = scmp.eq.s32.totalorder %s19, 0
    %p233 = por %p231, %p232
    %p234 = scmp.ne.s32.totalorder %s226, %s228
    %p235 = scmp.eq.s32.totalorder %s24, 1
    %p236 = por %p234, %p235
    %p237 = scmp.ne.s32.totalorder %s228, %s229
    %p238 = scmp.eq.s32.totalorder %s24, 0
    %p239 = por %p237, %p238
    %p240 = scmp.ne.s32.totalorder %s228, %s229
    %p241 = scmp.eq.s32.totalorder %s25, 1
    %p242 = por %p240, %p241
    %p244 = scmp.ne.s32.totalorder %s229, %s243
    %p245 = scmp.eq.s32.totalorder %s25, 0
    %p246 = por %p244, %p245
    %s248 = sadd.s32 %s247, 1
    %p251 = scmp.eq.s32.totalorder %s19, 1
    %p252 = scmp.ne.s32.totalorder %s247, %s249
    %p253 = scmp.eq.s32.totalorder %s19, 0
    %p254 = por %p252, %p253
    %p255 = scmp.ne.s32.totalorder %s247, %s249
    %p256 = scmp.eq.s32.totalorder %s24, 1
    %p257 = por %p255, %p256
    %p258 = scmp.ne.s32.totalorder %s249, %s250
    %p259 = scmp.eq.s32.totalorder %s24, 0
    %p260 = por %p258, %p259
    %p261 = scmp.ne.s32.totalorder %s249, %s250
    %p262 = scmp.eq.s32.totalorder %s25, 1
    %p263 = por %p261, %p262
    %p265 = scmp.ne.s32.totalorder %s250, %s264
    %p266 = scmp.eq.s32.totalorder %s25, 0
    %p267 = por %p265, %p266
    %s268 = ssub.s32 %s19, %s26
    %p269 = scmp.eq.s32.totalorder %s268, 0
    %s271 = sadd.s32 %s270, 1
    %s272 = scalar_select %p269, %s270, %s271
    %p275 = pneg %p269
    %p276 = scmp.eq.s32.totalorder %s19, 1
    %p277 = por %p275, %p276
    %p278 = scmp.ne.s32.totalorder %s270, %s273
    %p279 = scmp.eq.s32.totalorder %s19, 0
    %p280 = por %p278, %p279
    %p281 = scmp.ne.s32.totalorder %s270, %s273
    %p282 = scmp.eq.s32.totalorder %s24, 1
    %p283 = por %p281, %p282
    %p284 = scmp.ne.s32.totalorder %s273, %s274
    %p285 = scmp.eq.s32.totalorder %s24, 0
    %p286 = por %p284, %p285
    %p287 = scmp.ne.s32.totalorder %s273, %s274
    %p288 = scmp.eq.s32.totalorder %s25, 1
    %p289 = por %p287, %p288
    %p291 = scmp.ne.s32.totalorder %s274, %s290
    %p292 = scmp.eq.s32.totalorder %s25, 0
    %p293 = por %p291, %p292
    %s294 = ssub.s32 %s19, %s26
    %p295 = scmp.eq.s32.totalorder %s294, 0
    %s297 = sadd.s32 %s296, 1
    %s298 = scalar_select %p295, %s296, %s297
    %p301 = pneg %p295
    %p302 = scmp.eq.s32.totalorder %s19, 1
    %p303 = por %p301, %p302
    %p304 = scmp.ne.s32.totalorder %s296, %s299
    %p305 = scmp.eq.s32.totalorder %s19, 0
    %p306 = por %p304, %p305
    %p307 = scmp.ne.s32.totalorder %s296, %s299
    %p308 = scmp.eq.s32.totalorder %s24, 1
    %p309 = por %p307, %p308
    %p310 = scmp.ne.s32.totalorder %s299, %s300
    %p311 = scmp.eq.s32.totalorder %s24, 0
    %p312 = por %p310, %p311
    %p313 = scmp.ne.s32.totalorder %s299, %s300
    %p314 = scmp.eq.s32.totalorder %s25, 1
    %p315 = por %p313, %p314
    %p317 = scmp.ne.s32.totalorder %s300, %s316
    %p318 = scmp.eq.s32.totalorder %s25, 0
    %p319 = por %p317, %p318
    %p320 = scmp.le.s32.totalorder 1, %s19
    %p321 = scmp.lt.s32.totalorder %s19, 3
    %p322 = pnand %p320, %p321
    %p323 = pneg %p322
    // Predicated region
    $region9: #{_lambda_.1} parent=5 // pred_check
      _
    $region10: #{_lambda_.1} parent=5 // pred_check_branch
      %325 = sbr.rel (%p322) target = $region12
    $region11: #{_lambda_.1} parent=5 // pred_region
      %s326 = ssub.s32 %s19, 1
      // Predicated region
      $region13: #{_lambda_.1} parent=11 // pred_check
        %p327 = pneg %p92
      $region14: #{_lambda_.1} parent=11 // pred_check_branch
        %329 = sbr.rel (%p327) target = $region16
      $region15: #{_lambda_.1} parent=11 // pred_region
        _
      $region16: #{_lambda_.1} parent=11 // pred_fallthru
        _
      // Predicated region
      $region17: #{_lambda_.1} parent=11 // pred_check
        %p330 = pneg %p113
      $region18: #{_lambda_.1} parent=11 // pred_check_branch
        %332 = sbr.rel (%p330) target = $region20
      $region19: #{_lambda_.1} parent=11 // pred_region
        _
      $region20: #{_lambda_.1} parent=11 // pred_fallthru
        _
      // Predicated region
      $region21: #{_lambda_.1} parent=11 // pred_check
        %p333 = pneg %p134
      $region22: #{_lambda_.1} parent=11 // pred_check_branch
        %335 = sbr.rel (%p333) target = $region24
      $region23: #{_lambda_.1} parent=11 // pred_region
        _
      $region24: #{_lambda_.1} parent=11 // pred_fallthru
        _
      // Predicated region
      $region25: #{_lambda_.1} parent=11 // pred_check
        %p336 = pneg %p155
      $region26: #{_lambda_.1} parent=11 // pred_check_branch
        %338 = sbr.rel (%p336) target = $region28
      $region27: #{_lambda_.1} parent=11 // pred_region
        _
      $region28: #{_lambda_.1} parent=11 // pred_fallthru
        _
      // Predicated region
      $region29: #{_lambda_.1} parent=11 // pred_check
        %p339 = pneg %p176
      $region30: #{_lambda_.1} parent=11 // pred_check_branch
        %341 = sbr.rel (%p339) target = $region32
      $region31: #{_lambda_.1} parent=11 // pred_region
        _
      $region32: #{_lambda_.1} parent=11 // pred_fallthru
        _
      // Predicated region
      $region33: #{_lambda_.1} parent=11 // pred_check
        %p342 = pneg %p197
      $region34: #{_lambda_.1} parent=11 // pred_check_branch
        %344 = sbr.rel (%p342) target = $region36
      $region35: #{_lambda_.1} parent=11 // pred_region
        _
      $region36: #{_lambda_.1} parent=11 // pred_fallthru
        _
      // Predicated region
      $region37: #{_lambda_.1} parent=11 // pred_check
        %p345 = pneg %p218
      $region38: #{_lambda_.1} parent=11 // pred_check_branch
        %347 = sbr.rel (%p345) target = $region40
      $region39: #{_lambda_.1} parent=11 // pred_region
        _
      $region40: #{_lambda_.1} parent=11 // pred_fallthru
        _
      // Predicated region
      $region41: #{_lambda_.1} parent=11 // pred_check
        %p348 = pneg %p239
      $region42: #{_lambda_.1} parent=11 // pred_check_branch
        %350 = sbr.rel (%p348) target = $region44
      $region43: #{_lambda_.1} parent=11 // pred_region
        _
      $region44: #{_lambda_.1} parent=11 // pred_fallthru
        _
      // Predicated region
      $region45: #{_lambda_.1} parent=11 // pred_check
        %p351 = pneg %p260
      $region46: #{_lambda_.1} parent=11 // pred_check_branch
        %353 = sbr.rel (%p351) target = $region48
      $region47: #{_lambda_.1} parent=11 // pred_region
        _
      $region48: #{_lambda_.1} parent=11 // pred_fallthru
        _
    $region12: #{_lambda_.1} parent=5 // pred_fallthru
      _
    %p354 = scmp.lt.s32.totalorder %s19, 2
    // Predicated region
    $region49: #{_lambda_.1} parent=5 // pred_check
      %p355 = pneg %p354
    $region50: #{_lambda_.1} parent=5 // pred_check_branch
      %357 = sbr.rel (%p355) target = $region52
    $region51: #{_lambda_.1} parent=5 // pred_region
      // Predicated region
      $region53: #{_lambda_.1} parent=51 // pred_check
        %p358 = pneg %p39
      $region54: #{_lambda_.1} parent=51 // pred_check_branch
        %360 = sbr.rel (%p358) target = $region56
      $region55: #{_lambda_.1} parent=51 // pred_region
        %p361 = scmp.lt.s32.totalorder %s19, 1
        %s362 = scalar_select %p361, %s19, 1
        %s363 = smul.addr %s362, 8
        %s364 = smul.addr %s363, 4
        %s365 = scalar_lea.vmem %s0, %s364
      $region56: #{_lambda_.1} parent=51 // pred_fallthru
        _
      // Predicated region
      $region57: #{_lambda_.1} parent=51 // pred_check
        %p366 = pneg %p65
      $region58: #{_lambda_.1} parent=51 // pred_check_branch
        %368 = sbr.rel (%p366) target = $region60
      $region59: #{_lambda_.1} parent=51 // pred_region
        %p369 = scmp.lt.s32.totalorder %s19, 1
        %s370 = scalar_select %p369, %s19, 1
        %s371 = smul.addr %s370, 32
        %s372 = smul.addr %s371, 4
        %s373 = scalar_lea.vmem %s1, %s372
      $region60: #{_lambda_.1} parent=51 // pred_fallthru
        _
    $region52: #{_lambda_.1} parent=5 // pred_fallthru
      _
    %p374 = scmp.le.s32.totalorder 1, %s19
    %p375 = scmp.lt.s32.totalorder %s19, 3
    %p376 = pnand %p374, %p375
    %p377 = pneg %p376
    // Predicated region
    $region61: #{_lambda_.1} parent=5 // pred_check
      _
    $region62: #{_lambda_.1} parent=5 // pred_check_branch
      %379 = sbr.rel (%p376) target = $region64
    $region63: #{_lambda_.1} parent=5 // pred_region
      %s380 = ssub.s32 %s19, 1
      %p381 = scmp.lt.s32.totalorder %s24, 1
      %s382 = scalar_select %p381, %s24, 1
      %s383 = smul.addr %s382, 8
      %s384 = smul.addr %s383, 4
      %s385 = scalar_lea.vmem %s0, %s384
      %p386 = pneg %p45
      %p387 = pneg %p42
      %p388 = scmp.lt.s32.totalorder %s24, 1
      %s389 = scalar_select %p388, %s24, 1
      %s390 = smul.addr %s389, 32
      %s391 = smul.addr %s390, 4
      %s392 = scalar_lea.vmem %s1, %s391
      %p393 = pneg %p71
      %p394 = pneg %p68
      %p395 = pneg %p92
      %p396 = pneg %p89
      %p397 = pneg %p113
      %p398 = pneg %p110
      %p399 = pneg %p134
      %p400 = pneg %p131
      %p401 = pneg %p155
      %p402 = pneg %p152
      %p403 = pneg %p176
      %p404 = pneg %p173
      %p405 = pneg %p197
      %p406 = pneg %p194
      %p407 = pneg %p218
      %p408 = pneg %p215
      %p409 = pneg %p239
      %p410 = pneg %p236
      %p411 = pneg %p260
      %p412 = pneg %p257
      %p413 = pneg %p286
      %p414 = pneg %p283
      %p415 = scmp.lt.s32.totalorder %s24, 1
      %s416 = scalar_select %p415, %s24, 1
      %s417 = smul.addr %s416, 2
      %s418 = smul.addr %s417, 2
      %s419 = scalar_lea.vmem %s11, %s418
      %p420 = pneg %p312
      %p421 = pneg %p309
      %p422 = scmp.lt.s32.totalorder %s24, 1
      %s423 = scalar_select %p422, %s24, 1
      %s424 = smul.addr %s423, 2
      %s425 = scalar_lea.vmem %s12, %s424
      %p426 = scmp.lt.s32.totalorder %s24, 1
      %s427 = scalar_select %p426, %s24, 1
      %s428 = smul.addr %s427, 8
      %s429 = smul.addr %s428, 4
      %s430 = scalar_lea.vmem %s0, %s429
      %p431 = scmp.lt.s32.totalorder %s24, 1
      %s432 = scalar_select %p431, %s24, 1
      %s433 = smul.addr %s432, 32
      %s434 = smul.addr %s433, 4
      %s435 = scalar_lea.vmem %s1, %s434
      %p436 = scmp.lt.s32.totalorder %s24, 1
      %s437 = scalar_select %p436, %s24, 1
      %s438 = smul.addr %s437, 2
      %s439 = smul.addr %s438, 2
      %s440 = scalar_lea.vmem %s11, %s439
      %p441 = scmp.lt.s32.totalorder %s24, 1
      %s442 = scalar_select %p441, %s24, 1
      %s443 = smul.addr %s442, 2
      %s444 = scalar_lea.vmem %s12, %s443
      %v446 = vld [vmem:[%s430] sm:$0xf]
      %v447 = vld [vmem:[%s430 + $0x4] sm:$0xf]
      %v448 = vld [vmem:[%s430 + $0x8] sm:$0xf]
      %v449 = vld [vmem:[%s430 + $0xc] sm:$0xf]
      %v450 = vld [vmem:[%s430 + $0x10] sm:$0xf]
      %v451 = vld [vmem:[%s430 + $0x14] sm:$0xf]
      %v452 = vld [vmem:[%s430 + $0x18] sm:$0xf]
      %v453 = vld [vmem:[%s430 + $0x1c] sm:$0xf]
      %v462 = vrot.slane %v446, 3
      %v463 = vrot.slane %v447, 3
      %v464 = vrot.slane %v448, 3
      %v465 = vrot.slane %v449, 3
      %v466 = vrot.slane %v450, 3
      %v467 = vrot.slane %v451, 3
      %v468 = vrot.slane %v452, 3
      %v469 = vrot.slane %v453, 3
      %vm470 = vcmask 1040384
      %v473 = vsel %vm470, %v446, %v462
      %vm475 = vcmask 1041409
      %v476 = vsel %vm475, %v446, %v462
      %v478 = vrot.slane %v476, 1
      %vm479 = vcmask 1042434
      %v480 = vsel %vm479, %v446, %v462
      %v482 = vrot.slane %v480, 2
      %vm483 = vcmask 1043459
      %v484 = vsel %vm483, %v446, %v462
      %v486 = vrot.slane %v484, 3
      %v489 = vsel %vm470, %v447, %v463
      %v491 = vsel %vm475, %v447, %v463
      %v493 = vrot.slane %v491, 1
      %v494 = vsel %vm479, %v447, %v463
      %v496 = vrot.slane %v494, 2
      %v497 = vsel %vm483, %v447, %v463
      %v499 = vrot.slane %v497, 3
      %v502 = vsel %vm470, %v448, %v464
      %v504 = vsel %vm475, %v448, %v464
      %v506 = vrot.slane %v504, 1
      %v507 = vsel %vm479, %v448, %v464
      %v509 = vrot.slane %v507, 2
      %v510 = vsel %vm483, %v448, %v464
      %v512 = vrot.slane %v510, 3
      %v515 = vsel %vm470, %v449, %v465
      %v517 = vsel %vm475, %v449, %v465
      %v519 = vrot.slane %v517, 1
      %v520 = vsel %vm479, %v449, %v465
      %v522 = vrot.slane %v520, 2
      %v523 = vsel %vm483, %v449, %v465
      %v525 = vrot.slane %v523, 3
      %v528 = vsel %vm470, %v450, %v466
      %v530 = vsel %vm475, %v450, %v466
      %v532 = vrot.slane %v530, 1
      %v533 = vsel %vm479, %v450, %v466
      %v535 = vrot.slane %v533, 2
      %v536 = vsel %vm483, %v450, %v466
      %v538 = vrot.slane %v536, 3
      %v541 = vsel %vm470, %v451, %v467
      %v543 = vsel %vm475, %v451, %v467
      %v545 = vrot.slane %v543, 1
      %v546 = vsel %vm479, %v451, %v467
      %v548 = vrot.slane %v546, 2
      %v549 = vsel %vm483, %v451, %v467
      %v551 = vrot.slane %v549, 3
      %v554 = vsel %vm470, %v452, %v468
      %v556 = vsel %vm475, %v452, %v468
      %v558 = vrot.slane %v556, 1
      %v559 = vsel %vm479, %v452, %v468
      %v561 = vrot.slane %v559, 2
      %v562 = vsel %vm483, %v452, %v468
      %v564 = vrot.slane %v562, 3
      %v567 = vsel %vm470, %v453, %v469
      %v569 = vsel %vm475, %v453, %v469
      %v571 = vrot.slane %v569, 1
      %v572 = vsel %vm479, %v453, %v469
      %v574 = vrot.slane %v572, 2
      %v575 = vsel %vm483, %v453, %v469
      %v577 = vrot.slane %v575, 3
      %v578 = vunpack.i.l.s16 %v473
      %v579 = vunpack.i.h.s16 %v473
      %v580 = vunpack.i.l.s16 %v478
      %v581 = vunpack.i.h.s16 %v478
      %v582 = vunpack.i.l.s16 %v482
      %v583 = vunpack.i.h.s16 %v482
      %v584 = vunpack.i.l.s16 %v486
      %v585 = vunpack.i.h.s16 %v486
      %v586 = vunpack.i.l.s16 %v489
      %v587 = vunpack.i.h.s16 %v489
      %v588 = vunpack.i.l.s16 %v493
      %v589 = vunpack.i.h.s16 %v493
      %v590 = vunpack.i.l.s16 %v496
      %v591 = vunpack.i.h.s16 %v496
      %v592 = vunpack.i.l.s16 %v499
      %v593 = vunpack.i.h.s16 %v499
      %v594 = vunpack.i.l.s16 %v502
      %v595 = vunpack.i.h.s16 %v502
      %v596 = vunpack.i.l.s16 %v506
      %v597 = vunpack.i.h.s16 %v506
      %v598 = vunpack.i.l.s16 %v509
      %v599 = vunpack.i.h.s16 %v509
      %v600 = vunpack.i.l.s16 %v512
      %v601 = vunpack.i.h.s16 %v512
      %v602 = vunpack.i.l.s16 %v515
      %v603 = vunpack.i.h.s16 %v515
      %v604 = vunpack.i.l.s16 %v519
      %v605 = vunpack.i.h.s16 %v519
      %v606 = vunpack.i.l.s16 %v522
      %v607 = vunpack.i.h.s16 %v522
      %v608 = vunpack.i.l.s16 %v525
      %v609 = vunpack.i.h.s16 %v525
      %v610 = vunpack.i.l.s16 %v528
      %v611 = vunpack.i.h.s16 %v528
      %v612 = vunpack.i.l.s16 %v532
      %v613 = vunpack.i.h.s16 %v532
      %v614 = vunpack.i.l.s16 %v535
      %v615 = vunpack.i.h.s16 %v535
      %v616 = vunpack.i.l.s16 %v538
      %v617 = vunpack.i.h.s16 %v538
      %v618 = vunpack.i.l.s16 %v541
      %v619 = vunpack.i.h.s16 %v541
      %v620 = vunpack.i.l.s16 %v545
      %v621 = vunpack.i.h.s16 %v545
      %v622 = vunpack.i.l.s16 %v548
      %v623 = vunpack.i.h.s16 %v548
      %v624 = vunpack.i.l.s16 %v551
      %v625 = vunpack.i.h.s16 %v551
      %v626 = vunpack.i.l.s16 %v554
      %v627 = vunpack.i.h.s16 %v554
      %v628 = vunpack.i.l.s16 %v558
      %v629 = vunpack.i.h.s16 %v558
      %v630 = vunpack.i.l.s16 %v561
      %v631 = vunpack.i.h.s16 %v561
      %v632 = vunpack.i.l.s16 %v564
      %v633 = vunpack.i.h.s16 %v564
      %v634 = vunpack.i.l.s16 %v567
      %v635 = vunpack.i.h.s16 %v567
      %v636 = vunpack.i.l.s16 %v571
      %v637 = vunpack.i.h.s16 %v571
      %v638 = vunpack.i.l.s16 %v574
      %v639 = vunpack.i.h.s16 %v574
      %v640 = vunpack.i.l.s16 %v577
      %v641 = vunpack.i.h.s16 %v577
      %v642 = vpack.i.b16 %v578, %v578
      %v643 = vpack.i.b16 %v579, %v579
      %v644 = vpack.i.b16 %v580, %v580
      %v645 = vpack.i.b16 %v581, %v581
      %v646 = vpack.i.b16 %v582, %v582
      %v647 = vpack.i.b16 %v583, %v583
      %v648 = vpack.i.b16 %v584, %v584
      %v649 = vpack.i.b16 %v585, %v585
      %v650 = vpack.i.b16 %v586, %v586
      %v651 = vpack.i.b16 %v587, %v587
      %v652 = vpack.i.b16 %v588, %v588
      %v653 = vpack.i.b16 %v589, %v589
      %v654 = vpack.i.b16 %v590, %v590
      %v655 = vpack.i.b16 %v591, %v591
      %v656 = vpack.i.b16 %v592, %v592
      %v657 = vpack.i.b16 %v593, %v593
      %v658 = vpack.i.b16 %v594, %v594
      %v659 = vpack.i.b16 %v595, %v595
      %v660 = vpack.i.b16 %v596, %v596
      %v661 = vpack.i.b16 %v597, %v597
      %v662 = vpack.i.b16 %v598, %v598
      %v663 = vpack.i.b16 %v599, %v599
      %v664 = vpack.i.b16 %v600, %v600
      %v665 = vpack.i.b16 %v601, %v601
      %v666 = vpack.i.b16 %v602, %v602
      %v667 = vpack.i.b16 %v603, %v603
      %v668 = vpack.i.b16 %v604, %v604
      %v669 = vpack.i.b16 %v605, %v605
      %v670 = vpack.i.b16 %v606, %v606
      %v671 = vpack.i.b16 %v607, %v607
      %v672 = vpack.i.b16 %v608, %v608
      %v673 = vpack.i.b16 %v609, %v609
      %v674 = vpack.i.b16 %v610, %v610
      %v675 = vpack.i.b16 %v611, %v611
      %v676 = vpack.i.b16 %v612, %v612
      %v677 = vpack.i.b16 %v613, %v613
      %v678 = vpack.i.b16 %v614, %v614
      %v679 = vpack.i.b16 %v615, %v615
      %v680 = vpack.i.b16 %v616, %v616
      %v681 = vpack.i.b16 %v617, %v617
      %v682 = vpack.i.b16 %v618, %v618
      %v683 = vpack.i.b16 %v619, %v619
      %v684 = vpack.i.b16 %v620, %v620
      %v685 = vpack.i.b16 %v621, %v621
      %v686 = vpack.i.b16 %v622, %v622
      %v687 = vpack.i.b16 %v623, %v623
      %v688 = vpack.i.b16 %v624, %v624
      %v689 = vpack.i.b16 %v625, %v625
      %v690 = vpack.i.b16 %v626, %v626
      %v691 = vpack.i.b16 %v627, %v627
      %v692 = vpack.i.b16 %v628, %v628
      %v693 = vpack.i.b16 %v629, %v629
      %v694 = vpack.i.b16 %v630, %v630
      %v695 = vpack.i.b16 %v631, %v631
      %v696 = vpack.i.b16 %v632, %v632
      %v697 = vpack.i.b16 %v633, %v633
      %v698 = vpack.i.b16 %v634, %v634
      %v699 = vpack.i.b16 %v635, %v635
      %v700 = vpack.i.b16 %v636, %v636
      %v701 = vpack.i.b16 %v637, %v637
      %v702 = vpack.i.b16 %v638, %v638
      %v703 = vpack.i.b16 %v639, %v639
      %v704 = vpack.i.b16 %v640, %v640
      %v705 = vpack.i.b16 %v641, %v641
      %v706 = vperm.slane %v642, 0
      %v707 = vperm.slane %v643, 0
      %v708 = vperm.slane %v644, 0
      %v709 = vperm.slane %v645, 0
      %v710 = vperm.slane %v646, 0
      %v711 = vperm.slane %v647, 0
      %v712 = vperm.slane %v648, 0
      %v713 = vperm.slane %v649, 0
      %v714 = vperm.slane %v650, 0
      %v715 = vperm.slane %v651, 0
      %v716 = vperm.slane %v652, 0
      %v717 = vperm.slane %v653, 0
      %v718 = vperm.slane %v654, 0
      %v719 = vperm.slane %v655, 0
      %v720 = vperm.slane %v656, 0
      %v721 = vperm.slane %v657, 0
      %v722 = vperm.slane %v658, 0
      %v723 = vperm.slane %v659, 0
      %v724 = vperm.slane %v660, 0
      %v725 = vperm.slane %v661, 0
      %v726 = vperm.slane %v662, 0
      %v727 = vperm.slane %v663, 0
      %v728 = vperm.slane %v664, 0
      %v729 = vperm.slane %v665, 0
      %v730 = vperm.slane %v666, 0
      %v731 = vperm.slane %v667, 0
      %v732 = vperm.slane %v668, 0
      %v733 = vperm.slane %v669, 0
      %v734 = vperm.slane %v670, 0
      %v735 = vperm.slane %v671, 0
      %v736 = vperm.slane %v672, 0
      %v737 = vperm.slane %v673, 0
      %v738 = vperm.slane %v674, 0
      %v739 = vperm.slane %v675, 0
      %v740 = vperm.slane %v676, 0
      %v741 = vperm.slane %v677, 0
      %v742 = vperm.slane %v678, 0
      %v743 = vperm.slane %v679, 0
      %v744 = vperm.slane %v680, 0
      %v745 = vperm.slane %v681, 0
      %v746 = vperm.slane %v682, 0
      %v747 = vperm.slane %v683, 0
      %v748 = vperm.slane %v684, 0
      %v749 = vperm.slane %v685, 0
      %v750 = vperm.slane %v686, 0
      %v751 = vperm.slane %v687, 0
      %v752 = vperm.slane %v688, 0
      %v753 = vperm.slane %v689, 0
      %v754 = vperm.slane %v690, 0
      %v755 = vperm.slane %v691, 0
      %v756 = vperm.slane %v692, 0
      %v757 = vperm.slane %v693, 0
      %v758 = vperm.slane %v694, 0
      %v759 = vperm.slane %v695, 0
      %v760 = vperm.slane %v696, 0
      %v761 = vperm.slane %v697, 0
      %v762 = vperm.slane %v698, 0
      %v763 = vperm.slane %v699, 0
      %v764 = vperm.slane %v700, 0
      %v765 = vperm.slane %v701, 0
      %v766 = vperm.slane %v702, 0
      %v767 = vperm.slane %v703, 0
      %v768 = vperm.slane %v704, 0
      %v769 = vperm.slane %v705, 0
      %v771 = vpack.i.b16 %v706, %v706
      %v773 = vperm.slane %v771, 0
      %v775 = vpack.i.b16 %v707, %v707
      %v777 = vperm.slane %v775, 0
      %v779 = vpack.i.b16 %v708, %v708
      %v781 = vperm.slane %v779, 0
      %v783 = vpack.i.b16 %v709, %v709
      %v785 = vperm.slane %v783, 0
      %v787 = vpack.i.b16 %v710, %v710
      %v789 = vperm.slane %v787, 0
      %v791 = vpack.i.b16 %v711, %v711
      %v793 = vperm.slane %v791, 0
      %v795 = vpack.i.b16 %v712, %v712
      %v797 = vperm.slane %v795, 0
      %v799 = vpack.i.b16 %v713, %v713
      %v801 = vperm.slane %v799, 0
      %v803 = vpack.i.b16 %v714, %v714
      %v805 = vperm.slane %v803, 0
      %v807 = vpack.i.b16 %v715, %v715
      %v809 = vperm.slane %v807, 0
      %v811 = vpack.i.b16 %v716, %v716
      %v813 = vperm.slane %v811, 0
      %v815 = vpack.i.b16 %v717, %v717
      %v817 = vperm.slane %v815, 0
      %v819 = vpack.i.b16 %v718, %v718
      %v821 = vperm.slane %v819, 0
      %v823 = vpack.i.b16 %v719, %v719
      %v825 = vperm.slane %v823, 0
      %v827 = vpack.i.b16 %v720, %v720
      %v829 = vperm.slane %v827, 0
      %v831 = vpack.i.b16 %v721, %v721
      %v833 = vperm.slane %v831, 0
      %v835 = vpack.i.b16 %v722, %v722
      %v837 = vperm.slane %v835, 0
      %v839 = vpack.i.b16 %v723, %v723
      %v841 = vperm.slane %v839, 0
      %v843 = vpack.i.b16 %v724, %v724
      %v845 = vperm.slane %v843, 0
      %v847 = vpack.i.b16 %v725, %v725
      %v849 = vperm.slane %v847, 0
      %v851 = vpack.i.b16 %v726, %v726
      %v853 = vperm.slane %v851, 0
      %v855 = vpack.i.b16 %v727, %v727
      %v857 = vperm.slane %v855, 0
      %v859 = vpack.i.b16 %v728, %v728
      %v861 = vperm.slane %v859, 0
      %v863 = vpack.i.b16 %v729, %v729
      %v865 = vperm.slane %v863, 0
      %v867 = vpack.i.b16 %v730, %v730
      %v869 = vperm.slane %v867, 0
      %v871 = vpack.i.b16 %v731, %v731
      %v873 = vperm.slane %v871, 0
      %v875 = vpack.i.b16 %v732, %v732
      %v877 = vperm.slane %v875, 0
      %v879 = vpack.i.b16 %v733, %v733
      %v881 = vperm.slane %v879, 0
      %v883 = vpack.i.b16 %v734, %v734
      %v885 = vperm.slane %v883, 0
      %v887 = vpack.i.b16 %v735, %v735
      %v889 = vperm.slane %v887, 0
      %v891 = vpack.i.b16 %v736, %v736
      %v893 = vperm.slane %v891, 0
      %v895 = vpack.i.b16 %v737, %v737
      %v897 = vperm.slane %v895, 0
      %v899 = vpack.i.b16 %v738, %v738
      %v901 = vperm.slane %v899, 0
      %v903 = vpack.i.b16 %v739, %v739
      %v905 = vperm.slane %v903, 0
      %v907 = vpack.i.b16 %v740, %v740
      %v909 = vperm.slane %v907, 0
      %v911 = vpack.i.b16 %v741, %v741
      %v913 = vperm.slane %v911, 0
      %v915 = vpack.i.b16 %v742, %v742
      %v917 = vperm.slane %v915, 0
      %v919 = vpack.i.b16 %v743, %v743
      %v921 = vperm.slane %v919, 0
      %v923 = vpack.i.b16 %v744, %v744
      %v925 = vperm.slane %v923, 0
      %v927 = vpack.i.b16 %v745, %v745
      %v929 = vperm.slane %v927, 0
      %v931 = vpack.i.b16 %v746, %v746
      %v933 = vperm.slane %v931, 0
      %v935 = vpack.i.b16 %v747, %v747
      %v937 = vperm.slane %v935, 0
      %v939 = vpack.i.b16 %v748, %v748
      %v941 = vperm.slane %v939, 0
      %v943 = vpack.i.b16 %v749, %v749
      %v945 = vperm.slane %v943, 0
      %v947 = vpack.i.b16 %v750, %v750
      %v949 = vperm.slane %v947, 0
      %v951 = vpack.i.b16 %v751, %v751
      %v953 = vperm.slane %v951, 0
      %v955 = vpack.i.b16 %v752, %v752
      %v957 = vperm.slane %v955, 0
      %v959 = vpack.i.b16 %v753, %v753
      %v961 = vperm.slane %v959, 0
      %v963 = vpack.i.b16 %v754, %v754
      %v965 = vperm.slane %v963, 0
      %v967 = vpack.i.b16 %v755, %v755
      %v969 = vperm.slane %v967, 0
      %v971 = vpack.i.b16 %v756, %v756
      %v973 = vperm.slane %v971, 0
      %v975 = vpack.i.b16 %v757, %v757
      %v977 = vperm.slane %v975, 0
      %v979 = vpack.i.b16 %v758, %v758
      %v981 = vperm.slane %v979, 0
      %v983 = vpack.i.b16 %v759, %v759
      %v985 = vperm.slane %v983, 0
      %v987 = vpack.i.b16 %v760, %v760
      %v989 = vperm.slane %v987, 0
      %v991 = vpack.i.b16 %v761, %v761
      %v993 = vperm.slane %v991, 0
      %v995 = vpack.i.b16 %v762, %v762
      %v997 = vperm.slane %v995, 0
      %v999 = vpack.i.b16 %v763, %v763
      %v1001 = vperm.slane %v999, 0
      %v1003 = vpack.i.b16 %v764, %v764
      %v1005 = vperm.slane %v1003, 0
      %v1007 = vpack.i.b16 %v765, %v765
      %v1009 = vperm.slane %v1007, 0
      %v1011 = vpack.i.b16 %v766, %v766
      %v1013 = vperm.slane %v1011, 0
      %v1015 = vpack.i.b16 %v767, %v767
      %v1017 = vperm.slane %v1015, 0
      %v1019 = vpack.i.b16 %v768, %v768
      %v1021 = vperm.slane %v1019, 0
      %v1023 = vpack.i.b16 %v769, %v769
      %v1025 = vperm.slane %v1023, 0
      %v1026 = vld [vmem:[%s435] sm:$0xf]
      %v1027 = vld [vmem:[%s435 + $0x4] sm:$0xf]
      %v1028 = vld [vmem:[%s435 + $0x8] sm:$0xf]
      %v1029 = vld [vmem:[%s435 + $0xc] sm:$0xf]
      %v1030 = vld [vmem:[%s435 + $0x10] sm:$0xf]
      %v1031 = vld [vmem:[%s435 + $0x14] sm:$0xf]
      %v1032 = vld [vmem:[%s435 + $0x18] sm:$0xf]
      %v1033 = vld [vmem:[%s435 + $0x1c] sm:$0xf]
      %v1034 = vld [vmem:[%s435 + $0x20] sm:$0xf]
      %v1035 = vld [vmem:[%s435 + $0x24] sm:$0xf]
      %v1036 = vld [vmem:[%s435 + $0x28] sm:$0xf]
      %v1037 = vld [vmem:[%s435 + $0x2c] sm:$0xf]
      %v1038 = vld [vmem:[%s435 + $0x30] sm:$0xf]
      %v1039 = vld [vmem:[%s435 + $0x34] sm:$0xf]
      %v1040 = vld [vmem:[%s435 + $0x38] sm:$0xf]
      %v1041 = vld [vmem:[%s435 + $0x3c] sm:$0xf]
      %v1042 = vld [vmem:[%s435 + $0x40] sm:$0xf]
      %v1043 = vld [vmem:[%s435 + $0x44] sm:$0xf]
      %v1044 = vld [vmem:[%s435 + $0x48] sm:$0xf]
      %v1045 = vld [vmem:[%s435 + $0x4c] sm:$0xf]
      %v1046 = vld [vmem:[%s435 + $0x50] sm:$0xf]
      %v1047 = vld [vmem:[%s435 + $0x54] sm:$0xf]
      %v1048 = vld [vmem:[%s435 + $0x58] sm:$0xf]
      %v1049 = vld [vmem:[%s435 + $0x5c] sm:$0xf]
      %v1050 = vld [vmem:[%s435 + $0x60] sm:$0xf]
      %v1051 = vld [vmem:[%s435 + $0x64] sm:$0xf]
      %v1052 = vld [vmem:[%s435 + $0x68] sm:$0xf]
      %v1053 = vld [vmem:[%s435 + $0x6c] sm:$0xf]
      %v1054 = vld [vmem:[%s435 + $0x70] sm:$0xf]
      %v1055 = vld [vmem:[%s435 + $0x74] sm:$0xf]
      %v1056 = vld [vmem:[%s435 + $0x78] sm:$0xf]
      %v1057 = vld [vmem:[%s435 + $0x7c] sm:$0xf]
      %1059 = vst [vmem:[#allocation1] ss:$9 sm:$0xff] %v773
      %s1061 = scalar_lea.vmem [#allocation1], 1
      %1062 = vst [vmem:[%s1061] ss:$9 sm:$0xff] %v777
      %s1064 = scalar_lea.vmem [#allocation1], 2
      %1065 = vst [vmem:[%s1064] ss:$9 sm:$0xff] %v781
      %s1067 = scalar_lea.vmem [#allocation1], 3
      %1068 = vst [vmem:[%s1067] ss:$9 sm:$0xff] %v785
      %s1070 = scalar_lea.vmem [#allocation1], 4
      %1071 = vst [vmem:[%s1070] ss:$9 sm:$0xff] %v789
      %s1073 = scalar_lea.vmem [#allocation1], 5
      %1074 = vst [vmem:[%s1073] ss:$9 sm:$0xff] %v793
      %s1076 = scalar_lea.vmem [#allocation1], 6
      %1077 = vst [vmem:[%s1076] ss:$9 sm:$0xff] %v797
      %s1079 = scalar_lea.vmem [#allocation1], 7
      %1080 = vst [vmem:[%s1079] ss:$9 sm:$0xff] %v801
      %v1081 = vld [vmem:[#allocation1] sm:$0xff]
      %1082 = vst [vmem:[#allocation1] ss:$9 sm:$0xff] %v773
      %1083 = vst [vmem:[%s1061] ss:$9 sm:$0xff] %v777
      %1084 = vst [vmem:[%s1064] ss:$9 sm:$0xff] %v781
      %1085 = vst [vmem:[%s1067] ss:$9 sm:$0xff] %v785
      %1086 = vst [vmem:[%s1070] ss:$9 sm:$0xff] %v789
      %1087 = vst [vmem:[%s1073] ss:$9 sm:$0xff] %v793
      %1088 = vst [vmem:[%s1076] ss:$9 sm:$0xff] %v797
      %1089 = vst [vmem:[%s1079] ss:$9 sm:$0xff] %v801
      %v1090 = vld [vmem:[#allocation1] sm:$0xff]
      %1092 = vst [vmem:[#allocation1] ss:$9 sm:$0xff] %v805
      %1094 = vst [vmem:[%s1061] ss:$9 sm:$0xff] %v809
      %1096 = vst [vmem:[%s1064] ss:$9 sm:$0xff] %v813
      %1098 = vst [vmem:[%s1067] ss:$9 sm:$0xff] %v817
      %1100 = vst [vmem:[%s1070] ss:$9 sm:$0xff] %v821
      %1102 = vst [vmem:[%s1073] ss:$9 sm:$0xff] %v825
      %1104 = vst [vmem:[%s1076] ss:$9 sm:$0xff] %v829
      %1106 = vst [vmem:[%s1079] ss:$9 sm:$0xff] %v833
      %v1107 = vld [vmem:[#allocation1] sm:$0xff]
      %1108 = vst [vmem:[#allocation1] ss:$9 sm:$0xff] %v805
      %1109 = vst [vmem:[%s1061] ss:$9 sm:$0xff] %v809
      %1110 = vst [vmem:[%s1064] ss:$9 sm:$0xff] %v813
      %1111 = vst [vmem:[%s1067] ss:$9 sm:$0xff] %v817
      %1112 = vst [vmem:[%s1070] ss:$9 sm:$0xff] %v821
      %1113 = vst [vmem:[%s1073] ss:$9 sm:$0xff] %v825
      %1114 = vst [vmem:[%s1076] ss:$9 sm:$0xff] %v829
      %1115 = vst [vmem:[%s1079] ss:$9 sm:$0xff] %v833
      %v1116 = vld [vmem:[#allocation1] sm:$0xff]
      %1118 = vst [vmem:[#allocation1] ss:$9 sm:$0xff] %v837
      %1120 = vst [vmem:[%s1061] ss:$9 sm:$0xff] %v841
      %1122 = vst [vmem:[%s1064] ss:$9 sm:$0xff] %v845
      %1124 = vst [vmem:[%s1067] ss:$9 sm:$0xff] %v849
      %1126 = vst [vmem:[%s1070] ss:$9 sm:$0xff] %v853
      %1128 = vst [vmem:[%s1073] ss:$9 sm:$0xff] %v857
      %1130 = vst [vmem:[%s1076] ss:$9 sm:$0xff] %v861
      %1132 = vst [vmem:[%s1079] ss:$9 sm:$0xff] %v865
      %v1133 = vld [vmem:[#allocation1] sm:$0xff]
      %1134 = vst [vmem:[#allocation1] ss:$9 sm:$0xff] %v837
      %1135 = vst [vmem:[%s1061] ss:$9 sm:$0xff] %v841
      %1136 = vst [vmem:[%s1064] ss:$9 sm:$0xff] %v845
      %1137 = vst [vmem:[%s1067] ss:$9 sm:$0xff] %v849
      %1138 = vst [vmem:[%s1070] ss:$9 sm:$0xff] %v853
      %1139 = vst [vmem:[%s1073] ss:$9 sm:$0xff] %v857
      %1140 = vst [vmem:[%s1076] ss:$9 sm:$0xff] %v861
      %1141 = vst [vmem:[%s1079] ss:$9 sm:$0xff] %v865
      %v1142 = vld [vmem:[#allocation1] sm:$0xff]
      %1144 = vst [vmem:[#allocation1] ss:$9 sm:$0xff] %v869
      %1146 = vst [vmem:[%s1061] ss:$9 sm:$0xff] %v873
      %1148 = vst [vmem:[%s1064] ss:$9 sm:$0xff] %v877
      %1150 = vst [vmem:[%s1067] ss:$9 sm:$0xff] %v881
      %1152 = vst [vmem:[%s1070] ss:$9 sm:$0xff] %v885
      %1154 = vst [vmem:[%s1073] ss:$9 sm:$0xff] %v889
      %1156 = vst [vmem:[%s1076] ss:$9 sm:$0xff] %v893
      %1158 = vst [vmem:[%s1079] ss:$9 sm:$0xff] %v897
      %v1159 = vld [vmem:[#allocation1] sm:$0xff]
      %1160 = vst [vmem:[#allocation1] ss:$9 sm:$0xff] %v869
      %1161 = vst [vmem:[%s1061] ss:$9 sm:$0xff] %v873
      %1162 = vst [vmem:[%s1064] ss:$9 sm:$0xff] %v877
      %1163 = vst [vmem:[%s1067] ss:$9 sm:$0xff] %v881
      %1164 = vst [vmem:[%s1070] ss:$9 sm:$0xff] %v885
      %1165 = vst [vmem:[%s1073] ss:$9 sm:$0xff] %v889
      %1166 = vst [vmem:[%s1076] ss:$9 sm:$0xff] %v893
      %1167 = vst [vmem:[%s1079] ss:$9 sm:$0xff] %v897
      %v1168 = vld [vmem:[#allocation1] sm:$0xff]
      %1170 = vst [vmem:[#allocation1] ss:$9 sm:$0xff] %v901
      %1172 = vst [vmem:[%s1061] ss:$9 sm:$0xff] %v905
      %1174 = vst [vmem:[%s1064] ss:$9 sm:$0xff] %v909
      %1176 = vst [vmem:[%s1067] ss:$9 sm:$0xff] %v913
      %1178 = vst [vmem:[%s1070] ss:$9 sm:$0xff] %v917
      %1180 = vst [vmem:[%s1073] ss:$9 sm:$0xff] %v921
      %1182 = vst [vmem:[%s1076] ss:$9 sm:$0xff] %v925
      %1184 = vst [vmem:[%s1079] ss:$9 sm:$0xff] %v929
      %v1185 = vld [vmem:[#allocation1] sm:$0xff]
      %1186 = vst [vmem:[#allocation1] ss:$9 sm:$0xff] %v901
      %1187 = vst [vmem:[%s1061] ss:$9 sm:$0xff] %v905
      %1188 = vst [vmem:[%s1064] ss:$9 sm:$0xff] %v909
      %1189 = vst [vmem:[%s1067] ss:$9 sm:$0xff] %v913
      %1190 = vst [vmem:[%s1070] ss:$9 sm:$0xff] %v917
      %1191 = vst [vmem:[%s1073] ss:$9 sm:$0xff] %v921
      %1192 = vst [vmem:[%s1076] ss:$9 sm:$0xff] %v925
      %1193 = vst [vmem:[%s1079] ss:$9 sm:$0xff] %v929
      %v1194 = vld [vmem:[#allocation1] sm:$0xff]
      %1196 = vst [vmem:[#allocation1] ss:$9 sm:$0xff] %v933
      %1198 = vst [vmem:[%s1061] ss:$9 sm:$0xff] %v937
      %1200 = vst [vmem:[%s1064] ss:$9 sm:$0xff] %v941
      %1202 = vst [vmem:[%s1067] ss:$9 sm:$0xff] %v945
      %1204 = vst [vmem:[%s1070] ss:$9 sm:$0xff] %v949
      %1206 = vst [vmem:[%s1073] ss:$9 sm:$0xff] %v953
      %1208 = vst [vmem:[%s1076] ss:$9 sm:$0xff] %v957
      %1210 = vst [vmem:[%s1079] ss:$9 sm:$0xff] %v961
      %v1211 = vld [vmem:[#allocation1] sm:$0xff]
      %1212 = vst [vmem:[#allocation1] ss:$9 sm:$0xff] %v933
      %1213 = vst [vmem:[%s1061] ss:$9 sm:$0xff] %v937
      %1214 = vst [vmem:[%s1064] ss:$9 sm:$0xff] %v941
      %1215 = vst [vmem:[%s1067] ss:$9 sm:$0xff] %v945
      %1216 = vst [vmem:[%s1070] ss:$9 sm:$0xff] %v949
      %1217 = vst [vmem:[%s1073] ss:$9 sm:$0xff] %v953
      %1218 = vst [vmem:[%s1076] ss:$9 sm:$0xff] %v957
      %1219 = vst [vmem:[%s1079] ss:$9 sm:$0xff] %v961
      %v1220 = vld [vmem:[#allocation1] sm:$0xff]
      %1222 = vst [vmem:[#allocation1] ss:$9 sm:$0xff] %v965
      %1224 = vst [vmem:[%s1061] ss:$9 sm:$0xff] %v969
      %1226 = vst [vmem:[%s1064] ss:$9 sm:$0xff] %v973
      %1228 = vst [vmem:[%s1067] ss:$9 sm:$0xff] %v977
      %1230 = vst [vmem:[%s1070] ss:$9 sm:$0xff] %v981
      %1232 = vst [vmem:[%s1073] ss:$9 sm:$0xff] %v985
      %1234 = vst [vmem:[%s1076] ss:$9 sm:$0xff] %v989
      %1236 = vst [vmem:[%s1079] ss:$9 sm:$0xff] %v993
      %v1237 = vld [vmem:[#allocation1] sm:$0xff]
      %1238 = vst [vmem:[#allocation1] ss:$9 sm:$0xff] %v965
      %1239 = vst [vmem:[%s1061] ss:$9 sm:$0xff] %v969
      %1240 = vst [vmem:[%s1064] ss:$9 sm:$0xff] %v973
      %1241 = vst [vmem:[%s1067] ss:$9 sm:$0xff] %v977
      %1242 = vst [vmem:[%s1070] ss:$9 sm:$0xff] %v981
      %1243 = vst [vmem:[%s1073] ss:$9 sm:$0xff] %v985
      %1244 = vst [vmem:[%s1076] ss:$9 sm:$0xff] %v989
      %1245 = vst [vmem:[%s1079] ss:$9 sm:$0xff] %v993
      %v1246 = vld [vmem:[#allocation1] sm:$0xff]
      %1248 = vst [vmem:[#allocation1] ss:$9 sm:$0xff] %v997
      %1250 = vst [vmem:[%s1061] ss:$9 sm:$0xff] %v1001
      %1252 = vst [vmem:[%s1064] ss:$9 sm:$0xff] %v1005
      %1254 = vst [vmem:[%s1067] ss:$9 sm:$0xff] %v1009
      %1256 = vst [vmem:[%s1070] ss:$9 sm:$0xff] %v1013
      %1258 = vst [vmem:[%s1073] ss:$9 sm:$0xff] %v1017
      %1260 = vst [vmem:[%s1076] ss:$9 sm:$0xff] %v1021
      %1262 = vst [vmem:[%s1079] ss:$9 sm:$0xff] %v1025
      %v1263 = vld [vmem:[#allocation1] sm:$0xff]
      %1264 = vst [vmem:[#allocation1] ss:$9 sm:$0xff] %v997
      %1265 = vst [vmem:[%s1061] ss:$9 sm:$0xff] %v1001
      %1266 = vst [vmem:[%s1064] ss:$9 sm:$0xff] %v1005
      %1267 = vst [vmem:[%s1067] ss:$9 sm:$0xff] %v1009
      %1268 = vst [vmem:[%s1070] ss:$9 sm:$0xff] %v1013
      %1269 = vst [vmem:[%s1073] ss:$9 sm:$0xff] %v1017
      %1270 = vst [vmem:[%s1076] ss:$9 sm:$0xff] %v1021
      %1271 = vst [vmem:[%s1079] ss:$9 sm:$0xff] %v1025
      %v1272 = vld [vmem:[#allocation1] sm:$0xff]
      %v1305 = vunpack.c.l.b16 %v1026
      %v1306 = vunpack.c.l.b16 %v1027
      %v1307 = vunpack.c.l.b16 %v1028
      %v1308 = vunpack.c.l.b16 %v1029
      %v1309 = vunpack.c.l.b16 %v1030
      %v1310 = vunpack.c.l.b16 %v1031
      %v1311 = vunpack.c.l.b16 %v1032
      %v1312 = vunpack.c.l.b16 %v1033
      %v1313 = vunpack.c.l.b16 %v1034
      %v1314 = vunpack.c.l.b16 %v1035
      %v1315 = vunpack.c.l.b16 %v1036
      %v1316 = vunpack.c.l.b16 %v1037
      %v1317 = vunpack.c.l.b16 %v1038
      %v1318 = vunpack.c.l.b16 %v1039
      %v1319 = vunpack.c.l.b16 %v1040
      %v1320 = vunpack.c.l.b16 %v1041
      %v1321 = vunpack.c.l.b16 %v1042
      %v1322 = vunpack.c.l.b16 %v1043
      %v1323 = vunpack.c.l.b16 %v1044
      %v1324 = vunpack.c.l.b16 %v1045
      %v1325 = vunpack.c.l.b16 %v1046
      %v1326 = vunpack.c.l.b16 %v1047
      %v1327 = vunpack.c.l.b16 %v1048
      %v1328 = vunpack.c.l.b16 %v1049
      %v1329 = vunpack.c.l.b16 %v1050
      %v1330 = vunpack.c.l.b16 %v1051
      %v1331 = vunpack.c.l.b16 %v1052
      %v1332 = vunpack.c.l.b16 %v1053
      %v1333 = vunpack.c.l.b16 %v1054
      %v1334 = vunpack.c.l.b16 %v1055
      %v1335 = vunpack.c.l.b16 %v1056
      %v1336 = vunpack.c.l.b16 %v1057
      %v1337 = vpack.c.b16 %v1306, %v1305
      %v1338 = vpack.c.b16 %v1308, %v1307
      %v1339 = vpack.c.b16 %v1310, %v1309
      %v1340 = vpack.c.b16 %v1312, %v1311
      %v1341 = vpack.c.b16 %v1314, %v1313
      %v1342 = vpack.c.b16 %v1316, %v1315
      %v1343 = vpack.c.b16 %v1318, %v1317
      %v1344 = vpack.c.b16 %v1320, %v1319
      %v1345 = vpack.c.b16 %v1322, %v1321
      %v1346 = vpack.c.b16 %v1324, %v1323
      %v1347 = vpack.c.b16 %v1326, %v1325
      %v1348 = vpack.c.b16 %v1328, %v1327
      %v1349 = vpack.c.b16 %v1330, %v1329
      %v1350 = vpack.c.b16 %v1332, %v1331
      %v1351 = vpack.c.b16 %v1334, %v1333
      %v1352 = vpack.c.b16 %v1336, %v1335
      %1353 = vrot.lane.b32.xlu0 %v1337, 4
      %v1354 = vpop.permute.xlu0 %1353
      %1355 = vrot.lane.b32.xlu0 %v1338, 4
      %v1356 = vpop.permute.xlu0 %1355
      %1357 = vrot.lane.b32.xlu0 %v1339, 4
      %v1358 = vpop.permute.xlu0 %1357
      %1359 = vrot.lane.b32.xlu0 %v1340, 4
      %v1360 = vpop.permute.xlu0 %1359
      %1361 = vrot.lane.b32.xlu0 %v1341, 4
      %v1362 = vpop.permute.xlu0 %1361
      %1363 = vrot.lane.b32.xlu0 %v1342, 4
      %v1364 = vpop.permute.xlu0 %1363
      %1365 = vrot.lane.b32.xlu0 %v1343, 4
      %v1366 = vpop.permute.xlu0 %1365
      %1367 = vrot.lane.b32.xlu0 %v1344, 4
      %v1368 = vpop.permute.xlu0 %1367
      %1369 = vrot.lane.b32.xlu0 %v1345, 4
      %v1370 = vpop.permute.xlu0 %1369
      %1371 = vrot.lane.b32.xlu0 %v1346, 4
      %v1372 = vpop.permute.xlu0 %1371
      %1373 = vrot.lane.b32.xlu0 %v1347, 4
      %v1374 = vpop.permute.xlu0 %1373
      %1375 = vrot.lane.b32.xlu0 %v1348, 4
      %v1376 = vpop.permute.xlu0 %1375
      %1377 = vrot.lane.b32.xlu0 %v1349, 4
      %v1378 = vpop.permute.xlu0 %1377
      %1379 = vrot.lane.b32.xlu0 %v1350, 4
      %v1380 = vpop.permute.xlu0 %1379
      %1381 = vrot.lane.b32.xlu0 %v1351, 4
      %v1382 = vpop.permute.xlu0 %1381
      %1383 = vrot.lane.b32.xlu0 %v1352, 4
      %v1384 = vpop.permute.xlu0 %1383
      %vm1385 = vcmask 31744
      %v1387 = vsel %vm1385, %v1081, %v1354
      %v1390 = vsel %vm1385, %v1090, %v1356
      %v1393 = vsel %vm1385, %v1107, %v1358
      %v1396 = vsel %vm1385, %v1116, %v1360
      %v1399 = vsel %vm1385, %v1133, %v1362
      %v1402 = vsel %vm1385, %v1142, %v1364
      %v1405 = vsel %vm1385, %v1159, %v1366
      %v1408 = vsel %vm1385, %v1168, %v1368
      %v1411 = vsel %vm1385, %v1185, %v1370
      %v1414 = vsel %vm1385, %v1194, %v1372
      %v1417 = vsel %vm1385, %v1211, %v1374
      %v1420 = vsel %vm1385, %v1220, %v1376
      %v1423 = vsel %vm1385, %v1237, %v1378
      %v1426 = vsel %vm1385, %v1246, %v1380
      %v1429 = vsel %vm1385, %v1263, %v1382
      %v1432 = vsel %vm1385, %v1272, %v1384
      %vm1434 = vcmask 60416
      %1435 = vst.msk [vmem:[#allocation2] sm:$0xf] %vm1434, 0
      %1436 = vst.msk [vmem:[#allocation2 + $0x4] sm:$0xf] %vm1434, 0
      %vm1437 = vcmask 57344
      %1438 = vst.msk [vmem:[#allocation2 + $0x8] sm:$0x1] %vm1437, 0
      %s1439 = scalar_lea.vmem [#allocation2], 204
      %1440 = vst.msk [vmem:[%s1439] sm:$0xf] %vm1434, 0
      %1441 = vst.msk [vmem:[%s1439 + $0x4] sm:$0xf] %vm1434, 0
      %1442 = vst.msk [vmem:[%s1439 + $0x8] sm:$0x1] %vm1437, 0
      %s1443 = scalar_lea.vmem [#allocation2], 12
      %vm1444 = vcmask 57344
      %vm1445 = vsmask.f32 256
      %vm1446 = vmand %vm1444, %vm1445
      %v1447 = vld [vmem:[%s1443] sm:$0x1]
      %v1448 = vsel %vm1446, 0, %v1447
      %1449 = vst [vmem:[%s1443] sm:$0x1] %v1448
      %v1450 = vld [vmem:[%s1443 + $0xc] sm:$0x1]
      %v1451 = vsel %vm1446, 0, %v1450
      %1452 = vst [vmem:[%s1443 + $0xc] sm:$0x1] %v1451
      %v1453 = vld [vmem:[%s1443 + $0x18] sm:$0x1]
      %v1454 = vsel %vm1446, 0, %v1453
      %1455 = vst [vmem:[%s1443 + $0x18] sm:$0x1] %v1454
      %v1456 = vld [vmem:[%s1443 + $0x24] sm:$0x1]
      %v1457 = vsel %vm1446, 0, %v1456
      %1458 = vst [vmem:[%s1443 + $0x24] sm:$0x1] %v1457
      %v1459 = vld [vmem:[%s1443 + $0x30] sm:$0x1]
      %v1460 = vsel %vm1446, 0, %v1459
      %1461 = vst [vmem:[%s1443 + $0x30] sm:$0x1] %v1460
      %v1462 = vld [vmem:[%s1443 + $0x3c] sm:$0x1]
      %v1463 = vsel %vm1446, 0, %v1462
      %1464 = vst [vmem:[%s1443 + $0x3c] sm:$0x1] %v1463
      %v1465 = vld [vmem:[%s1443 + $0x48] sm:$0x1]
      %v1466 = vsel %vm1446, 0, %v1465
      %1467 = vst [vmem:[%s1443 + $0x48] sm:$0x1] %v1466
      %v1468 = vld [vmem:[%s1443 + $0x54] sm:$0x1]
      %v1469 = vsel %vm1446, 0, %v1468
      %1470 = vst [vmem:[%s1443 + $0x54] sm:$0x1] %v1469
      %v1471 = vld [vmem:[%s1443 + $0x60] sm:$0x1]
      %v1472 = vsel %vm1446, 0, %v1471
      %1473 = vst [vmem:[%s1443 + $0x60] sm:$0x1] %v1472
      %v1474 = vld [vmem:[%s1443 + $0x6c] sm:$0x1]
      %v1475 = vsel %vm1446, 0, %v1474
      %1476 = vst [vmem:[%s1443 + $0x6c] sm:$0x1] %v1475
      %v1477 = vld [vmem:[%s1443 + $0x78] sm:$0x1]
      %v1478 = vsel %vm1446, 0, %v1477
      %1479 = vst [vmem:[%s1443 + $0x78] sm:$0x1] %v1478
      %v1480 = vld [vmem:[%s1443 + $0x84] sm:$0x1]
      %v1481 = vsel %vm1446, 0, %v1480
      %1482 = vst [vmem:[%s1443 + $0x84] sm:$0x1] %v1481
      %v1483 = vld [vmem:[%s1443 + $0x90] sm:$0x1]
      %v1484 = vsel %vm1446, 0, %v1483
      %1485 = vst [vmem:[%s1443 + $0x90] sm:$0x1] %v1484
      %v1486 = vld [vmem:[%s1443 + $0x9c] sm:$0x1]
      %v1487 = vsel %vm1446, 0, %v1486
      %1488 = vst [vmem:[%s1443 + $0x9c] sm:$0x1] %v1487
      %v1489 = vld [vmem:[%s1443 + $0xa8] sm:$0x1]
      %v1490 = vsel %vm1446, 0, %v1489
      %1491 = vst [vmem:[%s1443 + $0xa8] sm:$0x1] %v1490
      %v1492 = vld [vmem:[%s1443 + $0xb4] sm:$0x1]
      %v1493 = vsel %vm1446, 0, %v1492
      %1494 = vst [vmem:[%s1443 + $0xb4] sm:$0x1] %v1493
      %vm1495 = vsmask.f32 7938
      %vm1496 = vmand %vm1444, %vm1495
      %v1497 = vld [vmem:[%s1443 + $0x8] sm:$0x1]
      %v1498 = vsel %vm1496, 0, %v1497
      %1499 = vst [vmem:[%s1443 + $0x8] sm:$0x1] %v1498
      %v1500 = vld [vmem:[%s1443 + $0x14] sm:$0x1]
      %v1501 = vsel %vm1496, 0, %v1500
      %1502 = vst [vmem:[%s1443 + $0x14] sm:$0x1] %v1501
      %v1503 = vld [vmem:[%s1443 + $0x20] sm:$0x1]
      %v1504 = vsel %vm1496, 0, %v1503
      %1505 = vst [vmem:[%s1443 + $0x20] sm:$0x1] %v1504
      %v1506 = vld [vmem:[%s1443 + $0x2c] sm:$0x1]
      %v1507 = vsel %vm1496, 0, %v1506
      %1508 = vst [vmem:[%s1443 + $0x2c] sm:$0x1] %v1507
      %v1509 = vld [vmem:[%s1443 + $0x38] sm:$0x1]
      %v1510 = vsel %vm1496, 0, %v1509
      %1511 = vst [vmem:[%s1443 + $0x38] sm:$0x1] %v1510
      %v1512 = vld [vmem:[%s1443 + $0x44] sm:$0x1]
      %v1513 = vsel %vm1496, 0, %v1512
      %1514 = vst [vmem:[%s1443 + $0x44] sm:$0x1] %v1513
      %v1515 = vld [vmem:[%s1443 + $0x50] sm:$0x1]
      %v1516 = vsel %vm1496, 0, %v1515
      %1517 = vst [vmem:[%s1443 + $0x50] sm:$0x1] %v1516
      %v1518 = vld [vmem:[%s1443 + $0x5c] sm:$0x1]
      %v1519 = vsel %vm1496, 0, %v1518
      %1520 = vst [vmem:[%s1443 + $0x5c] sm:$0x1] %v1519
      %v1521 = vld [vmem:[%s1443 + $0x68] sm:$0x1]
      %v1522 = vsel %vm1496, 0, %v1521
      %1523 = vst [vmem:[%s1443 + $0x68] sm:$0x1] %v1522
      %v1524 = vld [vmem:[%s1443 + $0x74] sm:$0x1]
      %v1525 = vsel %vm1496, 0, %v1524
      %1526 = vst [vmem:[%s1443 + $0x74] sm:$0x1] %v1525
      %v1527 = vld [vmem:[%s1443 + $0x80] sm:$0x1]
      %v1528 = vsel %vm1496, 0, %v1527
      %1529 = vst [vmem:[%s1443 + $0x80] sm:$0x1] %v1528
      %v1530 = vld [vmem:[%s1443 + $0x8c] sm:$0x1]
      %v1531 = vsel %vm1496, 0, %v1530
      %1532 = vst [vmem:[%s1443 + $0x8c] sm:$0x1] %v1531
      %v1533 = vld [vmem:[%s1443 + $0x98] sm:$0x1]
      %v1534 = vsel %vm1496, 0, %v1533
      %1535 = vst [vmem:[%s1443 + $0x98] sm:$0x1] %v1534
      %v1536 = vld [vmem:[%s1443 + $0xa4] sm:$0x1]
      %v1537 = vsel %vm1496, 0, %v1536
      %1538 = vst [vmem:[%s1443 + $0xa4] sm:$0x1] %v1537
      %v1539 = vld [vmem:[%s1443 + $0xb0] sm:$0x1]
      %v1540 = vsel %vm1496, 0, %v1539
      %1541 = vst [vmem:[%s1443 + $0xb0] sm:$0x1] %v1540
      %v1542 = vld [vmem:[%s1443 + $0xbc] sm:$0x1]
      %v1543 = vsel %vm1496, 0, %v1542
      %1544 = vst [vmem:[%s1443 + $0xbc] sm:$0x1] %v1543
      %v1561 = vunpack.c.l.b16 %v1387
      %v1562 = vunpack.c.h.b16 %v1387
      %v1563 = vunpack.c.l.b16 %v1390
      %v1564 = vunpack.c.h.b16 %v1390
      %v1565 = vunpack.c.l.b16 %v1393
      %v1566 = vunpack.c.h.b16 %v1393
      %v1567 = vunpack.c.l.b16 %v1396
      %v1568 = vunpack.c.h.b16 %v1396
      %v1569 = vunpack.c.l.b16 %v1399
      %v1570 = vunpack.c.h.b16 %v1399
      %v1571 = vunpack.c.l.b16 %v1402
      %v1572 = vunpack.c.h.b16 %v1402
      %v1573 = vunpack.c.l.b16 %v1405
      %v1574 = vunpack.c.h.b16 %v1405
      %v1575 = vunpack.c.l.b16 %v1408
      %v1576 = vunpack.c.h.b16 %v1408
      %v1577 = vunpack.c.l.b16 %v1411
      %v1578 = vunpack.c.h.b16 %v1411
      %v1579 = vunpack.c.l.b16 %v1414
      %v1580 = vunpack.c.h.b16 %v1414
      %v1581 = vunpack.c.l.b16 %v1417
      %v1582 = vunpack.c.h.b16 %v1417
      %v1583 = vunpack.c.l.b16 %v1420
      %v1584 = vunpack.c.h.b16 %v1420
      %v1585 = vunpack.c.l.b16 %v1423
      %v1586 = vunpack.c.h.b16 %v1423
      %v1587 = vunpack.c.l.b16 %v1426
      %v1588 = vunpack.c.h.b16 %v1426
      %v1589 = vunpack.c.l.b16 %v1429
      %v1590 = vunpack.c.h.b16 %v1429
      %v1591 = vunpack.c.l.b16 %v1432
      %v1592 = vunpack.c.h.b16 %v1432
      %v1593 = vpack.c.b16 %v1561, %v1561
      %v1594 = vpack.c.b16 %v1562, %v1562
      %v1595 = vpack.c.b16 %v1563, %v1563
      %v1596 = vpack.c.b16 %v1564, %v1564
      %v1597 = vpack.c.b16 %v1565, %v1565
      %v1598 = vpack.c.b16 %v1566, %v1566
      %v1599 = vpack.c.b16 %v1567, %v1567
      %v1600 = vpack.c.b16 %v1568, %v1568
      %v1601 = vpack.c.b16 %v1569, %v1569
      %v1602 = vpack.c.b16 %v1570, %v1570
      %v1603 = vpack.c.b16 %v1571, %v1571
      %v1604 = vpack.c.b16 %v1572, %v1572
      %v1605 = vpack.c.b16 %v1573, %v1573
      %v1606 = vpack.c.b16 %v1574, %v1574
      %v1607 = vpack.c.b16 %v1575, %v1575
      %v1608 = vpack.c.b16 %v1576, %v1576
      %v1609 = vpack.c.b16 %v1577, %v1577
      %v1610 = vpack.c.b16 %v1578, %v1578
      %v1611 = vpack.c.b16 %v1579, %v1579
      %v1612 = vpack.c.b16 %v1580, %v1580
      %v1613 = vpack.c.b16 %v1581, %v1581
      %v1614 = vpack.c.b16 %v1582, %v1582
      %v1615 = vpack.c.b16 %v1583, %v1583
      %v1616 = vpack.c.b16 %v1584, %v1584
      %v1617 = vpack.c.b16 %v1585, %v1585
      %v1618 = vpack.c.b16 %v1586, %v1586
      %v1619 = vpack.c.b16 %v1587, %v1587
      %v1620 = vpack.c.b16 %v1588, %v1588
      %v1621 = vpack.c.b16 %v1589, %v1589
      %v1622 = vpack.c.b16 %v1590, %v1590
      %v1623 = vpack.c.b16 %v1591, %v1591
      %v1624 = vpack.c.b16 %v1592, %v1592
      %vm1625 = vsmask.f32 4368
      %vm1626 = vmor %vm1445, %vm1625
      %v1628 = vshrl.u32 %v1593, 16
      %v1630 = vrot.slane %v1628, 7
      %v1631 = vshll.u32 %v1593, 16
      %v1633 = vor.u32 %v1630, %v1631
      %v1634 = vrot.slane %v1630, 4
      %v1636 = vshrl.u32 %v1594, 16
      %v1638 = vrot.slane %v1636, 7
      %v1639 = vshll.u32 %v1594, 16
      %v1641 = vor.u32 %v1638, %v1639
      %v1642 = vsel %vm1626, %v1634, %v1641
      %v1643 = vrot.slane %v1638, 4
      %v1645 = vshrl.u32 %v1595, 16
      %v1647 = vrot.slane %v1645, 7
      %v1648 = vshll.u32 %v1595, 16
      %v1650 = vor.u32 %v1647, %v1648
      %v1651 = vrot.slane %v1647, 4
      %v1653 = vshrl.u32 %v1596, 16
      %v1655 = vrot.slane %v1653, 7
      %v1656 = vshll.u32 %v1596, 16
      %v1658 = vor.u32 %v1655, %v1656
      %v1659 = vsel %vm1626, %v1651, %v1658
      %v1660 = vrot.slane %v1655, 4
      %v1662 = vshrl.u32 %v1597, 16
      %v1664 = vrot.slane %v1662, 7
      %v1665 = vshll.u32 %v1597, 16
      %v1667 = vor.u32 %v1664, %v1665
      %v1668 = vrot.slane %v1664, 4
      %v1670 = vshrl.u32 %v1598, 16
      %v1672 = vrot.slane %v1670, 7
      %v1673 = vshll.u32 %v1598, 16
      %v1675 = vor.u32 %v1672, %v1673
      %v1676 = vsel %vm1626, %v1668, %v1675
      %v1677 = vrot.slane %v1672, 4
      %v1679 = vshrl.u32 %v1599, 16
      %v1681 = vrot.slane %v1679, 7
      %v1682 = vshll.u32 %v1599, 16
      %v1684 = vor.u32 %v1681, %v1682
      %v1685 = vrot.slane %v1681, 4
      %v1687 = vshrl.u32 %v1600, 16
      %v1689 = vrot.slane %v1687, 7
      %v1690 = vshll.u32 %v1600, 16
      %v1692 = vor.u32 %v1689, %v1690
      %v1693 = vsel %vm1626, %v1685, %v1692
      %v1694 = vrot.slane %v1689, 4
      %v1696 = vshrl.u32 %v1601, 16
      %v1698 = vrot.slane %v1696, 7
      %v1699 = vshll.u32 %v1601, 16
      %v1701 = vor.u32 %v1698, %v1699
      %v1702 = vrot.slane %v1698, 4
      %v1704 = vshrl.u32 %v1602, 16
      %v1706 = vrot.slane %v1704, 7
      %v1707 = vshll.u32 %v1602, 16
      %v1709 = vor.u32 %v1706, %v1707
      %v1710 = vsel %vm1626, %v1702, %v1709
      %v1711 = vrot.slane %v1706, 4
      %v1713 = vshrl.u32 %v1603, 16
      %v1715 = vrot.slane %v1713, 7
      %v1716 = vshll.u32 %v1603, 16
      %v1718 = vor.u32 %v1715, %v1716
      %v1719 = vrot.slane %v1715, 4
      %v1721 = vshrl.u32 %v1604, 16
      %v1723 = vrot.slane %v1721, 7
      %v1724 = vshll.u32 %v1604, 16
      %v1726 = vor.u32 %v1723, %v1724
      %v1727 = vsel %vm1626, %v1719, %v1726
      %v1728 = vrot.slane %v1723, 4
      %v1730 = vshrl.u32 %v1605, 16
      %v1732 = vrot.slane %v1730, 7
      %v1733 = vshll.u32 %v1605, 16
      %v1735 = vor.u32 %v1732, %v1733
      %v1736 = vrot.slane %v1732, 4
      %v1738 = vshrl.u32 %v1606, 16
      %v1740 = vrot.slane %v1738, 7
      %v1741 = vshll.u32 %v1606, 16
      %v1743 = vor.u32 %v1740, %v1741
      %v1744 = vsel %vm1626, %v1736, %v1743
      %v1745 = vrot.slane %v1740, 4
      %v1747 = vshrl.u32 %v1607, 16
      %v1749 = vrot.slane %v1747, 7
      %v1750 = vshll.u32 %v1607, 16
      %v1752 = vor.u32 %v1749, %v1750
      %v1753 = vrot.slane %v1749, 4
      %v1755 = vshrl.u32 %v1608, 16
      %v1757 = vrot.slane %v1755, 7
      %v1758 = vshll.u32 %v1608, 16
      %v1760 = vor.u32 %v1757, %v1758
      %v1761 = vsel %vm1626, %v1753, %v1760
      %v1762 = vrot.slane %v1757, 4
      %v1764 = vshrl.u32 %v1609, 16
      %v1766 = vrot.slane %v1764, 7
      %v1767 = vshll.u32 %v1609, 16
      %v1769 = vor.u32 %v1766, %v1767
      %v1770 = vrot.slane %v1766, 4
      %v1772 = vshrl.u32 %v1610, 16
      %v1774 = vrot.slane %v1772, 7
      %v1775 = vshll.u32 %v1610, 16
      %v1777 = vor.u32 %v1774, %v1775
      %v1778 = vsel %vm1626, %v1770, %v1777
      %v1779 = vrot.slane %v1774, 4
      %v1781 = vshrl.u32 %v1611, 16
      %v1783 = vrot.slane %v1781, 7
      %v1784 = vshll.u32 %v1611, 16
      %v1786 = vor.u32 %v1783, %v1784
      %v1787 = vrot.slane %v1783, 4
      %v1789 = vshrl.u32 %v1612, 16
      %v1791 = vrot.slane %v1789, 7
      %v1792 = vshll.u32 %v1612, 16
      %v1794 = vor.u32 %v1791, %v1792
      %v1795 = vsel %vm1626, %v1787, %v1794
      %v1796 = vrot.slane %v1791, 4
      %v1798 = vshrl.u32 %v1613, 16
      %v1800 = vrot.slane %v1798, 7
      %v1801 = vshll.u32 %v1613, 16
      %v1803 = vor.u32 %v1800, %v1801
      %v1804 = vrot.slane %v1800, 4
      %v1806 = vshrl.u32 %v1614, 16
      %v1808 = vrot.slane %v1806, 7
      %v1809 = vshll.u32 %v1614, 16
      %v1811 = vor.u32 %v1808, %v1809
      %v1812 = vsel %vm1626, %v1804, %v1811
      %v1813 = vrot.slane %v1808, 4
      %v1815 = vshrl.u32 %v1615, 16
      %v1817 = vrot.slane %v1815, 7
      %v1818 = vshll.u32 %v1615, 16
      %v1820 = vor.u32 %v1817, %v1818
      %v1821 = vrot.slane %v1817, 4
      %v1823 = vshrl.u32 %v1616, 16
      %v1825 = vrot.slane %v1823, 7
      %v1826 = vshll.u32 %v1616, 16
      %v1828 = vor.u32 %v1825, %v1826
      %v1829 = vsel %vm1626, %v1821, %v1828
      %v1830 = vrot.slane %v1825, 4
      %v1832 = vshrl.u32 %v1617, 16
      %v1834 = vrot.slane %v1832, 7
      %v1835 = vshll.u32 %v1617, 16
      %v1837 = vor.u32 %v1834, %v1835
      %v1838 = vrot.slane %v1834, 4
      %v1840 = vshrl.u32 %v1618, 16
      %v1842 = vrot.slane %v1840, 7
      %v1843 = vshll.u32 %v1618, 16
      %v1845 = vor.u32 %v1842, %v1843
      %v1846 = vsel %vm1626, %v1838, %v1845
      %v1847 = vrot.slane %v1842, 4
      %v1849 = vshrl.u32 %v1619, 16
      %v1851 = vrot.slane %v1849, 7
      %v1852 = vshll.u32 %v1619, 16
      %v1854 = vor.u32 %v1851, %v1852
      %v1855 = vrot.slane %v1851, 4
      %v1857 = vshrl.u32 %v1620, 16
      %v1859 = vrot.slane %v1857, 7
      %v1860 = vshll.u32 %v1620, 16
      %v1862 = vor.u32 %v1859, %v1860
      %v1863 = vsel %vm1626, %v1855, %v1862
      %v1864 = vrot.slane %v1859, 4
      %v1866 = vshrl.u32 %v1621, 16
      %v1868 = vrot.slane %v1866, 7
      %v1869 = vshll.u32 %v1621, 16
      %v1871 = vor.u32 %v1868, %v1869
      %v1872 = vrot.slane %v1868, 4
      %v1874 = vshrl.u32 %v1622, 16
      %v1876 = vrot.slane %v1874, 7
      %v1877 = vshll.u32 %v1622, 16
      %v1879 = vor.u32 %v1876, %v1877
      %v1880 = vsel %vm1626, %v1872, %v1879
      %v1881 = vrot.slane %v1876, 4
      %v1883 = vshrl.u32 %v1623, 16
      %v1885 = vrot.slane %v1883, 7
      %v1886 = vshll.u32 %v1623, 16
      %v1888 = vor.u32 %v1885, %v1886
      %v1889 = vrot.slane %v1885, 4
      %v1891 = vshrl.u32 %v1624, 16
      %v1893 = vrot.slane %v1891, 7
      %v1894 = vshll.u32 %v1624, 16
      %v1896 = vor.u32 %v1893, %v1894
      %v1897 = vsel %vm1626, %v1889, %v1896
      %v1898 = vrot.slane %v1893, 4
      %vm1947 = vcmask 60416
      %vm1948 = vmand %vm1947, %vm1495
      %v1949 = vld [vmem:[%s1443] sm:$0xf]
      %v1950 = vsel %vm1948, %v1633, %v1949
      %1951 = vst [vmem:[%s1443] sm:$0xf] %v1950
      %1952 = vst.msk [vmem:[%s1443 + $0x4] sm:$0xf] %vm1434, %v1642
      %v1953 = vld [vmem:[%s1443 + $0x8] sm:$0x1]
      %v1954 = vsel %vm1446, %v1643, %v1953
      %1955 = vst [vmem:[%s1443 + $0x8] sm:$0x1] %v1954
      %v1956 = vld [vmem:[%s1443 + $0xc] sm:$0xf]
      %v1957 = vsel %vm1948, %v1650, %v1956
      %1958 = vst [vmem:[%s1443 + $0xc] sm:$0xf] %v1957
      %1959 = vst.msk [vmem:[%s1443 + $0x10] sm:$0xf] %vm1434, %v1659
      %v1960 = vld [vmem:[%s1443 + $0x14] sm:$0x1]
      %v1961 = vsel %vm1446, %v1660, %v1960
      %1962 = vst [vmem:[%s1443 + $0x14] sm:$0x1] %v1961
      %v1963 = vld [vmem:[%s1443 + $0x18] sm:$0xf]
      %v1964 = vsel %vm1948, %v1667, %v1963
      %1965 = vst [vmem:[%s1443 + $0x18] sm:$0xf] %v1964
      %1966 = vst.msk [vmem:[%s1443 + $0x1c] sm:$0xf] %vm1434, %v1676
      %v1967 = vld [vmem:[%s1443 + $0x20] sm:$0x1]
      %v1968 = vsel %vm1446, %v1677, %v1967
      %1969 = vst [vmem:[%s1443 + $0x20] sm:$0x1] %v1968
      %v1970 = vld [vmem:[%s1443 + $0x24] sm:$0xf]
      %v1971 = vsel %vm1948, %v1684, %v1970
      %1972 = vst [vmem:[%s1443 + $0x24] sm:$0xf] %v1971
      %1973 = vst.msk [vmem:[%s1443 + $0x28] sm:$0xf] %vm1434, %v1693
      %v1974 = vld [vmem:[%s1443 + $0x2c] sm:$0x1]
      %v1975 = vsel %vm1446, %v1694, %v1974
      %1976 = vst [vmem:[%s1443 + $0x2c] sm:$0x1] %v1975
      %v1977 = vld [vmem:[%s1443 + $0x30] sm:$0xf]
      %v1978 = vsel %vm1948, %v1701, %v1977
      %1979 = vst [vmem:[%s1443 + $0x30] sm:$0xf] %v1978
      %1980 = vst.msk [vmem:[%s1443 + $0x34] sm:$0xf] %vm1434, %v1710
      %v1981 = vld [vmem:[%s1443 + $0x38] sm:$0x1]
      %v1982 = vsel %vm1446, %v1711, %v1981
      %1983 = vst [vmem:[%s1443 + $0x38] sm:$0x1] %v1982
      %v1984 = vld [vmem:[%s1443 + $0x3c] sm:$0xf]
      %v1985 = vsel %vm1948, %v1718, %v1984
      %1986 = vst [vmem:[%s1443 + $0x3c] sm:$0xf] %v1985
      %1987 = vst.msk [vmem:[%s1443 + $0x40] sm:$0xf] %vm1434, %v1727
      %v1988 = vld [vmem:[%s1443 + $0x44] sm:$0x1]
      %v1989 = vsel %vm1446, %v1728, %v1988
      %1990 = vst [vmem:[%s1443 + $0x44] sm:$0x1] %v1989
      %v1991 = vld [vmem:[%s1443 + $0x48] sm:$0xf]
      %v1992 = vsel %vm1948, %v1735, %v1991
      %1993 = vst [vmem:[%s1443 + $0x48] sm:$0xf] %v1992
      %1994 = vst.msk [vmem:[%s1443 + $0x4c] sm:$0xf] %vm1434, %v1744
      %v1995 = vld [vmem:[%s1443 + $0x50] sm:$0x1]
      %v1996 = vsel %vm1446, %v1745, %v1995
      %1997 = vst [vmem:[%s1443 + $0x50] sm:$0x1] %v1996
      %v1998 = vld [vmem:[%s1443 + $0x54] sm:$0xf]
      %v1999 = vsel %vm1948, %v1752, %v1998
      %2000 = vst [vmem:[%s1443 + $0x54] sm:$0xf] %v1999
      %2001 = vst.msk [vmem:[%s1443 + $0x58] sm:$0xf] %vm1434, %v1761
      %v2002 = vld [vmem:[%s1443 + $0x5c] sm:$0x1]
      %v2003 = vsel %vm1446, %v1762, %v2002
      %2004 = vst [vmem:[%s1443 + $0x5c] sm:$0x1] %v2003
      %v2005 = vld [vmem:[%s1443 + $0x60] sm:$0xf]
      %v2006 = vsel %vm1948, %v1769, %v2005
      %2007 = vst [vmem:[%s1443 + $0x60] sm:$0xf] %v2006
      %2008 = vst.msk [vmem:[%s1443 + $0x64] sm:$0xf] %vm1434, %v1778
      %v2009 = vld [vmem:[%s1443 + $0x68] sm:$0x1]
      %v2010 = vsel %vm1446, %v1779, %v2009
      %2011 = vst [vmem:[%s1443 + $0x68] sm:$0x1] %v2010
      %v2012 = vld [vmem:[%s1443 + $0x6c] sm:$0xf]
      %v2013 = vsel %vm1948, %v1786, %v2012
      %2014 = vst [vmem:[%s1443 + $0x6c] sm:$0xf] %v2013
      %2015 = vst.msk [vmem:[%s1443 + $0x70] sm:$0xf] %vm1434, %v1795
      %v2016 = vld [vmem:[%s1443 + $0x74] sm:$0x1]
      %v2017 = vsel %vm1446, %v1796, %v2016
      %2018 = vst [vmem:[%s1443 + $0x74] sm:$0x1] %v2017
      %v2019 = vld [vmem:[%s1443 + $0x78] sm:$0xf]
      %v2020 = vsel %vm1948, %v1803, %v2019
      %2021 = vst [vmem:[%s1443 + $0x78] sm:$0xf] %v2020
      %2022 = vst.msk [vmem:[%s1443 + $0x7c] sm:$0xf] %vm1434, %v1812
      %v2023 = vld [vmem:[%s1443 + $0x80] sm:$0x1]
      %v2024 = vsel %vm1446, %v1813, %v2023
      %2025 = vst [vmem:[%s1443 + $0x80] sm:$0x1] %v2024
      %v2026 = vld [vmem:[%s1443 + $0x84] sm:$0xf]
      %v2027 = vsel %vm1948, %v1820, %v2026
      %2028 = vst [vmem:[%s1443 + $0x84] sm:$0xf] %v2027
      %2029 = vst.msk [vmem:[%s1443 + $0x88] sm:$0xf] %vm1434, %v1829
      %v2030 = vld [vmem:[%s1443 + $0x8c] sm:$0x1]
      %v2031 = vsel %vm1446, %v1830, %v2030
      %2032 = vst [vmem:[%s1443 + $0x8c] sm:$0x1] %v2031
      %v2033 = vld [vmem:[%s1443 + $0x90] sm:$0xf]
      %v2034 = vsel %vm1948, %v1837, %v2033
      %2035 = vst [vmem:[%s1443 + $0x90] sm:$0xf] %v2034
      %2036 = vst.msk [vmem:[%s1443 + $0x94] sm:$0xf] %vm1434, %v1846
      %v2037 = vld [vmem:[%s1443 + $0x98] sm:$0x1]
      %v2038 = vsel %vm1446, %v1847, %v2037
      %2039 = vst [vmem:[%s1443 + $0x98] sm:$0x1] %v2038
      %v2040 = vld [vmem:[%s1443 + $0x9c] sm:$0xf]
      %v2041 = vsel %vm1948, %v1854, %v2040
      %2042 = vst [vmem:[%s1443 + $0x9c] sm:$0xf] %v2041
      %2043 = vst.msk [vmem:[%s1443 + $0xa0] sm:$0xf] %vm1434, %v1863
      %v2044 = vld [vmem:[%s1443 + $0xa4] sm:$0x1]
      %v2045 = vsel %vm1446, %v1864, %v2044
      %2046 = vst [vmem:[%s1443 + $0xa4] sm:$0x1] %v2045
      %v2047 = vld [vmem:[%s1443 + $0xa8] sm:$0xf]
      %v2048 = vsel %vm1948, %v1871, %v2047
      %2049 = vst [vmem:[%s1443 + $0xa8] sm:$0xf] %v2048
      %2050 = vst.msk [vmem:[%s1443 + $0xac] sm:$0xf] %vm1434, %v1880
      %v2051 = vld [vmem:[%s1443 + $0xb0] sm:$0x1]
      %v2052 = vsel %vm1446, %v1881, %v2051
      %2053 = vst [vmem:[%s1443 + $0xb0] sm:$0x1] %v2052
      %v2054 = vld [vmem:[%s1443 + $0xb4] sm:$0xf]
      %v2055 = vsel %vm1948, %v1888, %v2054
      %2056 = vst [vmem:[%s1443 + $0xb4] sm:$0xf] %v2055
      %2057 = vst.msk [vmem:[%s1443 + $0xb8] sm:$0xf] %vm1434, %v1897
      %v2058 = vld [vmem:[%s1443 + $0xbc] sm:$0x1]
      %v2059 = vsel %vm1446, %v1898, %v2058
      %2060 = vst [vmem:[%s1443 + $0xbc] sm:$0x1] %v2059
      %v2061 = vld [vmem:[#allocation2] sm:$0xf]
      %v2062 = vld [vmem:[#allocation2 + $0x4] sm:$0xf]
      %v2063 = vld [vmem:[#allocation2 + $0x8] sm:$0x1]
      %v2064 = vld [vmem:[#allocation2 + $0xc] sm:$0xf]
      %v2065 = vld [vmem:[#allocation2 + $0x10] sm:$0xf]
      %v2066 = vld [vmem:[#allocation2 + $0x14] sm:$0x1]
      %v2067 = vld [vmem:[#allocation2 + $0x18] sm:$0xf]
      %v2068 = vld [vmem:[#allocation2 + $0x1c] sm:$0xf]
      %v2069 = vld [vmem:[#allocation2 + $0x20] sm:$0x1]
      %v2070 = vld [vmem:[#allocation2 + $0x24] sm:$0xf]
      %v2071 = vld [vmem:[#allocation2 + $0x28] sm:$0xf]
      %v2072 = vld [vmem:[#allocation2 + $0x2c] sm:$0x1]
      %v2073 = vld [vmem:[#allocation2 + $0x30] sm:$0xf]
      %v2074 = vld [vmem:[#allocation2 + $0x34] sm:$0xf]
      %v2075 = vld [vmem:[#allocation2 + $0x38] sm:$0x1]
      %v2076 = vld [vmem:[#allocation2 + $0x3c] sm:$0xf]
      %v2077 = vld [vmem:[#allocation2 + $0x40] sm:$0xf]
      %v2078 = vld [vmem:[#allocation2 + $0x44] sm:$0x1]
      %v2079 = vld [vmem:[#allocation2 + $0x48] sm:$0xf]
      %v2080 = vld [vmem:[#allocation2 + $0x4c] sm:$0xf]
      %v2081 = vld [vmem:[#allocation2 + $0x50] sm:$0x1]
      %v2082 = vld [vmem:[#allocation2 + $0x54] sm:$0xf]
      %v2083 = vld [vmem:[#allocation2 + $0x58] sm:$0xf]
      %v2084 = vld [vmem:[#allocation2 + $0x5c] sm:$0x1]
      %v2085 = vld [vmem:[#allocation2 + $0x60] sm:$0xf]
      %v2086 = vld [vmem:[#allocation2 + $0x64] sm:$0xf]
      %v2087 = vld [vmem:[#allocation2 + $0x68] sm:$0x1]
      %v2088 = vld [vmem:[#allocation2 + $0x6c] sm:$0xf]
      %v2089 = vld [vmem:[#allocation2 + $0x70] sm:$0xf]
      %v2090 = vld [vmem:[#allocation2 + $0x74] sm:$0x1]
      %v2091 = vld [vmem:[#allocation2 + $0x78] sm:$0xf]
      %v2092 = vld [vmem:[#allocation2 + $0x7c] sm:$0xf]
      %v2093 = vld [vmem:[#allocation2 + $0x80] sm:$0x1]
      %v2094 = vld [vmem:[#allocation2 + $0x84] sm:$0xf]
      %v2095 = vld [vmem:[#allocation2 + $0x88] sm:$0xf]
      %v2096 = vld [vmem:[#allocation2 + $0x8c] sm:$0x1]
      %v2097 = vld [vmem:[#allocation2 + $0x90] sm:$0xf]
      %v2098 = vld [vmem:[#allocation2 + $0x94] sm:$0xf]
      %v2099 = vld [vmem:[#allocation2 + $0x98] sm:$0x1]
      %v2100 = vld [vmem:[#allocation2 + $0x9c] sm:$0xf]
      %v2101 = vld [vmem:[#allocation2 + $0xa0] sm:$0xf]
      %v2102 = vld [vmem:[#allocation2 + $0xa4] sm:$0x1]
      %v2103 = vld [vmem:[#allocation2 + $0xa8] sm:$0xf]
      %v2104 = vld [vmem:[#allocation2 + $0xac] sm:$0xf]
      %v2105 = vld [vmem:[#allocation2 + $0xb0] sm:$0x1]
      %v2106 = vld [vmem:[#allocation2 + $0xb4] sm:$0xf]
      %v2107 = vld [vmem:[#allocation2 + $0xb8] sm:$0xf]
      %v2108 = vld [vmem:[#allocation2 + $0xbc] sm:$0x1]
      %v2141 = vunpack.c.l.b16 %v2061
      %v2142 = vunpack.c.l.b16 %v2062
      %v2143 = vunpack.c.l.b16 %v2064
      %v2144 = vunpack.c.l.b16 %v2065
      %v2145 = vunpack.c.l.b16 %v2067
      %v2146 = vunpack.c.l.b16 %v2068
      %v2147 = vunpack.c.l.b16 %v2070
      %v2148 = vunpack.c.l.b16 %v2071
      %v2149 = vunpack.c.l.b16 %v2073
      %v2150 = vunpack.c.l.b16 %v2074
      %v2151 = vunpack.c.l.b16 %v2076
      %v2152 = vunpack.c.l.b16 %v2077
      %v2153 = vunpack.c.l.b16 %v2079
      %v2154 = vunpack.c.l.b16 %v2080
      %v2155 = vunpack.c.l.b16 %v2082
      %v2156 = vunpack.c.l.b16 %v2083
      %v2157 = vunpack.c.l.b16 %v2085
      %v2158 = vunpack.c.l.b16 %v2086
      %v2159 = vunpack.c.l.b16 %v2088
      %v2160 = vunpack.c.l.b16 %v2089
      %v2161 = vunpack.c.l.b16 %v2091
      %v2162 = vunpack.c.l.b16 %v2092
      %v2163 = vunpack.c.l.b16 %v2094
      %v2164 = vunpack.c.l.b16 %v2095
      %v2165 = vunpack.c.l.b16 %v2097
      %v2166 = vunpack.c.l.b16 %v2098
      %v2167 = vunpack.c.l.b16 %v2100
      %v2168 = vunpack.c.l.b16 %v2101
      %v2169 = vunpack.c.l.b16 %v2103
      %v2170 = vunpack.c.l.b16 %v2104
      %v2171 = vunpack.c.l.b16 %v2106
      %v2172 = vunpack.c.l.b16 %v2107
      %v2173 = vpack.c.b16 %v2142, %v2141
      %v2174 = vpack.c.b16 %v2144, %v2143
      %v2175 = vpack.c.b16 %v2146, %v2145
      %v2176 = vpack.c.b16 %v2148, %v2147
      %v2177 = vpack.c.b16 %v2150, %v2149
      %v2178 = vpack.c.b16 %v2152, %v2151
      %v2179 = vpack.c.b16 %v2154, %v2153
      %v2180 = vpack.c.b16 %v2156, %v2155
      %v2181 = vpack.c.b16 %v2158, %v2157
      %v2182 = vpack.c.b16 %v2160, %v2159
      %v2183 = vpack.c.b16 %v2162, %v2161
      %v2184 = vpack.c.b16 %v2164, %v2163
      %v2185 = vpack.c.b16 %v2166, %v2165
      %v2186 = vpack.c.b16 %v2168, %v2167
      %v2187 = vpack.c.b16 %v2170, %v2169
      %v2188 = vpack.c.b16 %v2172, %v2171
      %v2205 = vunpack.c.l.b16 %v2063
      %v2206 = vunpack.c.l.b16 %v2066
      %v2207 = vunpack.c.l.b16 %v2069
      %v2208 = vunpack.c.l.b16 %v2072
      %v2209 = vunpack.c.l.b16 %v2075
      %v2210 = vunpack.c.l.b16 %v2078
      %v2211 = vunpack.c.l.b16 %v2081
      %v2212 = vunpack.c.l.b16 %v2084
      %v2213 = vunpack.c.l.b16 %v2087
      %v2214 = vunpack.c.l.b16 %v2090
      %v2215 = vunpack.c.l.b16 %v2093
      %v2216 = vunpack.c.l.b16 %v2096
      %v2217 = vunpack.c.l.b16 %v2099
      %v2218 = vunpack.c.l.b16 %v2102
      %v2219 = vunpack.c.l.b16 %v2105
      %v2220 = vunpack.c.l.b16 %v2108
      %v2221 = vpack.c.b16 %v2205, %v2205
      %v2222 = vpack.c.b16 %v2206, %v2206
      %v2223 = vpack.c.b16 %v2207, %v2207
      %v2224 = vpack.c.b16 %v2208, %v2208
      %v2225 = vpack.c.b16 %v2209, %v2209
      %v2226 = vpack.c.b16 %v2210, %v2210
      %v2227 = vpack.c.b16 %v2211, %v2211
      %v2228 = vpack.c.b16 %v2212, %v2212
      %v2229 = vpack.c.b16 %v2213, %v2213
      %v2230 = vpack.c.b16 %v2214, %v2214
      %v2231 = vpack.c.b16 %v2215, %v2215
      %v2232 = vpack.c.b16 %v2216, %v2216
      %v2233 = vpack.c.b16 %v2217, %v2217
      %v2234 = vpack.c.b16 %v2218, %v2218
      %v2235 = vpack.c.b16 %v2219, %v2219
      %v2236 = vpack.c.b16 %v2220, %v2220
      %vm2237 = vsmask.f32 7424
      %v2239 = vshrl.u32 %v2173, 16
      %v2241 = vshll.u32 %v2173, 16
      %v2243 = vrot.slane %v2241, 1
      %v2244 = vor.u32 %v2239, %v2243
      %v2246 = vshll.u32 %v2221, 16
      %v2248 = vrot.slane %v2246, 1
      %v2249 = vsel %vm2237, %v2244, %v2248
      %v2251 = vshrl.u32 %v2174, 16
      %v2253 = vshll.u32 %v2174, 16
      %v2255 = vrot.slane %v2253, 1
      %v2256 = vor.u32 %v2251, %v2255
      %v2258 = vshll.u32 %v2222, 16
      %v2260 = vrot.slane %v2258, 1
      %v2261 = vsel %vm2237, %v2256, %v2260
      %v2263 = vshrl.u32 %v2175, 16
      %v2265 = vshll.u32 %v2175, 16
      %v2267 = vrot.slane %v2265, 1
      %v2268 = vor.u32 %v2263, %v2267
      %v2270 = vshll.u32 %v2223, 16
      %v2272 = vrot.slane %v2270, 1
      %v2273 = vsel %vm2237, %v2268, %v2272
      %v2275 = vshrl.u32 %v2176, 16
      %v2277 = vshll.u32 %v2176, 16
      %v2279 = vrot.slane %v2277, 1
      %v2280 = vor.u32 %v2275, %v2279
      %v2282 = vshll.u32 %v2224, 16
      %v2284 = vrot.slane %v2282, 1
      %v2285 = vsel %vm2237, %v2280, %v2284
      %v2287 = vshrl.u32 %v2177, 16
      %v2289 = vshll.u32 %v2177, 16
      %v2291 = vrot.slane %v2289, 1
      %v2292 = vor.u32 %v2287, %v2291
      %v2294 = vshll.u32 %v2225, 16
      %v2296 = vrot.slane %v2294, 1
      %v2297 = vsel %vm2237, %v2292, %v2296
      %v2299 = vshrl.u32 %v2178, 16
      %v2301 = vshll.u32 %v2178, 16
      %v2303 = vrot.slane %v2301, 1
      %v2304 = vor.u32 %v2299, %v2303
      %v2306 = vshll.u32 %v2226, 16
      %v2308 = vrot.slane %v2306, 1
      %v2309 = vsel %vm2237, %v2304, %v2308
      %v2311 = vshrl.u32 %v2179, 16
      %v2313 = vshll.u32 %v2179, 16
      %v2315 = vrot.slane %v2313, 1
      %v2316 = vor.u32 %v2311, %v2315
      %v2318 = vshll.u32 %v2227, 16
      %v2320 = vrot.slane %v2318, 1
      %v2321 = vsel %vm2237, %v2316, %v2320
      %v2323 = vshrl.u32 %v2180, 16
      %v2325 = vshll.u32 %v2180, 16
      %v2327 = vrot.slane %v2325, 1
      %v2328 = vor.u32 %v2323, %v2327
      %v2330 = vshll.u32 %v2228, 16
      %v2332 = vrot.slane %v2330, 1
      %v2333 = vsel %vm2237, %v2328, %v2332
      %v2335 = vshrl.u32 %v2181, 16
      %v2337 = vshll.u32 %v2181, 16
      %v2339 = vrot.slane %v2337, 1
      %v2340 = vor.u32 %v2335, %v2339
      %v2342 = vshll.u32 %v2229, 16
      %v2344 = vrot.slane %v2342, 1
      %v2345 = vsel %vm2237, %v2340, %v2344
      %v2347 = vshrl.u32 %v2182, 16
      %v2349 = vshll.u32 %v2182, 16
      %v2351 = vrot.slane %v2349, 1
      %v2352 = vor.u32 %v2347, %v2351
      %v2354 = vshll.u32 %v2230, 16
      %v2356 = vrot.slane %v2354, 1
      %v2357 = vsel %vm2237, %v2352, %v2356
      %v2359 = vshrl.u32 %v2183, 16
      %v2361 = vshll.u32 %v2183, 16
      %v2363 = vrot.slane %v2361, 1
      %v2364 = vor.u32 %v2359, %v2363
      %v2366 = vshll.u32 %v2231, 16
      %v2368 = vrot.slane %v2366, 1
      %v2369 = vsel %vm2237, %v2364, %v2368
      %v2371 = vshrl.u32 %v2184, 16
      %v2373 = vshll.u32 %v2184, 16
      %v2375 = vrot.slane %v2373, 1
      %v2376 = vor.u32 %v2371, %v2375
      %v2378 = vshll.u32 %v2232, 16
      %v2380 = vrot.slane %v2378, 1
      %v2381 = vsel %vm2237, %v2376, %v2380
      %v2383 = vshrl.u32 %v2185, 16
      %v2385 = vshll.u32 %v2185, 16
      %v2387 = vrot.slane %v2385, 1
      %v2388 = vor.u32 %v2383, %v2387
      %v2390 = vshll.u32 %v2233, 16
      %v2392 = vrot.slane %v2390, 1
      %v2393 = vsel %vm2237, %v2388, %v2392
      %v2395 = vshrl.u32 %v2186, 16
      %v2397 = vshll.u32 %v2186, 16
      %v2399 = vrot.slane %v2397, 1
      %v2400 = vor.u32 %v2395, %v2399
      %v2402 = vshll.u32 %v2234, 16
      %v2404 = vrot.slane %v2402, 1
      %v2405 = vsel %vm2237, %v2400, %v2404
      %v2407 = vshrl.u32 %v2187, 16
      %v2409 = vshll.u32 %v2187, 16
      %v2411 = vrot.slane %v2409, 1
      %v2412 = vor.u32 %v2407, %v2411
      %v2414 = vshll.u32 %v2235, 16
      %v2416 = vrot.slane %v2414, 1
      %v2417 = vsel %vm2237, %v2412, %v2416
      %v2419 = vshrl.u32 %v2188, 16
      %v2421 = vshll.u32 %v2188, 16
      %v2423 = vrot.slane %v2421, 1
      %v2424 = vor.u32 %v2419, %v2423
      %v2426 = vshll.u32 %v2236, 16
      %v2428 = vrot.slane %v2426, 1
      %v2429 = vsel %vm2237, %v2424, %v2428
      %2430 = vrot.lane.b32.xlu0 %v2249, 8
      %v2431 = vpop.permute.xlu0 %2430
      %2432 = vrot.lane.b32.xlu0 %v2261, 8
      %v2433 = vpop.permute.xlu0 %2432
      %2434 = vrot.lane.b32.xlu0 %v2273, 8
      %v2435 = vpop.permute.xlu0 %2434
      %2436 = vrot.lane.b32.xlu0 %v2285, 8
      %v2437 = vpop.permute.xlu0 %2436
      %2438 = vrot.lane.b32.xlu0 %v2297, 8
      %v2439 = vpop.permute.xlu0 %2438
      %2440 = vrot.lane.b32.xlu0 %v2309, 8
      %v2441 = vpop.permute.xlu0 %2440
      %2442 = vrot.lane.b32.xlu0 %v2321, 8
      %v2443 = vpop.permute.xlu0 %2442
      %2444 = vrot.lane.b32.xlu0 %v2333, 8
      %v2445 = vpop.permute.xlu0 %2444
      %2446 = vrot.lane.b32.xlu0 %v2345, 8
      %v2447 = vpop.permute.xlu0 %2446
      %2448 = vrot.lane.b32.xlu0 %v2357, 8
      %v2449 = vpop.permute.xlu0 %2448
      %2450 = vrot.lane.b32.xlu0 %v2369, 8
      %v2451 = vpop.permute.xlu0 %2450
      %2452 = vrot.lane.b32.xlu0 %v2381, 8
      %v2453 = vpop.permute.xlu0 %2452
      %2454 = vrot.lane.b32.xlu0 %v2393, 8
      %v2455 = vpop.permute.xlu0 %2454
      %2456 = vrot.lane.b32.xlu0 %v2405, 8
      %v2457 = vpop.permute.xlu0 %2456
      %2458 = vrot.lane.b32.xlu0 %v2417, 8
      %v2459 = vpop.permute.xlu0 %2458
      %2460 = vrot.lane.b32.xlu0 %v2429, 8
      %v2461 = vpop.permute.xlu0 %2460
      %vm2462 = vcmask 1046528
      %v2463 = vrot.slane %v2173, 1
      %v2464 = vrot.slane %v2221, 1
      %v2465 = vsel %vm2462, %v2463, %v2464
      %v2466 = vrot.slane %v2174, 1
      %v2467 = vrot.slane %v2222, 1
      %v2468 = vsel %vm2462, %v2466, %v2467
      %v2469 = vrot.slane %v2175, 1
      %v2470 = vrot.slane %v2223, 1
      %v2471 = vsel %vm2462, %v2469, %v2470
      %v2472 = vrot.slane %v2176, 1
      %v2473 = vrot.slane %v2224, 1
      %v2474 = vsel %vm2462, %v2472, %v2473
      %v2475 = vrot.slane %v2177, 1
      %v2476 = vrot.slane %v2225, 1
      %v2477 = vsel %vm2462, %v2475, %v2476
      %v2478 = vrot.slane %v2178, 1
      %v2479 = vrot.slane %v2226, 1
      %v2480 = vsel %vm2462, %v2478, %v2479
      %v2481 = vrot.slane %v2179, 1
      %v2482 = vrot.slane %v2227, 1
      %v2483 = vsel %vm2462, %v2481, %v2482
      %v2484 = vrot.slane %v2180, 1
      %v2485 = vrot.slane %v2228, 1
      %v2486 = vsel %vm2462, %v2484, %v2485
      %v2487 = vrot.slane %v2181, 1
      %v2488 = vrot.slane %v2229, 1
      %v2489 = vsel %vm2462, %v2487, %v2488
      %v2490 = vrot.slane %v2182, 1
      %v2491 = vrot.slane %v2230, 1
      %v2492 = vsel %vm2462, %v2490, %v2491
      %v2493 = vrot.slane %v2183, 1
      %v2494 = vrot.slane %v2231, 1
      %v2495 = vsel %vm2462, %v2493, %v2494
      %v2496 = vrot.slane %v2184, 1
      %v2497 = vrot.slane %v2232, 1
      %v2498 = vsel %vm2462, %v2496, %v2497
      %v2499 = vrot.slane %v2185, 1
      %v2500 = vrot.slane %v2233, 1
      %v2501 = vsel %vm2462, %v2499, %v2500
      %v2502 = vrot.slane %v2186, 1
      %v2503 = vrot.slane %v2234, 1
      %v2504 = vsel %vm2462, %v2502, %v2503
      %v2505 = vrot.slane %v2187, 1
      %v2506 = vrot.slane %v2235, 1
      %v2507 = vsel %vm2462, %v2505, %v2506
      %v2508 = vrot.slane %v2188, 1
      %v2509 = vrot.slane %v2236, 1
      %v2510 = vsel %vm2462, %v2508, %v2509
      %2511 = vrot.lane.b32.xlu0 %v2465, 16
      %v2512 = vpop.permute.xlu0 %2511
      %2513 = vrot.lane.b32.xlu0 %v2468, 16
      %v2514 = vpop.permute.xlu0 %2513
      %2515 = vrot.lane.b32.xlu0 %v2471, 16
      %v2516 = vpop.permute.xlu0 %2515
      %2517 = vrot.lane.b32.xlu0 %v2474, 16
      %v2518 = vpop.permute.xlu0 %2517
      %2519 = vrot.lane.b32.xlu0 %v2477, 16
      %v2520 = vpop.permute.xlu0 %2519
      %2521 = vrot.lane.b32.xlu0 %v2480, 16
      %v2522 = vpop.permute.xlu0 %2521
      %2523 = vrot.lane.b32.xlu0 %v2483, 16
      %v2524 = vpop.permute.xlu0 %2523
      %2525 = vrot.lane.b32.xlu0 %v2486, 16
      %v2526 = vpop.permute.xlu0 %2525
      %2527 = vrot.lane.b32.xlu0 %v2489, 16
      %v2528 = vpop.permute.xlu0 %2527
      %2529 = vrot.lane.b32.xlu0 %v2492, 16
      %v2530 = vpop.permute.xlu0 %2529
      %2531 = vrot.lane.b32.xlu0 %v2495, 16
      %v2532 = vpop.permute.xlu0 %2531
      %2533 = vrot.lane.b32.xlu0 %v2498, 16
      %v2534 = vpop.permute.xlu0 %2533
      %2535 = vrot.lane.b32.xlu0 %v2501, 16
      %v2536 = vpop.permute.xlu0 %2535
      %2537 = vrot.lane.b32.xlu0 %v2504, 16
      %v2538 = vpop.permute.xlu0 %2537
      %2539 = vrot.lane.b32.xlu0 %v2507, 16
      %v2540 = vpop.permute.xlu0 %2539
      %2541 = vrot.lane.b32.xlu0 %v2510, 16
      %v2542 = vpop.permute.xlu0 %2541
      %vm2543 = vcmask 64512
      %v2545 = vsel %vm2543, %v2173, %v2431
      %v2547 = vsel %vm2543, %v2174, %v2433
      %v2549 = vsel %vm2543, %v2175, %v2435
      %v2551 = vsel %vm2543, %v2176, %v2437
      %v2553 = vsel %vm2543, %v2177, %v2439
      %v2555 = vsel %vm2543, %v2178, %v2441
      %v2557 = vsel %vm2543, %v2179, %v2443
      %v2559 = vsel %vm2543, %v2180, %v2445
      %v2561 = vsel %vm2543, %v2181, %v2447
      %v2563 = vsel %vm2543, %v2182, %v2449
      %v2565 = vsel %vm2543, %v2183, %v2451
      %v2567 = vsel %vm2543, %v2184, %v2453
      %v2569 = vsel %vm2543, %v2185, %v2455
      %v2571 = vsel %vm2543, %v2186, %v2457
      %v2573 = vsel %vm2543, %v2187, %v2459
      %v2575 = vsel %vm2543, %v2188, %v2461
      %vm2576 = vcmask 130048
      %v2578 = vsel %vm2576, %v2545, %v2512
      %v2580 = vsel %vm2576, %v2547, %v2514
      %v2582 = vsel %vm2576, %v2549, %v2516
      %v2584 = vsel %vm2576, %v2551, %v2518
      %v2586 = vsel %vm2576, %v2553, %v2520
      %v2588 = vsel %vm2576, %v2555, %v2522
      %v2590 = vsel %vm2576, %v2557, %v2524
      %v2592 = vsel %vm2576, %v2559, %v2526
      %v2594 = vsel %vm2576, %v2561, %v2528
      %v2596 = vsel %vm2576, %v2563, %v2530
      %v2598 = vsel %vm2576, %v2565, %v2532
      %v2600 = vsel %vm2576, %v2567, %v2534
      %v2602 = vsel %vm2576, %v2569, %v2536
      %v2604 = vsel %vm2576, %v2571, %v2538
      %v2606 = vsel %vm2576, %v2573, %v2540
      %v2608 = vsel %vm2576, %v2575, %v2542
      %v2609 = vld [vmem:[%s2] sm:$0xf]
      %v2610 = vld [vmem:[%s2 + $0x4] sm:$0xf]
      %v2611 = vld [vmem:[%s2 + $0x8] sm:$0xf]
      %v2612 = vld [vmem:[%s1443] sm:$0xf]
      %v2613 = vld [vmem:[%s1443 + $0x4] sm:$0xf]
      %v2614 = vld [vmem:[%s1443 + $0x8] sm:$0x1]
      %v2615 = vld [vmem:[%s1443 + $0xc] sm:$0xf]
      %v2616 = vld [vmem:[%s1443 + $0x10] sm:$0xf]
      %v2617 = vld [vmem:[%s1443 + $0x14] sm:$0x1]
      %v2618 = vld [vmem:[%s1443 + $0x18] sm:$0xf]
      %v2619 = vld [vmem:[%s1443 + $0x1c] sm:$0xf]
      %v2620 = vld [vmem:[%s1443 + $0x20] sm:$0x1]
      %v2621 = vld [vmem:[%s1443 + $0x24] sm:$0xf]
      %v2622 = vld [vmem:[%s1443 + $0x28] sm:$0xf]
      %v2623 = vld [vmem:[%s1443 + $0x2c] sm:$0x1]
      %v2624 = vld [vmem:[%s1443 + $0x30] sm:$0xf]
      %v2625 = vld [vmem:[%s1443 + $0x34] sm:$0xf]
      %v2626 = vld [vmem:[%s1443 + $0x38] sm:$0x1]
      %v2627 = vld [vmem:[%s1443 + $0x3c] sm:$0xf]
      %v2628 = vld [vmem:[%s1443 + $0x40] sm:$0xf]
      %v2629 = vld [vmem:[%s1443 + $0x44] sm:$0x1]
      %v2630 = vld [vmem:[%s1443 + $0x48] sm:$0xf]
      %v2631 = vld [vmem:[%s1443 + $0x4c] sm:$0xf]
      %v2632 = vld [vmem:[%s1443 + $0x50] sm:$0x1]
      %v2633 = vld [vmem:[%s1443 + $0x54] sm:$0xf]
      %v2634 = vld [vmem:[%s1443 + $0x58] sm:$0xf]
      %v2635 = vld [vmem:[%s1443 + $0x5c] sm:$0x1]
      %v2636 = vld [vmem:[%s1443 + $0x60] sm:$0xf]
      %v2637 = vld [vmem:[%s1443 + $0x64] sm:$0xf]
      %v2638 = vld [vmem:[%s1443 + $0x68] sm:$0x1]
      %v2639 = vld [vmem:[%s1443 + $0x6c] sm:$0xf]
      %v2640 = vld [vmem:[%s1443 + $0x70] sm:$0xf]
      %v2641 = vld [vmem:[%s1443 + $0x74] sm:$0x1]
      %v2642 = vld [vmem:[%s1443 + $0x78] sm:$0xf]
      %v2643 = vld [vmem:[%s1443 + $0x7c] sm:$0xf]
      %v2644 = vld [vmem:[%s1443 + $0x80] sm:$0x1]
      %v2645 = vld [vmem:[%s1443 + $0x84] sm:$0xf]
      %v2646 = vld [vmem:[%s1443 + $0x88] sm:$0xf]
      %v2647 = vld [vmem:[%s1443 + $0x8c] sm:$0x1]
      %v2648 = vld [vmem:[%s1443 + $0x90] sm:$0xf]
      %v2649 = vld [vmem:[%s1443 + $0x94] sm:$0xf]
      %v2650 = vld [vmem:[%s1443 + $0x98] sm:$0x1]
      %v2651 = vld [vmem:[%s1443 + $0x9c] sm:$0xf]
      %v2652 = vld [vmem:[%s1443 + $0xa0] sm:$0xf]
      %v2653 = vld [vmem:[%s1443 + $0xa4] sm:$0x1]
      %v2654 = vld [vmem:[%s1443 + $0xa8] sm:$0xf]
      %v2655 = vld [vmem:[%s1443 + $0xac] sm:$0xf]
      %v2656 = vld [vmem:[%s1443 + $0xb0] sm:$0x1]
      %v2657 = vld [vmem:[%s1443 + $0xb4] sm:$0xf]
      %v2658 = vld [vmem:[%s1443 + $0xb8] sm:$0xf]
      %v2659 = vld [vmem:[%s1443 + $0xbc] sm:$0x1]
      %v2692 = vunpack.c.l.b16 %v2612
      %v2693 = vunpack.c.l.b16 %v2613
      %v2694 = vunpack.c.l.b16 %v2615
      %v2695 = vunpack.c.l.b16 %v2616
      %v2696 = vunpack.c.l.b16 %v2618
      %v2697 = vunpack.c.l.b16 %v2619
      %v2698 = vunpack.c.l.b16 %v2621
      %v2699 = vunpack.c.l.b16 %v2622
      %v2700 = vunpack.c.l.b16 %v2624
      %v2701 = vunpack.c.l.b16 %v2625
      %v2702 = vunpack.c.l.b16 %v2627
      %v2703 = vunpack.c.l.b16 %v2628
      %v2704 = vunpack.c.l.b16 %v2630
      %v2705 = vunpack.c.l.b16 %v2631
      %v2706 = vunpack.c.l.b16 %v2633
      %v2707 = vunpack.c.l.b16 %v2634
      %v2708 = vunpack.c.l.b16 %v2636
      %v2709 = vunpack.c.l.b16 %v2637
      %v2710 = vunpack.c.l.b16 %v2639
      %v2711 = vunpack.c.l.b16 %v2640
      %v2712 = vunpack.c.l.b16 %v2642
      %v2713 = vunpack.c.l.b16 %v2643
      %v2714 = vunpack.c.l.b16 %v2645
      %v2715 = vunpack.c.l.b16 %v2646
      %v2716 = vunpack.c.l.b16 %v2648
      %v2717 = vunpack.c.l.b16 %v2649
      %v2718 = vunpack.c.l.b16 %v2651
      %v2719 = vunpack.c.l.b16 %v2652
      %v2720 = vunpack.c.l.b16 %v2654
      %v2721 = vunpack.c.l.b16 %v2655
      %v2722 = vunpack.c.l.b16 %v2657
      %v2723 = vunpack.c.l.b16 %v2658
      %v2724 = vpack.c.b16 %v2693, %v2692
      %v2725 = vpack.c.b16 %v2695, %v2694
      %v2726 = vpack.c.b16 %v2697, %v2696
      %v2727 = vpack.c.b16 %v2699, %v2698
      %v2728 = vpack.c.b16 %v2701, %v2700
      %v2729 = vpack.c.b16 %v2703, %v2702
      %v2730 = vpack.c.b16 %v2705, %v2704
      %v2731 = vpack.c.b16 %v2707, %v2706
      %v2732 = vpack.c.b16 %v2709, %v2708
      %v2733 = vpack.c.b16 %v2711, %v2710
      %v2734 = vpack.c.b16 %v2713, %v2712
      %v2735 = vpack.c.b16 %v2715, %v2714
      %v2736 = vpack.c.b16 %v2717, %v2716
      %v2737 = vpack.c.b16 %v2719, %v2718
      %v2738 = vpack.c.b16 %v2721, %v2720
      %v2739 = vpack.c.b16 %v2723, %v2722
      %v2756 = vunpack.c.l.b16 %v2614
      %v2757 = vunpack.c.l.b16 %v2617
      %v2758 = vunpack.c.l.b16 %v2620
      %v2759 = vunpack.c.l.b16 %v2623
      %v2760 = vunpack.c.l.b16 %v2626
      %v2761 = vunpack.c.l.b16 %v2629
      %v2762 = vunpack.c.l.b16 %v2632
      %v2763 = vunpack.c.l.b16 %v2635
      %v2764 = vunpack.c.l.b16 %v2638
      %v2765 = vunpack.c.l.b16 %v2641
      %v2766 = vunpack.c.l.b16 %v2644
      %v2767 = vunpack.c.l.b16 %v2647
      %v2768 = vunpack.c.l.b16 %v2650
      %v2769 = vunpack.c.l.b16 %v2653
      %v2770 = vunpack.c.l.b16 %v2656
      %v2771 = vunpack.c.l.b16 %v2659
      %v2772 = vpack.c.b16 %v2756, %v2756
      %v2773 = vpack.c.b16 %v2757, %v2757
      %v2774 = vpack.c.b16 %v2758, %v2758
      %v2775 = vpack.c.b16 %v2759, %v2759
      %v2776 = vpack.c.b16 %v2760, %v2760
      %v2777 = vpack.c.b16 %v2761, %v2761
      %v2778 = vpack.c.b16 %v2762, %v2762
      %v2779 = vpack.c.b16 %v2763, %v2763
      %v2780 = vpack.c.b16 %v2764, %v2764
      %v2781 = vpack.c.b16 %v2765, %v2765
      %v2782 = vpack.c.b16 %v2766, %v2766
      %v2783 = vpack.c.b16 %v2767, %v2767
      %v2784 = vpack.c.b16 %v2768, %v2768
      %v2785 = vpack.c.b16 %v2769, %v2769
      %v2786 = vpack.c.b16 %v2770, %v2770
      %v2787 = vpack.c.b16 %v2771, %v2771
      %v2789 = vshrl.u32 %v2724, 16
      %v2791 = vshll.u32 %v2724, 16
      %v2793 = vrot.slane %v2791, 1
      %v2794 = vor.u32 %v2789, %v2793
      %v2796 = vshll.u32 %v2772, 16
      %v2798 = vrot.slane %v2796, 1
      %v2799 = vsel %vm2237, %v2794, %v2798
      %v2801 = vshrl.u32 %v2725, 16
      %v2803 = vshll.u32 %v2725, 16
      %v2805 = vrot.slane %v2803, 1
      %v2806 = vor.u32 %v2801, %v2805
      %v2808 = vshll.u32 %v2773, 16
      %v2810 = vrot.slane %v2808, 1
      %v2811 = vsel %vm2237, %v2806, %v2810
      %v2813 = vshrl.u32 %v2726, 16
      %v2815 = vshll.u32 %v2726, 16
      %v2817 = vrot.slane %v2815, 1
      %v2818 = vor.u32 %v2813, %v2817
      %v2820 = vshll.u32 %v2774, 16
      %v2822 = vrot.slane %v2820, 1
      %v2823 = vsel %vm2237, %v2818, %v2822
      %v2825 = vshrl.u32 %v2727, 16
      %v2827 = vshll.u32 %v2727, 16
      %v2829 = vrot.slane %v2827, 1
      %v2830 = vor.u32 %v2825, %v2829
      %v2832 = vshll.u32 %v2775, 16
      %v2834 = vrot.slane %v2832, 1
      %v2835 = vsel %vm2237, %v2830, %v2834
      %v2837 = vshrl.u32 %v2728, 16
      %v2839 = vshll.u32 %v2728, 16
      %v2841 = vrot.slane %v2839, 1
      %v2842 = vor.u32 %v2837, %v2841
      %v2844 = vshll.u32 %v2776, 16
      %v2846 = vrot.slane %v2844, 1
      %v2847 = vsel %vm2237, %v2842, %v2846
      %v2849 = vshrl.u32 %v2729, 16
      %v2851 = vshll.u32 %v2729, 16
      %v2853 = vrot.slane %v2851, 1
      %v2854 = vor.u32 %v2849, %v2853
      %v2856 = vshll.u32 %v2777, 16
      %v2858 = vrot.slane %v2856, 1
      %v2859 = vsel %vm2237, %v2854, %v2858
      %v2861 = vshrl.u32 %v2730, 16
      %v2863 = vshll.u32 %v2730, 16
      %v2865 = vrot.slane %v2863, 1
      %v2866 = vor.u32 %v2861, %v2865
      %v2868 = vshll.u32 %v2778, 16
      %v2870 = vrot.slane %v2868, 1
      %v2871 = vsel %vm2237, %v2866, %v2870
      %v2873 = vshrl.u32 %v2731, 16
      %v2875 = vshll.u32 %v2731, 16
      %v2877 = vrot.slane %v2875, 1
      %v2878 = vor.u32 %v2873, %v2877
      %v2880 = vshll.u32 %v2779, 16
      %v2882 = vrot.slane %v2880, 1
      %v2883 = vsel %vm2237, %v2878, %v2882
      %v2885 = vshrl.u32 %v2732, 16
      %v2887 = vshll.u32 %v2732, 16
      %v2889 = vrot.slane %v2887, 1
      %v2890 = vor.u32 %v2885, %v2889
      %v2892 = vshll.u32 %v2780, 16
      %v2894 = vrot.slane %v2892, 1
      %v2895 = vsel %vm2237, %v2890, %v2894
      %v2897 = vshrl.u32 %v2733, 16
      %v2899 = vshll.u32 %v2733, 16
      %v2901 = vrot.slane %v2899, 1
      %v2902 = vor.u32 %v2897, %v2901
      %v2904 = vshll.u32 %v2781, 16
      %v2906 = vrot.slane %v2904, 1
      %v2907 = vsel %vm2237, %v2902, %v2906
      %v2909 = vshrl.u32 %v2734, 16
      %v2911 = vshll.u32 %v2734, 16
      %v2913 = vrot.slane %v2911, 1
      %v2914 = vor.u32 %v2909, %v2913
      %v2916 = vshll.u32 %v2782, 16
      %v2918 = vrot.slane %v2916, 1
      %v2919 = vsel %vm2237, %v2914, %v2918
      %v2921 = vshrl.u32 %v2735, 16
      %v2923 = vshll.u32 %v2735, 16
      %v2925 = vrot.slane %v2923, 1
      %v2926 = vor.u32 %v2921, %v2925
      %v2928 = vshll.u32 %v2783, 16
      %v2930 = vrot.slane %v2928, 1
      %v2931 = vsel %vm2237, %v2926, %v2930
      %v2933 = vshrl.u32 %v2736, 16
      %v2935 = vshll.u32 %v2736, 16
      %v2937 = vrot.slane %v2935, 1
      %v2938 = vor.u32 %v2933, %v2937
      %v2940 = vshll.u32 %v2784, 16
      %v2942 = vrot.slane %v2940, 1
      %v2943 = vsel %vm2237, %v2938, %v2942
      %v2945 = vshrl.u32 %v2737, 16
      %v2947 = vshll.u32 %v2737, 16
      %v2949 = vrot.slane %v2947, 1
      %v2950 = vor.u32 %v2945, %v2949
      %v2952 = vshll.u32 %v2785, 16
      %v2954 = vrot.slane %v2952, 1
      %v2955 = vsel %vm2237, %v2950, %v2954
      %v2957 = vshrl.u32 %v2738, 16
      %v2959 = vshll.u32 %v2738, 16
      %v2961 = vrot.slane %v2959, 1
      %v2962 = vor.u32 %v2957, %v2961
      %v2964 = vshll.u32 %v2786, 16
      %v2966 = vrot.slane %v2964, 1
      %v2967 = vsel %vm2237, %v2962, %v2966
      %v2969 = vshrl.u32 %v2739, 16
      %v2971 = vshll.u32 %v2739, 16
      %v2973 = vrot.slane %v2971, 1
      %v2974 = vor.u32 %v2969, %v2973
      %v2976 = vshll.u32 %v2787, 16
      %v2978 = vrot.slane %v2976, 1
      %v2979 = vsel %vm2237, %v2974, %v2978
      %2980 = vrot.lane.b32.xlu0 %v2799, 8
      %v2981 = vpop.permute.xlu0 %2980
      %2982 = vrot.lane.b32.xlu0 %v2811, 8
      %v2983 = vpop.permute.xlu0 %2982
      %2984 = vrot.lane.b32.xlu0 %v2823, 8
      %v2985 = vpop.permute.xlu0 %2984
      %2986 = vrot.lane.b32.xlu0 %v2835, 8
      %v2987 = vpop.permute.xlu0 %2986
      %2988 = vrot.lane.b32.xlu0 %v2847, 8
      %v2989 = vpop.permute.xlu0 %2988
      %2990 = vrot.lane.b32.xlu0 %v2859, 8
      %v2991 = vpop.permute.xlu0 %2990
      %2992 = vrot.lane.b32.xlu0 %v2871, 8
      %v2993 = vpop.permute.xlu0 %2992
      %2994 = vrot.lane.b32.xlu0 %v2883, 8
      %v2995 = vpop.permute.xlu0 %2994
      %2996 = vrot.lane.b32.xlu0 %v2895, 8
      %v2997 = vpop.permute.xlu0 %2996
      %2998 = vrot.lane.b32.xlu0 %v2907, 8
      %v2999 = vpop.permute.xlu0 %2998
      %3000 = vrot.lane.b32.xlu0 %v2919, 8
      %v3001 = vpop.permute.xlu0 %3000
      %3002 = vrot.lane.b32.xlu0 %v2931, 8
      %v3003 = vpop.permute.xlu0 %3002
      %3004 = vrot.lane.b32.xlu0 %v2943, 8
      %v3005 = vpop.permute.xlu0 %3004
      %3006 = vrot.lane.b32.xlu0 %v2955, 8
      %v3007 = vpop.permute.xlu0 %3006
      %3008 = vrot.lane.b32.xlu0 %v2967, 8
      %v3009 = vpop.permute.xlu0 %3008
      %3010 = vrot.lane.b32.xlu0 %v2979, 8
      %v3011 = vpop.permute.xlu0 %3010
      %v3012 = vrot.slane %v2724, 1
      %v3013 = vrot.slane %v2772, 1
      %v3014 = vsel %vm2462, %v3012, %v3013
      %v3015 = vrot.slane %v2725, 1
      %v3016 = vrot.slane %v2773, 1
      %v3017 = vsel %vm2462, %v3015, %v3016
      %v3018 = vrot.slane %v2726, 1
      %v3019 = vrot.slane %v2774, 1
      %v3020 = vsel %vm2462, %v3018, %v3019
      %v3021 = vrot.slane %v2727, 1
      %v3022 = vrot.slane %v2775, 1
      %v3023 = vsel %vm2462, %v3021, %v3022
      %v3024 = vrot.slane %v2728, 1
      %v3025 = vrot.slane %v2776, 1
      %v3026 = vsel %vm2462, %v3024, %v3025
      %v3027 = vrot.slane %v2729, 1
      %v3028 = vrot.slane %v2777, 1
      %v3029 = vsel %vm2462, %v3027, %v3028
      %v3030 = vrot.slane %v2730, 1
      %v3031 = vrot.slane %v2778, 1
      %v3032 = vsel %vm2462, %v3030, %v3031
      %v3033 = vrot.slane %v2731, 1
      %v3034 = vrot.slane %v2779, 1
      %v3035 = vsel %vm2462, %v3033, %v3034
      %v3036 = vrot.slane %v2732, 1
      %v3037 = vrot.slane %v2780, 1
      %v3038 = vsel %vm2462, %v3036, %v3037
      %v3039 = vrot.slane %v2733, 1
      %v3040 = vrot.slane %v2781, 1
      %v3041 = vsel %vm2462, %v3039, %v3040
      %v3042 = vrot.slane %v2734, 1
      %v3043 = vrot.slane %v2782, 1
      %v3044 = vsel %vm2462, %v3042, %v3043
      %v3045 = vrot.slane %v2735, 1
      %v3046 = vrot.slane %v2783, 1
      %v3047 = vsel %vm2462, %v3045, %v3046
      %v3048 = vrot.slane %v2736, 1
      %v3049 = vrot.slane %v2784, 1
      %v3050 = vsel %vm2462, %v3048, %v3049
      %v3051 = vrot.slane %v2737, 1
      %v3052 = vrot.slane %v2785, 1
      %v3053 = vsel %vm2462, %v3051, %v3052
      %v3054 = vrot.slane %v2738, 1
      %v3055 = vrot.slane %v2786, 1
      %v3056 = vsel %vm2462, %v3054, %v3055
      %v3057 = vrot.slane %v2739, 1
      %v3058 = vrot.slane %v2787, 1
      %v3059 = vsel %vm2462, %v3057, %v3058
      %3060 = vrot.lane.b32.xlu0 %v3014, 16
      %v3061 = vpop.permute.xlu0 %3060
      %3062 = vrot.lane.b32.xlu0 %v3017, 16
      %v3063 = vpop.permute.xlu0 %3062
      %3064 = vrot.lane.b32.xlu0 %v3020, 16
      %v3065 = vpop.permute.xlu0 %3064
      %3066 = vrot.lane.b32.xlu0 %v3023, 16
      %v3067 = vpop.permute.xlu0 %3066
      %3068 = vrot.lane.b32.xlu0 %v3026, 16
      %v3069 = vpop.permute.xlu0 %3068
      %3070 = vrot.lane.b32.xlu0 %v3029, 16
      %v3071 = vpop.permute.xlu0 %3070
      %3072 = vrot.lane.b32.xlu0 %v3032, 16
      %v3073 = vpop.permute.xlu0 %3072
      %3074 = vrot.lane.b32.xlu0 %v3035, 16
      %v3075 = vpop.permute.xlu0 %3074
      %3076 = vrot.lane.b32.xlu0 %v3038, 16
      %v3077 = vpop.permute.xlu0 %3076
      %3078 = vrot.lane.b32.xlu0 %v3041, 16
      %v3079 = vpop.permute.xlu0 %3078
      %3080 = vrot.lane.b32.xlu0 %v3044, 16
      %v3081 = vpop.permute.xlu0 %3080
      %3082 = vrot.lane.b32.xlu0 %v3047, 16
      %v3083 = vpop.permute.xlu0 %3082
      %3084 = vrot.lane.b32.xlu0 %v3050, 16
      %v3085 = vpop.permute.xlu0 %3084
      %3086 = vrot.lane.b32.xlu0 %v3053, 16
      %v3087 = vpop.permute.xlu0 %3086
      %3088 = vrot.lane.b32.xlu0 %v3056, 16
      %v3089 = vpop.permute.xlu0 %3088
      %3090 = vrot.lane.b32.xlu0 %v3059, 16
      %v3091 = vpop.permute.xlu0 %3090
      %v3093 = vsel %vm2543, %v2724, %v2981
      %v3095 = vsel %vm2543, %v2725, %v2983
      %v3097 = vsel %vm2543, %v2726, %v2985
      %v3099 = vsel %vm2543, %v2727, %v2987
      %v3101 = vsel %vm2543, %v2728, %v2989
      %v3103 = vsel %vm2543, %v2729, %v2991
      %v3105 = vsel %vm2543, %v2730, %v2993
      %v3107 = vsel %vm2543, %v2731, %v2995
      %v3109 = vsel %vm2543, %v2732, %v2997
      %v3111 = vsel %vm2543, %v2733, %v2999
      %v3113 = vsel %vm2543, %v2734, %v3001
      %v3115 = vsel %vm2543, %v2735, %v3003
      %v3117 = vsel %vm2543, %v2736, %v3005
      %v3119 = vsel %vm2543, %v2737, %v3007
      %v3121 = vsel %vm2543, %v2738, %v3009
      %v3123 = vsel %vm2543, %v2739, %v3011
      %v3125 = vsel %vm2576, %v3093, %v3061
      %v3127 = vsel %vm2576, %v3095, %v3063
      %v3129 = vsel %vm2576, %v3097, %v3065
      %v3131 = vsel %vm2576, %v3099, %v3067
      %v3133 = vsel %vm2576, %v3101, %v3069
      %v3135 = vsel %vm2576, %v3103, %v3071
      %v3137 = vsel %vm2576, %v3105, %v3073
      %v3139 = vsel %vm2576, %v3107, %v3075
      %v3141 = vsel %vm2576, %v3109, %v3077
      %v3143 = vsel %vm2576, %v3111, %v3079
      %v3145 = vsel %vm2576, %v3113, %v3081
      %v3147 = vsel %vm2576, %v3115, %v3083
      %v3149 = vsel %vm2576, %v3117, %v3085
      %v3151 = vsel %vm2576, %v3119, %v3087
      %v3153 = vsel %vm2576, %v3121, %v3089
      %v3155 = vsel %vm2576, %v3123, %v3091
      %v3156 = vld [vmem:[%s2 + $0xc] sm:$0xf]
      %v3157 = vld [vmem:[%s2 + $0x10] sm:$0xf]
      %v3158 = vld [vmem:[%s2 + $0x14] sm:$0xf]
      %v3162 = vunpack.c.l.b16 %v3156
      %v3163 = vunpack.c.l.b16 %v3157
      %v3164 = vunpack.c.l.b16 %v3158
      %v3165 = vpack.c.b16 %v3163, %v3162
      %v3166 = vpack.c.b16 %v3164, %v3164
      %vm3168 = vcmask 195584
      %v3169 = vsel %vm3168, %v3125, 0
      %v3171 = vsel %vm3168, %v3127, 0
      %v3173 = vsel %vm3168, %v3129, 0
      %v3175 = vsel %vm3168, %v3131, 0
      %v3177 = vsel %vm3168, %v3133, 0
      %v3179 = vsel %vm3168, %v3135, 0
      %v3181 = vsel %vm3168, %v3137, 0
      %v3183 = vsel %vm3168, %v3139, 0
      %v3185 = vsel %vm3168, %v3141, 0
      %v3187 = vsel %vm3168, %v3143, 0
      %v3189 = vsel %vm3168, %v3145, 0
      %v3191 = vsel %vm3168, %v3147, 0
      %v3193 = vsel %vm3168, %v3149, 0
      %v3195 = vsel %vm3168, %v3151, 0
      %v3197 = vsel %vm3168, %v3153, 0
      %v3199 = vsel %vm3168, %v3155, 0
      %vm3201 = vcmask 1043456
      %v3203 = vsel %vm3201, %v3166, 0
      %3205 = vmatpush.bf16.msra.mxu0 0
      %3206 = vmatpush.bf16.msra.mxu0 0
      %3207 = vmatpush.bf16.msra.mxu0 0
      %3208 = vmatpush.bf16.msra.mxu0 0
      %3209 = vmatpush.bf16.msra.mxu0 0
      %3210 = vmatpush.bf16.msra.mxu0 0
      %3211 = vmatpush.bf16.msra.mxu0 %v3203
      %3212 = vmatpush.bf16.msra.mxu0 %v3165
      %3213 = vmatmul.bf16.gmra.mxu0 %v3169
      %v3214 = vpop.f32.mrf.mxu0
      %v3215 = vadd.f32 0.0, %v3214
      %v3216 = vpop.f32.mrf.mxu0
      %v3217 = vadd.f32 0.0, %v3216
      %3218 = vmatmul.bf16.gmra.mxu0 %v3171
      %v3219 = vpop.f32.mrf.mxu0
      %v3220 = vadd.f32 0.0, %v3219
      %v3221 = vpop.f32.mrf.mxu0
      %v3222 = vadd.f32 0.0, %v3221
      %3223 = vmatmul.bf16.gmra.mxu0 %v3173
      %v3224 = vpop.f32.mrf.mxu0
      %v3225 = vadd.f32 0.0, %v3224
      %v3226 = vpop.f32.mrf.mxu0
      %v3227 = vadd.f32 0.0, %v3226
      %3228 = vmatmul.bf16.gmra.mxu0 %v3175
      %v3229 = vpop.f32.mrf.mxu0
      %v3230 = vadd.f32 0.0, %v3229
      %v3231 = vpop.f32.mrf.mxu0
      %v3232 = vadd.f32 0.0, %v3231
      %3233 = vmatmul.bf16.gmra.mxu0 %v3177
      %v3234 = vpop.f32.mrf.mxu0
      %v3235 = vadd.f32 0.0, %v3234
      %v3236 = vpop.f32.mrf.mxu0
      %v3237 = vadd.f32 0.0, %v3236
      %3238 = vmatmul.bf16.gmra.mxu0 %v3179
      %v3239 = vpop.f32.mrf.mxu0
      %v3240 = vadd.f32 0.0, %v3239
      %v3241 = vpop.f32.mrf.mxu0
      %v3242 = vadd.f32 0.0, %v3241
      %3243 = vmatmul.bf16.gmra.mxu0 %v3181
      %v3244 = vpop.f32.mrf.mxu0
      %v3245 = vadd.f32 0.0, %v3244
      %v3246 = vpop.f32.mrf.mxu0
      %v3247 = vadd.f32 0.0, %v3246
      %3248 = vmatmul.bf16.gmra.mxu0 %v3183
      %v3249 = vpop.f32.mrf.mxu0
      %v3250 = vadd.f32 0.0, %v3249
      %v3251 = vpop.f32.mrf.mxu0
      %v3252 = vadd.f32 0.0, %v3251
      %3253 = vmatmul.bf16.gmra.mxu0 %v3185
      %v3254 = vpop.f32.mrf.mxu0
      %v3255 = vadd.f32 0.0, %v3254
      %v3256 = vpop.f32.mrf.mxu0
      %v3257 = vadd.f32 0.0, %v3256
      %3258 = vmatmul.bf16.gmra.mxu0 %v3187
      %v3259 = vpop.f32.mrf.mxu0
      %v3260 = vadd.f32 0.0, %v3259
      %v3261 = vpop.f32.mrf.mxu0
      %v3262 = vadd.f32 0.0, %v3261
      %3263 = vmatmul.bf16.gmra.mxu0 %v3189
      %v3264 = vpop.f32.mrf.mxu0
      %v3265 = vadd.f32 0.0, %v3264
      %v3266 = vpop.f32.mrf.mxu0
      %v3267 = vadd.f32 0.0, %v3266
      %3268 = vmatmul.bf16.gmra.mxu0 %v3191
      %v3269 = vpop.f32.mrf.mxu0
      %v3270 = vadd.f32 0.0, %v3269
      %v3271 = vpop.f32.mrf.mxu0
      %v3272 = vadd.f32 0.0, %v3271
      %3273 = vmatmul.bf16.gmra.mxu0 %v3193
      %v3274 = vpop.f32.mrf.mxu0
      %v3275 = vadd.f32 0.0, %v3274
      %v3276 = vpop.f32.mrf.mxu0
      %v3277 = vadd.f32 0.0, %v3276
      %3278 = vmatmul.bf16.gmra.mxu0 %v3195
      %v3279 = vpop.f32.mrf.mxu0
      %v3280 = vadd.f32 0.0, %v3279
      %v3281 = vpop.f32.mrf.mxu0
      %v3282 = vadd.f32 0.0, %v3281
      %3283 = vmatmul.bf16.gmra.mxu0 %v3197
      %v3284 = vpop.f32.mrf.mxu0
      %v3285 = vadd.f32 0.0, %v3284
      %v3286 = vpop.f32.mrf.mxu0
      %v3287 = vadd.f32 0.0, %v3286
      %3288 = vmatmul.bf16.gmra.mxu0 %v3199
      %v3289 = vpop.f32.mrf.mxu0
      %v3290 = vadd.f32 0.0, %v3289
      %v3291 = vpop.f32.mrf.mxu0
      %v3292 = vadd.f32 0.0, %v3291
      %3293 = vdwg.mxu0
      %v3297 = vunpack.c.l.b16 %v2609
      %v3298 = vunpack.c.l.b16 %v2610
      %v3299 = vunpack.c.l.b16 %v2611
      %v3300 = vpack.c.b16 %v3298, %v3297
      %v3301 = vpack.c.b16 %v3299, %v3299
      %v3303 = vsel %vm3168, %v2578, 0
      %v3305 = vsel %vm3168, %v2580, 0
      %v3307 = vsel %vm3168, %v2582, 0
      %v3309 = vsel %vm3168, %v2584, 0
      %v3311 = vsel %vm3168, %v2586, 0
      %v3313 = vsel %vm3168, %v2588, 0
      %v3315 = vsel %vm3168, %v2590, 0
      %v3317 = vsel %vm3168, %v2592, 0
      %v3319 = vsel %vm3168, %v2594, 0
      %v3321 = vsel %vm3168, %v2596, 0
      %v3323 = vsel %vm3168, %v2598, 0
      %v3325 = vsel %vm3168, %v2600, 0
      %v3327 = vsel %vm3168, %v2602, 0
      %v3329 = vsel %vm3168, %v2604, 0
      %v3331 = vsel %vm3168, %v2606, 0
      %v3333 = vsel %vm3168, %v2608, 0
      %v3336 = vsel %vm3201, %v3301, 0
      %3338 = vmatpush.bf16.msra.mxu0 0
      %3339 = vmatpush.bf16.msra.mxu0 0
      %3340 = vmatpush.bf16.msra.mxu0 0
      %3341 = vmatpush.bf16.msra.mxu0 0
      %3342 = vmatpush.bf16.msra.mxu0 0
      %3343 = vmatpush.bf16.msra.mxu0 0
      %3344 = vmatpush.bf16.msra.mxu0 %v3336
      %3345 = vmatpush.bf16.msra.mxu0 %v3300
      %3346 = vmatmul.bf16.gmra.mxu0 %v3303
      %v3347 = vpop.f32.mrf.mxu0
      %v3348 = vadd.f32 %v3215, %v3347
      %v3349 = vpop.f32.mrf.mxu0
      %v3350 = vadd.f32 %v3217, %v3349
      %3351 = vmatmul.bf16.gmra.mxu0 %v3305
      %v3352 = vpop.f32.mrf.mxu0
      %v3353 = vadd.f32 %v3220, %v3352
      %v3354 = vpop.f32.mrf.mxu0
      %v3355 = vadd.f32 %v3222, %v3354
      %3356 = vmatmul.bf16.gmra.mxu0 %v3307
      %v3357 = vpop.f32.mrf.mxu0
      %v3358 = vadd.f32 %v3225, %v3357
      %v3359 = vpop.f32.mrf.mxu0
      %v3360 = vadd.f32 %v3227, %v3359
      %3361 = vmatmul.bf16.gmra.mxu0 %v3309
      %v3362 = vpop.f32.mrf.mxu0
      %v3363 = vadd.f32 %v3230, %v3362
      %v3364 = vpop.f32.mrf.mxu0
      %v3365 = vadd.f32 %v3232, %v3364
      %3366 = vmatmul.bf16.gmra.mxu0 %v3311
      %v3367 = vpop.f32.mrf.mxu0
      %v3368 = vadd.f32 %v3235, %v3367
      %v3369 = vpop.f32.mrf.mxu0
      %v3370 = vadd.f32 %v3237, %v3369
      %3371 = vmatmul.bf16.gmra.mxu0 %v3313
      %v3372 = vpop.f32.mrf.mxu0
      %v3373 = vadd.f32 %v3240, %v3372
      %v3374 = vpop.f32.mrf.mxu0
      %v3375 = vadd.f32 %v3242, %v3374
      %3376 = vmatmul.bf16.gmra.mxu0 %v3315
      %v3377 = vpop.f32.mrf.mxu0
      %v3378 = vadd.f32 %v3245, %v3377
      %v3379 = vpop.f32.mrf.mxu0
      %v3380 = vadd.f32 %v3247, %v3379
      %3381 = vmatmul.bf16.gmra.mxu0 %v3317
      %v3382 = vpop.f32.mrf.mxu0
      %v3383 = vadd.f32 %v3250, %v3382
      %v3384 = vpop.f32.mrf.mxu0
      %v3385 = vadd.f32 %v3252, %v3384
      %3386 = vmatmul.bf16.gmra.mxu0 %v3319
      %v3387 = vpop.f32.mrf.mxu0
      %v3388 = vadd.f32 %v3255, %v3387
      %v3389 = vpop.f32.mrf.mxu0
      %v3390 = vadd.f32 %v3257, %v3389
      %3391 = vmatmul.bf16.gmra.mxu0 %v3321
      %v3392 = vpop.f32.mrf.mxu0
      %v3393 = vadd.f32 %v3260, %v3392
      %v3394 = vpop.f32.mrf.mxu0
      %v3395 = vadd.f32 %v3262, %v3394
      %3396 = vmatmul.bf16.gmra.mxu0 %v3323
      %v3397 = vpop.f32.mrf.mxu0
      %v3398 = vadd.f32 %v3265, %v3397
      %v3399 = vpop.f32.mrf.mxu0
      %v3400 = vadd.f32 %v3267, %v3399
      %3401 = vmatmul.bf16.gmra.mxu0 %v3325
      %v3402 = vpop.f32.mrf.mxu0
      %v3403 = vadd.f32 %v3270, %v3402
      %v3404 = vpop.f32.mrf.mxu0
      %v3405 = vadd.f32 %v3272, %v3404
      %3406 = vmatmul.bf16.gmra.mxu0 %v3327
      %v3407 = vpop.f32.mrf.mxu0
      %v3408 = vadd.f32 %v3275, %v3407
      %v3409 = vpop.f32.mrf.mxu0
      %v3410 = vadd.f32 %v3277, %v3409
      %3411 = vmatmul.bf16.gmra.mxu0 %v3329
      %v3412 = vpop.f32.mrf.mxu0
      %v3413 = vadd.f32 %v3280, %v3412
      %v3414 = vpop.f32.mrf.mxu0
      %v3415 = vadd.f32 %v3282, %v3414
      %3416 = vmatmul.bf16.gmra.mxu0 %v3331
      %v3417 = vpop.f32.mrf.mxu0
      %v3418 = vadd.f32 %v3285, %v3417
      %v3419 = vpop.f32.mrf.mxu0
      %v3420 = vadd.f32 %v3287, %v3419
      %3421 = vmatmul.bf16.gmra.mxu0 %v3333
      %v3422 = vpop.f32.mrf.mxu0
      %v3423 = vadd.f32 %v3290, %v3422
      %v3424 = vpop.f32.mrf.mxu0
      %v3425 = vadd.f32 %v3292, %v3424
      %3426 = vdwg.mxu0
      %s3427 = scalar_lea.vmem [#allocation2], 24
      %v3428 = vld [vmem:[%s3427] sm:$0xf]
      %v3429 = vld [vmem:[%s3427 + $0x4] sm:$0xf]
      %v3430 = vld [vmem:[%s3427 + $0x8] sm:$0x1]
      %v3431 = vld [vmem:[%s3427 + $0xc] sm:$0xf]
      %v3432 = vld [vmem:[%s3427 + $0x10] sm:$0xf]
      %v3433 = vld [vmem:[%s3427 + $0x14] sm:$0x1]
      %v3434 = vld [vmem:[%s3427 + $0x18] sm:$0xf]
      %v3435 = vld [vmem:[%s3427 + $0x1c] sm:$0xf]
      %v3436 = vld [vmem:[%s3427 + $0x20] sm:$0x1]
      %v3437 = vld [vmem:[%s3427 + $0x24] sm:$0xf]
      %v3438 = vld [vmem:[%s3427 + $0x28] sm:$0xf]
      %v3439 = vld [vmem:[%s3427 + $0x2c] sm:$0x1]
      %v3440 = vld [vmem:[%s3427 + $0x30] sm:$0xf]
      %v3441 = vld [vmem:[%s3427 + $0x34] sm:$0xf]
      %v3442 = vld [vmem:[%s3427 + $0x38] sm:$0x1]
      %v3443 = vld [vmem:[%s3427 + $0x3c] sm:$0xf]
      %v3444 = vld [vmem:[%s3427 + $0x40] sm:$0xf]
      %v3445 = vld [vmem:[%s3427 + $0x44] sm:$0x1]
      %v3446 = vld [vmem:[%s3427 + $0x48] sm:$0xf]
      %v3447 = vld [vmem:[%s3427 + $0x4c] sm:$0xf]
      %v3448 = vld [vmem:[%s3427 + $0x50] sm:$0x1]
      %v3449 = vld [vmem:[%s3427 + $0x54] sm:$0xf]
      %v3450 = vld [vmem:[%s3427 + $0x58] sm:$0xf]
      %v3451 = vld [vmem:[%s3427 + $0x5c] sm:$0x1]
      %v3452 = vld [vmem:[%s3427 + $0x60] sm:$0xf]
      %v3453 = vld [vmem:[%s3427 + $0x64] sm:$0xf]
      %v3454 = vld [vmem:[%s3427 + $0x68] sm:$0x1]
      %v3455 = vld [vmem:[%s3427 + $0x6c] sm:$0xf]
      %v3456 = vld [vmem:[%s3427 + $0x70] sm:$0xf]
      %v3457 = vld [vmem:[%s3427 + $0x74] sm:$0x1]
      %v3458 = vld [vmem:[%s3427 + $0x78] sm:$0xf]
      %v3459 = vld [vmem:[%s3427 + $0x7c] sm:$0xf]
      %v3460 = vld [vmem:[%s3427 + $0x80] sm:$0x1]
      %v3461 = vld [vmem:[%s3427 + $0x84] sm:$0xf]
      %v3462 = vld [vmem:[%s3427 + $0x88] sm:$0xf]
      %v3463 = vld [vmem:[%s3427 + $0x8c] sm:$0x1]
      %v3464 = vld [vmem:[%s3427 + $0x90] sm:$0xf]
      %v3465 = vld [vmem:[%s3427 + $0x94] sm:$0xf]
      %v3466 = vld [vmem:[%s3427 + $0x98] sm:$0x1]
      %v3467 = vld [vmem:[%s3427 + $0x9c] sm:$0xf]
      %v3468 = vld [vmem:[%s3427 + $0xa0] sm:$0xf]
      %v3469 = vld [vmem:[%s3427 + $0xa4] sm:$0x1]
      %v3470 = vld [vmem:[%s3427 + $0xa8] sm:$0xf]
      %v3471 = vld [vmem:[%s3427 + $0xac] sm:$0xf]
      %v3472 = vld [vmem:[%s3427 + $0xb0] sm:$0x1]
      %v3473 = vld [vmem:[%s3427 + $0xb4] sm:$0xf]
      %v3474 = vld [vmem:[%s3427 + $0xb8] sm:$0xf]
      %v3475 = vld [vmem:[%s3427 + $0xbc] sm:$0x1]
      %v3508 = vunpack.c.l.b16 %v3428
      %v3509 = vunpack.c.l.b16 %v3429
      %v3510 = vunpack.c.l.b16 %v3431
      %v3511 = vunpack.c.l.b16 %v3432
      %v3512 = vunpack.c.l.b16 %v3434
      %v3513 = vunpack.c.l.b16 %v3435
      %v3514 = vunpack.c.l.b16 %v3437
      %v3515 = vunpack.c.l.b16 %v3438
      %v3516 = vunpack.c.l.b16 %v3440
      %v3517 = vunpack.c.l.b16 %v3441
      %v3518 = vunpack.c.l.b16 %v3443
      %v3519 = vunpack.c.l.b16 %v3444
      %v3520 = vunpack.c.l.b16 %v3446
      %v3521 = vunpack.c.l.b16 %v3447
      %v3522 = vunpack.c.l.b16 %v3449
      %v3523 = vunpack.c.l.b16 %v3450
      %v3524 = vunpack.c.l.b16 %v3452
      %v3525 = vunpack.c.l.b16 %v3453
      %v3526 = vunpack.c.l.b16 %v3455
      %v3527 = vunpack.c.l.b16 %v3456
      %v3528 = vunpack.c.l.b16 %v3458
      %v3529 = vunpack.c.l.b16 %v3459
      %v3530 = vunpack.c.l.b16 %v3461
      %v3531 = vunpack.c.l.b16 %v3462
      %v3532 = vunpack.c.l.b16 %v3464
      %v3533 = vunpack.c.l.b16 %v3465
      %v3534 = vunpack.c.l.b16 %v3467
      %v3535 = vunpack.c.l.b16 %v3468
      %v3536 = vunpack.c.l.b16 %v3470
      %v3537 = vunpack.c.l.b16 %v3471
      %v3538 = vunpack.c.l.b16 %v3473
      %v3539 = vunpack.c.l.b16 %v3474
      %v3540 = vpack.c.b16 %v3509, %v3508
      %v3541 = vpack.c.b16 %v3511, %v3510
      %v3542 = vpack.c.b16 %v3513, %v3512
      %v3543 = vpack.c.b16 %v3515, %v3514
      %v3544 = vpack.c.b16 %v3517, %v3516
      %v3545 = vpack.c.b16 %v3519, %v3518
      %v3546 = vpack.c.b16 %v3521, %v3520
      %v3547 = vpack.c.b16 %v3523, %v3522
      %v3548 = vpack.c.b16 %v3525, %v3524
      %v3549 = vpack.c.b16 %v3527, %v3526
      %v3550 = vpack.c.b16 %v3529, %v3528
      %v3551 = vpack.c.b16 %v3531, %v3530
      %v3552 = vpack.c.b16 %v3533, %v3532
      %v3553 = vpack.c.b16 %v3535, %v3534
      %v3554 = vpack.c.b16 %v3537, %v3536
      %v3555 = vpack.c.b16 %v3539, %v3538
      %v3572 = vunpack.c.l.b16 %v3430
      %v3573 = vunpack.c.l.b16 %v3433
      %v3574 = vunpack.c.l.b16 %v3436
      %v3575 = vunpack.c.l.b16 %v3439
      %v3576 = vunpack.c.l.b16 %v3442
      %v3577 = vunpack.c.l.b16 %v3445
      %v3578 = vunpack.c.l.b16 %v3448
      %v3579 = vunpack.c.l.b16 %v3451
      %v3580 = vunpack.c.l.b16 %v3454
      %v3581 = vunpack.c.l.b16 %v3457
      %v3582 = vunpack.c.l.b16 %v3460
      %v3583 = vunpack.c.l.b16 %v3463
      %v3584 = vunpack.c.l.b16 %v3466
      %v3585 = vunpack.c.l.b16 %v3469
      %v3586 = vunpack.c.l.b16 %v3472
      %v3587 = vunpack.c.l.b16 %v3475
      %v3588 = vpack.c.b16 %v3572, %v3572
      %v3589 = vpack.c.b16 %v3573, %v3573
      %v3590 = vpack.c.b16 %v3574, %v3574
      %v3591 = vpack.c.b16 %v3575, %v3575
      %v3592 = vpack.c.b16 %v3576, %v3576
      %v3593 = vpack.c.b16 %v3577, %v3577
      %v3594 = vpack.c.b16 %v3578, %v3578
      %v3595 = vpack.c.b16 %v3579, %v3579
      %v3596 = vpack.c.b16 %v3580, %v3580
      %v3597 = vpack.c.b16 %v3581, %v3581
      %v3598 = vpack.c.b16 %v3582, %v3582
      %v3599 = vpack.c.b16 %v3583, %v3583
      %v3600 = vpack.c.b16 %v3584, %v3584
      %v3601 = vpack.c.b16 %v3585, %v3585
      %v3602 = vpack.c.b16 %v3586, %v3586
      %v3603 = vpack.c.b16 %v3587, %v3587
      %v3605 = vshrl.u32 %v3540, 16
      %v3607 = vshll.u32 %v3540, 16
      %v3609 = vrot.slane %v3607, 1
      %v3610 = vor.u32 %v3605, %v3609
      %v3612 = vshll.u32 %v3588, 16
      %v3614 = vrot.slane %v3612, 1
      %v3615 = vsel %vm2237, %v3610, %v3614
      %v3617 = vshrl.u32 %v3541, 16
      %v3619 = vshll.u32 %v3541, 16
      %v3621 = vrot.slane %v3619, 1
      %v3622 = vor.u32 %v3617, %v3621
      %v3624 = vshll.u32 %v3589, 16
      %v3626 = vrot.slane %v3624, 1
      %v3627 = vsel %vm2237, %v3622, %v3626
      %v3629 = vshrl.u32 %v3542, 16
      %v3631 = vshll.u32 %v3542, 16
      %v3633 = vrot.slane %v3631, 1
      %v3634 = vor.u32 %v3629, %v3633
      %v3636 = vshll.u32 %v3590, 16
      %v3638 = vrot.slane %v3636, 1
      %v3639 = vsel %vm2237, %v3634, %v3638
      %v3641 = vshrl.u32 %v3543, 16
      %v3643 = vshll.u32 %v3543, 16
      %v3645 = vrot.slane %v3643, 1
      %v3646 = vor.u32 %v3641, %v3645
      %v3648 = vshll.u32 %v3591, 16
      %v3650 = vrot.slane %v3648, 1
      %v3651 = vsel %vm2237, %v3646, %v3650
      %v3653 = vshrl.u32 %v3544, 16
      %v3655 = vshll.u32 %v3544, 16
      %v3657 = vrot.slane %v3655, 1
      %v3658 = vor.u32 %v3653, %v3657
      %v3660 = vshll.u32 %v3592, 16
      %v3662 = vrot.slane %v3660, 1
      %v3663 = vsel %vm2237, %v3658, %v3662
      %v3665 = vshrl.u32 %v3545, 16
      %v3667 = vshll.u32 %v3545, 16
      %v3669 = vrot.slane %v3667, 1
      %v3670 = vor.u32 %v3665, %v3669
      %v3672 = vshll.u32 %v3593, 16
      %v3674 = vrot.slane %v3672, 1
      %v3675 = vsel %vm2237, %v3670, %v3674
      %v3677 = vshrl.u32 %v3546, 16
      %v3679 = vshll.u32 %v3546, 16
      %v3681 = vrot.slane %v3679, 1
      %v3682 = vor.u32 %v3677, %v3681
      %v3684 = vshll.u32 %v3594, 16
      %v3686 = vrot.slane %v3684, 1
      %v3687 = vsel %vm2237, %v3682, %v3686
      %v3689 = vshrl.u32 %v3547, 16
      %v3691 = vshll.u32 %v3547, 16
      %v3693 = vrot.slane %v3691, 1
      %v3694 = vor.u32 %v3689, %v3693
      %v3696 = vshll.u32 %v3595, 16
      %v3698 = vrot.slane %v3696, 1
      %v3699 = vsel %vm2237, %v3694, %v3698
      %v3701 = vshrl.u32 %v3548, 16
      %v3703 = vshll.u32 %v3548, 16
      %v3705 = vrot.slane %v3703, 1
      %v3706 = vor.u32 %v3701, %v3705
      %v3708 = vshll.u32 %v3596, 16
      %v3710 = vrot.slane %v3708, 1
      %v3711 = vsel %vm2237, %v3706, %v3710
      %v3713 = vshrl.u32 %v3549, 16
      %v3715 = vshll.u32 %v3549, 16
      %v3717 = vrot.slane %v3715, 1
      %v3718 = vor.u32 %v3713, %v3717
      %v3720 = vshll.u32 %v3597, 16
      %v3722 = vrot.slane %v3720, 1
      %v3723 = vsel %vm2237, %v3718, %v3722
      %v3725 = vshrl.u32 %v3550, 16
      %v3727 = vshll.u32 %v3550, 16
      %v3729 = vrot.slane %v3727, 1
      %v3730 = vor.u32 %v3725, %v3729
      %v3732 = vshll.u32 %v3598, 16
      %v3734 = vrot.slane %v3732, 1
      %v3735 = vsel %vm2237, %v3730, %v3734
      %v3737 = vshrl.u32 %v3551, 16
      %v3739 = vshll.u32 %v3551, 16
      %v3741 = vrot.slane %v3739, 1
      %v3742 = vor.u32 %v3737, %v3741
      %v3744 = vshll.u32 %v3599, 16
      %v3746 = vrot.slane %v3744, 1
      %v3747 = vsel %vm2237, %v3742, %v3746
      %v3749 = vshrl.u32 %v3552, 16
      %v3751 = vshll.u32 %v3552, 16
      %v3753 = vrot.slane %v3751, 1
      %v3754 = vor.u32 %v3749, %v3753
      %v3756 = vshll.u32 %v3600, 16
      %v3758 = vrot.slane %v3756, 1
      %v3759 = vsel %vm2237, %v3754, %v3758
      %v3761 = vshrl.u32 %v3553, 16
      %v3763 = vshll.u32 %v3553, 16
      %v3765 = vrot.slane %v3763, 1
      %v3766 = vor.u32 %v3761, %v3765
      %v3768 = vshll.u32 %v3601, 16
      %v3770 = vrot.slane %v3768, 1
      %v3771 = vsel %vm2237, %v3766, %v3770
      %v3773 = vshrl.u32 %v3554, 16
      %v3775 = vshll.u32 %v3554, 16
      %v3777 = vrot.slane %v3775, 1
      %v3778 = vor.u32 %v3773, %v3777
      %v3780 = vshll.u32 %v3602, 16
      %v3782 = vrot.slane %v3780, 1
      %v3783 = vsel %vm2237, %v3778, %v3782
      %v3785 = vshrl.u32 %v3555, 16
      %v3787 = vshll.u32 %v3555, 16
      %v3789 = vrot.slane %v3787, 1
      %v3790 = vor.u32 %v3785, %v3789
      %v3792 = vshll.u32 %v3603, 16
      %v3794 = vrot.slane %v3792, 1
      %v3795 = vsel %vm2237, %v3790, %v3794
      %3796 = vrot.lane.b32.xlu0 %v3615, 8
      %v3797 = vpop.permute.xlu0 %3796
      %3798 = vrot.lane.b32.xlu0 %v3627, 8
      %v3799 = vpop.permute.xlu0 %3798
      %3800 = vrot.lane.b32.xlu0 %v3639, 8
      %v3801 = vpop.permute.xlu0 %3800
      %3802 = vrot.lane.b32.xlu0 %v3651, 8
      %v3803 = vpop.permute.xlu0 %3802
      %3804 = vrot.lane.b32.xlu0 %v3663, 8
      %v3805 = vpop.permute.xlu0 %3804
      %3806 = vrot.lane.b32.xlu0 %v3675, 8
      %v3807 = vpop.permute.xlu0 %3806
      %3808 = vrot.lane.b32.xlu0 %v3687, 8
      %v3809 = vpop.permute.xlu0 %3808
      %3810 = vrot.lane.b32.xlu0 %v3699, 8
      %v3811 = vpop.permute.xlu0 %3810
      %3812 = vrot.lane.b32.xlu0 %v3711, 8
      %v3813 = vpop.permute.xlu0 %3812
      %3814 = vrot.lane.b32.xlu0 %v3723, 8
      %v3815 = vpop.permute.xlu0 %3814
      %3816 = vrot.lane.b32.xlu0 %v3735, 8
      %v3817 = vpop.permute.xlu0 %3816
      %3818 = vrot.lane.b32.xlu0 %v3747, 8
      %v3819 = vpop.permute.xlu0 %3818
      %3820 = vrot.lane.b32.xlu0 %v3759, 8
      %v3821 = vpop.permute.xlu0 %3820
      %3822 = vrot.lane.b32.xlu0 %v3771, 8
      %v3823 = vpop.permute.xlu0 %3822
      %3824 = vrot.lane.b32.xlu0 %v3783, 8
      %v3825 = vpop.permute.xlu0 %3824
      %3826 = vrot.lane.b32.xlu0 %v3795, 8
      %v3827 = vpop.permute.xlu0 %3826
      %v3828 = vrot.slane %v3540, 1
      %v3829 = vrot.slane %v3588, 1
      %v3830 = vsel %vm2462, %v3828, %v3829
      %v3831 = vrot.slane %v3541, 1
      %v3832 = vrot.slane %v3589, 1
      %v3833 = vsel %vm2462, %v3831, %v3832
      %v3834 = vrot.slane %v3542, 1
      %v3835 = vrot.slane %v3590, 1
      %v3836 = vsel %vm2462, %v3834, %v3835
      %v3837 = vrot.slane %v3543, 1
      %v3838 = vrot.slane %v3591, 1
      %v3839 = vsel %vm2462, %v3837, %v3838
      %v3840 = vrot.slane %v3544, 1
      %v3841 = vrot.slane %v3592, 1
      %v3842 = vsel %vm2462, %v3840, %v3841
      %v3843 = vrot.slane %v3545, 1
      %v3844 = vrot.slane %v3593, 1
      %v3845 = vsel %vm2462, %v3843, %v3844
      %v3846 = vrot.slane %v3546, 1
      %v3847 = vrot.slane %v3594, 1
      %v3848 = vsel %vm2462, %v3846, %v3847
      %v3849 = vrot.slane %v3547, 1
      %v3850 = vrot.slane %v3595, 1
      %v3851 = vsel %vm2462, %v3849, %v3850
      %v3852 = vrot.slane %v3548, 1
      %v3853 = vrot.slane %v3596, 1
      %v3854 = vsel %vm2462, %v3852, %v3853
      %v3855 = vrot.slane %v3549, 1
      %v3856 = vrot.slane %v3597, 1
      %v3857 = vsel %vm2462, %v3855, %v3856
      %v3858 = vrot.slane %v3550, 1
      %v3859 = vrot.slane %v3598, 1
      %v3860 = vsel %vm2462, %v3858, %v3859
      %v3861 = vrot.slane %v3551, 1
      %v3862 = vrot.slane %v3599, 1
      %v3863 = vsel %vm2462, %v3861, %v3862
      %v3864 = vrot.slane %v3552, 1
      %v3865 = vrot.slane %v3600, 1
      %v3866 = vsel %vm2462, %v3864, %v3865
      %v3867 = vrot.slane %v3553, 1
      %v3868 = vrot.slane %v3601, 1
      %v3869 = vsel %vm2462, %v3867, %v3868
      %v3870 = vrot.slane %v3554, 1
      %v3871 = vrot.slane %v3602, 1
      %v3872 = vsel %vm2462, %v3870, %v3871
      %v3873 = vrot.slane %v3555, 1
      %v3874 = vrot.slane %v3603, 1
      %v3875 = vsel %vm2462, %v3873, %v3874
      %3876 = vrot.lane.b32.xlu0 %v3830, 16
      %v3877 = vpop.permute.xlu0 %3876
      %3878 = vrot.lane.b32.xlu0 %v3833, 16
      %v3879 = vpop.permute.xlu0 %3878
      %3880 = vrot.lane.b32.xlu0 %v3836, 16
      %v3881 = vpop.permute.xlu0 %3880
      %3882 = vrot.lane.b32.xlu0 %v3839, 16
      %v3883 = vpop.permute.xlu0 %3882
      %3884 = vrot.lane.b32.xlu0 %v3842, 16
      %v3885 = vpop.permute.xlu0 %3884
      %3886 = vrot.lane.b32.xlu0 %v3845, 16
      %v3887 = vpop.permute.xlu0 %3886
      %3888 = vrot.lane.b32.xlu0 %v3848, 16
      %v3889 = vpop.permute.xlu0 %3888
      %3890 = vrot.lane.b32.xlu0 %v3851, 16
      %v3891 = vpop.permute.xlu0 %3890
      %3892 = vrot.lane.b32.xlu0 %v3854, 16
      %v3893 = vpop.permute.xlu0 %3892
      %3894 = vrot.lane.b32.xlu0 %v3857, 16
      %v3895 = vpop.permute.xlu0 %3894
      %3896 = vrot.lane.b32.xlu0 %v3860, 16
      %v3897 = vpop.permute.xlu0 %3896
      %3898 = vrot.lane.b32.xlu0 %v3863, 16
      %v3899 = vpop.permute.xlu0 %3898
      %3900 = vrot.lane.b32.xlu0 %v3866, 16
      %v3901 = vpop.permute.xlu0 %3900
      %3902 = vrot.lane.b32.xlu0 %v3869, 16
      %v3903 = vpop.permute.xlu0 %3902
      %3904 = vrot.lane.b32.xlu0 %v3872, 16
      %v3905 = vpop.permute.xlu0 %3904
      %3906 = vrot.lane.b32.xlu0 %v3875, 16
      %v3907 = vpop.permute.xlu0 %3906
      %v3909 = vsel %vm2543, %v3540, %v3797
      %v3911 = vsel %vm2543, %v3541, %v3799
      %v3913 = vsel %vm2543, %v3542, %v3801
      %v3915 = vsel %vm2543, %v3543, %v3803
      %v3917 = vsel %vm2543, %v3544, %v3805
      %v3919 = vsel %vm2543, %v3545, %v3807
      %v3921 = vsel %vm2543, %v3546, %v3809
      %v3923 = vsel %vm2543, %v3547, %v3811
      %v3925 = vsel %vm2543, %v3548, %v3813
      %v3927 = vsel %vm2543, %v3549, %v3815
      %v3929 = vsel %vm2543, %v3550, %v3817
      %v3931 = vsel %vm2543, %v3551, %v3819
      %v3933 = vsel %vm2543, %v3552, %v3821
      %v3935 = vsel %vm2543, %v3553, %v3823
      %v3937 = vsel %vm2543, %v3554, %v3825
      %v3939 = vsel %vm2543, %v3555, %v3827
      %v3941 = vsel %vm2576, %v3909, %v3877
      %v3943 = vsel %vm2576, %v3911, %v3879
      %v3945 = vsel %vm2576, %v3913, %v3881
      %v3947 = vsel %vm2576, %v3915, %v3883
      %v3949 = vsel %vm2576, %v3917, %v3885
      %v3951 = vsel %vm2576, %v3919, %v3887
      %v3953 = vsel %vm2576, %v3921, %v3889
      %v3955 = vsel %vm2576, %v3923, %v3891
      %v3957 = vsel %vm2576, %v3925, %v3893
      %v3959 = vsel %vm2576, %v3927, %v3895
      %v3961 = vsel %vm2576, %v3929, %v3897
      %v3963 = vsel %vm2576, %v3931, %v3899
      %v3965 = vsel %vm2576, %v3933, %v3901
      %v3967 = vsel %vm2576, %v3935, %v3903
      %v3969 = vsel %vm2576, %v3937, %v3905
      %v3971 = vsel %vm2576, %v3939, %v3907
      %v3972 = vld [vmem:[%s2 + $0x18] sm:$0xf]
      %v3973 = vld [vmem:[%s2 + $0x1c] sm:$0xf]
      %v3974 = vld [vmem:[%s2 + $0x20] sm:$0xf]
      %v3978 = vunpack.c.l.b16 %v3972
      %v3979 = vunpack.c.l.b16 %v3973
      %v3980 = vunpack.c.l.b16 %v3974
      %v3981 = vpack.c.b16 %v3979, %v3978
      %v3982 = vpack.c.b16 %v3980, %v3980
      %v3984 = vsel %vm3168, %v3941, 0
      %v3986 = vsel %vm3168, %v3943, 0
      %v3988 = vsel %vm3168, %v3945, 0
      %v3990 = vsel %vm3168, %v3947, 0
      %v3992 = vsel %vm3168, %v3949, 0
      %v3994 = vsel %vm3168, %v3951, 0
      %v3996 = vsel %vm3168, %v3953, 0
      %v3998 = vsel %vm3168, %v3955, 0
      %v4000 = vsel %vm3168, %v3957, 0
      %v4002 = vsel %vm3168, %v3959, 0
      %v4004 = vsel %vm3168, %v3961, 0
      %v4006 = vsel %vm3168, %v3963, 0
      %v4008 = vsel %vm3168, %v3965, 0
      %v4010 = vsel %vm3168, %v3967, 0
      %v4012 = vsel %vm3168, %v3969, 0
      %v4014 = vsel %vm3168, %v3971, 0
      %v4017 = vsel %vm3201, %v3982, 0
      %4019 = vmatpush.bf16.msra.mxu0 0
      %4020 = vmatpush.bf16.msra.mxu0 0
      %4021 = vmatpush.bf16.msra.mxu0 0
      %4022 = vmatpush.bf16.msra.mxu0 0
      %4023 = vmatpush.bf16.msra.mxu0 0
      %4024 = vmatpush.bf16.msra.mxu0 0
      %4025 = vmatpush.bf16.msra.mxu0 %v4017
      %4026 = vmatpush.bf16.msra.mxu0 %v3981
      %4027 = vmatmul.bf16.gmra.mxu0 %v3984
      %v4028 = vpop.f32.mrf.mxu0
      %v4029 = vadd.f32 0.0, %v4028
      %v4030 = vpop.f32.mrf.mxu0
      %v4031 = vadd.f32 0.0, %v4030
      %4032 = vmatmul.bf16.gmra.mxu0 %v3986
      %v4033 = vpop.f32.mrf.mxu0
      %v4034 = vadd.f32 0.0, %v4033
      %v4035 = vpop.f32.mrf.mxu0
      %v4036 = vadd.f32 0.0, %v4035
      %4037 = vmatmul.bf16.gmra.mxu0 %v3988
      %v4038 = vpop.f32.mrf.mxu0
      %v4039 = vadd.f32 0.0, %v4038
      %v4040 = vpop.f32.mrf.mxu0
      %v4041 = vadd.f32 0.0, %v4040
      %4042 = vmatmul.bf16.gmra.mxu0 %v3990
      %v4043 = vpop.f32.mrf.mxu0
      %v4044 = vadd.f32 0.0, %v4043
      %v4045 = vpop.f32.mrf.mxu0
      %v4046 = vadd.f32 0.0, %v4045
      %4047 = vmatmul.bf16.gmra.mxu0 %v3992
      %v4048 = vpop.f32.mrf.mxu0
      %v4049 = vadd.f32 0.0, %v4048
      %v4050 = vpop.f32.mrf.mxu0
      %v4051 = vadd.f32 0.0, %v4050
      %4052 = vmatmul.bf16.gmra.mxu0 %v3994
      %v4053 = vpop.f32.mrf.mxu0
      %v4054 = vadd.f32 0.0, %v4053
      %v4055 = vpop.f32.mrf.mxu0
      %v4056 = vadd.f32 0.0, %v4055
      %4057 = vmatmul.bf16.gmra.mxu0 %v3996
      %v4058 = vpop.f32.mrf.mxu0
      %v4059 = vadd.f32 0.0, %v4058
      %v4060 = vpop.f32.mrf.mxu0
      %v4061 = vadd.f32 0.0, %v4060
      %4062 = vmatmul.bf16.gmra.mxu0 %v3998
      %v4063 = vpop.f32.mrf.mxu0
      %v4064 = vadd.f32 0.0, %v4063
      %v4065 = vpop.f32.mrf.mxu0
      %v4066 = vadd.f32 0.0, %v4065
      %4067 = vmatmul.bf16.gmra.mxu0 %v4000
      %v4068 = vpop.f32.mrf.mxu0
      %v4069 = vadd.f32 0.0, %v4068
      %v4070 = vpop.f32.mrf.mxu0
      %v4071 = vadd.f32 0.0, %v4070
      %4072 = vmatmul.bf16.gmra.mxu0 %v4002
      %v4073 = vpop.f32.mrf.mxu0
      %v4074 = vadd.f32 0.0, %v4073
      %v4075 = vpop.f32.mrf.mxu0
      %v4076 = vadd.f32 0.0, %v4075
      %4077 = vmatmul.bf16.gmra.mxu0 %v4004
      %v4078 = vpop.f32.mrf.mxu0
      %v4079 = vadd.f32 0.0, %v4078
      %v4080 = vpop.f32.mrf.mxu0
      %v4081 = vadd.f32 0.0, %v4080
      %4082 = vmatmul.bf16.gmra.mxu0 %v4006
      %v4083 = vpop.f32.mrf.mxu0
      %v4084 = vadd.f32 0.0, %v4083
      %v4085 = vpop.f32.mrf.mxu0
      %v4086 = vadd.f32 0.0, %v4085
      %4087 = vmatmul.bf16.gmra.mxu0 %v4008
      %v4088 = vpop.f32.mrf.mxu0
      %v4089 = vadd.f32 0.0, %v4088
      %v4090 = vpop.f32.mrf.mxu0
      %v4091 = vadd.f32 0.0, %v4090
      %4092 = vmatmul.bf16.gmra.mxu0 %v4010
      %v4093 = vpop.f32.mrf.mxu0
      %v4094 = vadd.f32 0.0, %v4093
      %v4095 = vpop.f32.mrf.mxu0
      %v4096 = vadd.f32 0.0, %v4095
      %4097 = vmatmul.bf16.gmra.mxu0 %v4012
      %v4098 = vpop.f32.mrf.mxu0
      %v4099 = vadd.f32 0.0, %v4098
      %v4100 = vpop.f32.mrf.mxu0
      %v4101 = vadd.f32 0.0, %v4100
      %4102 = vmatmul.bf16.gmra.mxu0 %v4014
      %v4103 = vpop.f32.mrf.mxu0
      %v4104 = vadd.f32 0.0, %v4103
      %v4105 = vpop.f32.mrf.mxu0
      %v4106 = vadd.f32 0.0, %v4105
      %4107 = vdwg.mxu0
      %v4108 = vadd.f32 %v3348, %v4029
      %v4109 = vadd.f32 %v3350, %v4031
      %v4110 = vadd.f32 %v3353, %v4034
      %v4111 = vadd.f32 %v3355, %v4036
      %v4112 = vadd.f32 %v3358, %v4039
      %v4113 = vadd.f32 %v3360, %v4041
      %v4114 = vadd.f32 %v3363, %v4044
      %v4115 = vadd.f32 %v3365, %v4046
      %v4116 = vadd.f32 %v3368, %v4049
      %v4117 = vadd.f32 %v3370, %v4051
      %v4118 = vadd.f32 %v3373, %v4054
      %v4119 = vadd.f32 %v3375, %v4056
      %v4120 = vadd.f32 %v3378, %v4059
      %v4121 = vadd.f32 %v3380, %v4061
      %v4122 = vadd.f32 %v3383, %v4064
      %v4123 = vadd.f32 %v3385, %v4066
      %v4124 = vadd.f32 %v3388, %v4069
      %v4125 = vadd.f32 %v3390, %v4071
      %v4126 = vadd.f32 %v3393, %v4074
      %v4127 = vadd.f32 %v3395, %v4076
      %v4128 = vadd.f32 %v3398, %v4079
      %v4129 = vadd.f32 %v3400, %v4081
      %v4130 = vadd.f32 %v3403, %v4084
      %v4131 = vadd.f32 %v3405, %v4086
      %v4132 = vadd.f32 %v3408, %v4089
      %v4133 = vadd.f32 %v3410, %v4091
      %v4134 = vadd.f32 %v3413, %v4094
      %v4135 = vadd.f32 %v3415, %v4096
      %v4136 = vadd.f32 %v3418, %v4099
      %v4137 = vadd.f32 %v3420, %v4101
      %v4138 = vadd.f32 %v3423, %v4104
      %v4139 = vadd.f32 %v3425, %v4106
      %v4140 = vld [vmem:[%s7] sm:$0x1]
      %v4141 = vperm.slane %v4140, 0
      %v4142 = vmul.f32 %v4108, %v4141
      %v4143 = vmul.f32 %v4109, %v4141
      %v4144 = vmul.f32 %v4110, %v4141
      %v4145 = vmul.f32 %v4111, %v4141
      %v4146 = vmul.f32 %v4112, %v4141
      %v4147 = vmul.f32 %v4113, %v4141
      %v4148 = vmul.f32 %v4114, %v4141
      %v4149 = vmul.f32 %v4115, %v4141
      %v4150 = vmul.f32 %v4116, %v4141
      %v4151 = vmul.f32 %v4117, %v4141
      %v4152 = vmul.f32 %v4118, %v4141
      %v4153 = vmul.f32 %v4119, %v4141
      %v4154 = vmul.f32 %v4120, %v4141
      %v4155 = vmul.f32 %v4121, %v4141
      %v4156 = vmul.f32 %v4122, %v4141
      %v4157 = vmul.f32 %v4123, %v4141
      %v4158 = vmul.f32 %v4124, %v4141
      %v4159 = vmul.f32 %v4125, %v4141
      %v4160 = vmul.f32 %v4126, %v4141
      %v4161 = vmul.f32 %v4127, %v4141
      %v4162 = vmul.f32 %v4128, %v4141
      %v4163 = vmul.f32 %v4129, %v4141
      %v4164 = vmul.f32 %v4130, %v4141
      %v4165 = vmul.f32 %v4131, %v4141
      %v4166 = vmul.f32 %v4132, %v4141
      %v4167 = vmul.f32 %v4133, %v4141
      %v4168 = vmul.f32 %v4134, %v4141
      %v4169 = vmul.f32 %v4135, %v4141
      %v4170 = vmul.f32 %v4136, %v4141
      %v4171 = vmul.f32 %v4137, %v4141
      %v4172 = vmul.f32 %v4138, %v4141
      %v4173 = vmul.f32 %v4139, %v4141
      %v4174 = vld [vmem:[%s7 + $0x1] sm:$0x1]
      %v4175 = vperm.slane %v4174, 0
      %v4176 = vadd.f32 %v4142, %v4175
      %v4177 = vadd.f32 %v4143, %v4175
      %v4178 = vadd.f32 %v4144, %v4175
      %v4179 = vadd.f32 %v4145, %v4175
      %v4180 = vadd.f32 %v4146, %v4175
      %v4181 = vadd.f32 %v4147, %v4175
      %v4182 = vadd.f32 %v4148, %v4175
      %v4183 = vadd.f32 %v4149, %v4175
      %v4184 = vadd.f32 %v4150, %v4175
      %v4185 = vadd.f32 %v4151, %v4175
      %v4186 = vadd.f32 %v4152, %v4175
      %v4187 = vadd.f32 %v4153, %v4175
      %v4188 = vadd.f32 %v4154, %v4175
      %v4189 = vadd.f32 %v4155, %v4175
      %v4190 = vadd.f32 %v4156, %v4175
      %v4191 = vadd.f32 %v4157, %v4175
      %v4192 = vadd.f32 %v4158, %v4175
      %v4193 = vadd.f32 %v4159, %v4175
      %v4194 = vadd.f32 %v4160, %v4175
      %v4195 = vadd.f32 %v4161, %v4175
      %v4196 = vadd.f32 %v4162, %v4175
      %v4197 = vadd.f32 %v4163, %v4175
      %v4198 = vadd.f32 %v4164, %v4175
      %v4199 = vadd.f32 %v4165, %v4175
      %v4200 = vadd.f32 %v4166, %v4175
      %v4201 = vadd.f32 %v4167, %v4175
      %v4202 = vadd.f32 %v4168, %v4175
      %v4203 = vadd.f32 %v4169, %v4175
      %v4204 = vadd.f32 %v4170, %v4175
      %v4205 = vadd.f32 %v4171, %v4175
      %v4206 = vadd.f32 %v4172, %v4175
      %v4207 = vadd.f32 %v4173, %v4175
      %v4208 = vmax.f32 %v4176, 0.0
      %v4209 = vmax.f32 %v4177, 0.0
      %v4210 = vmax.f32 %v4178, 0.0
      %v4211 = vmax.f32 %v4179, 0.0
      %v4212 = vmax.f32 %v4180, 0.0
      %v4213 = vmax.f32 %v4181, 0.0
      %v4214 = vmax.f32 %v4182, 0.0
      %v4215 = vmax.f32 %v4183, 0.0
      %v4216 = vmax.f32 %v4184, 0.0
      %v4217 = vmax.f32 %v4185, 0.0
      %v4218 = vmax.f32 %v4186, 0.0
      %v4219 = vmax.f32 %v4187, 0.0
      %v4220 = vmax.f32 %v4188, 0.0
      %v4221 = vmax.f32 %v4189, 0.0
      %v4222 = vmax.f32 %v4190, 0.0
      %v4223 = vmax.f32 %v4191, 0.0
      %v4224 = vmax.f32 %v4192, 0.0
      %v4225 = vmax.f32 %v4193, 0.0
      %v4226 = vmax.f32 %v4194, 0.0
      %v4227 = vmax.f32 %v4195, 0.0
      %v4228 = vmax.f32 %v4196, 0.0
      %v4229 = vmax.f32 %v4197, 0.0
      %v4230 = vmax.f32 %v4198, 0.0
      %v4231 = vmax.f32 %v4199, 0.0
      %v4232 = vmax.f32 %v4200, 0.0
      %v4233 = vmax.f32 %v4201, 0.0
      %v4234 = vmax.f32 %v4202, 0.0
      %v4235 = vmax.f32 %v4203, 0.0
      %v4236 = vmax.f32 %v4204, 0.0
      %v4237 = vmax.f32 %v4205, 0.0
      %v4238 = vmax.f32 %v4206, 0.0
      %v4239 = vmax.f32 %v4207, 0.0
      %v4240 = vunpack.c.l.bf16 %v1387
      %v4241 = vunpack.c.h.bf16 %v1387
      %v4242 = vunpack.c.l.bf16 %v1390
      %v4243 = vunpack.c.h.bf16 %v1390
      %v4244 = vunpack.c.l.bf16 %v1393
      %v4245 = vunpack.c.h.bf16 %v1393
      %v4246 = vunpack.c.l.bf16 %v1396
      %v4247 = vunpack.c.h.bf16 %v1396
      %v4248 = vunpack.c.l.bf16 %v1399
      %v4249 = vunpack.c.h.bf16 %v1399
      %v4250 = vunpack.c.l.bf16 %v1402
      %v4251 = vunpack.c.h.bf16 %v1402
      %v4252 = vunpack.c.l.bf16 %v1405
      %v4253 = vunpack.c.h.bf16 %v1405
      %v4254 = vunpack.c.l.bf16 %v1408
      %v4255 = vunpack.c.h.bf16 %v1408
      %v4256 = vunpack.c.l.bf16 %v1411
      %v4257 = vunpack.c.h.bf16 %v1411
      %v4258 = vunpack.c.l.bf16 %v1414
      %v4259 = vunpack.c.h.bf16 %v1414
      %v4260 = vunpack.c.l.bf16 %v1417
      %v4261 = vunpack.c.h.bf16 %v1417
      %v4262 = vunpack.c.l.bf16 %v1420
      %v4263 = vunpack.c.h.bf16 %v1420
      %v4264 = vunpack.c.l.bf16 %v1423
      %v4265 = vunpack.c.h.bf16 %v1423
      %v4266 = vunpack.c.l.bf16 %v1426
      %v4267 = vunpack.c.h.bf16 %v1426
      %v4268 = vunpack.c.l.bf16 %v1429
      %v4269 = vunpack.c.h.bf16 %v1429
      %v4270 = vunpack.c.l.bf16 %v1432
      %v4271 = vunpack.c.h.bf16 %v1432
      %v4272 = vadd.f32 %v4240, %v4242
      %v4273 = vadd.f32 %v4241, %v4243
      %v4274 = vadd.f32 %v4244, %v4246
      %v4275 = vadd.f32 %v4245, %v4247
      %v4276 = vadd.f32 %v4248, %v4250
      %v4277 = vadd.f32 %v4249, %v4251
      %v4278 = vadd.f32 %v4252, %v4254
      %v4279 = vadd.f32 %v4253, %v4255
      %v4280 = vadd.f32 %v4256, %v4258
      %v4281 = vadd.f32 %v4257, %v4259
      %v4282 = vadd.f32 %v4260, %v4262
      %v4283 = vadd.f32 %v4261, %v4263
      %v4284 = vadd.f32 %v4264, %v4266
      %v4285 = vadd.f32 %v4265, %v4267
      %v4286 = vadd.f32 %v4268, %v4270
      %v4287 = vadd.f32 %v4269, %v4271
      %v4304 = vrot.slane %v4272, 2
      %v4305 = vrot.slane %v4272, 4
      %v4306 = vrot.slane %v4272, 6
      %v4307 = vrot.slane %v4273, 2
      %v4308 = vrot.slane %v4273, 4
      %v4309 = vrot.slane %v4273, 6
      %v4310 = vrot.slane %v4274, 2
      %v4311 = vrot.slane %v4274, 4
      %v4312 = vrot.slane %v4274, 6
      %v4313 = vrot.slane %v4275, 2
      %v4314 = vrot.slane %v4275, 4
      %v4315 = vrot.slane %v4275, 6
      %v4316 = vrot.slane %v4276, 2
      %v4317 = vrot.slane %v4276, 4
      %v4318 = vrot.slane %v4276, 6
      %v4319 = vrot.slane %v4277, 2
      %v4320 = vrot.slane %v4277, 4
      %v4321 = vrot.slane %v4277, 6
      %v4322 = vrot.slane %v4278, 2
      %v4323 = vrot.slane %v4278, 4
      %v4324 = vrot.slane %v4278, 6
      %v4325 = vrot.slane %v4279, 2
      %v4326 = vrot.slane %v4279, 4
      %v4327 = vrot.slane %v4279, 6
      %v4328 = vrot.slane %v4280, 2
      %v4329 = vrot.slane %v4280, 4
      %v4330 = vrot.slane %v4280, 6
      %v4331 = vrot.slane %v4281, 2
      %v4332 = vrot.slane %v4281, 4
      %v4333 = vrot.slane %v4281, 6
      %v4334 = vrot.slane %v4282, 2
      %v4335 = vrot.slane %v4282, 4
      %v4336 = vrot.slane %v4282, 6
      %v4337 = vrot.slane %v4283, 2
      %v4338 = vrot.slane %v4283, 4
      %v4339 = vrot.slane %v4283, 6
      %v4340 = vrot.slane %v4284, 2
      %v4341 = vrot.slane %v4284, 4
      %v4342 = vrot.slane %v4284, 6
      %v4343 = vrot.slane %v4285, 2
      %v4344 = vrot.slane %v4285, 4
      %v4345 = vrot.slane %v4285, 6
      %v4346 = vrot.slane %v4286, 2
      %v4347 = vrot.slane %v4286, 4
      %v4348 = vrot.slane %v4286, 6
      %v4349 = vrot.slane %v4287, 2
      %v4350 = vrot.slane %v4287, 4
      %v4351 = vrot.slane %v4287, 6
      %v4400 = vrot.slane %v4272, 7
      %v4401 = vrot.slane %v4400, 2
      %v4402 = vrot.slane %v4304, 7
      %v4403 = vrot.slane %v4402, 2
      %v4404 = vrot.slane %v4305, 7
      %v4405 = vrot.slane %v4404, 2
      %v4406 = vrot.slane %v4306, 7
      %v4407 = vrot.slane %v4406, 2
      %v4408 = vrot.slane %v4273, 7
      %v4409 = vrot.slane %v4408, 2
      %v4410 = vrot.slane %v4307, 7
      %v4411 = vrot.slane %v4410, 2
      %v4412 = vrot.slane %v4308, 7
      %v4413 = vrot.slane %v4412, 2
      %v4414 = vrot.slane %v4309, 7
      %v4415 = vrot.slane %v4414, 2
      %v4416 = vrot.slane %v4274, 7
      %v4417 = vrot.slane %v4416, 2
      %v4418 = vrot.slane %v4310, 7
      %v4419 = vrot.slane %v4418, 2
      %v4420 = vrot.slane %v4311, 7
      %v4421 = vrot.slane %v4420, 2
      %v4422 = vrot.slane %v4312, 7
      %v4423 = vrot.slane %v4422, 2
      %v4424 = vrot.slane %v4275, 7
      %v4425 = vrot.slane %v4424, 2
      %v4426 = vrot.slane %v4313, 7
      %v4427 = vrot.slane %v4426, 2
      %v4428 = vrot.slane %v4314, 7
      %v4429 = vrot.slane %v4428, 2
      %v4430 = vrot.slane %v4315, 7
      %v4431 = vrot.slane %v4430, 2
      %v4432 = vrot.slane %v4276, 7
      %v4433 = vrot.slane %v4432, 2
      %v4434 = vrot.slane %v4316, 7
      %v4435 = vrot.slane %v4434, 2
      %v4436 = vrot.slane %v4317, 7
      %v4437 = vrot.slane %v4436, 2
      %v4438 = vrot.slane %v4318, 7
      %v4439 = vrot.slane %v4438, 2
      %v4440 = vrot.slane %v4277, 7
      %v4441 = vrot.slane %v4440, 2
      %v4442 = vrot.slane %v4319, 7
      %v4443 = vrot.slane %v4442, 2
      %v4444 = vrot.slane %v4320, 7
      %v4445 = vrot.slane %v4444, 2
      %v4446 = vrot.slane %v4321, 7
      %v4447 = vrot.slane %v4446, 2
      %v4448 = vrot.slane %v4278, 7
      %v4449 = vrot.slane %v4448, 2
      %v4450 = vrot.slane %v4322, 7
      %v4451 = vrot.slane %v4450, 2
      %v4452 = vrot.slane %v4323, 7
      %v4453 = vrot.slane %v4452, 2
      %v4454 = vrot.slane %v4324, 7
      %v4455 = vrot.slane %v4454, 2
      %v4456 = vrot.slane %v4279, 7
      %v4457 = vrot.slane %v4456, 2
      %v4458 = vrot.slane %v4325, 7
      %v4459 = vrot.slane %v4458, 2
      %v4460 = vrot.slane %v4326, 7
      %v4461 = vrot.slane %v4460, 2
      %v4462 = vrot.slane %v4327, 7
      %v4463 = vrot.slane %v4462, 2
      %v4464 = vrot.slane %v4280, 7
      %v4465 = vrot.slane %v4464, 2
      %v4466 = vrot.slane %v4328, 7
      %v4467 = vrot.slane %v4466, 2
      %v4468 = vrot.slane %v4329, 7
      %v4469 = vrot.slane %v4468, 2
      %v4470 = vrot.slane %v4330, 7
      %v4471 = vrot.slane %v4470, 2
      %v4472 = vrot.slane %v4281, 7
      %v4473 = vrot.slane %v4472, 2
      %v4474 = vrot.slane %v4331, 7
      %v4475 = vrot.slane %v4474, 2
      %v4476 = vrot.slane %v4332, 7
      %v4477 = vrot.slane %v4476, 2
      %v4478 = vrot.slane %v4333, 7
      %v4479 = vrot.slane %v4478, 2
      %v4480 = vrot.slane %v4282, 7
      %v4481 = vrot.slane %v4480, 2
      %v4482 = vrot.slane %v4334, 7
      %v4483 = vrot.slane %v4482, 2
      %v4484 = vrot.slane %v4335, 7
      %v4485 = vrot.slane %v4484, 2
      %v4486 = vrot.slane %v4336, 7
      %v4487 = vrot.slane %v4486, 2
      %v4488 = vrot.slane %v4283, 7
      %v4489 = vrot.slane %v4488, 2
      %v4490 = vrot.slane %v4337, 7
      %v4491 = vrot.slane %v4490, 2
      %v4492 = vrot.slane %v4338, 7
      %v4493 = vrot.slane %v4492, 2
      %v4494 = vrot.slane %v4339, 7
      %v4495 = vrot.slane %v4494, 2
      %v4496 = vrot.slane %v4284, 7
      %v4497 = vrot.slane %v4496, 2
      %v4498 = vrot.slane %v4340, 7
      %v4499 = vrot.slane %v4498, 2
      %v4500 = vrot.slane %v4341, 7
      %v4501 = vrot.slane %v4500, 2
      %v4502 = vrot.slane %v4342, 7
      %v4503 = vrot.slane %v4502, 2
      %v4504 = vrot.slane %v4285, 7
      %v4505 = vrot.slane %v4504, 2
      %v4506 = vrot.slane %v4343, 7
      %v4507 = vrot.slane %v4506, 2
      %v4508 = vrot.slane %v4344, 7
      %v4509 = vrot.slane %v4508, 2
      %v4510 = vrot.slane %v4345, 7
      %v4511 = vrot.slane %v4510, 2
      %v4512 = vrot.slane %v4286, 7
      %v4513 = vrot.slane %v4512, 2
      %v4514 = vrot.slane %v4346, 7
      %v4515 = vrot.slane %v4514, 2
      %v4516 = vrot.slane %v4347, 7
      %v4517 = vrot.slane %v4516, 2
      %v4518 = vrot.slane %v4348, 7
      %v4519 = vrot.slane %v4518, 2
      %v4520 = vrot.slane %v4287, 7
      %v4521 = vrot.slane %v4520, 2
      %v4522 = vrot.slane %v4349, 7
      %v4523 = vrot.slane %v4522, 2
      %v4524 = vrot.slane %v4350, 7
      %v4525 = vrot.slane %v4524, 2
      %v4526 = vrot.slane %v4351, 7
      %v4527 = vrot.slane %v4526, 2
      %v4592 = vadd.f32 %v4272, %v4401
      %v4593 = vadd.f32 %v4304, %v4403
      %v4594 = vadd.f32 %v4305, %v4405
      %v4595 = vadd.f32 %v4306, %v4407
      %v4596 = vadd.f32 %v4273, %v4409
      %v4597 = vadd.f32 %v4307, %v4411
      %v4598 = vadd.f32 %v4308, %v4413
      %v4599 = vadd.f32 %v4309, %v4415
      %v4600 = vadd.f32 %v4274, %v4417
      %v4601 = vadd.f32 %v4310, %v4419
      %v4602 = vadd.f32 %v4311, %v4421
      %v4603 = vadd.f32 %v4312, %v4423
      %v4604 = vadd.f32 %v4275, %v4425
      %v4605 = vadd.f32 %v4313, %v4427
      %v4606 = vadd.f32 %v4314, %v4429
      %v4607 = vadd.f32 %v4315, %v4431
      %v4608 = vadd.f32 %v4276, %v4433
      %v4609 = vadd.f32 %v4316, %v4435
      %v4610 = vadd.f32 %v4317, %v4437
      %v4611 = vadd.f32 %v4318, %v4439
      %v4612 = vadd.f32 %v4277, %v4441
      %v4613 = vadd.f32 %v4319, %v4443
      %v4614 = vadd.f32 %v4320, %v4445
      %v4615 = vadd.f32 %v4321, %v4447
      %v4616 = vadd.f32 %v4278, %v4449
      %v4617 = vadd.f32 %v4322, %v4451
      %v4618 = vadd.f32 %v4323, %v4453
      %v4619 = vadd.f32 %v4324, %v4455
      %v4620 = vadd.f32 %v4279, %v4457
      %v4621 = vadd.f32 %v4325, %v4459
      %v4622 = vadd.f32 %v4326, %v4461
      %v4623 = vadd.f32 %v4327, %v4463
      %v4624 = vadd.f32 %v4280, %v4465
      %v4625 = vadd.f32 %v4328, %v4467
      %v4626 = vadd.f32 %v4329, %v4469
      %v4627 = vadd.f32 %v4330, %v4471
      %v4628 = vadd.f32 %v4281, %v4473
      %v4629 = vadd.f32 %v4331, %v4475
      %v4630 = vadd.f32 %v4332, %v4477
      %v4631 = vadd.f32 %v4333, %v4479
      %v4632 = vadd.f32 %v4282, %v4481
      %v4633 = vadd.f32 %v4334, %v4483
      %v4634 = vadd.f32 %v4335, %v4485
      %v4635 = vadd.f32 %v4336, %v4487
      %v4636 = vadd.f32 %v4283, %v4489
      %v4637 = vadd.f32 %v4337, %v4491
      %v4638 = vadd.f32 %v4338, %v4493
      %v4639 = vadd.f32 %v4339, %v4495
      %v4640 = vadd.f32 %v4284, %v4497
      %v4641 = vadd.f32 %v4340, %v4499
      %v4642 = vadd.f32 %v4341, %v4501
      %v4643 = vadd.f32 %v4342, %v4503
      %v4644 = vadd.f32 %v4285, %v4505
      %v4645 = vadd.f32 %v4343, %v4507
      %v4646 = vadd.f32 %v4344, %v4509
      %v4647 = vadd.f32 %v4345, %v4511
      %v4648 = vadd.f32 %v4286, %v4513
      %v4649 = vadd.f32 %v4346, %v4515
      %v4650 = vadd.f32 %v4347, %v4517
      %v4651 = vadd.f32 %v4348, %v4519
      %v4652 = vadd.f32 %v4287, %v4521
      %v4653 = vadd.f32 %v4349, %v4523
      %v4654 = vadd.f32 %v4350, %v4525
      %v4655 = vadd.f32 %v4351, %v4527
      %v4656 = vmul.f32 %v4592, 0.25
      %v4657 = vmul.f32 %v4593, 0.25
      %v4658 = vmul.f32 %v4594, 0.25
      %v4659 = vmul.f32 %v4595, 0.25
      %v4660 = vmul.f32 %v4596, 0.25
      %v4661 = vmul.f32 %v4597, 0.25
      %v4662 = vmul.f32 %v4598, 0.25
      %v4663 = vmul.f32 %v4599, 0.25
      %v4664 = vmul.f32 %v4600, 0.25
      %v4665 = vmul.f32 %v4601, 0.25
      %v4666 = vmul.f32 %v4602, 0.25
      %v4667 = vmul.f32 %v4603, 0.25
      %v4668 = vmul.f32 %v4604, 0.25
      %v4669 = vmul.f32 %v4605, 0.25
      %v4670 = vmul.f32 %v4606, 0.25
      %v4671 = vmul.f32 %v4607, 0.25
      %v4672 = vmul.f32 %v4608, 0.25
      %v4673 = vmul.f32 %v4609, 0.25
      %v4674 = vmul.f32 %v4610, 0.25
      %v4675 = vmul.f32 %v4611, 0.25
      %v4676 = vmul.f32 %v4612, 0.25
      %v4677 = vmul.f32 %v4613, 0.25
      %v4678 = vmul.f32 %v4614, 0.25
      %v4679 = vmul.f32 %v4615, 0.25
      %v4680 = vmul.f32 %v4616, 0.25
      %v4681 = vmul.f32 %v4617, 0.25
      %v4682 = vmul.f32 %v4618, 0.25
      %v4683 = vmul.f32 %v4619, 0.25
      %v4684 = vmul.f32 %v4620, 0.25
      %v4685 = vmul.f32 %v4621, 0.25
      %v4686 = vmul.f32 %v4622, 0.25
      %v4687 = vmul.f32 %v4623, 0.25
      %v4688 = vmul.f32 %v4624, 0.25
      %v4689 = vmul.f32 %v4625, 0.25
      %v4690 = vmul.f32 %v4626, 0.25
      %v4691 = vmul.f32 %v4627, 0.25
      %v4692 = vmul.f32 %v4628, 0.25
      %v4693 = vmul.f32 %v4629, 0.25
      %v4694 = vmul.f32 %v4630, 0.25
      %v4695 = vmul.f32 %v4631, 0.25
      %v4696 = vmul.f32 %v4632, 0.25
      %v4697 = vmul.f32 %v4633, 0.25
      %v4698 = vmul.f32 %v4634, 0.25
      %v4699 = vmul.f32 %v4635, 0.25
      %v4700 = vmul.f32 %v4636, 0.25
      %v4701 = vmul.f32 %v4637, 0.25
      %v4702 = vmul.f32 %v4638, 0.25
      %v4703 = vmul.f32 %v4639, 0.25
      %v4704 = vmul.f32 %v4640, 0.25
      %v4705 = vmul.f32 %v4641, 0.25
      %v4706 = vmul.f32 %v4642, 0.25
      %v4707 = vmul.f32 %v4643, 0.25
      %v4708 = vmul.f32 %v4644, 0.25
      %v4709 = vmul.f32 %v4645, 0.25
      %v4710 = vmul.f32 %v4646, 0.25
      %v4711 = vmul.f32 %v4647, 0.25
      %v4712 = vmul.f32 %v4648, 0.25
      %v4713 = vmul.f32 %v4649, 0.25
      %v4714 = vmul.f32 %v4650, 0.25
      %v4715 = vmul.f32 %v4651, 0.25
      %v4716 = vmul.f32 %v4652, 0.25
      %v4717 = vmul.f32 %v4653, 0.25
      %v4718 = vmul.f32 %v4654, 0.25
      %v4719 = vmul.f32 %v4655, 0.25
      %4720 = vst.msk [vmem:[#allocation3] sm:$0xf] %vm1434, 0
      %4721 = vst.msk [vmem:[#allocation3 + $0x4] sm:$0x1] %vm1437, 0
      %s4722 = scalar_lea.vmem [#allocation3], 72
      %4723 = vst.msk [vmem:[%s4722] sm:$0xf] %vm1434, 0
      %4724 = vst.msk [vmem:[%s4722 + $0x4] sm:$0x1] %vm1437, 0
      %s4725 = scalar_lea.vmem [#allocation3], 8
      %v4726 = vld [vmem:[%s4725] sm:$0x1]
      %v4727 = vsel %vm1446, 0, %v4726
      %4728 = vst [vmem:[%s4725] sm:$0x1] %v4727
      %v4729 = vld [vmem:[%s4725 + $0x8] sm:$0x1]
      %v4730 = vsel %vm1446, 0, %v4729
      %4731 = vst [vmem:[%s4725 + $0x8] sm:$0x1] %v4730
      %v4732 = vld [vmem:[%s4725 + $0x10] sm:$0x1]
      %v4733 = vsel %vm1446, 0, %v4732
      %4734 = vst [vmem:[%s4725 + $0x10] sm:$0x1] %v4733
      %v4735 = vld [vmem:[%s4725 + $0x18] sm:$0x1]
      %v4736 = vsel %vm1446, 0, %v4735
      %4737 = vst [vmem:[%s4725 + $0x18] sm:$0x1] %v4736
      %v4738 = vld [vmem:[%s4725 + $0x20] sm:$0x1]
      %v4739 = vsel %vm1446, 0, %v4738
      %4740 = vst [vmem:[%s4725 + $0x20] sm:$0x1] %v4739
      %v4741 = vld [vmem:[%s4725 + $0x28] sm:$0x1]
      %v4742 = vsel %vm1446, 0, %v4741
      %4743 = vst [vmem:[%s4725 + $0x28] sm:$0x1] %v4742
      %v4744 = vld [vmem:[%s4725 + $0x30] sm:$0x1]
      %v4745 = vsel %vm1446, 0, %v4744
      %4746 = vst [vmem:[%s4725 + $0x30] sm:$0x1] %v4745
      %v4747 = vld [vmem:[%s4725 + $0x38] sm:$0x1]
      %v4748 = vsel %vm1446, 0, %v4747
      %4749 = vst [vmem:[%s4725 + $0x38] sm:$0x1] %v4748
      %v4750 = vld [vmem:[%s4725 + $0x4] sm:$0x1]
      %v4751 = vsel %vm1496, 0, %v4750
      %4752 = vst [vmem:[%s4725 + $0x4] sm:$0x1] %v4751
      %v4753 = vld [vmem:[%s4725 + $0xc] sm:$0x1]
      %v4754 = vsel %vm1496, 0, %v4753
      %4755 = vst [vmem:[%s4725 + $0xc] sm:$0x1] %v4754
      %v4756 = vld [vmem:[%s4725 + $0x14] sm:$0x1]
      %v4757 = vsel %vm1496, 0, %v4756
      %4758 = vst [vmem:[%s4725 + $0x14] sm:$0x1] %v4757
      %v4759 = vld [vmem:[%s4725 + $0x1c] sm:$0x1]
      %v4760 = vsel %vm1496, 0, %v4759
      %4761 = vst [vmem:[%s4725 + $0x1c] sm:$0x1] %v4760
      %v4762 = vld [vmem:[%s4725 + $0x24] sm:$0x1]
      %v4763 = vsel %vm1496, 0, %v4762
      %4764 = vst [vmem:[%s4725 + $0x24] sm:$0x1] %v4763
      %v4765 = vld [vmem:[%s4725 + $0x2c] sm:$0x1]
      %v4766 = vsel %vm1496, 0, %v4765
      %4767 = vst [vmem:[%s4725 + $0x2c] sm:$0x1] %v4766
      %v4768 = vld [vmem:[%s4725 + $0x34] sm:$0x1]
      %v4769 = vsel %vm1496, 0, %v4768
      %4770 = vst [vmem:[%s4725 + $0x34] sm:$0x1] %v4769
      %v4771 = vld [vmem:[%s4725 + $0x3c] sm:$0x1]
      %v4772 = vsel %vm1496, 0, %v4771
      %4773 = vst [vmem:[%s4725 + $0x3c] sm:$0x1] %v4772
      %v4774 = vpack.c.bf16 %v4656, %v4656
      %v4775 = vpack.c.bf16 %v4657, %v4657
      %v4776 = vpack.c.bf16 %v4658, %v4658
      %v4777 = vpack.c.bf16 %v4659, %v4659
      %v4778 = vpack.c.bf16 %v4660, %v4660
      %v4779 = vpack.c.bf16 %v4661, %v4661
      %v4780 = vpack.c.bf16 %v4662, %v4662
      %v4781 = vpack.c.bf16 %v4663, %v4663
      %v4782 = vpack.c.bf16 %v4664, %v4664
      %v4783 = vpack.c.bf16 %v4665, %v4665
      %v4784 = vpack.c.bf16 %v4666, %v4666
      %v4785 = vpack.c.bf16 %v4667, %v4667
      %v4786 = vpack.c.bf16 %v4668, %v4668
      %v4787 = vpack.c.bf16 %v4669, %v4669
      %v4788 = vpack.c.bf16 %v4670, %v4670
      %v4789 = vpack.c.bf16 %v4671, %v4671
      %v4790 = vpack.c.bf16 %v4672, %v4672
      %v4791 = vpack.c.bf16 %v4673, %v4673
      %v4792 = vpack.c.bf16 %v4674, %v4674
      %v4793 = vpack.c.bf16 %v4675, %v4675
      %v4794 = vpack.c.bf16 %v4676, %v4676
      %v4795 = vpack.c.bf16 %v4677, %v4677
      %v4796 = vpack.c.bf16 %v4678, %v4678
      %v4797 = vpack.c.bf16 %v4679, %v4679
      %v4798 = vpack.c.bf16 %v4680, %v4680
      %v4799 = vpack.c.bf16 %v4681, %v4681
      %v4800 = vpack.c.bf16 %v4682, %v4682
      %v4801 = vpack.c.bf16 %v4683, %v4683
      %v4802 = vpack.c.bf16 %v4684, %v4684
      %v4803 = vpack.c.bf16 %v4685, %v4685
      %v4804 = vpack.c.bf16 %v4686, %v4686
      %v4805 = vpack.c.bf16 %v4687, %v4687
      %v4806 = vpack.c.bf16 %v4688, %v4688
      %v4807 = vpack.c.bf16 %v4689, %v4689
      %v4808 = vpack.c.bf16 %v4690, %v4690
      %v4809 = vpack.c.bf16 %v4691, %v4691
      %v4810 = vpack.c.bf16 %v4692, %v4692
      %v4811 = vpack.c.bf16 %v4693, %v4693
      %v4812 = vpack.c.bf16 %v4694, %v4694
      %v4813 = vpack.c.bf16 %v4695, %v4695
      %v4814 = vpack.c.bf16 %v4696, %v4696
      %v4815 = vpack.c.bf16 %v4697, %v4697
      %v4816 = vpack.c.bf16 %v4698, %v4698
      %v4817 = vpack.c.bf16 %v4699, %v4699
      %v4818 = vpack.c.bf16 %v4700, %v4700
      %v4819 = vpack.c.bf16 %v4701, %v4701
      %v4820 = vpack.c.bf16 %v4702, %v4702
      %v4821 = vpack.c.bf16 %v4703, %v4703
      %v4822 = vpack.c.bf16 %v4704, %v4704
      %v4823 = vpack.c.bf16 %v4705, %v4705
      %v4824 = vpack.c.bf16 %v4706, %v4706
      %v4825 = vpack.c.bf16 %v4707, %v4707
      %v4826 = vpack.c.bf16 %v4708, %v4708
      %v4827 = vpack.c.bf16 %v4709, %v4709
      %v4828 = vpack.c.bf16 %v4710, %v4710
      %v4829 = vpack.c.bf16 %v4711, %v4711
      %v4830 = vpack.c.bf16 %v4712, %v4712
      %v4831 = vpack.c.bf16 %v4713, %v4713
      %v4832 = vpack.c.bf16 %v4714, %v4714
      %v4833 = vpack.c.bf16 %v4715, %v4715
      %v4834 = vpack.c.bf16 %v4716, %v4716
      %v4835 = vpack.c.bf16 %v4717, %v4717
      %v4836 = vpack.c.bf16 %v4718, %v4718
      %v4837 = vpack.c.bf16 %v4719, %v4719
      %v4902 = vunpack.c.l.b16 %v4774
      %v4903 = vunpack.c.l.b16 %v4775
      %v4904 = vunpack.c.l.b16 %v4776
      %v4905 = vunpack.c.l.b16 %v4777
      %v4906 = vunpack.c.l.b16 %v4778
      %v4907 = vunpack.c.l.b16 %v4779
      %v4908 = vunpack.c.l.b16 %v4780
      %v4909 = vunpack.c.l.b16 %v4781
      %v4910 = vunpack.c.l.b16 %v4782
      %v4911 = vunpack.c.l.b16 %v4783
      %v4912 = vunpack.c.l.b16 %v4784
      %v4913 = vunpack.c.l.b16 %v4785
      %v4914 = vunpack.c.l.b16 %v4786
      %v4915 = vunpack.c.l.b16 %v4787
      %v4916 = vunpack.c.l.b16 %v4788
      %v4917 = vunpack.c.l.b16 %v4789
      %v4918 = vunpack.c.l.b16 %v4790
      %v4919 = vunpack.c.l.b16 %v4791
      %v4920 = vunpack.c.l.b16 %v4792
      %v4921 = vunpack.c.l.b16 %v4793
      %v4922 = vunpack.c.l.b16 %v4794
      %v4923 = vunpack.c.l.b16 %v4795
      %v4924 = vunpack.c.l.b16 %v4796
      %v4925 = vunpack.c.l.b16 %v4797
      %v4926 = vunpack.c.l.b16 %v4798
      %v4927 = vunpack.c.l.b16 %v4799
      %v4928 = vunpack.c.l.b16 %v4800
      %v4929 = vunpack.c.l.b16 %v4801
      %v4930 = vunpack.c.l.b16 %v4802
      %v4931 = vunpack.c.l.b16 %v4803
      %v4932 = vunpack.c.l.b16 %v4804
      %v4933 = vunpack.c.l.b16 %v4805
      %v4934 = vunpack.c.l.b16 %v4806
      %v4935 = vunpack.c.l.b16 %v4807
      %v4936 = vunpack.c.l.b16 %v4808
      %v4937 = vunpack.c.l.b16 %v4809
      %v4938 = vunpack.c.l.b16 %v4810
      %v4939 = vunpack.c.l.b16 %v4811
      %v4940 = vunpack.c.l.b16 %v4812
      %v4941 = vunpack.c.l.b16 %v4813
      %v4942 = vunpack.c.l.b16 %v4814
      %v4943 = vunpack.c.l.b16 %v4815
      %v4944 = vunpack.c.l.b16 %v4816
      %v4945 = vunpack.c.l.b16 %v4817
      %v4946 = vunpack.c.l.b16 %v4818
      %v4947 = vunpack.c.l.b16 %v4819
      %v4948 = vunpack.c.l.b16 %v4820
      %v4949 = vunpack.c.l.b16 %v4821
      %v4950 = vunpack.c.l.b16 %v4822
      %v4951 = vunpack.c.l.b16 %v4823
      %v4952 = vunpack.c.l.b16 %v4824
      %v4953 = vunpack.c.l.b16 %v4825
      %v4954 = vunpack.c.l.b16 %v4826
      %v4955 = vunpack.c.l.b16 %v4827
      %v4956 = vunpack.c.l.b16 %v4828
      %v4957 = vunpack.c.l.b16 %v4829
      %v4958 = vunpack.c.l.b16 %v4830
      %v4959 = vunpack.c.l.b16 %v4831
      %v4960 = vunpack.c.l.b16 %v4832
      %v4961 = vunpack.c.l.b16 %v4833
      %v4962 = vunpack.c.l.b16 %v4834
      %v4963 = vunpack.c.l.b16 %v4835
      %v4964 = vunpack.c.l.b16 %v4836
      %v4965 = vunpack.c.l.b16 %v4837
      %v4966 = vrot.slane %v4902, 7
      %v4967 = vrot.slane %v4903, 6
      %v4968 = vsel %vm479, %v4967, %v4966
      %v4969 = vrot.slane %v4904, 5
      %v4970 = vsel %vm483, %v4969, %v4968
      %v4971 = vrot.slane %v4905, 4
      %vm4972 = vcmask 1044484
      %v4973 = vsel %vm4972, %v4971, %v4970
      %v4974 = vrot.slane %v4906, 3
      %vm4975 = vcmask 1045509
      %v4976 = vsel %vm4975, %v4974, %v4973
      %v4977 = vrot.slane %v4907, 2
      %vm4978 = vcmask 1046534
      %v4979 = vsel %vm4978, %v4977, %v4976
      %v4980 = vrot.slane %v4908, 1
      %vm4981 = vcmask 1047559
      %v4982 = vsel %vm4981, %v4980, %v4979
      %v4983 = vrot.slane %v4910, 7
      %v4984 = vrot.slane %v4911, 6
      %v4985 = vsel %vm479, %v4984, %v4983
      %v4986 = vrot.slane %v4912, 5
      %v4987 = vsel %vm483, %v4986, %v4985
      %v4988 = vrot.slane %v4913, 4
      %v4989 = vsel %vm4972, %v4988, %v4987
      %v4990 = vrot.slane %v4914, 3
      %v4991 = vsel %vm4975, %v4990, %v4989
      %v4992 = vrot.slane %v4915, 2
      %v4993 = vsel %vm4978, %v4992, %v4991
      %v4994 = vrot.slane %v4916, 1
      %v4995 = vsel %vm4981, %v4994, %v4993
      %v4996 = vrot.slane %v4918, 7
      %v4997 = vrot.slane %v4919, 6
      %v4998 = vsel %vm479, %v4997, %v4996
      %v4999 = vrot.slane %v4920, 5
      %v5000 = vsel %vm483, %v4999, %v4998
      %v5001 = vrot.slane %v4921, 4
      %v5002 = vsel %vm4972, %v5001, %v5000
      %v5003 = vrot.slane %v4922, 3
      %v5004 = vsel %vm4975, %v5003, %v5002
      %v5005 = vrot.slane %v4923, 2
      %v5006 = vsel %vm4978, %v5005, %v5004
      %v5007 = vrot.slane %v4924, 1
      %v5008 = vsel %vm4981, %v5007, %v5006
      %v5009 = vrot.slane %v4926, 7
      %v5010 = vrot.slane %v4927, 6
      %v5011 = vsel %vm479, %v5010, %v5009
      %v5012 = vrot.slane %v4928, 5
      %v5013 = vsel %vm483, %v5012, %v5011
      %v5014 = vrot.slane %v4929, 4
      %v5015 = vsel %vm4972, %v5014, %v5013
      %v5016 = vrot.slane %v4930, 3
      %v5017 = vsel %vm4975, %v5016, %v5015
      %v5018 = vrot.slane %v4931, 2
      %v5019 = vsel %vm4978, %v5018, %v5017
      %v5020 = vrot.slane %v4932, 1
      %v5021 = vsel %vm4981, %v5020, %v5019
      %v5022 = vrot.slane %v4934, 7
      %v5023 = vrot.slane %v4935, 6
      %v5024 = vsel %vm479, %v5023, %v5022
      %v5025 = vrot.slane %v4936, 5
      %v5026 = vsel %vm483, %v5025, %v5024
      %v5027 = vrot.slane %v4937, 4
      %v5028 = vsel %vm4972, %v5027, %v5026
      %v5029 = vrot.slane %v4938, 3
      %v5030 = vsel %vm4975, %v5029, %v5028
      %v5031 = vrot.slane %v4939, 2
      %v5032 = vsel %vm4978, %v5031, %v5030
      %v5033 = vrot.slane %v4940, 1
      %v5034 = vsel %vm4981, %v5033, %v5032
      %v5035 = vrot.slane %v4942, 7
      %v5036 = vrot.slane %v4943, 6
      %v5037 = vsel %vm479, %v5036, %v5035
      %v5038 = vrot.slane %v4944, 5
      %v5039 = vsel %vm483, %v5038, %v5037
      %v5040 = vrot.slane %v4945, 4
      %v5041 = vsel %vm4972, %v5040, %v5039
      %v5042 = vrot.slane %v4946, 3
      %v5043 = vsel %vm4975, %v5042, %v5041
      %v5044 = vrot.slane %v4947, 2
      %v5045 = vsel %vm4978, %v5044, %v5043
      %v5046 = vrot.slane %v4948, 1
      %v5047 = vsel %vm4981, %v5046, %v5045
      %v5048 = vrot.slane %v4950, 7
      %v5049 = vrot.slane %v4951, 6
      %v5050 = vsel %vm479, %v5049, %v5048
      %v5051 = vrot.slane %v4952, 5
      %v5052 = vsel %vm483, %v5051, %v5050
      %v5053 = vrot.slane %v4953, 4
      %v5054 = vsel %vm4972, %v5053, %v5052
      %v5055 = vrot.slane %v4954, 3
      %v5056 = vsel %vm4975, %v5055, %v5054
      %v5057 = vrot.slane %v4955, 2
      %v5058 = vsel %vm4978, %v5057, %v5056
      %v5059 = vrot.slane %v4956, 1
      %v5060 = vsel %vm4981, %v5059, %v5058
      %v5061 = vrot.slane %v4958, 7
      %v5062 = vrot.slane %v4959, 6
      %v5063 = vsel %vm479, %v5062, %v5061
      %v5064 = vrot.slane %v4960, 5
      %v5065 = vsel %vm483, %v5064, %v5063
      %v5066 = vrot.slane %v4961, 4
      %v5067 = vsel %vm4972, %v5066, %v5065
      %v5068 = vrot.slane %v4962, 3
      %v5069 = vsel %vm4975, %v5068, %v5067
      %v5070 = vrot.slane %v4963, 2
      %v5071 = vsel %vm4978, %v5070, %v5069
      %v5072 = vrot.slane %v4964, 1
      %v5073 = vsel %vm4981, %v5072, %v5071
      %v5074 = vpack.c.b16 %v4982, %v4982
      %v5075 = vpack.c.b16 %v4909, %v4909
      %v5076 = vpack.c.b16 %v4995, %v4995
      %v5077 = vpack.c.b16 %v4917, %v4917
      %v5078 = vpack.c.b16 %v5008, %v5008
      %v5079 = vpack.c.b16 %v4925, %v4925
      %v5080 = vpack.c.b16 %v5021, %v5021
      %v5081 = vpack.c.b16 %v4933, %v4933
      %v5082 = vpack.c.b16 %v5034, %v5034
      %v5083 = vpack.c.b16 %v4941, %v4941
      %v5084 = vpack.c.b16 %v5047, %v5047
      %v5085 = vpack.c.b16 %v4949, %v4949
      %v5086 = vpack.c.b16 %v5060, %v5060
      %v5087 = vpack.c.b16 %v4957, %v4957
      %v5088 = vpack.c.b16 %v5073, %v5073
      %v5089 = vpack.c.b16 %v4965, %v4965
      %v5106 = vld [vmem:[%s4725] sm:$0xf]
      %v5107 = vsel %vm1948, %v5074, %v5106
      %5108 = vst [vmem:[%s4725] sm:$0xf] %v5107
      %v5109 = vld [vmem:[%s4725 + $0x4] sm:$0x1]
      %v5110 = vsel %vm1446, %v5075, %v5109
      %5111 = vst [vmem:[%s4725 + $0x4] sm:$0x1] %v5110
      %v5112 = vld [vmem:[%s4725 + $0x8] sm:$0xf]
      %v5113 = vsel %vm1948, %v5076, %v5112
      %5114 = vst [vmem:[%s4725 + $0x8] sm:$0xf] %v5113
      %v5115 = vld [vmem:[%s4725 + $0xc] sm:$0x1]
      %v5116 = vsel %vm1446, %v5077, %v5115
      %5117 = vst [vmem:[%s4725 + $0xc] sm:$0x1] %v5116
      %v5118 = vld [vmem:[%s4725 + $0x10] sm:$0xf]
      %v5119 = vsel %vm1948, %v5078, %v5118
      %5120 = vst [vmem:[%s4725 + $0x10] sm:$0xf] %v5119
      %v5121 = vld [vmem:[%s4725 + $0x14] sm:$0x1]
      %v5122 = vsel %vm1446, %v5079, %v5121
      %5123 = vst [vmem:[%s4725 + $0x14] sm:$0x1] %v5122
      %v5124 = vld [vmem:[%s4725 + $0x18] sm:$0xf]
      %v5125 = vsel %vm1948, %v5080, %v5124
      %5126 = vst [vmem:[%s4725 + $0x18] sm:$0xf] %v5125
      %v5127 = vld [vmem:[%s4725 + $0x1c] sm:$0x1]
      %v5128 = vsel %vm1446, %v5081, %v5127
      %5129 = vst [vmem:[%s4725 + $0x1c] sm:$0x1] %v5128
      %v5130 = vld [vmem:[%s4725 + $0x20] sm:$0xf]
      %v5131 = vsel %vm1948, %v5082, %v5130
      %5132 = vst [vmem:[%s4725 + $0x20] sm:$0xf] %v5131
      %v5133 = vld [vmem:[%s4725 + $0x24] sm:$0x1]
      %v5134 = vsel %vm1446, %v5083, %v5133
      %5135 = vst [vmem:[%s4725 + $0x24] sm:$0x1] %v5134
      %v5136 = vld [vmem:[%s4725 + $0x28] sm:$0xf]
      %v5137 = vsel %vm1948, %v5084, %v5136
      %5138 = vst [vmem:[%s4725 + $0x28] sm:$0xf] %v5137
      %v5139 = vld [vmem:[%s4725 + $0x2c] sm:$0x1]
      %v5140 = vsel %vm1446, %v5085, %v5139
      %5141 = vst [vmem:[%s4725 + $0x2c] sm:$0x1] %v5140
      %v5142 = vld [vmem:[%s4725 + $0x30] sm:$0xf]
      %v5143 = vsel %vm1948, %v5086, %v5142
      %5144 = vst [vmem:[%s4725 + $0x30] sm:$0xf] %v5143
      %v5145 = vld [vmem:[%s4725 + $0x34] sm:$0x1]
      %v5146 = vsel %vm1446, %v5087, %v5145
      %5147 = vst [vmem:[%s4725 + $0x34] sm:$0x1] %v5146
      %v5148 = vld [vmem:[%s4725 + $0x38] sm:$0xf]
      %v5149 = vsel %vm1948, %v5088, %v5148
      %5150 = vst [vmem:[%s4725 + $0x38] sm:$0xf] %v5149
      %v5151 = vld [vmem:[%s4725 + $0x3c] sm:$0x1]
      %v5152 = vsel %vm1446, %v5089, %v5151
      %5153 = vst [vmem:[%s4725 + $0x3c] sm:$0x1] %v5152
      %v5154 = vld [vmem:[#allocation3] sm:$0xf]
      %v5155 = vld [vmem:[#allocation3 + $0x4] sm:$0x1]
      %v5156 = vld [vmem:[#allocation3 + $0x8] sm:$0xf]
      %v5157 = vld [vmem:[#allocation3 + $0xc] sm:$0x1]
      %v5158 = vld [vmem:[#allocation3 + $0x10] sm:$0xf]
      %v5159 = vld [vmem:[#allocation3 + $0x14] sm:$0x1]
      %v5160 = vld [vmem:[#allocation3 + $0x18] sm:$0xf]
      %v5161 = vld [vmem:[#allocation3 + $0x1c] sm:$0x1]
      %v5162 = vld [vmem:[#allocation3 + $0x20] sm:$0xf]
      %v5163 = vld [vmem:[#allocation3 + $0x24] sm:$0x1]
      %v5164 = vld [vmem:[#allocation3 + $0x28] sm:$0xf]
      %v5165 = vld [vmem:[#allocation3 + $0x2c] sm:$0x1]
      %v5166 = vld [vmem:[#allocation3 + $0x30] sm:$0xf]
      %v5167 = vld [vmem:[#allocation3 + $0x34] sm:$0x1]
      %v5168 = vld [vmem:[#allocation3 + $0x38] sm:$0xf]
      %v5169 = vld [vmem:[#allocation3 + $0x3c] sm:$0x1]
      %v5186 = vunpack.c.l.b16 %v5154
      %v5187 = vunpack.c.l.b16 %v5155
      %v5188 = vunpack.c.l.b16 %v5156
      %v5189 = vunpack.c.l.b16 %v5157
      %v5190 = vunpack.c.l.b16 %v5158
      %v5191 = vunpack.c.l.b16 %v5159
      %v5192 = vunpack.c.l.b16 %v5160
      %v5193 = vunpack.c.l.b16 %v5161
      %v5194 = vunpack.c.l.b16 %v5162
      %v5195 = vunpack.c.l.b16 %v5163
      %v5196 = vunpack.c.l.b16 %v5164
      %v5197 = vunpack.c.l.b16 %v5165
      %v5198 = vunpack.c.l.b16 %v5166
      %v5199 = vunpack.c.l.b16 %v5167
      %v5200 = vunpack.c.l.b16 %v5168
      %v5201 = vunpack.c.l.b16 %v5169
      %v5202 = vpack.c.b16 %v5187, %v5186
      %v5203 = vpack.c.b16 %v5189, %v5188
      %v5204 = vpack.c.b16 %v5191, %v5190
      %v5205 = vpack.c.b16 %v5193, %v5192
      %v5206 = vpack.c.b16 %v5195, %v5194
      %v5207 = vpack.c.b16 %v5197, %v5196
      %v5208 = vpack.c.b16 %v5199, %v5198
      %v5209 = vpack.c.b16 %v5201, %v5200
      %v5211 = vshrl.u32 %v5202, 16
      %v5213 = vshll.u32 %v5202, 16
      %v5215 = vrot.slane %v5213, 1
      %v5216 = vor.u32 %v5211, %v5215
      %v5218 = vshrl.u32 %v5203, 16
      %v5220 = vshll.u32 %v5203, 16
      %v5222 = vrot.slane %v5220, 1
      %v5223 = vor.u32 %v5218, %v5222
      %v5225 = vshrl.u32 %v5204, 16
      %v5227 = vshll.u32 %v5204, 16
      %v5229 = vrot.slane %v5227, 1
      %v5230 = vor.u32 %v5225, %v5229
      %v5232 = vshrl.u32 %v5205, 16
      %v5234 = vshll.u32 %v5205, 16
      %v5236 = vrot.slane %v5234, 1
      %v5237 = vor.u32 %v5232, %v5236
      %v5239 = vshrl.u32 %v5206, 16
      %v5241 = vshll.u32 %v5206, 16
      %v5243 = vrot.slane %v5241, 1
      %v5244 = vor.u32 %v5239, %v5243
      %v5246 = vshrl.u32 %v5207, 16
      %v5248 = vshll.u32 %v5207, 16
      %v5250 = vrot.slane %v5248, 1
      %v5251 = vor.u32 %v5246, %v5250
      %v5253 = vshrl.u32 %v5208, 16
      %v5255 = vshll.u32 %v5208, 16
      %v5257 = vrot.slane %v5255, 1
      %v5258 = vor.u32 %v5253, %v5257
      %v5260 = vshrl.u32 %v5209, 16
      %v5262 = vshll.u32 %v5209, 16
      %v5264 = vrot.slane %v5262, 1
      %v5265 = vor.u32 %v5260, %v5264
      %5266 = vrot.lane.b32.xlu0 %v5216, 8
      %v5267 = vpop.permute.xlu0 %5266
      %5268 = vrot.lane.b32.xlu0 %v5223, 8
      %v5269 = vpop.permute.xlu0 %5268
      %5270 = vrot.lane.b32.xlu0 %v5230, 8
      %v5271 = vpop.permute.xlu0 %5270
      %5272 = vrot.lane.b32.xlu0 %v5237, 8
      %v5273 = vpop.permute.xlu0 %5272
      %5274 = vrot.lane.b32.xlu0 %v5244, 8
      %v5275 = vpop.permute.xlu0 %5274
      %5276 = vrot.lane.b32.xlu0 %v5251, 8
      %v5277 = vpop.permute.xlu0 %5276
      %5278 = vrot.lane.b32.xlu0 %v5258, 8
      %v5279 = vpop.permute.xlu0 %5278
      %5280 = vrot.lane.b32.xlu0 %v5265, 8
      %v5281 = vpop.permute.xlu0 %5280
      %v5282 = vrot.slane %v5202, 1
      %v5283 = vrot.slane %v5203, 1
      %v5284 = vrot.slane %v5204, 1
      %v5285 = vrot.slane %v5205, 1
      %v5286 = vrot.slane %v5206, 1
      %v5287 = vrot.slane %v5207, 1
      %v5288 = vrot.slane %v5208, 1
      %v5289 = vrot.slane %v5209, 1
      %5290 = vrot.lane.b32.xlu0 %v5282, 16
      %v5291 = vpop.permute.xlu0 %5290
      %5292 = vrot.lane.b32.xlu0 %v5283, 16
      %v5293 = vpop.permute.xlu0 %5292
      %5294 = vrot.lane.b32.xlu0 %v5284, 16
      %v5295 = vpop.permute.xlu0 %5294
      %5296 = vrot.lane.b32.xlu0 %v5285, 16
      %v5297 = vpop.permute.xlu0 %5296
      %5298 = vrot.lane.b32.xlu0 %v5286, 16
      %v5299 = vpop.permute.xlu0 %5298
      %5300 = vrot.lane.b32.xlu0 %v5287, 16
      %v5301 = vpop.permute.xlu0 %5300
      %5302 = vrot.lane.b32.xlu0 %v5288, 16
      %v5303 = vpop.permute.xlu0 %5302
      %5304 = vrot.lane.b32.xlu0 %v5289, 16
      %v5305 = vpop.permute.xlu0 %5304
      %v5308 = vsel %vm2543, %v5154, %v5267
      %v5311 = vsel %vm2543, %v5156, %v5269
      %v5314 = vsel %vm2543, %v5158, %v5271
      %v5317 = vsel %vm2543, %v5160, %v5273
      %v5320 = vsel %vm2543, %v5162, %v5275
      %v5323 = vsel %vm2543, %v5164, %v5277
      %v5326 = vsel %vm2543, %v5166, %v5279
      %v5329 = vsel %vm2543, %v5168, %v5281
      %v5331 = vsel %vm2576, %v5308, %v5291
      %v5333 = vsel %vm2576, %v5311, %v5293
      %v5335 = vsel %vm2576, %v5314, %v5295
      %v5337 = vsel %vm2576, %v5317, %v5297
      %v5339 = vsel %vm2576, %v5320, %v5299
      %v5341 = vsel %vm2576, %v5323, %v5301
      %v5343 = vsel %vm2576, %v5326, %v5303
      %v5345 = vsel %vm2576, %v5329, %v5305
      %v5346 = vld [vmem:[%s3] sm:$0xf]
      %v5347 = vld [vmem:[%s3 + $0x4] sm:$0xf]
      %v5348 = vld [vmem:[%s3 + $0x8] sm:$0xf]
      %v5349 = vld [vmem:[%s4725] sm:$0xf]
      %v5350 = vld [vmem:[%s4725 + $0x4] sm:$0x1]
      %v5351 = vld [vmem:[%s4725 + $0x8] sm:$0xf]
      %v5352 = vld [vmem:[%s4725 + $0xc] sm:$0x1]
      %v5353 = vld [vmem:[%s4725 + $0x10] sm:$0xf]
      %v5354 = vld [vmem:[%s4725 + $0x14] sm:$0x1]
      %v5355 = vld [vmem:[%s4725 + $0x18] sm:$0xf]
      %v5356 = vld [vmem:[%s4725 + $0x1c] sm:$0x1]
      %v5357 = vld [vmem:[%s4725 + $0x20] sm:$0xf]
      %v5358 = vld [vmem:[%s4725 + $0x24] sm:$0x1]
      %v5359 = vld [vmem:[%s4725 + $0x28] sm:$0xf]
      %v5360 = vld [vmem:[%s4725 + $0x2c] sm:$0x1]
      %v5361 = vld [vmem:[%s4725 + $0x30] sm:$0xf]
      %v5362 = vld [vmem:[%s4725 + $0x34] sm:$0x1]
      %v5363 = vld [vmem:[%s4725 + $0x38] sm:$0xf]
      %v5364 = vld [vmem:[%s4725 + $0x3c] sm:$0x1]
      %v5381 = vunpack.c.l.b16 %v5349
      %v5382 = vunpack.c.l.b16 %v5350
      %v5383 = vunpack.c.l.b16 %v5351
      %v5384 = vunpack.c.l.b16 %v5352
      %v5385 = vunpack.c.l.b16 %v5353
      %v5386 = vunpack.c.l.b16 %v5354
      %v5387 = vunpack.c.l.b16 %v5355
      %v5388 = vunpack.c.l.b16 %v5356
      %v5389 = vunpack.c.l.b16 %v5357
      %v5390 = vunpack.c.l.b16 %v5358
      %v5391 = vunpack.c.l.b16 %v5359
      %v5392 = vunpack.c.l.b16 %v5360
      %v5393 = vunpack.c.l.b16 %v5361
      %v5394 = vunpack.c.l.b16 %v5362
      %v5395 = vunpack.c.l.b16 %v5363
      %v5396 = vunpack.c.l.b16 %v5364
      %v5397 = vpack.c.b16 %v5382, %v5381
      %v5398 = vpack.c.b16 %v5384, %v5383
      %v5399 = vpack.c.b16 %v5386, %v5385
      %v5400 = vpack.c.b16 %v5388, %v5387
      %v5401 = vpack.c.b16 %v5390, %v5389
      %v5402 = vpack.c.b16 %v5392, %v5391
      %v5403 = vpack.c.b16 %v5394, %v5393
      %v5404 = vpack.c.b16 %v5396, %v5395
      %v5406 = vshrl.u32 %v5397, 16
      %v5408 = vshll.u32 %v5397, 16
      %v5410 = vrot.slane %v5408, 1
      %v5411 = vor.u32 %v5406, %v5410
      %v5413 = vshrl.u32 %v5398, 16
      %v5415 = vshll.u32 %v5398, 16
      %v5417 = vrot.slane %v5415, 1
      %v5418 = vor.u32 %v5413, %v5417
      %v5420 = vshrl.u32 %v5399, 16
      %v5422 = vshll.u32 %v5399, 16
      %v5424 = vrot.slane %v5422, 1
      %v5425 = vor.u32 %v5420, %v5424
      %v5427 = vshrl.u32 %v5400, 16
      %v5429 = vshll.u32 %v5400, 16
      %v5431 = vrot.slane %v5429, 1
      %v5432 = vor.u32 %v5427, %v5431
      %v5434 = vshrl.u32 %v5401, 16
      %v5436 = vshll.u32 %v5401, 16
      %v5438 = vrot.slane %v5436, 1
      %v5439 = vor.u32 %v5434, %v5438
      %v5441 = vshrl.u32 %v5402, 16
      %v5443 = vshll.u32 %v5402, 16
      %v5445 = vrot.slane %v5443, 1
      %v5446 = vor.u32 %v5441, %v5445
      %v5448 = vshrl.u32 %v5403, 16
      %v5450 = vshll.u32 %v5403, 16
      %v5452 = vrot.slane %v5450, 1
      %v5453 = vor.u32 %v5448, %v5452
      %v5455 = vshrl.u32 %v5404, 16
      %v5457 = vshll.u32 %v5404, 16
      %v5459 = vrot.slane %v5457, 1
      %v5460 = vor.u32 %v5455, %v5459
      %5461 = vrot.lane.b32.xlu0 %v5411, 8
      %v5462 = vpop.permute.xlu0 %5461
      %5463 = vrot.lane.b32.xlu0 %v5418, 8
      %v5464 = vpop.permute.xlu0 %5463
      %5465 = vrot.lane.b32.xlu0 %v5425, 8
      %v5466 = vpop.permute.xlu0 %5465
      %5467 = vrot.lane.b32.xlu0 %v5432, 8
      %v5468 = vpop.permute.xlu0 %5467
      %5469 = vrot.lane.b32.xlu0 %v5439, 8
      %v5470 = vpop.permute.xlu0 %5469
      %5471 = vrot.lane.b32.xlu0 %v5446, 8
      %v5472 = vpop.permute.xlu0 %5471
      %5473 = vrot.lane.b32.xlu0 %v5453, 8
      %v5474 = vpop.permute.xlu0 %5473
      %5475 = vrot.lane.b32.xlu0 %v5460, 8
      %v5476 = vpop.permute.xlu0 %5475
      %v5477 = vrot.slane %v5397, 1
      %v5478 = vrot.slane %v5398, 1
      %v5479 = vrot.slane %v5399, 1
      %v5480 = vrot.slane %v5400, 1
      %v5481 = vrot.slane %v5401, 1
      %v5482 = vrot.slane %v5402, 1
      %v5483 = vrot.slane %v5403, 1
      %v5484 = vrot.slane %v5404, 1
      %5485 = vrot.lane.b32.xlu0 %v5477, 16
      %v5486 = vpop.permute.xlu0 %5485
      %5487 = vrot.lane.b32.xlu0 %v5478, 16
      %v5488 = vpop.permute.xlu0 %5487
      %5489 = vrot.lane.b32.xlu0 %v5479, 16
      %v5490 = vpop.permute.xlu0 %5489
      %5491 = vrot.lane.b32.xlu0 %v5480, 16
      %v5492 = vpop.permute.xlu0 %5491
      %5493 = vrot.lane.b32.xlu0 %v5481, 16
      %v5494 = vpop.permute.xlu0 %5493
      %5495 = vrot.lane.b32.xlu0 %v5482, 16
      %v5496 = vpop.permute.xlu0 %5495
      %5497 = vrot.lane.b32.xlu0 %v5483, 16
      %v5498 = vpop.permute.xlu0 %5497
      %5499 = vrot.lane.b32.xlu0 %v5484, 16
      %v5500 = vpop.permute.xlu0 %5499
      %v5503 = vsel %vm2543, %v5349, %v5462
      %v5506 = vsel %vm2543, %v5351, %v5464
      %v5509 = vsel %vm2543, %v5353, %v5466
      %v5512 = vsel %vm2543, %v5355, %v5468
      %v5515 = vsel %vm2543, %v5357, %v5470
      %v5518 = vsel %vm2543, %v5359, %v5472
      %v5521 = vsel %vm2543, %v5361, %v5474
      %v5524 = vsel %vm2543, %v5363, %v5476
      %v5526 = vsel %vm2576, %v5503, %v5486
      %v5528 = vsel %vm2576, %v5506, %v5488
      %v5530 = vsel %vm2576, %v5509, %v5490
      %v5532 = vsel %vm2576, %v5512, %v5492
      %v5534 = vsel %vm2576, %v5515, %v5494
      %v5536 = vsel %vm2576, %v5518, %v5496
      %v5538 = vsel %vm2576, %v5521, %v5498
      %v5540 = vsel %vm2576, %v5524, %v5500
      %v5541 = vld [vmem:[%s3 + $0xc] sm:$0xf]
      %v5542 = vld [vmem:[%s3 + $0x10] sm:$0xf]
      %v5543 = vld [vmem:[%s3 + $0x14] sm:$0xf]
      %v5552 = vunpack.c.l.b16 %v5526
      %v5553 = vunpack.c.l.b16 %v5528
      %v5554 = vunpack.c.l.b16 %v5530
      %v5555 = vunpack.c.l.b16 %v5532
      %v5556 = vunpack.c.l.b16 %v5534
      %v5557 = vunpack.c.l.b16 %v5536
      %v5558 = vunpack.c.l.b16 %v5538
      %v5559 = vunpack.c.l.b16 %v5540
      %v5560 = vpack.c.b16 %v5553, %v5552
      %v5561 = vpack.c.b16 %v5555, %v5554
      %v5562 = vpack.c.b16 %v5557, %v5556
      %v5563 = vpack.c.b16 %v5559, %v5558
      %v5567 = vunpack.c.l.b16 %v5541
      %v5568 = vunpack.c.l.b16 %v5542
      %v5569 = vunpack.c.l.b16 %v5543
      %v5570 = vpack.c.b16 %v5568, %v5567
      %v5571 = vpack.c.b16 %v5569, %v5569
      %v5574 = vsel %vm3168, %v5560, 0
      %v5577 = vsel %vm3168, %v5561, 0
      %v5580 = vsel %vm3168, %v5562, 0
      %v5583 = vsel %vm3168, %v5563, 0
      %v5586 = vsel %vm3201, %v5571, 0
      %5588 = vmatpush.bf16.msra.mxu0 0
      %5589 = vmatpush.bf16.msra.mxu0 0
      %5590 = vmatpush.bf16.msra.mxu0 0
      %5591 = vmatpush.bf16.msra.mxu0 0
      %5592 = vmatpush.bf16.msra.mxu0 0
      %5593 = vmatpush.bf16.msra.mxu0 0
      %5594 = vmatpush.bf16.msra.mxu0 %v5586
      %5595 = vmatpush.bf16.msra.mxu0 %v5570
      %5596 = vmatmul.bf16.gmra.mxu0 %v5574
      %v5597 = vpop.f32.mrf.mxu0
      %v5598 = vadd.f32 0.0, %v5597
      %v5599 = vpop.f32.mrf.mxu0
      %v5600 = vadd.f32 0.0, %v5599
      %5601 = vmatmul.bf16.gmra.mxu0 %v5577
      %v5602 = vpop.f32.mrf.mxu0
      %v5603 = vadd.f32 0.0, %v5602
      %v5604 = vpop.f32.mrf.mxu0
      %v5605 = vadd.f32 0.0, %v5604
      %5606 = vmatmul.bf16.gmra.mxu0 %v5580
      %v5607 = vpop.f32.mrf.mxu0
      %v5608 = vadd.f32 0.0, %v5607
      %v5609 = vpop.f32.mrf.mxu0
      %v5610 = vadd.f32 0.0, %v5609
      %5611 = vmatmul.bf16.gmra.mxu0 %v5583
      %v5612 = vpop.f32.mrf.mxu0
      %v5613 = vadd.f32 0.0, %v5612
      %v5614 = vpop.f32.mrf.mxu0
      %v5615 = vadd.f32 0.0, %v5614
      %5616 = vdwg.mxu0
      %v5625 = vunpack.c.l.b16 %v5331
      %v5626 = vunpack.c.l.b16 %v5333
      %v5627 = vunpack.c.l.b16 %v5335
      %v5628 = vunpack.c.l.b16 %v5337
      %v5629 = vunpack.c.l.b16 %v5339
      %v5630 = vunpack.c.l.b16 %v5341
      %v5631 = vunpack.c.l.b16 %v5343
      %v5632 = vunpack.c.l.b16 %v5345
      %v5633 = vpack.c.b16 %v5626, %v5625
      %v5634 = vpack.c.b16 %v5628, %v5627
      %v5635 = vpack.c.b16 %v5630, %v5629
      %v5636 = vpack.c.b16 %v5632, %v5631
      %v5640 = vunpack.c.l.b16 %v5346
      %v5641 = vunpack.c.l.b16 %v5347
      %v5642 = vunpack.c.l.b16 %v5348
      %v5643 = vpack.c.b16 %v5641, %v5640
      %v5644 = vpack.c.b16 %v5642, %v5642
      %v5647 = vsel %vm3168, %v5633, 0
      %v5650 = vsel %vm3168, %v5634, 0
      %v5653 = vsel %vm3168, %v5635, 0
      %v5656 = vsel %vm3168, %v5636, 0
      %v5659 = vsel %vm3201, %v5644, 0
      %5661 = vmatpush.bf16.msra.mxu0 0
      %5662 = vmatpush.bf16.msra.mxu0 0
      %5663 = vmatpush.bf16.msra.mxu0 0
      %5664 = vmatpush.bf16.msra.mxu0 0
      %5665 = vmatpush.bf16.msra.mxu0 0
      %5666 = vmatpush.bf16.msra.mxu0 0
      %5667 = vmatpush.bf16.msra.mxu0 %v5659
      %5668 = vmatpush.bf16.msra.mxu0 %v5643
      %5669 = vmatmul.bf16.gmra.mxu0 %v5647
      %v5670 = vpop.f32.mrf.mxu0
      %v5671 = vadd.f32 %v5598, %v5670
      %v5672 = vpop.f32.mrf.mxu0
      %v5673 = vadd.f32 %v5600, %v5672
      %5674 = vmatmul.bf16.gmra.mxu0 %v5650
      %v5675 = vpop.f32.mrf.mxu0
      %v5676 = vadd.f32 %v5603, %v5675
      %v5677 = vpop.f32.mrf.mxu0
      %v5678 = vadd.f32 %v5605, %v5677
      %5679 = vmatmul.bf16.gmra.mxu0 %v5653
      %v5680 = vpop.f32.mrf.mxu0
      %v5681 = vadd.f32 %v5608, %v5680
      %v5682 = vpop.f32.mrf.mxu0
      %v5683 = vadd.f32 %v5610, %v5682
      %5684 = vmatmul.bf16.gmra.mxu0 %v5656
      %v5685 = vpop.f32.mrf.mxu0
      %v5686 = vadd.f32 %v5613, %v5685
      %v5687 = vpop.f32.mrf.mxu0
      %v5688 = vadd.f32 %v5615, %v5687
      %5689 = vdwg.mxu0
      %s5690 = scalar_lea.vmem [#allocation3], 16
      %v5691 = vld [vmem:[%s5690] sm:$0xf]
      %v5692 = vld [vmem:[%s5690 + $0x4] sm:$0x1]
      %v5693 = vld [vmem:[%s5690 + $0x8] sm:$0xf]
      %v5694 = vld [vmem:[%s5690 + $0xc] sm:$0x1]
      %v5695 = vld [vmem:[%s5690 + $0x10] sm:$0xf]
      %v5696 = vld [vmem:[%s5690 + $0x14] sm:$0x1]
      %v5697 = vld [vmem:[%s5690 + $0x18] sm:$0xf]
      %v5698 = vld [vmem:[%s5690 + $0x1c] sm:$0x1]
      %v5699 = vld [vmem:[%s5690 + $0x20] sm:$0xf]
      %v5700 = vld [vmem:[%s5690 + $0x24] sm:$0x1]
      %v5701 = vld [vmem:[%s5690 + $0x28] sm:$0xf]
      %v5702 = vld [vmem:[%s5690 + $0x2c] sm:$0x1]
      %v5703 = vld [vmem:[%s5690 + $0x30] sm:$0xf]
      %v5704 = vld [vmem:[%s5690 + $0x34] sm:$0x1]
      %v5705 = vld [vmem:[%s5690 + $0x38] sm:$0xf]
      %v5706 = vld [vmem:[%s5690 + $0x3c] sm:$0x1]
      %v5723 = vunpack.c.l.b16 %v5691
      %v5724 = vunpack.c.l.b16 %v5692
      %v5725 = vunpack.c.l.b16 %v5693
      %v5726 = vunpack.c.l.b16 %v5694
      %v5727 = vunpack.c.l.b16 %v5695
      %v5728 = vunpack.c.l.b16 %v5696
      %v5729 = vunpack.c.l.b16 %v5697
      %v5730 = vunpack.c.l.b16 %v5698
      %v5731 = vunpack.c.l.b16 %v5699
      %v5732 = vunpack.c.l.b16 %v5700
      %v5733 = vunpack.c.l.b16 %v5701
      %v5734 = vunpack.c.l.b16 %v5702
      %v5735 = vunpack.c.l.b16 %v5703
      %v5736 = vunpack.c.l.b16 %v5704
      %v5737 = vunpack.c.l.b16 %v5705
      %v5738 = vunpack.c.l.b16 %v5706
      %v5739 = vpack.c.b16 %v5724, %v5723
      %v5740 = vpack.c.b16 %v5726, %v5725
      %v5741 = vpack.c.b16 %v5728, %v5727
      %v5742 = vpack.c.b16 %v5730, %v5729
      %v5743 = vpack.c.b16 %v5732, %v5731
      %v5744 = vpack.c.b16 %v5734, %v5733
      %v5745 = vpack.c.b16 %v5736, %v5735
      %v5746 = vpack.c.b16 %v5738, %v5737
      %v5748 = vshrl.u32 %v5739, 16
      %v5750 = vshll.u32 %v5739, 16
      %v5752 = vrot.slane %v5750, 1
      %v5753 = vor.u32 %v5748, %v5752
      %v5755 = vshrl.u32 %v5740, 16
      %v5757 = vshll.u32 %v5740, 16
      %v5759 = vrot.slane %v5757, 1
      %v5760 = vor.u32 %v5755, %v5759
      %v5762 = vshrl.u32 %v5741, 16
      %v5764 = vshll.u32 %v5741, 16
      %v5766 = vrot.slane %v5764, 1
      %v5767 = vor.u32 %v5762, %v5766
      %v5769 = vshrl.u32 %v5742, 16
      %v5771 = vshll.u32 %v5742, 16
      %v5773 = vrot.slane %v5771, 1
      %v5774 = vor.u32 %v5769, %v5773
      %v5776 = vshrl.u32 %v5743, 16
      %v5778 = vshll.u32 %v5743, 16
      %v5780 = vrot.slane %v5778, 1
      %v5781 = vor.u32 %v5776, %v5780
      %v5783 = vshrl.u32 %v5744, 16
      %v5785 = vshll.u32 %v5744, 16
      %v5787 = vrot.slane %v5785, 1
      %v5788 = vor.u32 %v5783, %v5787
      %v5790 = vshrl.u32 %v5745, 16
      %v5792 = vshll.u32 %v5745, 16
      %v5794 = vrot.slane %v5792, 1
      %v5795 = vor.u32 %v5790, %v5794
      %v5797 = vshrl.u32 %v5746, 16
      %v5799 = vshll.u32 %v5746, 16
      %v5801 = vrot.slane %v5799, 1
      %v5802 = vor.u32 %v5797, %v5801
      %5803 = vrot.lane.b32.xlu0 %v5753, 8
      %v5804 = vpop.permute.xlu0 %5803
      %5805 = vrot.lane.b32.xlu0 %v5760, 8
      %v5806 = vpop.permute.xlu0 %5805
      %5807 = vrot.lane.b32.xlu0 %v5767, 8
      %v5808 = vpop.permute.xlu0 %5807
      %5809 = vrot.lane.b32.xlu0 %v5774, 8
      %v5810 = vpop.permute.xlu0 %5809
      %5811 = vrot.lane.b32.xlu0 %v5781, 8
      %v5812 = vpop.permute.xlu0 %5811
      %5813 = vrot.lane.b32.xlu0 %v5788, 8
      %v5814 = vpop.permute.xlu0 %5813
      %5815 = vrot.lane.b32.xlu0 %v5795, 8
      %v5816 = vpop.permute.xlu0 %5815
      %5817 = vrot.lane.b32.xlu0 %v5802, 8
      %v5818 = vpop.permute.xlu0 %5817
      %v5819 = vrot.slane %v5739, 1
      %v5820 = vrot.slane %v5740, 1
      %v5821 = vrot.slane %v5741, 1
      %v5822 = vrot.slane %v5742, 1
      %v5823 = vrot.slane %v5743, 1
      %v5824 = vrot.slane %v5744, 1
      %v5825 = vrot.slane %v5745, 1
      %v5826 = vrot.slane %v5746, 1
      %5827 = vrot.lane.b32.xlu0 %v5819, 16
      %v5828 = vpop.permute.xlu0 %5827
      %5829 = vrot.lane.b32.xlu0 %v5820, 16
      %v5830 = vpop.permute.xlu0 %5829
      %5831 = vrot.lane.b32.xlu0 %v5821, 16
      %v5832 = vpop.permute.xlu0 %5831
      %5833 = vrot.lane.b32.xlu0 %v5822, 16
      %v5834 = vpop.permute.xlu0 %5833
      %5835 = vrot.lane.b32.xlu0 %v5823, 16
      %v5836 = vpop.permute.xlu0 %5835
      %5837 = vrot.lane.b32.xlu0 %v5824, 16
      %v5838 = vpop.permute.xlu0 %5837
      %5839 = vrot.lane.b32.xlu0 %v5825, 16
      %v5840 = vpop.permute.xlu0 %5839
      %5841 = vrot.lane.b32.xlu0 %v5826, 16
      %v5842 = vpop.permute.xlu0 %5841
      %v5845 = vsel %vm2543, %v5691, %v5804
      %v5848 = vsel %vm2543, %v5693, %v5806
      %v5851 = vsel %vm2543, %v5695, %v5808
      %v5854 = vsel %vm2543, %v5697, %v5810
      %v5857 = vsel %vm2543, %v5699, %v5812
      %v5860 = vsel %vm2543, %v5701, %v5814
      %v5863 = vsel %vm2543, %v5703, %v5816
      %v5866 = vsel %vm2543, %v5705, %v5818
      %v5868 = vsel %vm2576, %v5845, %v5828
      %v5870 = vsel %vm2576, %v5848, %v5830
      %v5872 = vsel %vm2576, %v5851, %v5832
      %v5874 = vsel %vm2576, %v5854, %v5834
      %v5876 = vsel %vm2576, %v5857, %v5836
      %v5878 = vsel %vm2576, %v5860, %v5838
      %v5880 = vsel %vm2576, %v5863, %v5840
      %v5882 = vsel %vm2576, %v5866, %v5842
      %v5883 = vld [vmem:[%s3 + $0x18] sm:$0xf]
      %v5884 = vld [vmem:[%s3 + $0x1c] sm:$0xf]
      %v5885 = vld [vmem:[%s3 + $0x20] sm:$0xf]
      %v5894 = vunpack.c.l.b16 %v5868
      %v5895 = vunpack.c.l.b16 %v5870
      %v5896 = vunpack.c.l.b16 %v5872
      %v5897 = vunpack.c.l.b16 %v5874
      %v5898 = vunpack.c.l.b16 %v5876
      %v5899 = vunpack.c.l.b16 %v5878
      %v5900 = vunpack.c.l.b16 %v5880
      %v5901 = vunpack.c.l.b16 %v5882
      %v5902 = vpack.c.b16 %v5895, %v5894
      %v5903 = vpack.c.b16 %v5897, %v5896
      %v5904 = vpack.c.b16 %v5899, %v5898
      %v5905 = vpack.c.b16 %v5901, %v5900
      %v5909 = vunpack.c.l.b16 %v5883
      %v5910 = vunpack.c.l.b16 %v5884
      %v5911 = vunpack.c.l.b16 %v5885
      %v5912 = vpack.c.b16 %v5910, %v5909
      %v5913 = vpack.c.b16 %v5911, %v5911
      %v5916 = vsel %vm3168, %v5902, 0
      %v5919 = vsel %vm3168, %v5903, 0
      %v5922 = vsel %vm3168, %v5904, 0
      %v5925 = vsel %vm3168, %v5905, 0
      %v5928 = vsel %vm3201, %v5913, 0
      %5930 = vmatpush.bf16.msra.mxu0 0
      %5931 = vmatpush.bf16.msra.mxu0 0
      %5932 = vmatpush.bf16.msra.mxu0 0
      %5933 = vmatpush.bf16.msra.mxu0 0
      %5934 = vmatpush.bf16.msra.mxu0 0
      %5935 = vmatpush.bf16.msra.mxu0 0
      %5936 = vmatpush.bf16.msra.mxu0 %v5928
      %5937 = vmatpush.bf16.msra.mxu0 %v5912
      %5938 = vmatmul.bf16.gmra.mxu0 %v5916
      %v5939 = vpop.f32.mrf.mxu0
      %v5940 = vadd.f32 0.0, %v5939
      %v5941 = vpop.f32.mrf.mxu0
      %v5942 = vadd.f32 0.0, %v5941
      %5943 = vmatmul.bf16.gmra.mxu0 %v5919
      %v5944 = vpop.f32.mrf.mxu0
      %v5945 = vadd.f32 0.0, %v5944
      %v5946 = vpop.f32.mrf.mxu0
      %v5947 = vadd.f32 0.0, %v5946
      %5948 = vmatmul.bf16.gmra.mxu0 %v5922
      %v5949 = vpop.f32.mrf.mxu0
      %v5950 = vadd.f32 0.0, %v5949
      %v5951 = vpop.f32.mrf.mxu0
      %v5952 = vadd.f32 0.0, %v5951
      %5953 = vmatmul.bf16.gmra.mxu0 %v5925
      %v5954 = vpop.f32.mrf.mxu0
      %v5955 = vadd.f32 0.0, %v5954
      %v5956 = vpop.f32.mrf.mxu0
      %v5957 = vadd.f32 0.0, %v5956
      %5958 = vdwg.mxu0
      %v5959 = vadd.f32 %v5671, %v5940
      %v5960 = vadd.f32 %v5673, %v5942
      %v5961 = vadd.f32 %v5676, %v5945
      %v5962 = vadd.f32 %v5678, %v5947
      %v5963 = vadd.f32 %v5681, %v5950
      %v5964 = vadd.f32 %v5683, %v5952
      %v5965 = vadd.f32 %v5686, %v5955
      %v5966 = vadd.f32 %v5688, %v5957
      %v5967 = vld [vmem:[%s8] sm:$0x1]
      %v5968 = vperm.slane %v5967, 0
      %v5969 = vmul.f32 %v5959, %v5968
      %v5970 = vmul.f32 %v5960, %v5968
      %v5971 = vmul.f32 %v5961, %v5968
      %v5972 = vmul.f32 %v5962, %v5968
      %v5973 = vmul.f32 %v5963, %v5968
      %v5974 = vmul.f32 %v5964, %v5968
      %v5975 = vmul.f32 %v5965, %v5968
      %v5976 = vmul.f32 %v5966, %v5968
      %v5977 = vld [vmem:[%s8 + $0x1] sm:$0x1]
      %v5978 = vperm.slane %v5977, 0
      %v5979 = vadd.f32 %v5969, %v5978
      %v5980 = vadd.f32 %v5970, %v5978
      %v5981 = vadd.f32 %v5971, %v5978
      %v5982 = vadd.f32 %v5972, %v5978
      %v5983 = vadd.f32 %v5973, %v5978
      %v5984 = vadd.f32 %v5974, %v5978
      %v5985 = vadd.f32 %v5975, %v5978
      %v5986 = vadd.f32 %v5976, %v5978
      %v5987 = vmax.f32 %v5979, 0.0
      %v5988 = vmax.f32 %v5980, 0.0
      %v5989 = vmax.f32 %v5981, 0.0
      %v5990 = vmax.f32 %v5982, 0.0
      %v5991 = vmax.f32 %v5983, 0.0
      %v5992 = vmax.f32 %v5984, 0.0
      %v5993 = vmax.f32 %v5985, 0.0
      %v5994 = vmax.f32 %v5986, 0.0
      %vm5995 = vcmask 27648
      %5996 = vst.msk [vmem:[#allocation5] sm:$0xf] %vm5995, 0
      %vm5997 = vcmask 24576
      %5998 = vst.msk [vmem:[#allocation5 + $0x4] sm:$0x1] %vm5997, 0
      %s5999 = scalar_lea.vmem [#allocation5], 72
      %6000 = vst.msk [vmem:[%s5999] sm:$0xf] %vm5995, 0
      %6001 = vst.msk [vmem:[%s5999 + $0x4] sm:$0x1] %vm5997, 0
      %s6002 = scalar_lea.vmem [#allocation5], 8
      %vm6003 = vcmask 24576
      %vm6004 = vmand %vm6003, %vm1445
      %v6005 = vld [vmem:[%s6002] sm:$0x1]
      %v6006 = vsel %vm6004, 0, %v6005
      %6007 = vst [vmem:[%s6002] sm:$0x1] %v6006
      %v6008 = vld [vmem:[%s6002 + $0x8] sm:$0x1]
      %v6009 = vsel %vm6004, 0, %v6008
      %6010 = vst [vmem:[%s6002 + $0x8] sm:$0x1] %v6009
      %v6011 = vld [vmem:[%s6002 + $0x10] sm:$0x1]
      %v6012 = vsel %vm6004, 0, %v6011
      %6013 = vst [vmem:[%s6002 + $0x10] sm:$0x1] %v6012
      %v6014 = vld [vmem:[%s6002 + $0x18] sm:$0x1]
      %v6015 = vsel %vm6004, 0, %v6014
      %6016 = vst [vmem:[%s6002 + $0x18] sm:$0x1] %v6015
      %v6017 = vld [vmem:[%s6002 + $0x20] sm:$0x1]
      %v6018 = vsel %vm6004, 0, %v6017
      %6019 = vst [vmem:[%s6002 + $0x20] sm:$0x1] %v6018
      %v6020 = vld [vmem:[%s6002 + $0x28] sm:$0x1]
      %v6021 = vsel %vm6004, 0, %v6020
      %6022 = vst [vmem:[%s6002 + $0x28] sm:$0x1] %v6021
      %v6023 = vld [vmem:[%s6002 + $0x30] sm:$0x1]
      %v6024 = vsel %vm6004, 0, %v6023
      %6025 = vst [vmem:[%s6002 + $0x30] sm:$0x1] %v6024
      %v6026 = vld [vmem:[%s6002 + $0x38] sm:$0x1]
      %v6027 = vsel %vm6004, 0, %v6026
      %6028 = vst [vmem:[%s6002 + $0x38] sm:$0x1] %v6027
      %vm6029 = vmand %vm6003, %vm1495
      %v6030 = vld [vmem:[%s6002 + $0x4] sm:$0x1]
      %v6031 = vsel %vm6029, 0, %v6030
      %6032 = vst [vmem:[%s6002 + $0x4] sm:$0x1] %v6031
      %v6033 = vld [vmem:[%s6002 + $0xc] sm:$0x1]
      %v6034 = vsel %vm6029, 0, %v6033
      %6035 = vst [vmem:[%s6002 + $0xc] sm:$0x1] %v6034
      %v6036 = vld [vmem:[%s6002 + $0x14] sm:$0x1]
      %v6037 = vsel %vm6029, 0, %v6036
      %6038 = vst [vmem:[%s6002 + $0x14] sm:$0x1] %v6037
      %v6039 = vld [vmem:[%s6002 + $0x1c] sm:$0x1]
      %v6040 = vsel %vm6029, 0, %v6039
      %6041 = vst [vmem:[%s6002 + $0x1c] sm:$0x1] %v6040
      %v6042 = vld [vmem:[%s6002 + $0x24] sm:$0x1]
      %v6043 = vsel %vm6029, 0, %v6042
      %6044 = vst [vmem:[%s6002 + $0x24] sm:$0x1] %v6043
      %v6045 = vld [vmem:[%s6002 + $0x2c] sm:$0x1]
      %v6046 = vsel %vm6029, 0, %v6045
      %6047 = vst [vmem:[%s6002 + $0x2c] sm:$0x1] %v6046
      %v6048 = vld [vmem:[%s6002 + $0x34] sm:$0x1]
      %v6049 = vsel %vm6029, 0, %v6048
      %6050 = vst [vmem:[%s6002 + $0x34] sm:$0x1] %v6049
      %v6051 = vld [vmem:[%s6002 + $0x3c] sm:$0x1]
      %v6052 = vsel %vm6029, 0, %v6051
      %6053 = vst [vmem:[%s6002 + $0x3c] sm:$0x1] %v6052
      %v6054 = vpack.c.bf16 %v5987, %v5987
      %v6055 = vpack.c.bf16 %v5988, %v5988
      %v6056 = vpack.c.bf16 %v5989, %v5989
      %v6057 = vpack.c.bf16 %v5990, %v5990
      %v6058 = vpack.c.bf16 %v5991, %v5991
      %v6059 = vpack.c.bf16 %v5992, %v5992
      %v6060 = vpack.c.bf16 %v5993, %v5993
      %v6061 = vpack.c.bf16 %v5994, %v5994
      %v6063 = vshrl.u32 %v6054, 16
      %v6065 = vrot.slane %v6063, 7
      %v6066 = vshll.u32 %v6054, 16
      %v6068 = vor.u32 %v6065, %v6066
      %v6069 = vrot.slane %v6065, 4
      %v6071 = vshrl.u32 %v6055, 16
      %v6073 = vrot.slane %v6071, 7
      %v6074 = vshll.u32 %v6055, 16
      %v6076 = vor.u32 %v6073, %v6074
      %v6077 = vrot.slane %v6073, 4
      %v6079 = vshrl.u32 %v6056, 16
      %v6081 = vrot.slane %v6079, 7
      %v6082 = vshll.u32 %v6056, 16
      %v6084 = vor.u32 %v6081, %v6082
      %v6085 = vrot.slane %v6081, 4
      %v6087 = vshrl.u32 %v6057, 16
      %v6089 = vrot.slane %v6087, 7
      %v6090 = vshll.u32 %v6057, 16
      %v6092 = vor.u32 %v6089, %v6090
      %v6093 = vrot.slane %v6089, 4
      %v6095 = vshrl.u32 %v6058, 16
      %v6097 = vrot.slane %v6095, 7
      %v6098 = vshll.u32 %v6058, 16
      %v6100 = vor.u32 %v6097, %v6098
      %v6101 = vrot.slane %v6097, 4
      %v6103 = vshrl.u32 %v6059, 16
      %v6105 = vrot.slane %v6103, 7
      %v6106 = vshll.u32 %v6059, 16
      %v6108 = vor.u32 %v6105, %v6106
      %v6109 = vrot.slane %v6105, 4
      %v6111 = vshrl.u32 %v6060, 16
      %v6113 = vrot.slane %v6111, 7
      %v6114 = vshll.u32 %v6060, 16
      %v6116 = vor.u32 %v6113, %v6114
      %v6117 = vrot.slane %v6113, 4
      %v6119 = vshrl.u32 %v6061, 16
      %v6121 = vrot.slane %v6119, 7
      %v6122 = vshll.u32 %v6061, 16
      %v6124 = vor.u32 %v6121, %v6122
      %v6125 = vrot.slane %v6121, 4
      %vm6142 = vcmask 27648
      %vm6143 = vmand %vm6142, %vm1495
      %v6144 = vld [vmem:[%s6002] sm:$0xf]
      %v6145 = vsel %vm6143, %v6068, %v6144
      %6146 = vst [vmem:[%s6002] sm:$0xf] %v6145
      %v6147 = vld [vmem:[%s6002 + $0x4] sm:$0x1]
      %v6148 = vsel %vm6004, %v6069, %v6147
      %6149 = vst [vmem:[%s6002 + $0x4] sm:$0x1] %v6148
      %v6150 = vld [vmem:[%s6002 + $0x8] sm:$0xf]
      %v6151 = vsel %vm6143, %v6076, %v6150
      %6152 = vst [vmem:[%s6002 + $0x8] sm:$0xf] %v6151
      %v6153 = vld [vmem:[%s6002 + $0xc] sm:$0x1]
      %v6154 = vsel %vm6004, %v6077, %v6153
      %6155 = vst [vmem:[%s6002 + $0xc] sm:$0x1] %v6154
      %v6156 = vld [vmem:[%s6002 + $0x10] sm:$0xf]
      %v6157 = vsel %vm6143, %v6084, %v6156
      %6158 = vst [vmem:[%s6002 + $0x10] sm:$0xf] %v6157
      %v6159 = vld [vmem:[%s6002 + $0x14] sm:$0x1]
      %v6160 = vsel %vm6004, %v6085, %v6159
      %6161 = vst [vmem:[%s6002 + $0x14] sm:$0x1] %v6160
      %v6162 = vld [vmem:[%s6002 + $0x18] sm:$0xf]
      %v6163 = vsel %vm6143, %v6092, %v6162
      %6164 = vst [vmem:[%s6002 + $0x18] sm:$0xf] %v6163
      %v6165 = vld [vmem:[%s6002 + $0x1c] sm:$0x1]
      %v6166 = vsel %vm6004, %v6093, %v6165
      %6167 = vst [vmem:[%s6002 + $0x1c] sm:$0x1] %v6166
      %v6168 = vld [vmem:[%s6002 + $0x20] sm:$0xf]
      %v6169 = vsel %vm6143, %v6100, %v6168
      %6170 = vst [vmem:[%s6002 + $0x20] sm:$0xf] %v6169
      %v6171 = vld [vmem:[%s6002 + $0x24] sm:$0x1]
      %v6172 = vsel %vm6004, %v6101, %v6171
      %6173 = vst [vmem:[%s6002 + $0x24] sm:$0x1] %v6172
      %v6174 = vld [vmem:[%s6002 + $0x28] sm:$0xf]
      %v6175 = vsel %vm6143, %v6108, %v6174
      %6176 = vst [vmem:[%s6002 + $0x28] sm:$0xf] %v6175
      %v6177 = vld [vmem:[%s6002 + $0x2c] sm:$0x1]
      %v6178 = vsel %vm6004, %v6109, %v6177
      %6179 = vst [vmem:[%s6002 + $0x2c] sm:$0x1] %v6178
      %v6180 = vld [vmem:[%s6002 + $0x30] sm:$0xf]
      %v6181 = vsel %vm6143, %v6116, %v6180
      %6182 = vst [vmem:[%s6002 + $0x30] sm:$0xf] %v6181
      %v6183 = vld [vmem:[%s6002 + $0x34] sm:$0x1]
      %v6184 = vsel %vm6004, %v6117, %v6183
      %6185 = vst [vmem:[%s6002 + $0x34] sm:$0x1] %v6184
      %v6186 = vld [vmem:[%s6002 + $0x38] sm:$0xf]
      %v6187 = vsel %vm6143, %v6124, %v6186
      %6188 = vst [vmem:[%s6002 + $0x38] sm:$0xf] %v6187
      %v6189 = vld [vmem:[%s6002 + $0x3c] sm:$0x1]
      %v6190 = vsel %vm6004, %v6125, %v6189
      %6191 = vst [vmem:[%s6002 + $0x3c] sm:$0x1] %v6190
      %v6192 = vld [vmem:[#allocation5] sm:$0xf]
      %v6193 = vld [vmem:[#allocation5 + $0x4] sm:$0x1]
      %v6194 = vld [vmem:[#allocation5 + $0x8] sm:$0xf]
      %v6195 = vld [vmem:[#allocation5 + $0xc] sm:$0x1]
      %v6196 = vld [vmem:[#allocation5 + $0x10] sm:$0xf]
      %v6197 = vld [vmem:[#allocation5 + $0x14] sm:$0x1]
      %v6198 = vld [vmem:[#allocation5 + $0x18] sm:$0xf]
      %v6199 = vld [vmem:[#allocation5 + $0x1c] sm:$0x1]
      %v6200 = vld [vmem:[#allocation5 + $0x20] sm:$0xf]
      %v6201 = vld [vmem:[#allocation5 + $0x24] sm:$0x1]
      %v6202 = vld [vmem:[#allocation5 + $0x28] sm:$0xf]
      %v6203 = vld [vmem:[#allocation5 + $0x2c] sm:$0x1]
      %v6204 = vld [vmem:[#allocation5 + $0x30] sm:$0xf]
      %v6205 = vld [vmem:[#allocation5 + $0x34] sm:$0x1]
      %v6206 = vld [vmem:[#allocation5 + $0x38] sm:$0xf]
      %v6207 = vld [vmem:[#allocation5 + $0x3c] sm:$0x1]
      %v6224 = vunpack.c.l.b16 %v6192
      %v6225 = vunpack.c.l.b16 %v6193
      %v6226 = vunpack.c.l.b16 %v6194
      %v6227 = vunpack.c.l.b16 %v6195
      %v6228 = vunpack.c.l.b16 %v6196
      %v6229 = vunpack.c.l.b16 %v6197
      %v6230 = vunpack.c.l.b16 %v6198
      %v6231 = vunpack.c.l.b16 %v6199
      %v6232 = vunpack.c.l.b16 %v6200
      %v6233 = vunpack.c.l.b16 %v6201
      %v6234 = vunpack.c.l.b16 %v6202
      %v6235 = vunpack.c.l.b16 %v6203
      %v6236 = vunpack.c.l.b16 %v6204
      %v6237 = vunpack.c.l.b16 %v6205
      %v6238 = vunpack.c.l.b16 %v6206
      %v6239 = vunpack.c.l.b16 %v6207
      %v6240 = vpack.c.b16 %v6225, %v6224
      %v6241 = vpack.c.b16 %v6227, %v6226
      %v6242 = vpack.c.b16 %v6229, %v6228
      %v6243 = vpack.c.b16 %v6231, %v6230
      %v6244 = vpack.c.b16 %v6233, %v6232
      %v6245 = vpack.c.b16 %v6235, %v6234
      %v6246 = vpack.c.b16 %v6237, %v6236
      %v6247 = vpack.c.b16 %v6239, %v6238
      %v6249 = vshrl.u32 %v6240, 16
      %v6251 = vshll.u32 %v6240, 16
      %v6253 = vrot.slane %v6251, 1
      %v6254 = vor.u32 %v6249, %v6253
      %v6256 = vshrl.u32 %v6241, 16
      %v6258 = vshll.u32 %v6241, 16
      %v6260 = vrot.slane %v6258, 1
      %v6261 = vor.u32 %v6256, %v6260
      %v6263 = vshrl.u32 %v6242, 16
      %v6265 = vshll.u32 %v6242, 16
      %v6267 = vrot.slane %v6265, 1
      %v6268 = vor.u32 %v6263, %v6267
      %v6270 = vshrl.u32 %v6243, 16
      %v6272 = vshll.u32 %v6243, 16
      %v6274 = vrot.slane %v6272, 1
      %v6275 = vor.u32 %v6270, %v6274
      %v6277 = vshrl.u32 %v6244, 16
      %v6279 = vshll.u32 %v6244, 16
      %v6281 = vrot.slane %v6279, 1
      %v6282 = vor.u32 %v6277, %v6281
      %v6284 = vshrl.u32 %v6245, 16
      %v6286 = vshll.u32 %v6245, 16
      %v6288 = vrot.slane %v6286, 1
      %v6289 = vor.u32 %v6284, %v6288
      %v6291 = vshrl.u32 %v6246, 16
      %v6293 = vshll.u32 %v6246, 16
      %v6295 = vrot.slane %v6293, 1
      %v6296 = vor.u32 %v6291, %v6295
      %v6298 = vshrl.u32 %v6247, 16
      %v6300 = vshll.u32 %v6247, 16
      %v6302 = vrot.slane %v6300, 1
      %v6303 = vor.u32 %v6298, %v6302
      %6304 = vrot.lane.b32.xlu0 %v6254, 4
      %v6305 = vpop.permute.xlu0 %6304
      %6306 = vrot.lane.b32.xlu0 %v6261, 4
      %v6307 = vpop.permute.xlu0 %6306
      %6308 = vrot.lane.b32.xlu0 %v6268, 4
      %v6309 = vpop.permute.xlu0 %6308
      %6310 = vrot.lane.b32.xlu0 %v6275, 4
      %v6311 = vpop.permute.xlu0 %6310
      %6312 = vrot.lane.b32.xlu0 %v6282, 4
      %v6313 = vpop.permute.xlu0 %6312
      %6314 = vrot.lane.b32.xlu0 %v6289, 4
      %v6315 = vpop.permute.xlu0 %6314
      %6316 = vrot.lane.b32.xlu0 %v6296, 4
      %v6317 = vpop.permute.xlu0 %6316
      %6318 = vrot.lane.b32.xlu0 %v6303, 4
      %v6319 = vpop.permute.xlu0 %6318
      %v6320 = vrot.slane %v6240, 1
      %v6321 = vrot.slane %v6241, 1
      %v6322 = vrot.slane %v6242, 1
      %v6323 = vrot.slane %v6243, 1
      %v6324 = vrot.slane %v6244, 1
      %v6325 = vrot.slane %v6245, 1
      %v6326 = vrot.slane %v6246, 1
      %v6327 = vrot.slane %v6247, 1
      %6328 = vrot.lane.b32.xlu0 %v6320, 8
      %v6329 = vpop.permute.xlu0 %6328
      %6330 = vrot.lane.b32.xlu0 %v6321, 8
      %v6331 = vpop.permute.xlu0 %6330
      %6332 = vrot.lane.b32.xlu0 %v6322, 8
      %v6333 = vpop.permute.xlu0 %6332
      %6334 = vrot.lane.b32.xlu0 %v6323, 8
      %v6335 = vpop.permute.xlu0 %6334
      %6336 = vrot.lane.b32.xlu0 %v6324, 8
      %v6337 = vpop.permute.xlu0 %6336
      %6338 = vrot.lane.b32.xlu0 %v6325, 8
      %v6339 = vpop.permute.xlu0 %6338
      %6340 = vrot.lane.b32.xlu0 %v6326, 8
      %v6341 = vpop.permute.xlu0 %6340
      %6342 = vrot.lane.b32.xlu0 %v6327, 8
      %v6343 = vpop.permute.xlu0 %6342
      %v6346 = vsel %vm1385, %v6192, %v6305
      %v6349 = vsel %vm1385, %v6194, %v6307
      %v6352 = vsel %vm1385, %v6196, %v6309
      %v6355 = vsel %vm1385, %v6198, %v6311
      %v6358 = vsel %vm1385, %v6200, %v6313
      %v6361 = vsel %vm1385, %v6202, %v6315
      %v6364 = vsel %vm1385, %v6204, %v6317
      %v6367 = vsel %vm1385, %v6206, %v6319
      %v6369 = vsel %vm2543, %v6346, %v6329
      %v6371 = vsel %vm2543, %v6349, %v6331
      %v6373 = vsel %vm2543, %v6352, %v6333
      %v6375 = vsel %vm2543, %v6355, %v6335
      %v6377 = vsel %vm2543, %v6358, %v6337
      %v6379 = vsel %vm2543, %v6361, %v6339
      %v6381 = vsel %vm2543, %v6364, %v6341
      %v6383 = vsel %vm2543, %v6367, %v6343
      %v6384 = vld [vmem:[%s5] sm:$0xf]
      %v6385 = vld [vmem:[%s5 + $0x4] sm:$0x3]
      %v6386 = vld [vmem:[%s6002] sm:$0xf]
      %v6387 = vld [vmem:[%s6002 + $0x4] sm:$0x1]
      %v6388 = vld [vmem:[%s6002 + $0x8] sm:$0xf]
      %v6389 = vld [vmem:[%s6002 + $0xc] sm:$0x1]
      %v6390 = vld [vmem:[%s6002 + $0x10] sm:$0xf]
      %v6391 = vld [vmem:[%s6002 + $0x14] sm:$0x1]
      %v6392 = vld [vmem:[%s6002 + $0x18] sm:$0xf]
      %v6393 = vld [vmem:[%s6002 + $0x1c] sm:$0x1]
      %v6394 = vld [vmem:[%s6002 + $0x20] sm:$0xf]
      %v6395 = vld [vmem:[%s6002 + $0x24] sm:$0x1]
      %v6396 = vld [vmem:[%s6002 + $0x28] sm:$0xf]
      %v6397 = vld [vmem:[%s6002 + $0x2c] sm:$0x1]
      %v6398 = vld [vmem:[%s6002 + $0x30] sm:$0xf]
      %v6399 = vld [vmem:[%s6002 + $0x34] sm:$0x1]
      %v6400 = vld [vmem:[%s6002 + $0x38] sm:$0xf]
      %v6401 = vld [vmem:[%s6002 + $0x3c] sm:$0x1]
      %v6418 = vunpack.c.l.b16 %v6386
      %v6419 = vunpack.c.l.b16 %v6387
      %v6420 = vunpack.c.l.b16 %v6388
      %v6421 = vunpack.c.l.b16 %v6389
      %v6422 = vunpack.c.l.b16 %v6390
      %v6423 = vunpack.c.l.b16 %v6391
      %v6424 = vunpack.c.l.b16 %v6392
      %v6425 = vunpack.c.l.b16 %v6393
      %v6426 = vunpack.c.l.b16 %v6394
      %v6427 = vunpack.c.l.b16 %v6395
      %v6428 = vunpack.c.l.b16 %v6396
      %v6429 = vunpack.c.l.b16 %v6397
      %v6430 = vunpack.c.l.b16 %v6398
      %v6431 = vunpack.c.l.b16 %v6399
      %v6432 = vunpack.c.l.b16 %v6400
      %v6433 = vunpack.c.l.b16 %v6401
      %v6434 = vpack.c.b16 %v6419, %v6418
      %v6435 = vpack.c.b16 %v6421, %v6420
      %v6436 = vpack.c.b16 %v6423, %v6422
      %v6437 = vpack.c.b16 %v6425, %v6424
      %v6438 = vpack.c.b16 %v6427, %v6426
      %v6439 = vpack.c.b16 %v6429, %v6428
      %v6440 = vpack.c.b16 %v6431, %v6430
      %v6441 = vpack.c.b16 %v6433, %v6432
      %v6443 = vshrl.u32 %v6434, 16
      %v6445 = vshll.u32 %v6434, 16
      %v6447 = vrot.slane %v6445, 1
      %v6448 = vor.u32 %v6443, %v6447
      %v6450 = vshrl.u32 %v6435, 16
      %v6452 = vshll.u32 %v6435, 16
      %v6454 = vrot.slane %v6452, 1
      %v6455 = vor.u32 %v6450, %v6454
      %v6457 = vshrl.u32 %v6436, 16
      %v6459 = vshll.u32 %v6436, 16
      %v6461 = vrot.slane %v6459, 1
      %v6462 = vor.u32 %v6457, %v6461
      %v6464 = vshrl.u32 %v6437, 16
      %v6466 = vshll.u32 %v6437, 16
      %v6468 = vrot.slane %v6466, 1
      %v6469 = vor.u32 %v6464, %v6468
      %v6471 = vshrl.u32 %v6438, 16
      %v6473 = vshll.u32 %v6438, 16
      %v6475 = vrot.slane %v6473, 1
      %v6476 = vor.u32 %v6471, %v6475
      %v6478 = vshrl.u32 %v6439, 16
      %v6480 = vshll.u32 %v6439, 16
      %v6482 = vrot.slane %v6480, 1
      %v6483 = vor.u32 %v6478, %v6482
      %v6485 = vshrl.u32 %v6440, 16
      %v6487 = vshll.u32 %v6440, 16
      %v6489 = vrot.slane %v6487, 1
      %v6490 = vor.u32 %v6485, %v6489
      %v6492 = vshrl.u32 %v6441, 16
      %v6494 = vshll.u32 %v6441, 16
      %v6496 = vrot.slane %v6494, 1
      %v6497 = vor.u32 %v6492, %v6496
      %6498 = vrot.lane.b32.xlu0 %v6448, 4
      %v6499 = vpop.permute.xlu0 %6498
      %6500 = vrot.lane.b32.xlu0 %v6455, 4
      %v6501 = vpop.permute.xlu0 %6500
      %6502 = vrot.lane.b32.xlu0 %v6462, 4
      %v6503 = vpop.permute.xlu0 %6502
      %6504 = vrot.lane.b32.xlu0 %v6469, 4
      %v6505 = vpop.permute.xlu0 %6504
      %6506 = vrot.lane.b32.xlu0 %v6476, 4
      %v6507 = vpop.permute.xlu0 %6506
      %6508 = vrot.lane.b32.xlu0 %v6483, 4
      %v6509 = vpop.permute.xlu0 %6508
      %6510 = vrot.lane.b32.xlu0 %v6490, 4
      %v6511 = vpop.permute.xlu0 %6510
      %6512 = vrot.lane.b32.xlu0 %v6497, 4
      %v6513 = vpop.permute.xlu0 %6512
      %v6514 = vrot.slane %v6434, 1
      %v6515 = vrot.slane %v6435, 1
      %v6516 = vrot.slane %v6436, 1
      %v6517 = vrot.slane %v6437, 1
      %v6518 = vrot.slane %v6438, 1
      %v6519 = vrot.slane %v6439, 1
      %v6520 = vrot.slane %v6440, 1
      %v6521 = vrot.slane %v6441, 1
      %6522 = vrot.lane.b32.xlu0 %v6514, 8
      %v6523 = vpop.permute.xlu0 %6522
      %6524 = vrot.lane.b32.xlu0 %v6515, 8
      %v6525 = vpop.permute.xlu0 %6524
      %6526 = vrot.lane.b32.xlu0 %v6516, 8
      %v6527 = vpop.permute.xlu0 %6526
      %6528 = vrot.lane.b32.xlu0 %v6517, 8
      %v6529 = vpop.permute.xlu0 %6528
      %6530 = vrot.lane.b32.xlu0 %v6518, 8
      %v6531 = vpop.permute.xlu0 %6530
      %6532 = vrot.lane.b32.xlu0 %v6519, 8
      %v6533 = vpop.permute.xlu0 %6532
      %6534 = vrot.lane.b32.xlu0 %v6520, 8
      %v6535 = vpop.permute.xlu0 %6534
      %6536 = vrot.lane.b32.xlu0 %v6521, 8
      %v6537 = vpop.permute.xlu0 %6536
      %v6540 = vsel %vm1385, %v6386, %v6499
      %v6543 = vsel %vm1385, %v6388, %v6501
      %v6546 = vsel %vm1385, %v6390, %v6503
      %v6549 = vsel %vm1385, %v6392, %v6505
      %v6552 = vsel %vm1385, %v6394, %v6507
      %v6555 = vsel %vm1385, %v6396, %v6509
      %v6558 = vsel %vm1385, %v6398, %v6511
      %v6561 = vsel %vm1385, %v6400, %v6513
      %v6563 = vsel %vm2543, %v6540, %v6523
      %v6565 = vsel %vm2543, %v6543, %v6525
      %v6567 = vsel %vm2543, %v6546, %v6527
      %v6569 = vsel %vm2543, %v6549, %v6529
      %v6571 = vsel %vm2543, %v6552, %v6531
      %v6573 = vsel %vm2543, %v6555, %v6533
      %v6575 = vsel %vm2543, %v6558, %v6535
      %v6577 = vsel %vm2543, %v6561, %v6537
      %v6578 = vld [vmem:[%s5 + $0x4] sm:$0xc]
      %v6579 = vld [vmem:[%s5 + $0x8] sm:$0xf]
      %v6588 = vunpack.c.l.b16 %v6563
      %v6589 = vunpack.c.l.b16 %v6565
      %v6590 = vunpack.c.l.b16 %v6567
      %v6591 = vunpack.c.l.b16 %v6569
      %v6592 = vunpack.c.l.b16 %v6571
      %v6593 = vunpack.c.l.b16 %v6573
      %v6594 = vunpack.c.l.b16 %v6575
      %v6595 = vunpack.c.l.b16 %v6577
      %v6596 = vpack.c.b16 %v6589, %v6588
      %v6597 = vpack.c.b16 %v6591, %v6590
      %v6598 = vpack.c.b16 %v6593, %v6592
      %v6599 = vpack.c.b16 %v6595, %v6594
      %v6602 = vunpack.c.l.b16 %v6578
      %v6603 = vunpack.c.l.b16 %v6579
      %v6604 = vpack.c.b16 %v6603, %v6602
      %v6605 = vrot.slane %v6604, 2
      %vm6606 = vcmask 97280
      %v6608 = vsel %vm6606, %v6596, 0
      %v6611 = vsel %vm6606, %v6597, 0
      %v6614 = vsel %vm6606, %v6598, 0
      %v6617 = vsel %vm6606, %v6599, 0
      %vm6619 = vcmask 1045504
      %v6621 = vsel %vm6619, %v6605, 0
      %6623 = vmatpush.bf16.msra.mxu0 0
      %6624 = vmatpush.bf16.msra.mxu0 0
      %6625 = vmatpush.bf16.msra.mxu0 0
      %6626 = vmatpush.bf16.msra.mxu0 0
      %6627 = vmatpush.bf16.msra.mxu0 0
      %6628 = vmatpush.bf16.msra.mxu0 0
      %6629 = vmatpush.bf16.msra.mxu0 0
      %6630 = vmatpush.bf16.msra.mxu0 %v6621
      %6631 = vmatmul.bf16.gmra.mxu0 %v6608
      %v6632 = vpop.f32.mrf.mxu0
      %v6633 = vadd.f32 0.0, %v6632
      %v6634 = vpop.f32.mrf.mxu0
      %v6635 = vadd.f32 0.0, %v6634
      %6636 = vmatmul.bf16.gmra.mxu0 %v6611
      %v6637 = vpop.f32.mrf.mxu0
      %v6638 = vadd.f32 0.0, %v6637
      %v6639 = vpop.f32.mrf.mxu0
      %v6640 = vadd.f32 0.0, %v6639
      %6641 = vmatmul.bf16.gmra.mxu0 %v6614
      %v6642 = vpop.f32.mrf.mxu0
      %v6643 = vadd.f32 0.0, %v6642
      %v6644 = vpop.f32.mrf.mxu0
      %v6645 = vadd.f32 0.0, %v6644
      %6646 = vmatmul.bf16.gmra.mxu0 %v6617
      %v6647 = vpop.f32.mrf.mxu0
      %v6648 = vadd.f32 0.0, %v6647
      %v6649 = vpop.f32.mrf.mxu0
      %v6650 = vadd.f32 0.0, %v6649
      %6651 = vdwg.mxu0
      %v6660 = vunpack.c.l.b16 %v6369
      %v6661 = vunpack.c.l.b16 %v6371
      %v6662 = vunpack.c.l.b16 %v6373
      %v6663 = vunpack.c.l.b16 %v6375
      %v6664 = vunpack.c.l.b16 %v6377
      %v6665 = vunpack.c.l.b16 %v6379
      %v6666 = vunpack.c.l.b16 %v6381
      %v6667 = vunpack.c.l.b16 %v6383
      %v6668 = vpack.c.b16 %v6661, %v6660
      %v6669 = vpack.c.b16 %v6663, %v6662
      %v6670 = vpack.c.b16 %v6665, %v6664
      %v6671 = vpack.c.b16 %v6667, %v6666
      %v6674 = vunpack.c.l.b16 %v6384
      %v6675 = vunpack.c.l.b16 %v6385
      %v6676 = vpack.c.b16 %v6675, %v6674
      %v6678 = vsel %vm6606, %v6668, 0
      %v6681 = vsel %vm6606, %v6669, 0
      %v6684 = vsel %vm6606, %v6670, 0
      %v6687 = vsel %vm6606, %v6671, 0
      %v6690 = vsel %vm6619, %v6676, 0
      %6692 = vmatpush.bf16.msra.mxu0 0
      %6693 = vmatpush.bf16.msra.mxu0 0
      %6694 = vmatpush.bf16.msra.mxu0 0
      %6695 = vmatpush.bf16.msra.mxu0 0
      %6696 = vmatpush.bf16.msra.mxu0 0
      %6697 = vmatpush.bf16.msra.mxu0 0
      %6698 = vmatpush.bf16.msra.mxu0 0
      %6699 = vmatpush.bf16.msra.mxu0 %v6690
      %6700 = vmatmul.bf16.gmra.mxu0 %v6678
      %v6701 = vpop.f32.mrf.mxu0
      %v6702 = vadd.f32 %v6633, %v6701
      %v6703 = vpop.f32.mrf.mxu0
      %v6704 = vadd.f32 %v6635, %v6703
      %6705 = vmatmul.bf16.gmra.mxu0 %v6681
      %v6706 = vpop.f32.mrf.mxu0
      %v6707 = vadd.f32 %v6638, %v6706
      %v6708 = vpop.f32.mrf.mxu0
      %v6709 = vadd.f32 %v6640, %v6708
      %6710 = vmatmul.bf16.gmra.mxu0 %v6684
      %v6711 = vpop.f32.mrf.mxu0
      %v6712 = vadd.f32 %v6643, %v6711
      %v6713 = vpop.f32.mrf.mxu0
      %v6714 = vadd.f32 %v6645, %v6713
      %6715 = vmatmul.bf16.gmra.mxu0 %v6687
      %v6716 = vpop.f32.mrf.mxu0
      %v6717 = vadd.f32 %v6648, %v6716
      %v6718 = vpop.f32.mrf.mxu0
      %v6719 = vadd.f32 %v6650, %v6718
      %6720 = vdwg.mxu0
      %s6721 = scalar_lea.vmem [#allocation5], 16
      %v6722 = vld [vmem:[%s6721] sm:$0xf]
      %v6723 = vld [vmem:[%s6721 + $0x4] sm:$0x1]
      %v6724 = vld [vmem:[%s6721 + $0x8] sm:$0xf]
      %v6725 = vld [vmem:[%s6721 + $0xc] sm:$0x1]
      %v6726 = vld [vmem:[%s6721 + $0x10] sm:$0xf]
      %v6727 = vld [vmem:[%s6721 + $0x14] sm:$0x1]
      %v6728 = vld [vmem:[%s6721 + $0x18] sm:$0xf]
      %v6729 = vld [vmem:[%s6721 + $0x1c] sm:$0x1]
      %v6730 = vld [vmem:[%s6721 + $0x20] sm:$0xf]
      %v6731 = vld [vmem:[%s6721 + $0x24] sm:$0x1]
      %v6732 = vld [vmem:[%s6721 + $0x28] sm:$0xf]
      %v6733 = vld [vmem:[%s6721 + $0x2c] sm:$0x1]
      %v6734 = vld [vmem:[%s6721 + $0x30] sm:$0xf]
      %v6735 = vld [vmem:[%s6721 + $0x34] sm:$0x1]
      %v6736 = vld [vmem:[%s6721 + $0x38] sm:$0xf]
      %v6737 = vld [vmem:[%s6721 + $0x3c] sm:$0x1]
      %v6754 = vunpack.c.l.b16 %v6722
      %v6755 = vunpack.c.l.b16 %v6723
      %v6756 = vunpack.c.l.b16 %v6724
      %v6757 = vunpack.c.l.b16 %v6725
      %v6758 = vunpack.c.l.b16 %v6726
      %v6759 = vunpack.c.l.b16 %v6727
      %v6760 = vunpack.c.l.b16 %v6728
      %v6761 = vunpack.c.l.b16 %v6729
      %v6762 = vunpack.c.l.b16 %v6730
      %v6763 = vunpack.c.l.b16 %v6731
      %v6764 = vunpack.c.l.b16 %v6732
      %v6765 = vunpack.c.l.b16 %v6733
      %v6766 = vunpack.c.l.b16 %v6734
      %v6767 = vunpack.c.l.b16 %v6735
      %v6768 = vunpack.c.l.b16 %v6736
      %v6769 = vunpack.c.l.b16 %v6737
      %v6770 = vpack.c.b16 %v6755, %v6754
      %v6771 = vpack.c.b16 %v6757, %v6756
      %v6772 = vpack.c.b16 %v6759, %v6758
      %v6773 = vpack.c.b16 %v6761, %v6760
      %v6774 = vpack.c.b16 %v6763, %v6762
      %v6775 = vpack.c.b16 %v6765, %v6764
      %v6776 = vpack.c.b16 %v6767, %v6766
      %v6777 = vpack.c.b16 %v6769, %v6768
      %v6779 = vshrl.u32 %v6770, 16
      %v6781 = vshll.u32 %v6770, 16
      %v6783 = vrot.slane %v6781, 1
      %v6784 = vor.u32 %v6779, %v6783
      %v6786 = vshrl.u32 %v6771, 16
      %v6788 = vshll.u32 %v6771, 16
      %v6790 = vrot.slane %v6788, 1
      %v6791 = vor.u32 %v6786, %v6790
      %v6793 = vshrl.u32 %v6772, 16
      %v6795 = vshll.u32 %v6772, 16
      %v6797 = vrot.slane %v6795, 1
      %v6798 = vor.u32 %v6793, %v6797
      %v6800 = vshrl.u32 %v6773, 16
      %v6802 = vshll.u32 %v6773, 16
      %v6804 = vrot.slane %v6802, 1
      %v6805 = vor.u32 %v6800, %v6804
      %v6807 = vshrl.u32 %v6774, 16
      %v6809 = vshll.u32 %v6774, 16
      %v6811 = vrot.slane %v6809, 1
      %v6812 = vor.u32 %v6807, %v6811
      %v6814 = vshrl.u32 %v6775, 16
      %v6816 = vshll.u32 %v6775, 16
      %v6818 = vrot.slane %v6816, 1
      %v6819 = vor.u32 %v6814, %v6818
      %v6821 = vshrl.u32 %v6776, 16
      %v6823 = vshll.u32 %v6776, 16
      %v6825 = vrot.slane %v6823, 1
      %v6826 = vor.u32 %v6821, %v6825
      %v6828 = vshrl.u32 %v6777, 16
      %v6830 = vshll.u32 %v6777, 16
      %v6832 = vrot.slane %v6830, 1
      %v6833 = vor.u32 %v6828, %v6832
      %6834 = vrot.lane.b32.xlu0 %v6784, 4
      %v6835 = vpop.permute.xlu0 %6834
      %6836 = vrot.lane.b32.xlu0 %v6791, 4
      %v6837 = vpop.permute.xlu0 %6836
      %6838 = vrot.lane.b32.xlu0 %v6798, 4
      %v6839 = vpop.permute.xlu0 %6838
      %6840 = vrot.lane.b32.xlu0 %v6805, 4
      %v6841 = vpop.permute.xlu0 %6840
      %6842 = vrot.lane.b32.xlu0 %v6812, 4
      %v6843 = vpop.permute.xlu0 %6842
      %6844 = vrot.lane.b32.xlu0 %v6819, 4
      %v6845 = vpop.permute.xlu0 %6844
      %6846 = vrot.lane.b32.xlu0 %v6826, 4
      %v6847 = vpop.permute.xlu0 %6846
      %6848 = vrot.lane.b32.xlu0 %v6833, 4
      %v6849 = vpop.permute.xlu0 %6848
      %v6850 = vrot.slane %v6770, 1
      %v6851 = vrot.slane %v6771, 1
      %v6852 = vrot.slane %v6772, 1
      %v6853 = vrot.slane %v6773, 1
      %v6854 = vrot.slane %v6774, 1
      %v6855 = vrot.slane %v6775, 1
      %v6856 = vrot.slane %v6776, 1
      %v6857 = vrot.slane %v6777, 1
      %6858 = vrot.lane.b32.xlu0 %v6850, 8
      %v6859 = vpop.permute.xlu0 %6858
      %6860 = vrot.lane.b32.xlu0 %v6851, 8
      %v6861 = vpop.permute.xlu0 %6860
      %6862 = vrot.lane.b32.xlu0 %v6852, 8
      %v6863 = vpop.permute.xlu0 %6862
      %6864 = vrot.lane.b32.xlu0 %v6853, 8
      %v6865 = vpop.permute.xlu0 %6864
      %6866 = vrot.lane.b32.xlu0 %v6854, 8
      %v6867 = vpop.permute.xlu0 %6866
      %6868 = vrot.lane.b32.xlu0 %v6855, 8
      %v6869 = vpop.permute.xlu0 %6868
      %6870 = vrot.lane.b32.xlu0 %v6856, 8
      %v6871 = vpop.permute.xlu0 %6870
      %6872 = vrot.lane.b32.xlu0 %v6857, 8
      %v6873 = vpop.permute.xlu0 %6872
      %v6876 = vsel %vm1385, %v6722, %v6835
      %v6879 = vsel %vm1385, %v6724, %v6837
      %v6882 = vsel %vm1385, %v6726, %v6839
      %v6885 = vsel %vm1385, %v6728, %v6841
      %v6888 = vsel %vm1385, %v6730, %v6843
      %v6891 = vsel %vm1385, %v6732, %v6845
      %v6894 = vsel %vm1385, %v6734, %v6847
      %v6897 = vsel %vm1385, %v6736, %v6849
      %v6899 = vsel %vm2543, %v6876, %v6859
      %v6901 = vsel %vm2543, %v6879, %v6861
      %v6903 = vsel %vm2543, %v6882, %v6863
      %v6905 = vsel %vm2543, %v6885, %v6865
      %v6907 = vsel %vm2543, %v6888, %v6867
      %v6909 = vsel %vm2543, %v6891, %v6869
      %v6911 = vsel %vm2543, %v6894, %v6871
      %v6913 = vsel %vm2543, %v6897, %v6873
      %v6914 = vld [vmem:[%s5 + $0xc] sm:$0xf]
      %v6915 = vld [vmem:[%s5 + $0x10] sm:$0x3]
      %v6924 = vunpack.c.l.b16 %v6899
      %v6925 = vunpack.c.l.b16 %v6901
      %v6926 = vunpack.c.l.b16 %v6903
      %v6927 = vunpack.c.l.b16 %v6905
      %v6928 = vunpack.c.l.b16 %v6907
      %v6929 = vunpack.c.l.b16 %v6909
      %v6930 = vunpack.c.l.b16 %v6911
      %v6931 = vunpack.c.l.b16 %v6913
      %v6932 = vpack.c.b16 %v6925, %v6924
      %v6933 = vpack.c.b16 %v6927, %v6926
      %v6934 = vpack.c.b16 %v6929, %v6928
      %v6935 = vpack.c.b16 %v6931, %v6930
      %v6938 = vunpack.c.l.b16 %v6914
      %v6939 = vunpack.c.l.b16 %v6915
      %v6940 = vpack.c.b16 %v6939, %v6938
      %v6942 = vsel %vm6606, %v6932, 0
      %v6945 = vsel %vm6606, %v6933, 0
      %v6948 = vsel %vm6606, %v6934, 0
      %v6951 = vsel %vm6606, %v6935, 0
      %v6954 = vsel %vm6619, %v6940, 0
      %6956 = vmatpush.bf16.msra.mxu0 0
      %6957 = vmatpush.bf16.msra.mxu0 0
      %6958 = vmatpush.bf16.msra.mxu0 0
      %6959 = vmatpush.bf16.msra.mxu0 0
      %6960 = vmatpush.bf16.msra.mxu0 0
      %6961 = vmatpush.bf16.msra.mxu0 0
      %6962 = vmatpush.bf16.msra.mxu0 0
      %6963 = vmatpush.bf16.msra.mxu0 %v6954
      %6964 = vmatmul.bf16.gmra.mxu0 %v6942
      %v6965 = vpop.f32.mrf.mxu0
      %v6966 = vadd.f32 0.0, %v6965
      %v6967 = vpop.f32.mrf.mxu0
      %v6968 = vadd.f32 0.0, %v6967
      %6969 = vmatmul.bf16.gmra.mxu0 %v6945
      %v6970 = vpop.f32.mrf.mxu0
      %v6971 = vadd.f32 0.0, %v6970
      %v6972 = vpop.f32.mrf.mxu0
      %v6973 = vadd.f32 0.0, %v6972
      %6974 = vmatmul.bf16.gmra.mxu0 %v6948
      %v6975 = vpop.f32.mrf.mxu0
      %v6976 = vadd.f32 0.0, %v6975
      %v6977 = vpop.f32.mrf.mxu0
      %v6978 = vadd.f32 0.0, %v6977
      %6979 = vmatmul.bf16.gmra.mxu0 %v6951
      %v6980 = vpop.f32.mrf.mxu0
      %v6981 = vadd.f32 0.0, %v6980
      %v6982 = vpop.f32.mrf.mxu0
      %v6983 = vadd.f32 0.0, %v6982
      %6984 = vdwg.mxu0
      %v6985 = vadd.f32 %v6702, %v6966
      %v6986 = vadd.f32 %v6704, %v6968
      %v6987 = vadd.f32 %v6707, %v6971
      %v6988 = vadd.f32 %v6709, %v6973
      %v6989 = vadd.f32 %v6712, %v6976
      %v6990 = vadd.f32 %v6714, %v6978
      %v6991 = vadd.f32 %v6717, %v6981
      %v6992 = vadd.f32 %v6719, %v6983
      %v6993 = vadd.f32 %v4208, %v4210
      %v6994 = vadd.f32 %v4209, %v4211
      %v6995 = vadd.f32 %v4212, %v4214
      %v6996 = vadd.f32 %v4213, %v4215
      %v6997 = vadd.f32 %v4216, %v4218
      %v6998 = vadd.f32 %v4217, %v4219
      %v6999 = vadd.f32 %v4220, %v4222
      %v7000 = vadd.f32 %v4221, %v4223
      %v7001 = vadd.f32 %v4224, %v4226
      %v7002 = vadd.f32 %v4225, %v4227
      %v7003 = vadd.f32 %v4228, %v4230
      %v7004 = vadd.f32 %v4229, %v4231
      %v7005 = vadd.f32 %v4232, %v4234
      %v7006 = vadd.f32 %v4233, %v4235
      %v7007 = vadd.f32 %v4236, %v4238
      %v7008 = vadd.f32 %v4237, %v4239
      %v7025 = vrot.slane %v6993, 2
      %v7026 = vrot.slane %v6993, 4
      %v7027 = vrot.slane %v6993, 6
      %v7028 = vrot.slane %v6994, 2
      %v7029 = vrot.slane %v6994, 4
      %v7030 = vrot.slane %v6994, 6
      %v7031 = vrot.slane %v6995, 2
      %v7032 = vrot.slane %v6995, 4
      %v7033 = vrot.slane %v6995, 6
      %v7034 = vrot.slane %v6996, 2
      %v7035 = vrot.slane %v6996, 4
      %v7036 = vrot.slane %v6996, 6
      %v7037 = vrot.slane %v6997, 2
      %v7038 = vrot.slane %v6997, 4
      %v7039 = vrot.slane %v6997, 6
      %v7040 = vrot.slane %v6998, 2
      %v7041 = vrot.slane %v6998, 4
      %v7042 = vrot.slane %v6998, 6
      %v7043 = vrot.slane %v6999, 2
      %v7044 = vrot.slane %v6999, 4
      %v7045 = vrot.slane %v6999, 6
      %v7046 = vrot.slane %v7000, 2
      %v7047 = vrot.slane %v7000, 4
      %v7048 = vrot.slane %v7000, 6
      %v7049 = vrot.slane %v7001, 2
      %v7050 = vrot.slane %v7001, 4
      %v7051 = vrot.slane %v7001, 6
      %v7052 = vrot.slane %v7002, 2
      %v7053 = vrot.slane %v7002, 4
      %v7054 = vrot.slane %v7002, 6
      %v7055 = vrot.slane %v7003, 2
      %v7056 = vrot.slane %v7003, 4
      %v7057 = vrot.slane %v7003, 6
      %v7058 = vrot.slane %v7004, 2
      %v7059 = vrot.slane %v7004, 4
      %v7060 = vrot.slane %v7004, 6
      %v7061 = vrot.slane %v7005, 2
      %v7062 = vrot.slane %v7005, 4
      %v7063 = vrot.slane %v7005, 6
      %v7064 = vrot.slane %v7006, 2
      %v7065 = vrot.slane %v7006, 4
      %v7066 = vrot.slane %v7006, 6
      %v7067 = vrot.slane %v7007, 2
      %v7068 = vrot.slane %v7007, 4
      %v7069 = vrot.slane %v7007, 6
      %v7070 = vrot.slane %v7008, 2
      %v7071 = vrot.slane %v7008, 4
      %v7072 = vrot.slane %v7008, 6
      %v7121 = vrot.slane %v6993, 7
      %v7122 = vrot.slane %v7121, 2
      %v7123 = vrot.slane %v7025, 7
      %v7124 = vrot.slane %v7123, 2
      %v7125 = vrot.slane %v7026, 7
      %v7126 = vrot.slane %v7125, 2
      %v7127 = vrot.slane %v7027, 7
      %v7128 = vrot.slane %v7127, 2
      %v7129 = vrot.slane %v6994, 7
      %v7130 = vrot.slane %v7129, 2
      %v7131 = vrot.slane %v7028, 7
      %v7132 = vrot.slane %v7131, 2
      %v7133 = vrot.slane %v7029, 7
      %v7134 = vrot.slane %v7133, 2
      %v7135 = vrot.slane %v7030, 7
      %v7136 = vrot.slane %v7135, 2
      %v7137 = vrot.slane %v6995, 7
      %v7138 = vrot.slane %v7137, 2
      %v7139 = vrot.slane %v7031, 7
      %v7140 = vrot.slane %v7139, 2
      %v7141 = vrot.slane %v7032, 7
      %v7142 = vrot.slane %v7141, 2
      %v7143 = vrot.slane %v7033, 7
      %v7144 = vrot.slane %v7143, 2
      %v7145 = vrot.slane %v6996, 7
      %v7146 = vrot.slane %v7145, 2
      %v7147 = vrot.slane %v7034, 7
      %v7148 = vrot.slane %v7147, 2
      %v7149 = vrot.slane %v7035, 7
      %v7150 = vrot.slane %v7149, 2
      %v7151 = vrot.slane %v7036, 7
      %v7152 = vrot.slane %v7151, 2
      %v7153 = vrot.slane %v6997, 7
      %v7154 = vrot.slane %v7153, 2
      %v7155 = vrot.slane %v7037, 7
      %v7156 = vrot.slane %v7155, 2
      %v7157 = vrot.slane %v7038, 7
      %v7158 = vrot.slane %v7157, 2
      %v7159 = vrot.slane %v7039, 7
      %v7160 = vrot.slane %v7159, 2
      %v7161 = vrot.slane %v6998, 7
      %v7162 = vrot.slane %v7161, 2
      %v7163 = vrot.slane %v7040, 7
      %v7164 = vrot.slane %v7163, 2
      %v7165 = vrot.slane %v7041, 7
      %v7166 = vrot.slane %v7165, 2
      %v7167 = vrot.slane %v7042, 7
      %v7168 = vrot.slane %v7167, 2
      %v7169 = vrot.slane %v6999, 7
      %v7170 = vrot.slane %v7169, 2
      %v7171 = vrot.slane %v7043, 7
      %v7172 = vrot.slane %v7171, 2
      %v7173 = vrot.slane %v7044, 7
      %v7174 = vrot.slane %v7173, 2
      %v7175 = vrot.slane %v7045, 7
      %v7176 = vrot.slane %v7175, 2
      %v7177 = vrot.slane %v7000, 7
      %v7178 = vrot.slane %v7177, 2
      %v7179 = vrot.slane %v7046, 7
      %v7180 = vrot.slane %v7179, 2
      %v7181 = vrot.slane %v7047, 7
      %v7182 = vrot.slane %v7181, 2
      %v7183 = vrot.slane %v7048, 7
      %v7184 = vrot.slane %v7183, 2
      %v7185 = vrot.slane %v7001, 7
      %v7186 = vrot.slane %v7185, 2
      %v7187 = vrot.slane %v7049, 7
      %v7188 = vrot.slane %v7187, 2
      %v7189 = vrot.slane %v7050, 7
      %v7190 = vrot.slane %v7189, 2
      %v7191 = vrot.slane %v7051, 7
      %v7192 = vrot.slane %v7191, 2
      %v7193 = vrot.slane %v7002, 7
      %v7194 = vrot.slane %v7193, 2
      %v7195 = vrot.slane %v7052, 7
      %v7196 = vrot.slane %v7195, 2
      %v7197 = vrot.slane %v7053, 7
      %v7198 = vrot.slane %v7197, 2
      %v7199 = vrot.slane %v7054, 7
      %v7200 = vrot.slane %v7199, 2
      %v7201 = vrot.slane %v7003, 7
      %v7202 = vrot.slane %v7201, 2
      %v7203 = vrot.slane %v7055, 7
      %v7204 = vrot.slane %v7203, 2
      %v7205 = vrot.slane %v7056, 7
      %v7206 = vrot.slane %v7205, 2
      %v7207 = vrot.slane %v7057, 7
      %v7208 = vrot.slane %v7207, 2
      %v7209 = vrot.slane %v7004, 7
      %v7210 = vrot.slane %v7209, 2
      %v7211 = vrot.slane %v7058, 7
      %v7212 = vrot.slane %v7211, 2
      %v7213 = vrot.slane %v7059, 7
      %v7214 = vrot.slane %v7213, 2
      %v7215 = vrot.slane %v7060, 7
      %v7216 = vrot.slane %v7215, 2
      %v7217 = vrot.slane %v7005, 7
      %v7218 = vrot.slane %v7217, 2
      %v7219 = vrot.slane %v7061, 7
      %v7220 = vrot.slane %v7219, 2
      %v7221 = vrot.slane %v7062, 7
      %v7222 = vrot.slane %v7221, 2
      %v7223 = vrot.slane %v7063, 7
      %v7224 = vrot.slane %v7223, 2
      %v7225 = vrot.slane %v7006, 7
      %v7226 = vrot.slane %v7225, 2
      %v7227 = vrot.slane %v7064, 7
      %v7228 = vrot.slane %v7227, 2
      %v7229 = vrot.slane %v7065, 7
      %v7230 = vrot.slane %v7229, 2
      %v7231 = vrot.slane %v7066, 7
      %v7232 = vrot.slane %v7231, 2
      %v7233 = vrot.slane %v7007, 7
      %v7234 = vrot.slane %v7233, 2
      %v7235 = vrot.slane %v7067, 7
      %v7236 = vrot.slane %v7235, 2
      %v7237 = vrot.slane %v7068, 7
      %v7238 = vrot.slane %v7237, 2
      %v7239 = vrot.slane %v7069, 7
      %v7240 = vrot.slane %v7239, 2
      %v7241 = vrot.slane %v7008, 7
      %v7242 = vrot.slane %v7241, 2
      %v7243 = vrot.slane %v7070, 7
      %v7244 = vrot.slane %v7243, 2
      %v7245 = vrot.slane %v7071, 7
      %v7246 = vrot.slane %v7245, 2
      %v7247 = vrot.slane %v7072, 7
      %v7248 = vrot.slane %v7247, 2
      %v7313 = vadd.f32 %v6993, %v7122
      %v7314 = vadd.f32 %v7025, %v7124
      %v7315 = vadd.f32 %v7026, %v7126
      %v7316 = vadd.f32 %v7027, %v7128
      %v7317 = vadd.f32 %v6994, %v7130
      %v7318 = vadd.f32 %v7028, %v7132
      %v7319 = vadd.f32 %v7029, %v7134
      %v7320 = vadd.f32 %v7030, %v7136
      %v7321 = vadd.f32 %v6995, %v7138
      %v7322 = vadd.f32 %v7031, %v7140
      %v7323 = vadd.f32 %v7032, %v7142
      %v7324 = vadd.f32 %v7033, %v7144
      %v7325 = vadd.f32 %v6996, %v7146
      %v7326 = vadd.f32 %v7034, %v7148
      %v7327 = vadd.f32 %v7035, %v7150
      %v7328 = vadd.f32 %v7036, %v7152
      %v7329 = vadd.f32 %v6997, %v7154
      %v7330 = vadd.f32 %v7037, %v7156
      %v7331 = vadd.f32 %v7038, %v7158
      %v7332 = vadd.f32 %v7039, %v7160
      %v7333 = vadd.f32 %v6998, %v7162
      %v7334 = vadd.f32 %v7040, %v7164
      %v7335 = vadd.f32 %v7041, %v7166
      %v7336 = vadd.f32 %v7042, %v7168
      %v7337 = vadd.f32 %v6999, %v7170
      %v7338 = vadd.f32 %v7043, %v7172
      %v7339 = vadd.f32 %v7044, %v7174
      %v7340 = vadd.f32 %v7045, %v7176
      %v7341 = vadd.f32 %v7000, %v7178
      %v7342 = vadd.f32 %v7046, %v7180
      %v7343 = vadd.f32 %v7047, %v7182
      %v7344 = vadd.f32 %v7048, %v7184
      %v7345 = vadd.f32 %v7001, %v7186
      %v7346 = vadd.f32 %v7049, %v7188
      %v7347 = vadd.f32 %v7050, %v7190
      %v7348 = vadd.f32 %v7051, %v7192
      %v7349 = vadd.f32 %v7002, %v7194
      %v7350 = vadd.f32 %v7052, %v7196
      %v7351 = vadd.f32 %v7053, %v7198
      %v7352 = vadd.f32 %v7054, %v7200
      %v7353 = vadd.f32 %v7003, %v7202
      %v7354 = vadd.f32 %v7055, %v7204
      %v7355 = vadd.f32 %v7056, %v7206
      %v7356 = vadd.f32 %v7057, %v7208
      %v7357 = vadd.f32 %v7004, %v7210
      %v7358 = vadd.f32 %v7058, %v7212
      %v7359 = vadd.f32 %v7059, %v7214
      %v7360 = vadd.f32 %v7060, %v7216
      %v7361 = vadd.f32 %v7005, %v7218
      %v7362 = vadd.f32 %v7061, %v7220
      %v7363 = vadd.f32 %v7062, %v7222
      %v7364 = vadd.f32 %v7063, %v7224
      %v7365 = vadd.f32 %v7006, %v7226
      %v7366 = vadd.f32 %v7064, %v7228
      %v7367 = vadd.f32 %v7065, %v7230
      %v7368 = vadd.f32 %v7066, %v7232
      %v7369 = vadd.f32 %v7007, %v7234
      %v7370 = vadd.f32 %v7067, %v7236
      %v7371 = vadd.f32 %v7068, %v7238
      %v7372 = vadd.f32 %v7069, %v7240
      %v7373 = vadd.f32 %v7008, %v7242
      %v7374 = vadd.f32 %v7070, %v7244
      %v7375 = vadd.f32 %v7071, %v7246
      %v7376 = vadd.f32 %v7072, %v7248
      %v7377 = vmul.f32 %v7313, 0.25
      %v7378 = vmul.f32 %v7314, 0.25
      %v7379 = vmul.f32 %v7315, 0.25
      %v7380 = vmul.f32 %v7316, 0.25
      %v7381 = vmul.f32 %v7317, 0.25
      %v7382 = vmul.f32 %v7318, 0.25
      %v7383 = vmul.f32 %v7319, 0.25
      %v7384 = vmul.f32 %v7320, 0.25
      %v7385 = vmul.f32 %v7321, 0.25
      %v7386 = vmul.f32 %v7322, 0.25
      %v7387 = vmul.f32 %v7323, 0.25
      %v7388 = vmul.f32 %v7324, 0.25
      %v7389 = vmul.f32 %v7325, 0.25
      %v7390 = vmul.f32 %v7326, 0.25
      %v7391 = vmul.f32 %v7327, 0.25
      %v7392 = vmul.f32 %v7328, 0.25
      %v7393 = vmul.f32 %v7329, 0.25
      %v7394 = vmul.f32 %v7330, 0.25
      %v7395 = vmul.f32 %v7331, 0.25
      %v7396 = vmul.f32 %v7332, 0.25
      %v7397 = vmul.f32 %v7333, 0.25
      %v7398 = vmul.f32 %v7334, 0.25
      %v7399 = vmul.f32 %v7335, 0.25
      %v7400 = vmul.f32 %v7336, 0.25
      %v7401 = vmul.f32 %v7337, 0.25
      %v7402 = vmul.f32 %v7338, 0.25
      %v7403 = vmul.f32 %v7339, 0.25
      %v7404 = vmul.f32 %v7340, 0.25
      %v7405 = vmul.f32 %v7341, 0.25
      %v7406 = vmul.f32 %v7342, 0.25
      %v7407 = vmul.f32 %v7343, 0.25
      %v7408 = vmul.f32 %v7344, 0.25
      %v7409 = vmul.f32 %v7345, 0.25
      %v7410 = vmul.f32 %v7346, 0.25
      %v7411 = vmul.f32 %v7347, 0.25
      %v7412 = vmul.f32 %v7348, 0.25
      %v7413 = vmul.f32 %v7349, 0.25
      %v7414 = vmul.f32 %v7350, 0.25
      %v7415 = vmul.f32 %v7351, 0.25
      %v7416 = vmul.f32 %v7352, 0.25
      %v7417 = vmul.f32 %v7353, 0.25
      %v7418 = vmul.f32 %v7354, 0.25
      %v7419 = vmul.f32 %v7355, 0.25
      %v7420 = vmul.f32 %v7356, 0.25
      %v7421 = vmul.f32 %v7357, 0.25
      %v7422 = vmul.f32 %v7358, 0.25
      %v7423 = vmul.f32 %v7359, 0.25
      %v7424 = vmul.f32 %v7360, 0.25
      %v7425 = vmul.f32 %v7361, 0.25
      %v7426 = vmul.f32 %v7362, 0.25
      %v7427 = vmul.f32 %v7363, 0.25
      %v7428 = vmul.f32 %v7364, 0.25
      %v7429 = vmul.f32 %v7365, 0.25
      %v7430 = vmul.f32 %v7366, 0.25
      %v7431 = vmul.f32 %v7367, 0.25
      %v7432 = vmul.f32 %v7368, 0.25
      %v7433 = vmul.f32 %v7369, 0.25
      %v7434 = vmul.f32 %v7370, 0.25
      %v7435 = vmul.f32 %v7371, 0.25
      %v7436 = vmul.f32 %v7372, 0.25
      %v7437 = vmul.f32 %v7373, 0.25
      %v7438 = vmul.f32 %v7374, 0.25
      %v7439 = vmul.f32 %v7375, 0.25
      %v7440 = vmul.f32 %v7376, 0.25
      %7441 = vst.msk [vmem:[#allocation6] sm:$0xf] %vm5995, 0
      %7442 = vst.msk [vmem:[#allocation6 + $0x4] sm:$0x1] %vm5997, 0
      %s7443 = scalar_lea.vmem [#allocation6], 72
      %7444 = vst.msk [vmem:[%s7443] sm:$0xf] %vm5995, 0
      %7445 = vst.msk [vmem:[%s7443 + $0x4] sm:$0x1] %vm5997, 0
      %s7446 = scalar_lea.vmem [#allocation6], 8
      %v7447 = vld [vmem:[%s7446] sm:$0x1]
      %v7448 = vsel %vm6004, 0, %v7447
      %7449 = vst [vmem:[%s7446] sm:$0x1] %v7448
      %v7450 = vld [vmem:[%s7446 + $0x8] sm:$0x1]
      %v7451 = vsel %vm6004, 0, %v7450
      %7452 = vst [vmem:[%s7446 + $0x8] sm:$0x1] %v7451
      %v7453 = vld [vmem:[%s7446 + $0x10] sm:$0x1]
      %v7454 = vsel %vm6004, 0, %v7453
      %7455 = vst [vmem:[%s7446 + $0x10] sm:$0x1] %v7454
      %v7456 = vld [vmem:[%s7446 + $0x18] sm:$0x1]
      %v7457 = vsel %vm6004, 0, %v7456
      %7458 = vst [vmem:[%s7446 + $0x18] sm:$0x1] %v7457
      %v7459 = vld [vmem:[%s7446 + $0x20] sm:$0x1]
      %v7460 = vsel %vm6004, 0, %v7459
      %7461 = vst [vmem:[%s7446 + $0x20] sm:$0x1] %v7460
      %v7462 = vld [vmem:[%s7446 + $0x28] sm:$0x1]
      %v7463 = vsel %vm6004, 0, %v7462
      %7464 = vst [vmem:[%s7446 + $0x28] sm:$0x1] %v7463
      %v7465 = vld [vmem:[%s7446 + $0x30] sm:$0x1]
      %v7466 = vsel %vm6004, 0, %v7465
      %7467 = vst [vmem:[%s7446 + $0x30] sm:$0x1] %v7466
      %v7468 = vld [vmem:[%s7446 + $0x38] sm:$0x1]
      %v7469 = vsel %vm6004, 0, %v7468
      %7470 = vst [vmem:[%s7446 + $0x38] sm:$0x1] %v7469
      %v7471 = vld [vmem:[%s7446 + $0x4] sm:$0x1]
      %v7472 = vsel %vm6029, 0, %v7471
      %7473 = vst [vmem:[%s7446 + $0x4] sm:$0x1] %v7472
      %v7474 = vld [vmem:[%s7446 + $0xc] sm:$0x1]
      %v7475 = vsel %vm6029, 0, %v7474
      %7476 = vst [vmem:[%s7446 + $0xc] sm:$0x1] %v7475
      %v7477 = vld [vmem:[%s7446 + $0x14] sm:$0x1]
      %v7478 = vsel %vm6029, 0, %v7477
      %7479 = vst [vmem:[%s7446 + $0x14] sm:$0x1] %v7478
      %v7480 = vld [vmem:[%s7446 + $0x1c] sm:$0x1]
      %v7481 = vsel %vm6029, 0, %v7480
      %7482 = vst [vmem:[%s7446 + $0x1c] sm:$0x1] %v7481
      %v7483 = vld [vmem:[%s7446 + $0x24] sm:$0x1]
      %v7484 = vsel %vm6029, 0, %v7483
      %7485 = vst [vmem:[%s7446 + $0x24] sm:$0x1] %v7484
      %v7486 = vld [vmem:[%s7446 + $0x2c] sm:$0x1]
      %v7487 = vsel %vm6029, 0, %v7486
      %7488 = vst [vmem:[%s7446 + $0x2c] sm:$0x1] %v7487
      %v7489 = vld [vmem:[%s7446 + $0x34] sm:$0x1]
      %v7490 = vsel %vm6029, 0, %v7489
      %7491 = vst [vmem:[%s7446 + $0x34] sm:$0x1] %v7490
      %v7492 = vld [vmem:[%s7446 + $0x3c] sm:$0x1]
      %v7493 = vsel %vm6029, 0, %v7492
      %7494 = vst [vmem:[%s7446 + $0x3c] sm:$0x1] %v7493
      %v7495 = vpack.c.bf16 %v7377, %v7377
      %v7496 = vpack.c.bf16 %v7378, %v7378
      %v7497 = vpack.c.bf16 %v7379, %v7379
      %v7498 = vpack.c.bf16 %v7380, %v7380
      %v7499 = vpack.c.bf16 %v7381, %v7381
      %v7500 = vpack.c.bf16 %v7382, %v7382
      %v7501 = vpack.c.bf16 %v7383, %v7383
      %v7502 = vpack.c.bf16 %v7384, %v7384
      %v7503 = vpack.c.bf16 %v7385, %v7385
      %v7504 = vpack.c.bf16 %v7386, %v7386
      %v7505 = vpack.c.bf16 %v7387, %v7387
      %v7506 = vpack.c.bf16 %v7388, %v7388
      %v7507 = vpack.c.bf16 %v7389, %v7389
      %v7508 = vpack.c.bf16 %v7390, %v7390
      %v7509 = vpack.c.bf16 %v7391, %v7391
      %v7510 = vpack.c.bf16 %v7392, %v7392
      %v7511 = vpack.c.bf16 %v7393, %v7393
      %v7512 = vpack.c.bf16 %v7394, %v7394
      %v7513 = vpack.c.bf16 %v7395, %v7395
      %v7514 = vpack.c.bf16 %v7396, %v7396
      %v7515 = vpack.c.bf16 %v7397, %v7397
      %v7516 = vpack.c.bf16 %v7398, %v7398
      %v7517 = vpack.c.bf16 %v7399, %v7399
      %v7518 = vpack.c.bf16 %v7400, %v7400
      %v7519 = vpack.c.bf16 %v7401, %v7401
      %v7520 = vpack.c.bf16 %v7402, %v7402
      %v7521 = vpack.c.bf16 %v7403, %v7403
      %v7522 = vpack.c.bf16 %v7404, %v7404
      %v7523 = vpack.c.bf16 %v7405, %v7405
      %v7524 = vpack.c.bf16 %v7406, %v7406
      %v7525 = vpack.c.bf16 %v7407, %v7407
      %v7526 = vpack.c.bf16 %v7408, %v7408
      %v7527 = vpack.c.bf16 %v7409, %v7409
      %v7528 = vpack.c.bf16 %v7410, %v7410
      %v7529 = vpack.c.bf16 %v7411, %v7411
      %v7530 = vpack.c.bf16 %v7412, %v7412
      %v7531 = vpack.c.bf16 %v7413, %v7413
      %v7532 = vpack.c.bf16 %v7414, %v7414
      %v7533 = vpack.c.bf16 %v7415, %v7415
      %v7534 = vpack.c.bf16 %v7416, %v7416
      %v7535 = vpack.c.bf16 %v7417, %v7417
      %v7536 = vpack.c.bf16 %v7418, %v7418
      %v7537 = vpack.c.bf16 %v7419, %v7419
      %v7538 = vpack.c.bf16 %v7420, %v7420
      %v7539 = vpack.c.bf16 %v7421, %v7421
      %v7540 = vpack.c.bf16 %v7422, %v7422
      %v7541 = vpack.c.bf16 %v7423, %v7423
      %v7542 = vpack.c.bf16 %v7424, %v7424
      %v7543 = vpack.c.bf16 %v7425, %v7425
      %v7544 = vpack.c.bf16 %v7426, %v7426
      %v7545 = vpack.c.bf16 %v7427, %v7427
      %v7546 = vpack.c.bf16 %v7428, %v7428
      %v7547 = vpack.c.bf16 %v7429, %v7429
      %v7548 = vpack.c.bf16 %v7430, %v7430
      %v7549 = vpack.c.bf16 %v7431, %v7431
      %v7550 = vpack.c.bf16 %v7432, %v7432
      %v7551 = vpack.c.bf16 %v7433, %v7433
      %v7552 = vpack.c.bf16 %v7434, %v7434
      %v7553 = vpack.c.bf16 %v7435, %v7435
      %v7554 = vpack.c.bf16 %v7436, %v7436
      %v7555 = vpack.c.bf16 %v7437, %v7437
      %v7556 = vpack.c.bf16 %v7438, %v7438
      %v7557 = vpack.c.bf16 %v7439, %v7439
      %v7558 = vpack.c.bf16 %v7440, %v7440
      %v7623 = vunpack.c.l.b16 %v7495
      %v7624 = vunpack.c.l.b16 %v7496
      %v7625 = vunpack.c.l.b16 %v7497
      %v7626 = vunpack.c.l.b16 %v7498
      %v7627 = vunpack.c.l.b16 %v7499
      %v7628 = vunpack.c.l.b16 %v7500
      %v7629 = vunpack.c.l.b16 %v7501
      %v7630 = vunpack.c.l.b16 %v7502
      %v7631 = vunpack.c.l.b16 %v7503
      %v7632 = vunpack.c.l.b16 %v7504
      %v7633 = vunpack.c.l.b16 %v7505
      %v7634 = vunpack.c.l.b16 %v7506
      %v7635 = vunpack.c.l.b16 %v7507
      %v7636 = vunpack.c.l.b16 %v7508
      %v7637 = vunpack.c.l.b16 %v7509
      %v7638 = vunpack.c.l.b16 %v7510
      %v7639 = vunpack.c.l.b16 %v7511
      %v7640 = vunpack.c.l.b16 %v7512
      %v7641 = vunpack.c.l.b16 %v7513
      %v7642 = vunpack.c.l.b16 %v7514
      %v7643 = vunpack.c.l.b16 %v7515
      %v7644 = vunpack.c.l.b16 %v7516
      %v7645 = vunpack.c.l.b16 %v7517
      %v7646 = vunpack.c.l.b16 %v7518
      %v7647 = vunpack.c.l.b16 %v7519
      %v7648 = vunpack.c.l.b16 %v7520
      %v7649 = vunpack.c.l.b16 %v7521
      %v7650 = vunpack.c.l.b16 %v7522
      %v7651 = vunpack.c.l.b16 %v7523
      %v7652 = vunpack.c.l.b16 %v7524
      %v7653 = vunpack.c.l.b16 %v7525
      %v7654 = vunpack.c.l.b16 %v7526
      %v7655 = vunpack.c.l.b16 %v7527
      %v7656 = vunpack.c.l.b16 %v7528
      %v7657 = vunpack.c.l.b16 %v7529
      %v7658 = vunpack.c.l.b16 %v7530
      %v7659 = vunpack.c.l.b16 %v7531
      %v7660 = vunpack.c.l.b16 %v7532
      %v7661 = vunpack.c.l.b16 %v7533
      %v7662 = vunpack.c.l.b16 %v7534
      %v7663 = vunpack.c.l.b16 %v7535
      %v7664 = vunpack.c.l.b16 %v7536
      %v7665 = vunpack.c.l.b16 %v7537
      %v7666 = vunpack.c.l.b16 %v7538
      %v7667 = vunpack.c.l.b16 %v7539
      %v7668 = vunpack.c.l.b16 %v7540
      %v7669 = vunpack.c.l.b16 %v7541
      %v7670 = vunpack.c.l.b16 %v7542
      %v7671 = vunpack.c.l.b16 %v7543
      %v7672 = vunpack.c.l.b16 %v7544
      %v7673 = vunpack.c.l.b16 %v7545
      %v7674 = vunpack.c.l.b16 %v7546
      %v7675 = vunpack.c.l.b16 %v7547
      %v7676 = vunpack.c.l.b16 %v7548
      %v7677 = vunpack.c.l.b16 %v7549
      %v7678 = vunpack.c.l.b16 %v7550
      %v7679 = vunpack.c.l.b16 %v7551
      %v7680 = vunpack.c.l.b16 %v7552
      %v7681 = vunpack.c.l.b16 %v7553
      %v7682 = vunpack.c.l.b16 %v7554
      %v7683 = vunpack.c.l.b16 %v7555
      %v7684 = vunpack.c.l.b16 %v7556
      %v7685 = vunpack.c.l.b16 %v7557
      %v7686 = vunpack.c.l.b16 %v7558
      %v7687 = vrot.slane %v7623, 7
      %v7688 = vrot.slane %v7624, 6
      %v7689 = vsel %vm479, %v7688, %v7687
      %v7690 = vrot.slane %v7625, 5
      %v7691 = vsel %vm483, %v7690, %v7689
      %v7692 = vrot.slane %v7626, 4
      %v7693 = vsel %vm4972, %v7692, %v7691
      %v7694 = vrot.slane %v7627, 3
      %v7695 = vsel %vm4975, %v7694, %v7693
      %v7696 = vrot.slane %v7628, 2
      %v7697 = vsel %vm4978, %v7696, %v7695
      %v7698 = vrot.slane %v7629, 1
      %v7699 = vsel %vm4981, %v7698, %v7697
      %v7700 = vrot.slane %v7631, 7
      %v7701 = vrot.slane %v7632, 6
      %v7702 = vsel %vm479, %v7701, %v7700
      %v7703 = vrot.slane %v7633, 5
      %v7704 = vsel %vm483, %v7703, %v7702
      %v7705 = vrot.slane %v7634, 4
      %v7706 = vsel %vm4972, %v7705, %v7704
      %v7707 = vrot.slane %v7635, 3
      %v7708 = vsel %vm4975, %v7707, %v7706
      %v7709 = vrot.slane %v7636, 2
      %v7710 = vsel %vm4978, %v7709, %v7708
      %v7711 = vrot.slane %v7637, 1
      %v7712 = vsel %vm4981, %v7711, %v7710
      %v7713 = vrot.slane %v7639, 7
      %v7714 = vrot.slane %v7640, 6
      %v7715 = vsel %vm479, %v7714, %v7713
      %v7716 = vrot.slane %v7641, 5
      %v7717 = vsel %vm483, %v7716, %v7715
      %v7718 = vrot.slane %v7642, 4
      %v7719 = vsel %vm4972, %v7718, %v7717
      %v7720 = vrot.slane %v7643, 3
      %v7721 = vsel %vm4975, %v7720, %v7719
      %v7722 = vrot.slane %v7644, 2
      %v7723 = vsel %vm4978, %v7722, %v7721
      %v7724 = vrot.slane %v7645, 1
      %v7725 = vsel %vm4981, %v7724, %v7723
      %v7726 = vrot.slane %v7647, 7
      %v7727 = vrot.slane %v7648, 6
      %v7728 = vsel %vm479, %v7727, %v7726
      %v7729 = vrot.slane %v7649, 5
      %v7730 = vsel %vm483, %v7729, %v7728
      %v7731 = vrot.slane %v7650, 4
      %v7732 = vsel %vm4972, %v7731, %v7730
      %v7733 = vrot.slane %v7651, 3
      %v7734 = vsel %vm4975, %v7733, %v7732
      %v7735 = vrot.slane %v7652, 2
      %v7736 = vsel %vm4978, %v7735, %v7734
      %v7737 = vrot.slane %v7653, 1
      %v7738 = vsel %vm4981, %v7737, %v7736
      %v7739 = vrot.slane %v7655, 7
      %v7740 = vrot.slane %v7656, 6
      %v7741 = vsel %vm479, %v7740, %v7739
      %v7742 = vrot.slane %v7657, 5
      %v7743 = vsel %vm483, %v7742, %v7741
      %v7744 = vrot.slane %v7658, 4
      %v7745 = vsel %vm4972, %v7744, %v7743
      %v7746 = vrot.slane %v7659, 3
      %v7747 = vsel %vm4975, %v7746, %v7745
      %v7748 = vrot.slane %v7660, 2
      %v7749 = vsel %vm4978, %v7748, %v7747
      %v7750 = vrot.slane %v7661, 1
      %v7751 = vsel %vm4981, %v7750, %v7749
      %v7752 = vrot.slane %v7663, 7
      %v7753 = vrot.slane %v7664, 6
      %v7754 = vsel %vm479, %v7753, %v7752
      %v7755 = vrot.slane %v7665, 5
      %v7756 = vsel %vm483, %v7755, %v7754
      %v7757 = vrot.slane %v7666, 4
      %v7758 = vsel %vm4972, %v7757, %v7756
      %v7759 = vrot.slane %v7667, 3
      %v7760 = vsel %vm4975, %v7759, %v7758
      %v7761 = vrot.slane %v7668, 2
      %v7762 = vsel %vm4978, %v7761, %v7760
      %v7763 = vrot.slane %v7669, 1
      %v7764 = vsel %vm4981, %v7763, %v7762
      %v7765 = vrot.slane %v7671, 7
      %v7766 = vrot.slane %v7672, 6
      %v7767 = vsel %vm479, %v7766, %v7765
      %v7768 = vrot.slane %v7673, 5
      %v7769 = vsel %vm483, %v7768, %v7767
      %v7770 = vrot.slane %v7674, 4
      %v7771 = vsel %vm4972, %v7770, %v7769
      %v7772 = vrot.slane %v7675, 3
      %v7773 = vsel %vm4975, %v7772, %v7771
      %v7774 = vrot.slane %v7676, 2
      %v7775 = vsel %vm4978, %v7774, %v7773
      %v7776 = vrot.slane %v7677, 1
      %v7777 = vsel %vm4981, %v7776, %v7775
      %v7778 = vrot.slane %v7679, 7
      %v7779 = vrot.slane %v7680, 6
      %v7780 = vsel %vm479, %v7779, %v7778
      %v7781 = vrot.slane %v7681, 5
      %v7782 = vsel %vm483, %v7781, %v7780
      %v7783 = vrot.slane %v7682, 4
      %v7784 = vsel %vm4972, %v7783, %v7782
      %v7785 = vrot.slane %v7683, 3
      %v7786 = vsel %vm4975, %v7785, %v7784
      %v7787 = vrot.slane %v7684, 2
      %v7788 = vsel %vm4978, %v7787, %v7786
      %v7789 = vrot.slane %v7685, 1
      %v7790 = vsel %vm4981, %v7789, %v7788
      %v7791 = vpack.c.b16 %v7699, %v7699
      %v7792 = vpack.c.b16 %v7630, %v7630
      %v7793 = vpack.c.b16 %v7712, %v7712
      %v7794 = vpack.c.b16 %v7638, %v7638
      %v7795 = vpack.c.b16 %v7725, %v7725
      %v7796 = vpack.c.b16 %v7646, %v7646
      %v7797 = vpack.c.b16 %v7738, %v7738
      %v7798 = vpack.c.b16 %v7654, %v7654
      %v7799 = vpack.c.b16 %v7751, %v7751
      %v7800 = vpack.c.b16 %v7662, %v7662
      %v7801 = vpack.c.b16 %v7764, %v7764
      %v7802 = vpack.c.b16 %v7670, %v7670
      %v7803 = vpack.c.b16 %v7777, %v7777
      %v7804 = vpack.c.b16 %v7678, %v7678
      %v7805 = vpack.c.b16 %v7790, %v7790
      %v7806 = vpack.c.b16 %v7686, %v7686
      %v7823 = vld [vmem:[%s7446] sm:$0xf]
      %v7824 = vsel %vm6143, %v7791, %v7823
      %7825 = vst [vmem:[%s7446] sm:$0xf] %v7824
      %v7826 = vld [vmem:[%s7446 + $0x4] sm:$0x1]
      %v7827 = vsel %vm6004, %v7792, %v7826
      %7828 = vst [vmem:[%s7446 + $0x4] sm:$0x1] %v7827
      %v7829 = vld [vmem:[%s7446 + $0x8] sm:$0xf]
      %v7830 = vsel %vm6143, %v7793, %v7829
      %7831 = vst [vmem:[%s7446 + $0x8] sm:$0xf] %v7830
      %v7832 = vld [vmem:[%s7446 + $0xc] sm:$0x1]
      %v7833 = vsel %vm6004, %v7794, %v7832
      %7834 = vst [vmem:[%s7446 + $0xc] sm:$0x1] %v7833
      %v7835 = vld [vmem:[%s7446 + $0x10] sm:$0xf]
      %v7836 = vsel %vm6143, %v7795, %v7835
      %7837 = vst [vmem:[%s7446 + $0x10] sm:$0xf] %v7836
      %v7838 = vld [vmem:[%s7446 + $0x14] sm:$0x1]
      %v7839 = vsel %vm6004, %v7796, %v7838
      %7840 = vst [vmem:[%s7446 + $0x14] sm:$0x1] %v7839
      %v7841 = vld [vmem:[%s7446 + $0x18] sm:$0xf]
      %v7842 = vsel %vm6143, %v7797, %v7841
      %7843 = vst [vmem:[%s7446 + $0x18] sm:$0xf] %v7842
      %v7844 = vld [vmem:[%s7446 + $0x1c] sm:$0x1]
      %v7845 = vsel %vm6004, %v7798, %v7844
      %7846 = vst [vmem:[%s7446 + $0x1c] sm:$0x1] %v7845
      %v7847 = vld [vmem:[%s7446 + $0x20] sm:$0xf]
      %v7848 = vsel %vm6143, %v7799, %v7847
      %7849 = vst [vmem:[%s7446 + $0x20] sm:$0xf] %v7848
      %v7850 = vld [vmem:[%s7446 + $0x24] sm:$0x1]
      %v7851 = vsel %vm6004, %v7800, %v7850
      %7852 = vst [vmem:[%s7446 + $0x24] sm:$0x1] %v7851
      %v7853 = vld [vmem:[%s7446 + $0x28] sm:$0xf]
      %v7854 = vsel %vm6143, %v7801, %v7853
      %7855 = vst [vmem:[%s7446 + $0x28] sm:$0xf] %v7854
      %v7856 = vld [vmem:[%s7446 + $0x2c] sm:$0x1]
      %v7857 = vsel %vm6004, %v7802, %v7856
      %7858 = vst [vmem:[%s7446 + $0x2c] sm:$0x1] %v7857
      %v7859 = vld [vmem:[%s7446 + $0x30] sm:$0xf]
      %v7860 = vsel %vm6143, %v7803, %v7859
      %7861 = vst [vmem:[%s7446 + $0x30] sm:$0xf] %v7860
      %v7862 = vld [vmem:[%s7446 + $0x34] sm:$0x1]
      %v7863 = vsel %vm6004, %v7804, %v7862
      %7864 = vst [vmem:[%s7446 + $0x34] sm:$0x1] %v7863
      %v7865 = vld [vmem:[%s7446 + $0x38] sm:$0xf]
      %v7866 = vsel %vm6143, %v7805, %v7865
      %7867 = vst [vmem:[%s7446 + $0x38] sm:$0xf] %v7866
      %v7868 = vld [vmem:[%s7446 + $0x3c] sm:$0x1]
      %v7869 = vsel %vm6004, %v7806, %v7868
      %7870 = vst [vmem:[%s7446 + $0x3c] sm:$0x1] %v7869
      %v7871 = vld [vmem:[#allocation6] sm:$0xf]
      %v7872 = vld [vmem:[#allocation6 + $0x4] sm:$0x1]
      %v7873 = vld [vmem:[#allocation6 + $0x8] sm:$0xf]
      %v7874 = vld [vmem:[#allocation6 + $0xc] sm:$0x1]
      %v7875 = vld [vmem:[#allocation6 + $0x10] sm:$0xf]
      %v7876 = vld [vmem:[#allocation6 + $0x14] sm:$0x1]
      %v7877 = vld [vmem:[#allocation6 + $0x18] sm:$0xf]
      %v7878 = vld [vmem:[#allocation6 + $0x1c] sm:$0x1]
      %v7879 = vld [vmem:[#allocation6 + $0x20] sm:$0xf]
      %v7880 = vld [vmem:[#allocation6 + $0x24] sm:$0x1]
      %v7881 = vld [vmem:[#allocation6 + $0x28] sm:$0xf]
      %v7882 = vld [vmem:[#allocation6 + $0x2c] sm:$0x1]
      %v7883 = vld [vmem:[#allocation6 + $0x30] sm:$0xf]
      %v7884 = vld [vmem:[#allocation6 + $0x34] sm:$0x1]
      %v7885 = vld [vmem:[#allocation6 + $0x38] sm:$0xf]
      %v7886 = vld [vmem:[#allocation6 + $0x3c] sm:$0x1]
      %v7903 = vunpack.c.l.b16 %v7871
      %v7904 = vunpack.c.l.b16 %v7872
      %v7905 = vunpack.c.l.b16 %v7873
      %v7906 = vunpack.c.l.b16 %v7874
      %v7907 = vunpack.c.l.b16 %v7875
      %v7908 = vunpack.c.l.b16 %v7876
      %v7909 = vunpack.c.l.b16 %v7877
      %v7910 = vunpack.c.l.b16 %v7878
      %v7911 = vunpack.c.l.b16 %v7879
      %v7912 = vunpack.c.l.b16 %v7880
      %v7913 = vunpack.c.l.b16 %v7881
      %v7914 = vunpack.c.l.b16 %v7882
      %v7915 = vunpack.c.l.b16 %v7883
      %v7916 = vunpack.c.l.b16 %v7884
      %v7917 = vunpack.c.l.b16 %v7885
      %v7918 = vunpack.c.l.b16 %v7886
      %v7919 = vpack.c.b16 %v7904, %v7903
      %v7920 = vpack.c.b16 %v7906, %v7905
      %v7921 = vpack.c.b16 %v7908, %v7907
      %v7922 = vpack.c.b16 %v7910, %v7909
      %v7923 = vpack.c.b16 %v7912, %v7911
      %v7924 = vpack.c.b16 %v7914, %v7913
      %v7925 = vpack.c.b16 %v7916, %v7915
      %v7926 = vpack.c.b16 %v7918, %v7917
      %v7928 = vshrl.u32 %v7919, 16
      %v7930 = vshll.u32 %v7919, 16
      %v7932 = vrot.slane %v7930, 1
      %v7933 = vor.u32 %v7928, %v7932
      %v7935 = vshrl.u32 %v7920, 16
      %v7937 = vshll.u32 %v7920, 16
      %v7939 = vrot.slane %v7937, 1
      %v7940 = vor.u32 %v7935, %v7939
      %v7942 = vshrl.u32 %v7921, 16
      %v7944 = vshll.u32 %v7921, 16
      %v7946 = vrot.slane %v7944, 1
      %v7947 = vor.u32 %v7942, %v7946
      %v7949 = vshrl.u32 %v7922, 16
      %v7951 = vshll.u32 %v7922, 16
      %v7953 = vrot.slane %v7951, 1
      %v7954 = vor.u32 %v7949, %v7953
      %v7956 = vshrl.u32 %v7923, 16
      %v7958 = vshll.u32 %v7923, 16
      %v7960 = vrot.slane %v7958, 1
      %v7961 = vor.u32 %v7956, %v7960
      %v7963 = vshrl.u32 %v7924, 16
      %v7965 = vshll.u32 %v7924, 16
      %v7967 = vrot.slane %v7965, 1
      %v7968 = vor.u32 %v7963, %v7967
      %v7970 = vshrl.u32 %v7925, 16
      %v7972 = vshll.u32 %v7925, 16
      %v7974 = vrot.slane %v7972, 1
      %v7975 = vor.u32 %v7970, %v7974
      %v7977 = vshrl.u32 %v7926, 16
      %v7979 = vshll.u32 %v7926, 16
      %v7981 = vrot.slane %v7979, 1
      %v7982 = vor.u32 %v7977, %v7981
      %7983 = vrot.lane.b32.xlu0 %v7933, 4
      %v7984 = vpop.permute.xlu0 %7983
      %7985 = vrot.lane.b32.xlu0 %v7940, 4
      %v7986 = vpop.permute.xlu0 %7985
      %7987 = vrot.lane.b32.xlu0 %v7947, 4
      %v7988 = vpop.permute.xlu0 %7987
      %7989 = vrot.lane.b32.xlu0 %v7954, 4
      %v7990 = vpop.permute.xlu0 %7989
      %7991 = vrot.lane.b32.xlu0 %v7961, 4
      %v7992 = vpop.permute.xlu0 %7991
      %7993 = vrot.lane.b32.xlu0 %v7968, 4
      %v7994 = vpop.permute.xlu0 %7993
      %7995 = vrot.lane.b32.xlu0 %v7975, 4
      %v7996 = vpop.permute.xlu0 %7995
      %7997 = vrot.lane.b32.xlu0 %v7982, 4
      %v7998 = vpop.permute.xlu0 %7997
      %v7999 = vrot.slane %v7919, 1
      %v8000 = vrot.slane %v7920, 1
      %v8001 = vrot.slane %v7921, 1
      %v8002 = vrot.slane %v7922, 1
      %v8003 = vrot.slane %v7923, 1
      %v8004 = vrot.slane %v7924, 1
      %v8005 = vrot.slane %v7925, 1
      %v8006 = vrot.slane %v7926, 1
      %8007 = vrot.lane.b32.xlu0 %v7999, 8
      %v8008 = vpop.permute.xlu0 %8007
      %8009 = vrot.lane.b32.xlu0 %v8000, 8
      %v8010 = vpop.permute.xlu0 %8009
      %8011 = vrot.lane.b32.xlu0 %v8001, 8
      %v8012 = vpop.permute.xlu0 %8011
      %8013 = vrot.lane.b32.xlu0 %v8002, 8
      %v8014 = vpop.permute.xlu0 %8013
      %8015 = vrot.lane.b32.xlu0 %v8003, 8
      %v8016 = vpop.permute.xlu0 %8015
      %8017 = vrot.lane.b32.xlu0 %v8004, 8
      %v8018 = vpop.permute.xlu0 %8017
      %8019 = vrot.lane.b32.xlu0 %v8005, 8
      %v8020 = vpop.permute.xlu0 %8019
      %8021 = vrot.lane.b32.xlu0 %v8006, 8
      %v8022 = vpop.permute.xlu0 %8021
      %v8025 = vsel %vm1385, %v7871, %v7984
      %v8028 = vsel %vm1385, %v7873, %v7986
      %v8031 = vsel %vm1385, %v7875, %v7988
      %v8034 = vsel %vm1385, %v7877, %v7990
      %v8037 = vsel %vm1385, %v7879, %v7992
      %v8040 = vsel %vm1385, %v7881, %v7994
      %v8043 = vsel %vm1385, %v7883, %v7996
      %v8046 = vsel %vm1385, %v7885, %v7998
      %v8048 = vsel %vm2543, %v8025, %v8008
      %v8050 = vsel %vm2543, %v8028, %v8010
      %v8052 = vsel %vm2543, %v8031, %v8012
      %v8054 = vsel %vm2543, %v8034, %v8014
      %v8056 = vsel %vm2543, %v8037, %v8016
      %v8058 = vsel %vm2543, %v8040, %v8018
      %v8060 = vsel %vm2543, %v8043, %v8020
      %v8062 = vsel %vm2543, %v8046, %v8022
      %v8063 = vld [vmem:[%s6] sm:$0xf]
      %v8064 = vld [vmem:[%s6 + $0x4] sm:$0x3]
      %v8073 = vunpack.c.l.b16 %v8048
      %v8074 = vunpack.c.l.b16 %v8050
      %v8075 = vunpack.c.l.b16 %v8052
      %v8076 = vunpack.c.l.b16 %v8054
      %v8077 = vunpack.c.l.b16 %v8056
      %v8078 = vunpack.c.l.b16 %v8058
      %v8079 = vunpack.c.l.b16 %v8060
      %v8080 = vunpack.c.l.b16 %v8062
      %v8081 = vpack.c.b16 %v8074, %v8073
      %v8082 = vpack.c.b16 %v8076, %v8075
      %v8083 = vpack.c.b16 %v8078, %v8077
      %v8084 = vpack.c.b16 %v8080, %v8079
      %v8087 = vunpack.c.l.b16 %v8063
      %v8088 = vunpack.c.l.b16 %v8064
      %v8089 = vpack.c.b16 %v8088, %v8087
      %v8091 = vsel %vm6606, %v8081, 0
      %v8094 = vsel %vm6606, %v8082, 0
      %v8097 = vsel %vm6606, %v8083, 0
      %v8100 = vsel %vm6606, %v8084, 0
      %v8103 = vsel %vm6619, %v8089, 0
      %8105 = vmatpush.bf16.msra.mxu0 0
      %8106 = vmatpush.bf16.msra.mxu0 0
      %8107 = vmatpush.bf16.msra.mxu0 0
      %8108 = vmatpush.bf16.msra.mxu0 0
      %8109 = vmatpush.bf16.msra.mxu0 0
      %8110 = vmatpush.bf16.msra.mxu0 0
      %8111 = vmatpush.bf16.msra.mxu0 0
      %8112 = vmatpush.bf16.msra.mxu0 %v8103
      %8113 = vmatmul.bf16.gmra.mxu0 %v8091
      %v8114 = vpop.f32.mrf.mxu0
      %v8115 = vadd.f32 0.0, %v8114
      %v8116 = vpop.f32.mrf.mxu0
      %v8117 = vadd.f32 0.0, %v8116
      %8118 = vmatmul.bf16.gmra.mxu0 %v8094
      %v8119 = vpop.f32.mrf.mxu0
      %v8120 = vadd.f32 0.0, %v8119
      %v8121 = vpop.f32.mrf.mxu0
      %v8122 = vadd.f32 0.0, %v8121
      %8123 = vmatmul.bf16.gmra.mxu0 %v8097
      %v8124 = vpop.f32.mrf.mxu0
      %v8125 = vadd.f32 0.0, %v8124
      %v8126 = vpop.f32.mrf.mxu0
      %v8127 = vadd.f32 0.0, %v8126
      %8128 = vmatmul.bf16.gmra.mxu0 %v8100
      %v8129 = vpop.f32.mrf.mxu0
      %v8130 = vadd.f32 0.0, %v8129
      %v8131 = vpop.f32.mrf.mxu0
      %v8132 = vadd.f32 0.0, %v8131
      %8133 = vdwg.mxu0
      %8142 = vrot.lane.b32.xlu0 %v8115, 4
      %v8143 = vpop.permute.xlu0 %8142
      %8144 = vrot.lane.b32.xlu0 %v8117, 4
      %v8145 = vpop.permute.xlu0 %8144
      %8146 = vrot.lane.b32.xlu0 %v8120, 4
      %v8147 = vpop.permute.xlu0 %8146
      %8148 = vrot.lane.b32.xlu0 %v8122, 4
      %v8149 = vpop.permute.xlu0 %8148
      %8150 = vrot.lane.b32.xlu0 %v8125, 4
      %v8151 = vpop.permute.xlu0 %8150
      %8152 = vrot.lane.b32.xlu0 %v8127, 4
      %v8153 = vpop.permute.xlu0 %8152
      %8154 = vrot.lane.b32.xlu0 %v8130, 4
      %v8155 = vpop.permute.xlu0 %8154
      %8156 = vrot.lane.b32.xlu0 %v8132, 4
      %v8157 = vpop.permute.xlu0 %8156
      %v8166 = vadd.f32 %v6985, %v8143
      %v8167 = vadd.f32 %v6986, %v8145
      %v8168 = vadd.f32 %v6987, %v8147
      %v8169 = vadd.f32 %v6988, %v8149
      %v8170 = vadd.f32 %v6989, %v8151
      %v8171 = vadd.f32 %v6990, %v8153
      %v8172 = vadd.f32 %v6991, %v8155
      %v8173 = vadd.f32 %v6992, %v8157
      %v8174 = vld [vmem:[%s7446] sm:$0xf]
      %v8175 = vld [vmem:[%s7446 + $0x4] sm:$0x1]
      %v8176 = vld [vmem:[%s7446 + $0x8] sm:$0xf]
      %v8177 = vld [vmem:[%s7446 + $0xc] sm:$0x1]
      %v8178 = vld [vmem:[%s7446 + $0x10] sm:$0xf]
      %v8179 = vld [vmem:[%s7446 + $0x14] sm:$0x1]
      %v8180 = vld [vmem:[%s7446 + $0x18] sm:$0xf]
      %v8181 = vld [vmem:[%s7446 + $0x1c] sm:$0x1]
      %v8182 = vld [vmem:[%s7446 + $0x20] sm:$0xf]
      %v8183 = vld [vmem:[%s7446 + $0x24] sm:$0x1]
      %v8184 = vld [vmem:[%s7446 + $0x28] sm:$0xf]
      %v8185 = vld [vmem:[%s7446 + $0x2c] sm:$0x1]
      %v8186 = vld [vmem:[%s7446 + $0x30] sm:$0xf]
      %v8187 = vld [vmem:[%s7446 + $0x34] sm:$0x1]
      %v8188 = vld [vmem:[%s7446 + $0x38] sm:$0xf]
      %v8189 = vld [vmem:[%s7446 + $0x3c] sm:$0x1]
      %v8206 = vunpack.c.l.b16 %v8174
      %v8207 = vunpack.c.l.b16 %v8175
      %v8208 = vunpack.c.l.b16 %v8176
      %v8209 = vunpack.c.l.b16 %v8177
      %v8210 = vunpack.c.l.b16 %v8178
      %v8211 = vunpack.c.l.b16 %v8179
      %v8212 = vunpack.c.l.b16 %v8180
      %v8213 = vunpack.c.l.b16 %v8181
      %v8214 = vunpack.c.l.b16 %v8182
      %v8215 = vunpack.c.l.b16 %v8183
      %v8216 = vunpack.c.l.b16 %v8184
      %v8217 = vunpack.c.l.b16 %v8185
      %v8218 = vunpack.c.l.b16 %v8186
      %v8219 = vunpack.c.l.b16 %v8187
      %v8220 = vunpack.c.l.b16 %v8188
      %v8221 = vunpack.c.l.b16 %v8189
      %v8222 = vpack.c.b16 %v8207, %v8206
      %v8223 = vpack.c.b16 %v8209, %v8208
      %v8224 = vpack.c.b16 %v8211, %v8210
      %v8225 = vpack.c.b16 %v8213, %v8212
      %v8226 = vpack.c.b16 %v8215, %v8214
      %v8227 = vpack.c.b16 %v8217, %v8216
      %v8228 = vpack.c.b16 %v8219, %v8218
      %v8229 = vpack.c.b16 %v8221, %v8220
      %v8231 = vshrl.u32 %v8222, 16
      %v8233 = vshll.u32 %v8222, 16
      %v8235 = vrot.slane %v8233, 1
      %v8236 = vor.u32 %v8231, %v8235
      %v8238 = vshrl.u32 %v8223, 16
      %v8240 = vshll.u32 %v8223, 16
      %v8242 = vrot.slane %v8240, 1
      %v8243 = vor.u32 %v8238, %v8242
      %v8245 = vshrl.u32 %v8224, 16
      %v8247 = vshll.u32 %v8224, 16
      %v8249 = vrot.slane %v8247, 1
      %v8250 = vor.u32 %v8245, %v8249
      %v8252 = vshrl.u32 %v8225, 16
      %v8254 = vshll.u32 %v8225, 16
      %v8256 = vrot.slane %v8254, 1
      %v8257 = vor.u32 %v8252, %v8256
      %v8259 = vshrl.u32 %v8226, 16
      %v8261 = vshll.u32 %v8226, 16
      %v8263 = vrot.slane %v8261, 1
      %v8264 = vor.u32 %v8259, %v8263
      %v8266 = vshrl.u32 %v8227, 16
      %v8268 = vshll.u32 %v8227, 16
      %v8270 = vrot.slane %v8268, 1
      %v8271 = vor.u32 %v8266, %v8270
      %v8273 = vshrl.u32 %v8228, 16
      %v8275 = vshll.u32 %v8228, 16
      %v8277 = vrot.slane %v8275, 1
      %v8278 = vor.u32 %v8273, %v8277
      %v8280 = vshrl.u32 %v8229, 16
      %v8282 = vshll.u32 %v8229, 16
      %v8284 = vrot.slane %v8282, 1
      %v8285 = vor.u32 %v8280, %v8284
      %8286 = vrot.lane.b32.xlu0 %v8236, 4
      %v8287 = vpop.permute.xlu0 %8286
      %8288 = vrot.lane.b32.xlu0 %v8243, 4
      %v8289 = vpop.permute.xlu0 %8288
      %8290 = vrot.lane.b32.xlu0 %v8250, 4
      %v8291 = vpop.permute.xlu0 %8290
      %8292 = vrot.lane.b32.xlu0 %v8257, 4
      %v8293 = vpop.permute.xlu0 %8292
      %8294 = vrot.lane.b32.xlu0 %v8264, 4
      %v8295 = vpop.permute.xlu0 %8294
      %8296 = vrot.lane.b32.xlu0 %v8271, 4
      %v8297 = vpop.permute.xlu0 %8296
      %8298 = vrot.lane.b32.xlu0 %v8278, 4
      %v8299 = vpop.permute.xlu0 %8298
      %8300 = vrot.lane.b32.xlu0 %v8285, 4
      %v8301 = vpop.permute.xlu0 %8300
      %v8302 = vrot.slane %v8222, 1
      %v8303 = vrot.slane %v8223, 1
      %v8304 = vrot.slane %v8224, 1
      %v8305 = vrot.slane %v8225, 1
      %v8306 = vrot.slane %v8226, 1
      %v8307 = vrot.slane %v8227, 1
      %v8308 = vrot.slane %v8228, 1
      %v8309 = vrot.slane %v8229, 1
      %8310 = vrot.lane.b32.xlu0 %v8302, 8
      %v8311 = vpop.permute.xlu0 %8310
      %8312 = vrot.lane.b32.xlu0 %v8303, 8
      %v8313 = vpop.permute.xlu0 %8312
      %8314 = vrot.lane.b32.xlu0 %v8304, 8
      %v8315 = vpop.permute.xlu0 %8314
      %8316 = vrot.lane.b32.xlu0 %v8305, 8
      %v8317 = vpop.permute.xlu0 %8316
      %8318 = vrot.lane.b32.xlu0 %v8306, 8
      %v8319 = vpop.permute.xlu0 %8318
      %8320 = vrot.lane.b32.xlu0 %v8307, 8
      %v8321 = vpop.permute.xlu0 %8320
      %8322 = vrot.lane.b32.xlu0 %v8308, 8
      %v8323 = vpop.permute.xlu0 %8322
      %8324 = vrot.lane.b32.xlu0 %v8309, 8
      %v8325 = vpop.permute.xlu0 %8324
      %v8328 = vsel %vm1385, %v8174, %v8287
      %v8331 = vsel %vm1385, %v8176, %v8289
      %v8334 = vsel %vm1385, %v8178, %v8291
      %v8337 = vsel %vm1385, %v8180, %v8293
      %v8340 = vsel %vm1385, %v8182, %v8295
      %v8343 = vsel %vm1385, %v8184, %v8297
      %v8346 = vsel %vm1385, %v8186, %v8299
      %v8349 = vsel %vm1385, %v8188, %v8301
      %v8351 = vsel %vm2543, %v8328, %v8311
      %v8353 = vsel %vm2543, %v8331, %v8313
      %v8355 = vsel %vm2543, %v8334, %v8315
      %v8357 = vsel %vm2543, %v8337, %v8317
      %v8359 = vsel %vm2543, %v8340, %v8319
      %v8361 = vsel %vm2543, %v8343, %v8321
      %v8363 = vsel %vm2543, %v8346, %v8323
      %v8365 = vsel %vm2543, %v8349, %v8325
      %v8366 = vld [vmem:[%s6 + $0x4] sm:$0xc]
      %v8367 = vld [vmem:[%s6 + $0x8] sm:$0xf]
      %v8376 = vunpack.c.l.b16 %v8351
      %v8377 = vunpack.c.l.b16 %v8353
      %v8378 = vunpack.c.l.b16 %v8355
      %v8379 = vunpack.c.l.b16 %v8357
      %v8380 = vunpack.c.l.b16 %v8359
      %v8381 = vunpack.c.l.b16 %v8361
      %v8382 = vunpack.c.l.b16 %v8363
      %v8383 = vunpack.c.l.b16 %v8365
      %v8384 = vpack.c.b16 %v8377, %v8376
      %v8385 = vpack.c.b16 %v8379, %v8378
      %v8386 = vpack.c.b16 %v8381, %v8380
      %v8387 = vpack.c.b16 %v8383, %v8382
      %v8390 = vunpack.c.l.b16 %v8366
      %v8391 = vunpack.c.l.b16 %v8367
      %v8392 = vpack.c.b16 %v8391, %v8390
      %v8393 = vrot.slane %v8392, 2
      %v8395 = vsel %vm6606, %v8384, 0
      %v8398 = vsel %vm6606, %v8385, 0
      %v8401 = vsel %vm6606, %v8386, 0
      %v8404 = vsel %vm6606, %v8387, 0
      %v8407 = vsel %vm6619, %v8393, 0
      %8409 = vmatpush.bf16.msra.mxu0 0
      %8410 = vmatpush.bf16.msra.mxu0 0
      %8411 = vmatpush.bf16.msra.mxu0 0
      %8412 = vmatpush.bf16.msra.mxu0 0
      %8413 = vmatpush.bf16.msra.mxu0 0
      %8414 = vmatpush.bf16.msra.mxu0 0
      %8415 = vmatpush.bf16.msra.mxu0 0
      %8416 = vmatpush.bf16.msra.mxu0 %v8407
      %8417 = vmatmul.bf16.gmra.mxu0 %v8395
      %v8418 = vpop.f32.mrf.mxu0
      %v8419 = vadd.f32 0.0, %v8418
      %v8420 = vpop.f32.mrf.mxu0
      %v8421 = vadd.f32 0.0, %v8420
      %8422 = vmatmul.bf16.gmra.mxu0 %v8398
      %v8423 = vpop.f32.mrf.mxu0
      %v8424 = vadd.f32 0.0, %v8423
      %v8425 = vpop.f32.mrf.mxu0
      %v8426 = vadd.f32 0.0, %v8425
      %8427 = vmatmul.bf16.gmra.mxu0 %v8401
      %v8428 = vpop.f32.mrf.mxu0
      %v8429 = vadd.f32 0.0, %v8428
      %v8430 = vpop.f32.mrf.mxu0
      %v8431 = vadd.f32 0.0, %v8430
      %8432 = vmatmul.bf16.gmra.mxu0 %v8404
      %v8433 = vpop.f32.mrf.mxu0
      %v8434 = vadd.f32 0.0, %v8433
      %v8435 = vpop.f32.mrf.mxu0
      %v8436 = vadd.f32 0.0, %v8435
      %8437 = vdwg.mxu0
      %8446 = vrot.lane.b32.xlu0 %v8419, 4
      %v8447 = vpop.permute.xlu0 %8446
      %8448 = vrot.lane.b32.xlu0 %v8421, 4
      %v8449 = vpop.permute.xlu0 %8448
      %8450 = vrot.lane.b32.xlu0 %v8424, 4
      %v8451 = vpop.permute.xlu0 %8450
      %8452 = vrot.lane.b32.xlu0 %v8426, 4
      %v8453 = vpop.permute.xlu0 %8452
      %8454 = vrot.lane.b32.xlu0 %v8429, 4
      %v8455 = vpop.permute.xlu0 %8454
      %8456 = vrot.lane.b32.xlu0 %v8431, 4
      %v8457 = vpop.permute.xlu0 %8456
      %8458 = vrot.lane.b32.xlu0 %v8434, 4
      %v8459 = vpop.permute.xlu0 %8458
      %8460 = vrot.lane.b32.xlu0 %v8436, 4
      %v8461 = vpop.permute.xlu0 %8460
      %v8470 = vadd.f32 %v8166, %v8447
      %v8471 = vadd.f32 %v8167, %v8449
      %v8472 = vadd.f32 %v8168, %v8451
      %v8473 = vadd.f32 %v8169, %v8453
      %v8474 = vadd.f32 %v8170, %v8455
      %v8475 = vadd.f32 %v8171, %v8457
      %v8476 = vadd.f32 %v8172, %v8459
      %v8477 = vadd.f32 %v8173, %v8461
      %s8478 = scalar_lea.vmem [#allocation6], 16
      %v8479 = vld [vmem:[%s8478] sm:$0xf]
      %v8480 = vld [vmem:[%s8478 + $0x4] sm:$0x1]
      %v8481 = vld [vmem:[%s8478 + $0x8] sm:$0xf]
      %v8482 = vld [vmem:[%s8478 + $0xc] sm:$0x1]
      %v8483 = vld [vmem:[%s8478 + $0x10] sm:$0xf]
      %v8484 = vld [vmem:[%s8478 + $0x14] sm:$0x1]
      %v8485 = vld [vmem:[%s8478 + $0x18] sm:$0xf]
      %v8486 = vld [vmem:[%s8478 + $0x1c] sm:$0x1]
      %v8487 = vld [vmem:[%s8478 + $0x20] sm:$0xf]
      %v8488 = vld [vmem:[%s8478 + $0x24] sm:$0x1]
      %v8489 = vld [vmem:[%s8478 + $0x28] sm:$0xf]
      %v8490 = vld [vmem:[%s8478 + $0x2c] sm:$0x1]
      %v8491 = vld [vmem:[%s8478 + $0x30] sm:$0xf]
      %v8492 = vld [vmem:[%s8478 + $0x34] sm:$0x1]
      %v8493 = vld [vmem:[%s8478 + $0x38] sm:$0xf]
      %v8494 = vld [vmem:[%s8478 + $0x3c] sm:$0x1]
      %v8511 = vunpack.c.l.b16 %v8479
      %v8512 = vunpack.c.l.b16 %v8480
      %v8513 = vunpack.c.l.b16 %v8481
      %v8514 = vunpack.c.l.b16 %v8482
      %v8515 = vunpack.c.l.b16 %v8483
      %v8516 = vunpack.c.l.b16 %v8484
      %v8517 = vunpack.c.l.b16 %v8485
      %v8518 = vunpack.c.l.b16 %v8486
      %v8519 = vunpack.c.l.b16 %v8487
      %v8520 = vunpack.c.l.b16 %v8488
      %v8521 = vunpack.c.l.b16 %v8489
      %v8522 = vunpack.c.l.b16 %v8490
      %v8523 = vunpack.c.l.b16 %v8491
      %v8524 = vunpack.c.l.b16 %v8492
      %v8525 = vunpack.c.l.b16 %v8493
      %v8526 = vunpack.c.l.b16 %v8494
      %v8527 = vpack.c.b16 %v8512, %v8511
      %v8528 = vpack.c.b16 %v8514, %v8513
      %v8529 = vpack.c.b16 %v8516, %v8515
      %v8530 = vpack.c.b16 %v8518, %v8517
      %v8531 = vpack.c.b16 %v8520, %v8519
      %v8532 = vpack.c.b16 %v8522, %v8521
      %v8533 = vpack.c.b16 %v8524, %v8523
      %v8534 = vpack.c.b16 %v8526, %v8525
      %v8536 = vshrl.u32 %v8527, 16
      %v8538 = vshll.u32 %v8527, 16
      %v8540 = vrot.slane %v8538, 1
      %v8541 = vor.u32 %v8536, %v8540
      %v8543 = vshrl.u32 %v8528, 16
      %v8545 = vshll.u32 %v8528, 16
      %v8547 = vrot.slane %v8545, 1
      %v8548 = vor.u32 %v8543, %v8547
      %v8550 = vshrl.u32 %v8529, 16
      %v8552 = vshll.u32 %v8529, 16
      %v8554 = vrot.slane %v8552, 1
      %v8555 = vor.u32 %v8550, %v8554
      %v8557 = vshrl.u32 %v8530, 16
      %v8559 = vshll.u32 %v8530, 16
      %v8561 = vrot.slane %v8559, 1
      %v8562 = vor.u32 %v8557, %v8561
      %v8564 = vshrl.u32 %v8531, 16
      %v8566 = vshll.u32 %v8531, 16
      %v8568 = vrot.slane %v8566, 1
      %v8569 = vor.u32 %v8564, %v8568
      %v8571 = vshrl.u32 %v8532, 16
      %v8573 = vshll.u32 %v8532, 16
      %v8575 = vrot.slane %v8573, 1
      %v8576 = vor.u32 %v8571, %v8575
      %v8578 = vshrl.u32 %v8533, 16
      %v8580 = vshll.u32 %v8533, 16
      %v8582 = vrot.slane %v8580, 1
      %v8583 = vor.u32 %v8578, %v8582
      %v8585 = vshrl.u32 %v8534, 16
      %v8587 = vshll.u32 %v8534, 16
      %v8589 = vrot.slane %v8587, 1
      %v8590 = vor.u32 %v8585, %v8589
      %8591 = vrot.lane.b32.xlu0 %v8541, 4
      %v8592 = vpop.permute.xlu0 %8591
      %8593 = vrot.lane.b32.xlu0 %v8548, 4
      %v8594 = vpop.permute.xlu0 %8593
      %8595 = vrot.lane.b32.xlu0 %v8555, 4
      %v8596 = vpop.permute.xlu0 %8595
      %8597 = vrot.lane.b32.xlu0 %v8562, 4
      %v8598 = vpop.permute.xlu0 %8597
      %8599 = vrot.lane.b32.xlu0 %v8569, 4
      %v8600 = vpop.permute.xlu0 %8599
      %8601 = vrot.lane.b32.xlu0 %v8576, 4
      %v8602 = vpop.permute.xlu0 %8601
      %8603 = vrot.lane.b32.xlu0 %v8583, 4
      %v8604 = vpop.permute.xlu0 %8603
      %8605 = vrot.lane.b32.xlu0 %v8590, 4
      %v8606 = vpop.permute.xlu0 %8605
      %v8607 = vrot.slane %v8527, 1
      %v8608 = vrot.slane %v8528, 1
      %v8609 = vrot.slane %v8529, 1
      %v8610 = vrot.slane %v8530, 1
      %v8611 = vrot.slane %v8531, 1
      %v8612 = vrot.slane %v8532, 1
      %v8613 = vrot.slane %v8533, 1
      %v8614 = vrot.slane %v8534, 1
      %8615 = vrot.lane.b32.xlu0 %v8607, 8
      %v8616 = vpop.permute.xlu0 %8615
      %8617 = vrot.lane.b32.xlu0 %v8608, 8
      %v8618 = vpop.permute.xlu0 %8617
      %8619 = vrot.lane.b32.xlu0 %v8609, 8
      %v8620 = vpop.permute.xlu0 %8619
      %8621 = vrot.lane.b32.xlu0 %v8610, 8
      %v8622 = vpop.permute.xlu0 %8621
      %8623 = vrot.lane.b32.xlu0 %v8611, 8
      %v8624 = vpop.permute.xlu0 %8623
      %8625 = vrot.lane.b32.xlu0 %v8612, 8
      %v8626 = vpop.permute.xlu0 %8625
      %8627 = vrot.lane.b32.xlu0 %v8613, 8
      %v8628 = vpop.permute.xlu0 %8627
      %8629 = vrot.lane.b32.xlu0 %v8614, 8
      %v8630 = vpop.permute.xlu0 %8629
      %v8633 = vsel %vm1385, %v8479, %v8592
      %v8636 = vsel %vm1385, %v8481, %v8594
      %v8639 = vsel %vm1385, %v8483, %v8596
      %v8642 = vsel %vm1385, %v8485, %v8598
      %v8645 = vsel %vm1385, %v8487, %v8600
      %v8648 = vsel %vm1385, %v8489, %v8602
      %v8651 = vsel %vm1385, %v8491, %v8604
      %v8654 = vsel %vm1385, %v8493, %v8606
      %v8656 = vsel %vm2543, %v8633, %v8616
      %v8658 = vsel %vm2543, %v8636, %v8618
      %v8660 = vsel %vm2543, %v8639, %v8620
      %v8662 = vsel %vm2543, %v8642, %v8622
      %v8664 = vsel %vm2543, %v8645, %v8624
      %v8666 = vsel %vm2543, %v8648, %v8626
      %v8668 = vsel %vm2543, %v8651, %v8628
      %v8670 = vsel %vm2543, %v8654, %v8630
      %v8671 = vld [vmem:[%s6 + $0xc] sm:$0xf]
      %v8672 = vld [vmem:[%s6 + $0x10] sm:$0x3]
      %v8681 = vunpack.c.l.b16 %v8656
      %v8682 = vunpack.c.l.b16 %v8658
      %v8683 = vunpack.c.l.b16 %v8660
      %v8684 = vunpack.c.l.b16 %v8662
      %v8685 = vunpack.c.l.b16 %v8664
      %v8686 = vunpack.c.l.b16 %v8666
      %v8687 = vunpack.c.l.b16 %v8668
      %v8688 = vunpack.c.l.b16 %v8670
      %v8689 = vpack.c.b16 %v8682, %v8681
      %v8690 = vpack.c.b16 %v8684, %v8683
      %v8691 = vpack.c.b16 %v8686, %v8685
      %v8692 = vpack.c.b16 %v8688, %v8687
      %v8695 = vunpack.c.l.b16 %v8671
      %v8696 = vunpack.c.l.b16 %v8672
      %v8697 = vpack.c.b16 %v8696, %v8695
      %v8699 = vsel %vm6606, %v8689, 0
      %v8702 = vsel %vm6606, %v8690, 0
      %v8705 = vsel %vm6606, %v8691, 0
      %v8708 = vsel %vm6606, %v8692, 0
      %v8711 = vsel %vm6619, %v8697, 0
      %8713 = vmatpush.bf16.msra.mxu0 0
      %8714 = vmatpush.bf16.msra.mxu0 0
      %8715 = vmatpush.bf16.msra.mxu0 0
      %8716 = vmatpush.bf16.msra.mxu0 0
      %8717 = vmatpush.bf16.msra.mxu0 0
      %8718 = vmatpush.bf16.msra.mxu0 0
      %8719 = vmatpush.bf16.msra.mxu0 0
      %8720 = vmatpush.bf16.msra.mxu0 %v8711
      %8721 = vmatmul.bf16.gmra.mxu0 %v8699
      %v8722 = vpop.f32.mrf.mxu0
      %v8723 = vadd.f32 0.0, %v8722
      %v8724 = vpop.f32.mrf.mxu0
      %v8725 = vadd.f32 0.0, %v8724
      %8726 = vmatmul.bf16.gmra.mxu0 %v8702
      %v8727 = vpop.f32.mrf.mxu0
      %v8728 = vadd.f32 0.0, %v8727
      %v8729 = vpop.f32.mrf.mxu0
      %v8730 = vadd.f32 0.0, %v8729
      %8731 = vmatmul.bf16.gmra.mxu0 %v8705
      %v8732 = vpop.f32.mrf.mxu0
      %v8733 = vadd.f32 0.0, %v8732
      %v8734 = vpop.f32.mrf.mxu0
      %v8735 = vadd.f32 0.0, %v8734
      %8736 = vmatmul.bf16.gmra.mxu0 %v8708
      %v8737 = vpop.f32.mrf.mxu0
      %v8738 = vadd.f32 0.0, %v8737
      %v8739 = vpop.f32.mrf.mxu0
      %v8740 = vadd.f32 0.0, %v8739
      %8741 = vdwg.mxu0
      %8750 = vrot.lane.b32.xlu0 %v8723, 4
      %v8751 = vpop.permute.xlu0 %8750
      %8752 = vrot.lane.b32.xlu0 %v8725, 4
      %v8753 = vpop.permute.xlu0 %8752
      %8754 = vrot.lane.b32.xlu0 %v8728, 4
      %v8755 = vpop.permute.xlu0 %8754
      %8756 = vrot.lane.b32.xlu0 %v8730, 4
      %v8757 = vpop.permute.xlu0 %8756
      %8758 = vrot.lane.b32.xlu0 %v8733, 4
      %v8759 = vpop.permute.xlu0 %8758
      %8760 = vrot.lane.b32.xlu0 %v8735, 4
      %v8761 = vpop.permute.xlu0 %8760
      %8762 = vrot.lane.b32.xlu0 %v8738, 4
      %v8763 = vpop.permute.xlu0 %8762
      %8764 = vrot.lane.b32.xlu0 %v8740, 4
      %v8765 = vpop.permute.xlu0 %8764
      %v8774 = vadd.f32 %v8470, %v8751
      %v8775 = vadd.f32 %v8471, %v8753
      %v8776 = vadd.f32 %v8472, %v8755
      %v8777 = vadd.f32 %v8473, %v8757
      %v8778 = vadd.f32 %v8474, %v8759
      %v8779 = vadd.f32 %v8475, %v8761
      %v8780 = vadd.f32 %v8476, %v8763
      %v8781 = vadd.f32 %v8477, %v8765
      %v8782 = vld [vmem:[%s10] sm:$0x1]
      %v8783 = vperm.slane %v8782, 0
      %8785 = vrot.lane.b32.xlu0 %v8783, 4
      %v8786 = vpop.permute.xlu0 %8785
      %v8788 = vmul.f32 %v8774, %v8786
      %v8789 = vmul.f32 %v8775, %v8786
      %v8790 = vmul.f32 %v8776, %v8786
      %v8791 = vmul.f32 %v8777, %v8786
      %v8792 = vmul.f32 %v8778, %v8786
      %v8793 = vmul.f32 %v8779, %v8786
      %v8794 = vmul.f32 %v8780, %v8786
      %v8795 = vmul.f32 %v8781, %v8786
      %v8796 = vld [vmem:[%s10 + $0x1] sm:$0x1]
      %v8797 = vperm.slane %v8796, 0
      %8799 = vrot.lane.b32.xlu0 %v8797, 4
      %v8800 = vpop.permute.xlu0 %8799
      %v8802 = vadd.f32 %v8788, %v8800
      %v8803 = vadd.f32 %v8789, %v8800
      %v8804 = vadd.f32 %v8790, %v8800
      %v8805 = vadd.f32 %v8791, %v8800
      %v8806 = vadd.f32 %v8792, %v8800
      %v8807 = vadd.f32 %v8793, %v8800
      %v8808 = vadd.f32 %v8794, %v8800
      %v8809 = vadd.f32 %v8795, %v8800
      %v8810 = vmax.f32 %v8802, 0.0
      %v8811 = vmax.f32 %v8803, 0.0
      %v8812 = vmax.f32 %v8804, 0.0
      %v8813 = vmax.f32 %v8805, 0.0
      %v8814 = vmax.f32 %v8806, 0.0
      %v8815 = vmax.f32 %v8807, 0.0
      %v8816 = vmax.f32 %v8808, 0.0
      %v8817 = vmax.f32 %v8809, 0.0
      %8826 = vrot.lane.b32.xlu0 %v8810, 124
      %v8827 = vpop.permute.xlu0 %8826
      %8828 = vrot.lane.b32.xlu0 %v8811, 124
      %v8829 = vpop.permute.xlu0 %8828
      %8830 = vrot.lane.b32.xlu0 %v8812, 124
      %v8831 = vpop.permute.xlu0 %8830
      %8832 = vrot.lane.b32.xlu0 %v8813, 124
      %v8833 = vpop.permute.xlu0 %8832
      %8834 = vrot.lane.b32.xlu0 %v8814, 124
      %v8835 = vpop.permute.xlu0 %8834
      %8836 = vrot.lane.b32.xlu0 %v8815, 124
      %v8837 = vpop.permute.xlu0 %8836
      %8838 = vrot.lane.b32.xlu0 %v8816, 124
      %v8839 = vpop.permute.xlu0 %8838
      %8840 = vrot.lane.b32.xlu0 %v8817, 124
      %v8841 = vpop.permute.xlu0 %8840
      %8850 = vxpose.xlu0.b32.start [1/16] %v8827, 128
      %8851 = vxpose.xlu0.b32.cont [2/16] %v8829, 128
      %8852 = vxpose.xlu0.b32.cont [3/16] %v8831, 128
      %8853 = vxpose.xlu0.b32.cont [4/16] %v8833, 128
      %8854 = vxpose.xlu0.b32.cont [5/16] %v8835, 128
      %8855 = vxpose.xlu0.b32.cont [6/16] %v8837, 128
      %8856 = vxpose.xlu0.b32.cont [7/16] %v8839, 128
      %8857 = vxpose.xlu0.b32.cont [8/16] %v8841, 128
      %8858 = vxpose.xlu0.b32.cont [9/16] 0.0, 128
      %8859 = vxpose.xlu0.b32.cont [10/16] 0.0, 128
      %8860 = vxpose.xlu0.b32.cont [11/16] 0.0, 128
      %8861 = vxpose.xlu0.b32.cont [12/16] 0.0, 128
      %8862 = vxpose.xlu0.b32.cont [13/16] 0.0, 128
      %8863 = vxpose.xlu0.b32.cont [14/16] 0.0, 128
      %8864 = vxpose.xlu0.b32.cont [15/16] 0.0, 128
      %8865 = vxpose.xlu0.b32.end [16/16] 0.0, 128
      %v8866 = vpop.trf.xlu0
      %v8867 = vpop.trf.xlu0
      %v8868 = vpop.trf.xlu0
      %v8869 = vpop.trf.xlu0
      %v8870 = vpop.trf.xlu0
      %v8871 = vpop.trf.xlu0
      %v8872 = vpop.trf.xlu0
      %v8873 = vpop.trf.xlu0
      %v8874 = vpop.trf.xlu0
      %v8875 = vpop.trf.xlu0
      %v8876 = vpop.trf.xlu0
      %v8877 = vpop.trf.xlu0
      %v8878 = vpop.trf.xlu0
      %v8879 = vpop.trf.xlu0
      %v8880 = vpop.trf.xlu0
      %v8881 = vpop.trf.xlu0
      %v8882 = vpack.c.bf16 %v8866, %v8866
      %vm8883 = vcmask 517120
      %8884 = vst.msk [vmem:[%s444] sm:$0x3] %vm8883, %v8882
      %8885 = vst.msk [vmem:[#allocation4] sm:$0xf] %vm5995, 0
      %8886 = vst.msk [vmem:[#allocation4 + $0x4] sm:$0xf] %vm5995, 0
      %8887 = vst.msk [vmem:[#allocation4 + $0x8] sm:$0x1] %vm5997, 0
      %s8888 = scalar_lea.vmem [#allocation4], 204
      %8889 = vst.msk [vmem:[%s8888] sm:$0xf] %vm5995, 0
      %8890 = vst.msk [vmem:[%s8888 + $0x4] sm:$0xf] %vm5995, 0
      %8891 = vst.msk [vmem:[%s8888 + $0x8] sm:$0x1] %vm5997, 0
      %s8892 = scalar_lea.vmem [#allocation4], 12
      %v8893 = vld [vmem:[%s8892] sm:$0x1]
      %v8894 = vsel %vm6004, 0, %v8893
      %8895 = vst [vmem:[%s8892] sm:$0x1] %v8894
      %v8896 = vld [vmem:[%s8892 + $0xc] sm:$0x1]
      %v8897 = vsel %vm6004, 0, %v8896
      %8898 = vst [vmem:[%s8892 + $0xc] sm:$0x1] %v8897
      %v8899 = vld [vmem:[%s8892 + $0x18] sm:$0x1]
      %v8900 = vsel %vm6004, 0, %v8899
      %8901 = vst [vmem:[%s8892 + $0x18] sm:$0x1] %v8900
      %v8902 = vld [vmem:[%s8892 + $0x24] sm:$0x1]
      %v8903 = vsel %vm6004, 0, %v8902
      %8904 = vst [vmem:[%s8892 + $0x24] sm:$0x1] %v8903
      %v8905 = vld [vmem:[%s8892 + $0x30] sm:$0x1]
      %v8906 = vsel %vm6004, 0, %v8905
      %8907 = vst [vmem:[%s8892 + $0x30] sm:$0x1] %v8906
      %v8908 = vld [vmem:[%s8892 + $0x3c] sm:$0x1]
      %v8909 = vsel %vm6004, 0, %v8908
      %8910 = vst [vmem:[%s8892 + $0x3c] sm:$0x1] %v8909
      %v8911 = vld [vmem:[%s8892 + $0x48] sm:$0x1]
      %v8912 = vsel %vm6004, 0, %v8911
      %8913 = vst [vmem:[%s8892 + $0x48] sm:$0x1] %v8912
      %v8914 = vld [vmem:[%s8892 + $0x54] sm:$0x1]
      %v8915 = vsel %vm6004, 0, %v8914
      %8916 = vst [vmem:[%s8892 + $0x54] sm:$0x1] %v8915
      %v8917 = vld [vmem:[%s8892 + $0x60] sm:$0x1]
      %v8918 = vsel %vm6004, 0, %v8917
      %8919 = vst [vmem:[%s8892 + $0x60] sm:$0x1] %v8918
      %v8920 = vld [vmem:[%s8892 + $0x6c] sm:$0x1]
      %v8921 = vsel %vm6004, 0, %v8920
      %8922 = vst [vmem:[%s8892 + $0x6c] sm:$0x1] %v8921
      %v8923 = vld [vmem:[%s8892 + $0x78] sm:$0x1]
      %v8924 = vsel %vm6004, 0, %v8923
      %8925 = vst [vmem:[%s8892 + $0x78] sm:$0x1] %v8924
      %v8926 = vld [vmem:[%s8892 + $0x84] sm:$0x1]
      %v8927 = vsel %vm6004, 0, %v8926
      %8928 = vst [vmem:[%s8892 + $0x84] sm:$0x1] %v8927
      %v8929 = vld [vmem:[%s8892 + $0x90] sm:$0x1]
      %v8930 = vsel %vm6004, 0, %v8929
      %8931 = vst [vmem:[%s8892 + $0x90] sm:$0x1] %v8930
      %v8932 = vld [vmem:[%s8892 + $0x9c] sm:$0x1]
      %v8933 = vsel %vm6004, 0, %v8932
      %8934 = vst [vmem:[%s8892 + $0x9c] sm:$0x1] %v8933
      %v8935 = vld [vmem:[%s8892 + $0xa8] sm:$0x1]
      %v8936 = vsel %vm6004, 0, %v8935
      %8937 = vst [vmem:[%s8892 + $0xa8] sm:$0x1] %v8936
      %v8938 = vld [vmem:[%s8892 + $0xb4] sm:$0x1]
      %v8939 = vsel %vm6004, 0, %v8938
      %8940 = vst [vmem:[%s8892 + $0xb4] sm:$0x1] %v8939
      %v8941 = vld [vmem:[%s8892 + $0x8] sm:$0x1]
      %v8942 = vsel %vm6029, 0, %v8941
      %8943 = vst [vmem:[%s8892 + $0x8] sm:$0x1] %v8942
      %v8944 = vld [vmem:[%s8892 + $0x14] sm:$0x1]
      %v8945 = vsel %vm6029, 0, %v8944
      %8946 = vst [vmem:[%s8892 + $0x14] sm:$0x1] %v8945
      %v8947 = vld [vmem:[%s8892 + $0x20] sm:$0x1]
      %v8948 = vsel %vm6029, 0, %v8947
      %8949 = vst [vmem:[%s8892 + $0x20] sm:$0x1] %v8948
      %v8950 = vld [vmem:[%s8892 + $0x2c] sm:$0x1]
      %v8951 = vsel %vm6029, 0, %v8950
      %8952 = vst [vmem:[%s8892 + $0x2c] sm:$0x1] %v8951
      %v8953 = vld [vmem:[%s8892 + $0x38] sm:$0x1]
      %v8954 = vsel %vm6029, 0, %v8953
      %8955 = vst [vmem:[%s8892 + $0x38] sm:$0x1] %v8954
      %v8956 = vld [vmem:[%s8892 + $0x44] sm:$0x1]
      %v8957 = vsel %vm6029, 0, %v8956
      %8958 = vst [vmem:[%s8892 + $0x44] sm:$0x1] %v8957
      %v8959 = vld [vmem:[%s8892 + $0x50] sm:$0x1]
      %v8960 = vsel %vm6029, 0, %v8959
      %8961 = vst [vmem:[%s8892 + $0x50] sm:$0x1] %v8960
      %v8962 = vld [vmem:[%s8892 + $0x5c] sm:$0x1]
      %v8963 = vsel %vm6029, 0, %v8962
      %8964 = vst [vmem:[%s8892 + $0x5c] sm:$0x1] %v8963
      %v8965 = vld [vmem:[%s8892 + $0x68] sm:$0x1]
      %v8966 = vsel %vm6029, 0, %v8965
      %8967 = vst [vmem:[%s8892 + $0x68] sm:$0x1] %v8966
      %v8968 = vld [vmem:[%s8892 + $0x74] sm:$0x1]
      %v8969 = vsel %vm6029, 0, %v8968
      %8970 = vst [vmem:[%s8892 + $0x74] sm:$0x1] %v8969
      %v8971 = vld [vmem:[%s8892 + $0x80] sm:$0x1]
      %v8972 = vsel %vm6029, 0, %v8971
      %8973 = vst [vmem:[%s8892 + $0x80] sm:$0x1] %v8972
      %v8974 = vld [vmem:[%s8892 + $0x8c] sm:$0x1]
      %v8975 = vsel %vm6029, 0, %v8974
      %8976 = vst [vmem:[%s8892 + $0x8c] sm:$0x1] %v8975
      %v8977 = vld [vmem:[%s8892 + $0x98] sm:$0x1]
      %v8978 = vsel %vm6029, 0, %v8977
      %8979 = vst [vmem:[%s8892 + $0x98] sm:$0x1] %v8978
      %v8980 = vld [vmem:[%s8892 + $0xa4] sm:$0x1]
      %v8981 = vsel %vm6029, 0, %v8980
      %8982 = vst [vmem:[%s8892 + $0xa4] sm:$0x1] %v8981
      %v8983 = vld [vmem:[%s8892 + $0xb0] sm:$0x1]
      %v8984 = vsel %vm6029, 0, %v8983
      %8985 = vst [vmem:[%s8892 + $0xb0] sm:$0x1] %v8984
      %v8986 = vld [vmem:[%s8892 + $0xbc] sm:$0x1]
      %v8987 = vsel %vm6029, 0, %v8986
      %8988 = vst [vmem:[%s8892 + $0xbc] sm:$0x1] %v8987
      %v8989 = vpack.c.bf16 %v4208, %v4208
      %v8990 = vpack.c.bf16 %v4209, %v4209
      %v8991 = vpack.c.bf16 %v4210, %v4210
      %v8992 = vpack.c.bf16 %v4211, %v4211
      %v8993 = vpack.c.bf16 %v4212, %v4212
      %v8994 = vpack.c.bf16 %v4213, %v4213
      %v8995 = vpack.c.bf16 %v4214, %v4214
      %v8996 = vpack.c.bf16 %v4215, %v4215
      %v8997 = vpack.c.bf16 %v4216, %v4216
      %v8998 = vpack.c.bf16 %v4217, %v4217
      %v8999 = vpack.c.bf16 %v4218, %v4218
      %v9000 = vpack.c.bf16 %v4219, %v4219
      %v9001 = vpack.c.bf16 %v4220, %v4220
      %v9002 = vpack.c.bf16 %v4221, %v4221
      %v9003 = vpack.c.bf16 %v4222, %v4222
      %v9004 = vpack.c.bf16 %v4223, %v4223
      %v9005 = vpack.c.bf16 %v4224, %v4224
      %v9006 = vpack.c.bf16 %v4225, %v4225
      %v9007 = vpack.c.bf16 %v4226, %v4226
      %v9008 = vpack.c.bf16 %v4227, %v4227
      %v9009 = vpack.c.bf16 %v4228, %v4228
      %v9010 = vpack.c.bf16 %v4229, %v4229
      %v9011 = vpack.c.bf16 %v4230, %v4230
      %v9012 = vpack.c.bf16 %v4231, %v4231
      %v9013 = vpack.c.bf16 %v4232, %v4232
      %v9014 = vpack.c.bf16 %v4233, %v4233
      %v9015 = vpack.c.bf16 %v4234, %v4234
      %v9016 = vpack.c.bf16 %v4235, %v4235
      %v9017 = vpack.c.bf16 %v4236, %v4236
      %v9018 = vpack.c.bf16 %v4237, %v4237
      %v9019 = vpack.c.bf16 %v4238, %v4238
      %v9020 = vpack.c.bf16 %v4239, %v4239
      %v9022 = vshrl.u32 %v8989, 16
      %v9024 = vrot.slane %v9022, 7
      %v9025 = vshll.u32 %v8989, 16
      %v9027 = vor.u32 %v9024, %v9025
      %v9028 = vrot.slane %v9024, 4
      %v9030 = vshrl.u32 %v8990, 16
      %v9032 = vrot.slane %v9030, 7
      %v9033 = vshll.u32 %v8990, 16
      %v9035 = vor.u32 %v9032, %v9033
      %v9036 = vsel %vm1626, %v9028, %v9035
      %v9037 = vrot.slane %v9032, 4
      %v9039 = vshrl.u32 %v8991, 16
      %v9041 = vrot.slane %v9039, 7
      %v9042 = vshll.u32 %v8991, 16
      %v9044 = vor.u32 %v9041, %v9042
      %v9045 = vrot.slane %v9041, 4
      %v9047 = vshrl.u32 %v8992, 16
      %v9049 = vrot.slane %v9047, 7
      %v9050 = vshll.u32 %v8992, 16
      %v9052 = vor.u32 %v9049, %v9050
      %v9053 = vsel %vm1626, %v9045, %v9052
      %v9054 = vrot.slane %v9049, 4
      %v9056 = vshrl.u32 %v8993, 16
      %v9058 = vrot.slane %v9056, 7
      %v9059 = vshll.u32 %v8993, 16
      %v9061 = vor.u32 %v9058, %v9059
      %v9062 = vrot.slane %v9058, 4
      %v9064 = vshrl.u32 %v8994, 16
      %v9066 = vrot.slane %v9064, 7
      %v9067 = vshll.u32 %v8994, 16
      %v9069 = vor.u32 %v9066, %v9067
      %v9070 = vsel %vm1626, %v9062, %v9069
      %v9071 = vrot.slane %v9066, 4
      %v9073 = vshrl.u32 %v8995, 16
      %v9075 = vrot.slane %v9073, 7
      %v9076 = vshll.u32 %v8995, 16
      %v9078 = vor.u32 %v9075, %v9076
      %v9079 = vrot.slane %v9075, 4
      %v9081 = vshrl.u32 %v8996, 16
      %v9083 = vrot.slane %v9081, 7
      %v9084 = vshll.u32 %v8996, 16
      %v9086 = vor.u32 %v9083, %v9084
      %v9087 = vsel %vm1626, %v9079, %v9086
      %v9088 = vrot.slane %v9083, 4
      %v9090 = vshrl.u32 %v8997, 16
      %v9092 = vrot.slane %v9090, 7
      %v9093 = vshll.u32 %v8997, 16
      %v9095 = vor.u32 %v9092, %v9093
      %v9096 = vrot.slane %v9092, 4
      %v9098 = vshrl.u32 %v8998, 16
      %v9100 = vrot.slane %v9098, 7
      %v9101 = vshll.u32 %v8998, 16
      %v9103 = vor.u32 %v9100, %v9101
      %v9104 = vsel %vm1626, %v9096, %v9103
      %v9105 = vrot.slane %v9100, 4
      %v9107 = vshrl.u32 %v8999, 16
      %v9109 = vrot.slane %v9107, 7
      %v9110 = vshll.u32 %v8999, 16
      %v9112 = vor.u32 %v9109, %v9110
      %v9113 = vrot.slane %v9109, 4
      %v9115 = vshrl.u32 %v9000, 16
      %v9117 = vrot.slane %v9115, 7
      %v9118 = vshll.u32 %v9000, 16
      %v9120 = vor.u32 %v9117, %v9118
      %v9121 = vsel %vm1626, %v9113, %v9120
      %v9122 = vrot.slane %v9117, 4
      %v9124 = vshrl.u32 %v9001, 16
      %v9126 = vrot.slane %v9124, 7
      %v9127 = vshll.u32 %v9001, 16
      %v9129 = vor.u32 %v9126, %v9127
      %v9130 = vrot.slane %v9126, 4
      %v9132 = vshrl.u32 %v9002, 16
      %v9134 = vrot.slane %v9132, 7
      %v9135 = vshll.u32 %v9002, 16
      %v9137 = vor.u32 %v9134, %v9135
      %v9138 = vsel %vm1626, %v9130, %v9137
      %v9139 = vrot.slane %v9134, 4
      %v9141 = vshrl.u32 %v9003, 16
      %v9143 = vrot.slane %v9141, 7
      %v9144 = vshll.u32 %v9003, 16
      %v9146 = vor.u32 %v9143, %v9144
      %v9147 = vrot.slane %v9143, 4
      %v9149 = vshrl.u32 %v9004, 16
      %v9151 = vrot.slane %v9149, 7
      %v9152 = vshll.u32 %v9004, 16
      %v9154 = vor.u32 %v9151, %v9152
      %v9155 = vsel %vm1626, %v9147, %v9154
      %v9156 = vrot.slane %v9151, 4
      %v9158 = vshrl.u32 %v9005, 16
      %v9160 = vrot.slane %v9158, 7
      %v9161 = vshll.u32 %v9005, 16
      %v9163 = vor.u32 %v9160, %v9161
      %v9164 = vrot.slane %v9160, 4
      %v9166 = vshrl.u32 %v9006, 16
      %v9168 = vrot.slane %v9166, 7
      %v9169 = vshll.u32 %v9006, 16
      %v9171 = vor.u32 %v9168, %v9169
      %v9172 = vsel %vm1626, %v9164, %v9171
      %v9173 = vrot.slane %v9168, 4
      %v9175 = vshrl.u32 %v9007, 16
      %v9177 = vrot.slane %v9175, 7
      %v9178 = vshll.u32 %v9007, 16
      %v9180 = vor.u32 %v9177, %v9178
      %v9181 = vrot.slane %v9177, 4
      %v9183 = vshrl.u32 %v9008, 16
      %v9185 = vrot.slane %v9183, 7
      %v9186 = vshll.u32 %v9008, 16
      %v9188 = vor.u32 %v9185, %v9186
      %v9189 = vsel %vm1626, %v9181, %v9188
      %v9190 = vrot.slane %v9185, 4
      %v9192 = vshrl.u32 %v9009, 16
      %v9194 = vrot.slane %v9192, 7
      %v9195 = vshll.u32 %v9009, 16
      %v9197 = vor.u32 %v9194, %v9195
      %v9198 = vrot.slane %v9194, 4
      %v9200 = vshrl.u32 %v9010, 16
      %v9202 = vrot.slane %v9200, 7
      %v9203 = vshll.u32 %v9010, 16
      %v9205 = vor.u32 %v9202, %v9203
      %v9206 = vsel %vm1626, %v9198, %v9205
      %v9207 = vrot.slane %v9202, 4
      %v9209 = vshrl.u32 %v9011, 16
      %v9211 = vrot.slane %v9209, 7
      %v9212 = vshll.u32 %v9011, 16
      %v9214 = vor.u32 %v9211, %v9212
      %v9215 = vrot.slane %v9211, 4
      %v9217 = vshrl.u32 %v9012, 16
      %v9219 = vrot.slane %v9217, 7
      %v9220 = vshll.u32 %v9012, 16
      %v9222 = vor.u32 %v9219, %v9220
      %v9223 = vsel %vm1626, %v9215, %v9222
      %v9224 = vrot.slane %v9219, 4
      %v9226 = vshrl.u32 %v9013, 16
      %v9228 = vrot.slane %v9226, 7
      %v9229 = vshll.u32 %v9013, 16
      %v9231 = vor.u32 %v9228, %v9229
      %v9232 = vrot.slane %v9228, 4
      %v9234 = vshrl.u32 %v9014, 16
      %v9236 = vrot.slane %v9234, 7
      %v9237 = vshll.u32 %v9014, 16
      %v9239 = vor.u32 %v9236, %v9237
      %v9240 = vsel %vm1626, %v9232, %v9239
      %v9241 = vrot.slane %v9236, 4
      %v9243 = vshrl.u32 %v9015, 16
      %v9245 = vrot.slane %v9243, 7
      %v9246 = vshll.u32 %v9015, 16
      %v9248 = vor.u32 %v9245, %v9246
      %v9249 = vrot.slane %v9245, 4
      %v9251 = vshrl.u32 %v9016, 16
      %v9253 = vrot.slane %v9251, 7
      %v9254 = vshll.u32 %v9016, 16
      %v9256 = vor.u32 %v9253, %v9254
      %v9257 = vsel %vm1626, %v9249, %v9256
      %v9258 = vrot.slane %v9253, 4
      %v9260 = vshrl.u32 %v9017, 16
      %v9262 = vrot.slane %v9260, 7
      %v9263 = vshll.u32 %v9017, 16
      %v9265 = vor.u32 %v9262, %v9263
      %v9266 = vrot.slane %v9262, 4
      %v9268 = vshrl.u32 %v9018, 16
      %v9270 = vrot.slane %v9268, 7
      %v9271 = vshll.u32 %v9018, 16
      %v9273 = vor.u32 %v9270, %v9271
      %v9274 = vsel %vm1626, %v9266, %v9273
      %v9275 = vrot.slane %v9270, 4
      %v9277 = vshrl.u32 %v9019, 16
      %v9279 = vrot.slane %v9277, 7
      %v9280 = vshll.u32 %v9019, 16
      %v9282 = vor.u32 %v9279, %v9280
      %v9283 = vrot.slane %v9279, 4
      %v9285 = vshrl.u32 %v9020, 16
      %v9287 = vrot.slane %v9285, 7
      %v9288 = vshll.u32 %v9020, 16
      %v9290 = vor.u32 %v9287, %v9288
      %v9291 = vsel %vm1626, %v9283, %v9290
      %v9292 = vrot.slane %v9287, 4
      %v9341 = vld [vmem:[%s8892] sm:$0xf]
      %v9342 = vsel %vm6143, %v9027, %v9341
      %9343 = vst [vmem:[%s8892] sm:$0xf] %v9342
      %9344 = vst.msk [vmem:[%s8892 + $0x4] sm:$0xf] %vm5995, %v9036
      %v9345 = vld [vmem:[%s8892 + $0x8] sm:$0x1]
      %v9346 = vsel %vm6004, %v9037, %v9345
      %9347 = vst [vmem:[%s8892 + $0x8] sm:$0x1] %v9346
      %v9348 = vld [vmem:[%s8892 + $0xc] sm:$0xf]
      %v9349 = vsel %vm6143, %v9044, %v9348
      %9350 = vst [vmem:[%s8892 + $0xc] sm:$0xf] %v9349
      %9351 = vst.msk [vmem:[%s8892 + $0x10] sm:$0xf] %vm5995, %v9053
      %v9352 = vld [vmem:[%s8892 + $0x14] sm:$0x1]
      %v9353 = vsel %vm6004, %v9054, %v9352
      %9354 = vst [vmem:[%s8892 + $0x14] sm:$0x1] %v9353
      %v9355 = vld [vmem:[%s8892 + $0x18] sm:$0xf]
      %v9356 = vsel %vm6143, %v9061, %v9355
      %9357 = vst [vmem:[%s8892 + $0x18] sm:$0xf] %v9356
      %9358 = vst.msk [vmem:[%s8892 + $0x1c] sm:$0xf] %vm5995, %v9070
      %v9359 = vld [vmem:[%s8892 + $0x20] sm:$0x1]
      %v9360 = vsel %vm6004, %v9071, %v9359
      %9361 = vst [vmem:[%s8892 + $0x20] sm:$0x1] %v9360
      %v9362 = vld [vmem:[%s8892 + $0x24] sm:$0xf]
      %v9363 = vsel %vm6143, %v9078, %v9362
      %9364 = vst [vmem:[%s8892 + $0x24] sm:$0xf] %v9363
      %9365 = vst.msk [vmem:[%s8892 + $0x28] sm:$0xf] %vm5995, %v9087
      %v9366 = vld [vmem:[%s8892 + $0x2c] sm:$0x1]
      %v9367 = vsel %vm6004, %v9088, %v9366
      %9368 = vst [vmem:[%s8892 + $0x2c] sm:$0x1] %v9367
      %v9369 = vld [vmem:[%s8892 + $0x30] sm:$0xf]
      %v9370 = vsel %vm6143, %v9095, %v9369
      %9371 = vst [vmem:[%s8892 + $0x30] sm:$0xf] %v9370
      %9372 = vst.msk [vmem:[%s8892 + $0x34] sm:$0xf] %vm5995, %v9104
      %v9373 = vld [vmem:[%s8892 + $0x38] sm:$0x1]
      %v9374 = vsel %vm6004, %v9105, %v9373
      %9375 = vst [vmem:[%s8892 + $0x38] sm:$0x1] %v9374
      %v9376 = vld [vmem:[%s8892 + $0x3c] sm:$0xf]
      %v9377 = vsel %vm6143, %v9112, %v9376
      %9378 = vst [vmem:[%s8892 + $0x3c] sm:$0xf] %v9377
      %9379 = vst.msk [vmem:[%s8892 + $0x40] sm:$0xf] %vm5995, %v9121
      %v9380 = vld [vmem:[%s8892 + $0x44] sm:$0x1]
      %v9381 = vsel %vm6004, %v9122, %v9380
      %9382 = vst [vmem:[%s8892 + $0x44] sm:$0x1] %v9381
      %v9383 = vld [vmem:[%s8892 + $0x48] sm:$0xf]
      %v9384 = vsel %vm6143, %v9129, %v9383
      %9385 = vst [vmem:[%s8892 + $0x48] sm:$0xf] %v9384
      %9386 = vst.msk [vmem:[%s8892 + $0x4c] sm:$0xf] %vm5995, %v9138
      %v9387 = vld [vmem:[%s8892 + $0x50] sm:$0x1]
      %v9388 = vsel %vm6004, %v9139, %v9387
      %9389 = vst [vmem:[%s8892 + $0x50] sm:$0x1] %v9388
      %v9390 = vld [vmem:[%s8892 + $0x54] sm:$0xf]
      %v9391 = vsel %vm6143, %v9146, %v9390
      %9392 = vst [vmem:[%s8892 + $0x54] sm:$0xf] %v9391
      %9393 = vst.msk [vmem:[%s8892 + $0x58] sm:$0xf] %vm5995, %v9155
      %v9394 = vld [vmem:[%s8892 + $0x5c] sm:$0x1]
      %v9395 = vsel %vm6004, %v9156, %v9394
      %9396 = vst [vmem:[%s8892 + $0x5c] sm:$0x1] %v9395
      %v9397 = vld [vmem:[%s8892 + $0x60] sm:$0xf]
      %v9398 = vsel %vm6143, %v9163, %v9397
      %9399 = vst [vmem:[%s8892 + $0x60] sm:$0xf] %v9398
      %9400 = vst.msk [vmem:[%s8892 + $0x64] sm:$0xf] %vm5995, %v9172
      %v9401 = vld [vmem:[%s8892 + $0x68] sm:$0x1]
      %v9402 = vsel %vm6004, %v9173, %v9401
      %9403 = vst [vmem:[%s8892 + $0x68] sm:$0x1] %v9402
      %v9404 = vld [vmem:[%s8892 + $0x6c] sm:$0xf]
      %v9405 = vsel %vm6143, %v9180, %v9404
      %9406 = vst [vmem:[%s8892 + $0x6c] sm:$0xf] %v9405
      %9407 = vst.msk [vmem:[%s8892 + $0x70] sm:$0xf] %vm5995, %v9189
      %v9408 = vld [vmem:[%s8892 + $0x74] sm:$0x1]
      %v9409 = vsel %vm6004, %v9190, %v9408
      %9410 = vst [vmem:[%s8892 + $0x74] sm:$0x1] %v9409
      %v9411 = vld [vmem:[%s8892 + $0x78] sm:$0xf]
      %v9412 = vsel %vm6143, %v9197, %v9411
      %9413 = vst [vmem:[%s8892 + $0x78] sm:$0xf] %v9412
      %9414 = vst.msk [vmem:[%s8892 + $0x7c] sm:$0xf] %vm5995, %v9206
      %v9415 = vld [vmem:[%s8892 + $0x80] sm:$0x1]
      %v9416 = vsel %vm6004, %v9207, %v9415
      %9417 = vst [vmem:[%s8892 + $0x80] sm:$0x1] %v9416
      %v9418 = vld [vmem:[%s8892 + $0x84] sm:$0xf]
      %v9419 = vsel %vm6143, %v9214, %v9418
      %9420 = vst [vmem:[%s8892 + $0x84] sm:$0xf] %v9419
      %9421 = vst.msk [vmem:[%s8892 + $0x88] sm:$0xf] %vm5995, %v9223
      %v9422 = vld [vmem:[%s8892 + $0x8c] sm:$0x1]
      %v9423 = vsel %vm6004, %v9224, %v9422
      %9424 = vst [vmem:[%s8892 + $0x8c] sm:$0x1] %v9423
      %v9425 = vld [vmem:[%s8892 + $0x90] sm:$0xf]
      %v9426 = vsel %vm6143, %v9231, %v9425
      %9427 = vst [vmem:[%s8892 + $0x90] sm:$0xf] %v9426
      %9428 = vst.msk [vmem:[%s8892 + $0x94] sm:$0xf] %vm5995, %v9240
      %v9429 = vld [vmem:[%s8892 + $0x98] sm:$0x1]
      %v9430 = vsel %vm6004, %v9241, %v9429
      %9431 = vst [vmem:[%s8892 + $0x98] sm:$0x1] %v9430
      %v9432 = vld [vmem:[%s8892 + $0x9c] sm:$0xf]
      %v9433 = vsel %vm6143, %v9248, %v9432
      %9434 = vst [vmem:[%s8892 + $0x9c] sm:$0xf] %v9433
      %9435 = vst.msk [vmem:[%s8892 + $0xa0] sm:$0xf] %vm5995, %v9257
      %v9436 = vld [vmem:[%s8892 + $0xa4] sm:$0x1]
      %v9437 = vsel %vm6004, %v9258, %v9436
      %9438 = vst [vmem:[%s8892 + $0xa4] sm:$0x1] %v9437
      %v9439 = vld [vmem:[%s8892 + $0xa8] sm:$0xf]
      %v9440 = vsel %vm6143, %v9265, %v9439
      %9441 = vst [vmem:[%s8892 + $0xa8] sm:$0xf] %v9440
      %9442 = vst.msk [vmem:[%s8892 + $0xac] sm:$0xf] %vm5995, %v9274
      %v9443 = vld [vmem:[%s8892 + $0xb0] sm:$0x1]
      %v9444 = vsel %vm6004, %v9275, %v9443
      %9445 = vst [vmem:[%s8892 + $0xb0] sm:$0x1] %v9444
      %v9446 = vld [vmem:[%s8892 + $0xb4] sm:$0xf]
      %v9447 = vsel %vm6143, %v9282, %v9446
      %9448 = vst [vmem:[%s8892 + $0xb4] sm:$0xf] %v9447
      %9449 = vst.msk [vmem:[%s8892 + $0xb8] sm:$0xf] %vm5995, %v9291
      %v9450 = vld [vmem:[%s8892 + $0xbc] sm:$0x1]
      %v9451 = vsel %vm6004, %v9292, %v9450
      %9452 = vst [vmem:[%s8892 + $0xbc] sm:$0x1] %v9451
      %v9461 = vrot.slane %v6985, 1
      %v9462 = vrot.slane %v6985, 2
      %v9463 = vrot.slane %v6985, 3
      %v9464 = vrot.slane %v6985, 4
      %v9465 = vrot.slane %v6985, 5
      %v9466 = vrot.slane %v6985, 6
      %v9467 = vrot.slane %v6985, 7
      %v9468 = vrot.slane %v6986, 1
      %v9469 = vrot.slane %v6986, 2
      %v9470 = vrot.slane %v6986, 3
      %v9471 = vrot.slane %v6986, 4
      %v9472 = vrot.slane %v6986, 5
      %v9473 = vrot.slane %v6986, 6
      %v9474 = vrot.slane %v6986, 7
      %v9475 = vrot.slane %v6987, 1
      %v9476 = vrot.slane %v6987, 2
      %v9477 = vrot.slane %v6987, 3
      %v9478 = vrot.slane %v6987, 4
      %v9479 = vrot.slane %v6987, 5
      %v9480 = vrot.slane %v6987, 6
      %v9481 = vrot.slane %v6987, 7
      %v9482 = vrot.slane %v6988, 1
      %v9483 = vrot.slane %v6988, 2
      %v9484 = vrot.slane %v6988, 3
      %v9485 = vrot.slane %v6988, 4
      %v9486 = vrot.slane %v6988, 5
      %v9487 = vrot.slane %v6988, 6
      %v9488 = vrot.slane %v6988, 7
      %v9489 = vrot.slane %v6989, 1
      %v9490 = vrot.slane %v6989, 2
      %v9491 = vrot.slane %v6989, 3
      %v9492 = vrot.slane %v6989, 4
      %v9493 = vrot.slane %v6989, 5
      %v9494 = vrot.slane %v6989, 6
      %v9495 = vrot.slane %v6989, 7
      %v9496 = vrot.slane %v6990, 1
      %v9497 = vrot.slane %v6990, 2
      %v9498 = vrot.slane %v6990, 3
      %v9499 = vrot.slane %v6990, 4
      %v9500 = vrot.slane %v6990, 5
      %v9501 = vrot.slane %v6990, 6
      %v9502 = vrot.slane %v6990, 7
      %v9503 = vrot.slane %v6991, 1
      %v9504 = vrot.slane %v6991, 2
      %v9505 = vrot.slane %v6991, 3
      %v9506 = vrot.slane %v6991, 4
      %v9507 = vrot.slane %v6991, 5
      %v9508 = vrot.slane %v6991, 6
      %v9509 = vrot.slane %v6991, 7
      %v9510 = vrot.slane %v6992, 1
      %v9511 = vrot.slane %v6992, 2
      %v9512 = vrot.slane %v6992, 3
      %v9513 = vrot.slane %v6992, 4
      %v9514 = vrot.slane %v6992, 5
      %v9515 = vrot.slane %v6992, 6
      %v9516 = vrot.slane %v6992, 7
      %v9517 = vperm.slane %v6985, 0
      %v9518 = vperm.slane %v9461, 0
      %v9519 = vperm.slane %v9462, 0
      %v9520 = vperm.slane %v9463, 0
      %v9521 = vperm.slane %v9464, 0
      %v9522 = vperm.slane %v9465, 0
      %v9523 = vperm.slane %v9466, 0
      %v9524 = vperm.slane %v9467, 0
      %v9525 = vperm.slane %v6986, 0
      %v9526 = vperm.slane %v9468, 0
      %v9527 = vperm.slane %v9469, 0
      %v9528 = vperm.slane %v9470, 0
      %v9529 = vperm.slane %v9471, 0
      %v9530 = vperm.slane %v9472, 0
      %v9531 = vperm.slane %v9473, 0
      %v9532 = vperm.slane %v9474, 0
      %v9533 = vperm.slane %v6987, 0
      %v9534 = vperm.slane %v9475, 0
      %v9535 = vperm.slane %v9476, 0
      %v9536 = vperm.slane %v9477, 0
      %v9537 = vperm.slane %v9478, 0
      %v9538 = vperm.slane %v9479, 0
      %v9539 = vperm.slane %v9480, 0
      %v9540 = vperm.slane %v9481, 0
      %v9541 = vperm.slane %v6988, 0
      %v9542 = vperm.slane %v9482, 0
      %v9543 = vperm.slane %v9483, 0
      %v9544 = vperm.slane %v9484, 0
      %v9545 = vperm.slane %v9485, 0
      %v9546 = vperm.slane %v9486, 0
      %v9547 = vperm.slane %v9487, 0
      %v9548 = vperm.slane %v9488, 0
      %v9549 = vperm.slane %v6989, 0
      %v9550 = vperm.slane %v9489, 0
      %v9551 = vperm.slane %v9490, 0
      %v9552 = vperm.slane %v9491, 0
      %v9553 = vperm.slane %v9492, 0
      %v9554 = vperm.slane %v9493, 0
      %v9555 = vperm.slane %v9494, 0
      %v9556 = vperm.slane %v9495, 0
      %v9557 = vperm.slane %v6990, 0
      %v9558 = vperm.slane %v9496, 0
      %v9559 = vperm.slane %v9497, 0
      %v9560 = vperm.slane %v9498, 0
      %v9561 = vperm.slane %v9499, 0
      %v9562 = vperm.slane %v9500, 0
      %v9563 = vperm.slane %v9501, 0
      %v9564 = vperm.slane %v9502, 0
      %v9565 = vperm.slane %v6991, 0
      %v9566 = vperm.slane %v9503, 0
      %v9567 = vperm.slane %v9504, 0
      %v9568 = vperm.slane %v9505, 0
      %v9569 = vperm.slane %v9506, 0
      %v9570 = vperm.slane %v9507, 0
      %v9571 = vperm.slane %v9508, 0
      %v9572 = vperm.slane %v9509, 0
      %v9573 = vperm.slane %v6992, 0
      %v9574 = vperm.slane %v9510, 0
      %v9575 = vperm.slane %v9511, 0
      %v9576 = vperm.slane %v9512, 0
      %v9577 = vperm.slane %v9513, 0
      %v9578 = vperm.slane %v9514, 0
      %v9579 = vperm.slane %v9515, 0
      %v9580 = vperm.slane %v9516, 0
      %v9645 = vld [vmem:[#allocation4] sm:$0xf]
      %v9646 = vld [vmem:[#allocation4 + $0x4] sm:$0xf]
      %v9647 = vld [vmem:[#allocation4 + $0x8] sm:$0x1]
      %v9648 = vld [vmem:[#allocation4 + $0xc] sm:$0xf]
      %v9649 = vld [vmem:[#allocation4 + $0x10] sm:$0xf]
      %v9650 = vld [vmem:[#allocation4 + $0x14] sm:$0x1]
      %v9651 = vld [vmem:[#allocation4 + $0x18] sm:$0xf]
      %v9652 = vld [vmem:[#allocation4 + $0x1c] sm:$0xf]
      %v9653 = vld [vmem:[#allocation4 + $0x20] sm:$0x1]
      %v9654 = vld [vmem:[#allocation4 + $0x24] sm:$0xf]
      %v9655 = vld [vmem:[#allocation4 + $0x28] sm:$0xf]
      %v9656 = vld [vmem:[#allocation4 + $0x2c] sm:$0x1]
      %v9657 = vld [vmem:[#allocation4 + $0x30] sm:$0xf]
      %v9658 = vld [vmem:[#allocation4 + $0x34] sm:$0xf]
      %v9659 = vld [vmem:[#allocation4 + $0x38] sm:$0x1]
      %v9660 = vld [vmem:[#allocation4 + $0x3c] sm:$0xf]
      %v9661 = vld [vmem:[#allocation4 + $0x40] sm:$0xf]
      %v9662 = vld [vmem:[#allocation4 + $0x44] sm:$0x1]
      %v9663 = vld [vmem:[#allocation4 + $0x48] sm:$0xf]
      %v9664 = vld [vmem:[#allocation4 + $0x4c] sm:$0xf]
      %v9665 = vld [vmem:[#allocation4 + $0x50] sm:$0x1]
      %v9666 = vld [vmem:[#allocation4 + $0x54] sm:$0xf]
      %v9667 = vld [vmem:[#allocation4 + $0x58] sm:$0xf]
      %v9668 = vld [vmem:[#allocation4 + $0x5c] sm:$0x1]
      %v9669 = vld [vmem:[#allocation4 + $0x60] sm:$0xf]
      %v9670 = vld [vmem:[#allocation4 + $0x64] sm:$0xf]
      %v9671 = vld [vmem:[#allocation4 + $0x68] sm:$0x1]
      %v9672 = vld [vmem:[#allocation4 + $0x6c] sm:$0xf]
      %v9673 = vld [vmem:[#allocation4 + $0x70] sm:$0xf]
      %v9674 = vld [vmem:[#allocation4 + $0x74] sm:$0x1]
      %v9675 = vld [vmem:[#allocation4 + $0x78] sm:$0xf]
      %v9676 = vld [vmem:[#allocation4 + $0x7c] sm:$0xf]
      %v9677 = vld [vmem:[#allocation4 + $0x80] sm:$0x1]
      %v9678 = vld [vmem:[#allocation4 + $0x84] sm:$0xf]
      %v9679 = vld [vmem:[#allocation4 + $0x88] sm:$0xf]
      %v9680 = vld [vmem:[#allocation4 + $0x8c] sm:$0x1]
      %v9681 = vld [vmem:[#allocation4 + $0x90] sm:$0xf]
      %v9682 = vld [vmem:[#allocation4 + $0x94] sm:$0xf]
      %v9683 = vld [vmem:[#allocation4 + $0x98] sm:$0x1]
      %v9684 = vld [vmem:[#allocation4 + $0x9c] sm:$0xf]
      %v9685 = vld [vmem:[#allocation4 + $0xa0] sm:$0xf]
      %v9686 = vld [vmem:[#allocation4 + $0xa4] sm:$0x1]
      %v9687 = vld [vmem:[#allocation4 + $0xa8] sm:$0xf]
      %v9688 = vld [vmem:[#allocation4 + $0xac] sm:$0xf]
      %v9689 = vld [vmem:[#allocation4 + $0xb0] sm:$0x1]
      %v9690 = vld [vmem:[#allocation4 + $0xb4] sm:$0xf]
      %v9691 = vld [vmem:[#allocation4 + $0xb8] sm:$0xf]
      %v9692 = vld [vmem:[#allocation4 + $0xbc] sm:$0x1]
      %v9725 = vunpack.c.l.b16 %v9645
      %v9726 = vunpack.c.l.b16 %v9646
      %v9727 = vunpack.c.l.b16 %v9648
      %v9728 = vunpack.c.l.b16 %v9649
      %v9729 = vunpack.c.l.b16 %v9651
      %v9730 = vunpack.c.l.b16 %v9652
      %v9731 = vunpack.c.l.b16 %v9654
      %v9732 = vunpack.c.l.b16 %v9655
      %v9733 = vunpack.c.l.b16 %v9657
      %v9734 = vunpack.c.l.b16 %v9658
      %v9735 = vunpack.c.l.b16 %v9660
      %v9736 = vunpack.c.l.b16 %v9661
      %v9737 = vunpack.c.l.b16 %v9663
      %v9738 = vunpack.c.l.b16 %v9664
      %v9739 = vunpack.c.l.b16 %v9666
      %v9740 = vunpack.c.l.b16 %v9667
      %v9741 = vunpack.c.l.b16 %v9669
      %v9742 = vunpack.c.l.b16 %v9670
      %v9743 = vunpack.c.l.b16 %v9672
      %v9744 = vunpack.c.l.b16 %v9673
      %v9745 = vunpack.c.l.b16 %v9675
      %v9746 = vunpack.c.l.b16 %v9676
      %v9747 = vunpack.c.l.b16 %v9678
      %v9748 = vunpack.c.l.b16 %v9679
      %v9749 = vunpack.c.l.b16 %v9681
      %v9750 = vunpack.c.l.b16 %v9682
      %v9751 = vunpack.c.l.b16 %v9684
      %v9752 = vunpack.c.l.b16 %v9685
      %v9753 = vunpack.c.l.b16 %v9687
      %v9754 = vunpack.c.l.b16 %v9688
      %v9755 = vunpack.c.l.b16 %v9690
      %v9756 = vunpack.c.l.b16 %v9691
      %v9757 = vpack.c.b16 %v9726, %v9725
      %v9758 = vpack.c.b16 %v9728, %v9727
      %v9759 = vpack.c.b16 %v9730, %v9729
      %v9760 = vpack.c.b16 %v9732, %v9731
      %v9761 = vpack.c.b16 %v9734, %v9733
      %v9762 = vpack.c.b16 %v9736, %v9735
      %v9763 = vpack.c.b16 %v9738, %v9737
      %v9764 = vpack.c.b16 %v9740, %v9739
      %v9765 = vpack.c.b16 %v9742, %v9741
      %v9766 = vpack.c.b16 %v9744, %v9743
      %v9767 = vpack.c.b16 %v9746, %v9745
      %v9768 = vpack.c.b16 %v9748, %v9747
      %v9769 = vpack.c.b16 %v9750, %v9749
      %v9770 = vpack.c.b16 %v9752, %v9751
      %v9771 = vpack.c.b16 %v9754, %v9753
      %v9772 = vpack.c.b16 %v9756, %v9755
      %v9789 = vunpack.c.l.b16 %v9647
      %v9790 = vunpack.c.l.b16 %v9650
      %v9791 = vunpack.c.l.b16 %v9653
      %v9792 = vunpack.c.l.b16 %v9656
      %v9793 = vunpack.c.l.b16 %v9659
      %v9794 = vunpack.c.l.b16 %v9662
      %v9795 = vunpack.c.l.b16 %v9665
      %v9796 = vunpack.c.l.b16 %v9668
      %v9797 = vunpack.c.l.b16 %v9671
      %v9798 = vunpack.c.l.b16 %v9674
      %v9799 = vunpack.c.l.b16 %v9677
      %v9800 = vunpack.c.l.b16 %v9680
      %v9801 = vunpack.c.l.b16 %v9683
      %v9802 = vunpack.c.l.b16 %v9686
      %v9803 = vunpack.c.l.b16 %v9689
      %v9804 = vunpack.c.l.b16 %v9692
      %v9805 = vpack.c.b16 %v9789, %v9789
      %v9806 = vpack.c.b16 %v9790, %v9790
      %v9807 = vpack.c.b16 %v9791, %v9791
      %v9808 = vpack.c.b16 %v9792, %v9792
      %v9809 = vpack.c.b16 %v9793, %v9793
      %v9810 = vpack.c.b16 %v9794, %v9794
      %v9811 = vpack.c.b16 %v9795, %v9795
      %v9812 = vpack.c.b16 %v9796, %v9796
      %v9813 = vpack.c.b16 %v9797, %v9797
      %v9814 = vpack.c.b16 %v9798, %v9798
      %v9815 = vpack.c.b16 %v9799, %v9799
      %v9816 = vpack.c.b16 %v9800, %v9800
      %v9817 = vpack.c.b16 %v9801, %v9801
      %v9818 = vpack.c.b16 %v9802, %v9802
      %v9819 = vpack.c.b16 %v9803, %v9803
      %v9820 = vpack.c.b16 %v9804, %v9804
      %v9822 = vshrl.u32 %v9757, 16
      %v9824 = vshll.u32 %v9757, 16
      %v9826 = vrot.slane %v9824, 1
      %v9827 = vor.u32 %v9822, %v9826
      %v9829 = vshll.u32 %v9805, 16
      %v9831 = vrot.slane %v9829, 1
      %v9832 = vsel %vm2237, %v9827, %v9831
      %v9834 = vshrl.u32 %v9758, 16
      %v9836 = vshll.u32 %v9758, 16
      %v9838 = vrot.slane %v9836, 1
      %v9839 = vor.u32 %v9834, %v9838
      %v9841 = vshll.u32 %v9806, 16
      %v9843 = vrot.slane %v9841, 1
      %v9844 = vsel %vm2237, %v9839, %v9843
      %v9846 = vshrl.u32 %v9759, 16
      %v9848 = vshll.u32 %v9759, 16
      %v9850 = vrot.slane %v9848, 1
      %v9851 = vor.u32 %v9846, %v9850
      %v9853 = vshll.u32 %v9807, 16
      %v9855 = vrot.slane %v9853, 1
      %v9856 = vsel %vm2237, %v9851, %v9855
      %v9858 = vshrl.u32 %v9760, 16
      %v9860 = vshll.u32 %v9760, 16
      %v9862 = vrot.slane %v9860, 1
      %v9863 = vor.u32 %v9858, %v9862
      %v9865 = vshll.u32 %v9808, 16
      %v9867 = vrot.slane %v9865, 1
      %v9868 = vsel %vm2237, %v9863, %v9867
      %v9870 = vshrl.u32 %v9761, 16
      %v9872 = vshll.u32 %v9761, 16
      %v9874 = vrot.slane %v9872, 1
      %v9875 = vor.u32 %v9870, %v9874
      %v9877 = vshll.u32 %v9809, 16
      %v9879 = vrot.slane %v9877, 1
      %v9880 = vsel %vm2237, %v9875, %v9879
      %v9882 = vshrl.u32 %v9762, 16
      %v9884 = vshll.u32 %v9762, 16
      %v9886 = vrot.slane %v9884, 1
      %v9887 = vor.u32 %v9882, %v9886
      %v9889 = vshll.u32 %v9810, 16
      %v9891 = vrot.slane %v9889, 1
      %v9892 = vsel %vm2237, %v9887, %v9891
      %v9894 = vshrl.u32 %v9763, 16
      %v9896 = vshll.u32 %v9763, 16
      %v9898 = vrot.slane %v9896, 1
      %v9899 = vor.u32 %v9894, %v9898
      %v9901 = vshll.u32 %v9811, 16
      %v9903 = vrot.slane %v9901, 1
      %v9904 = vsel %vm2237, %v9899, %v9903
      %v9906 = vshrl.u32 %v9764, 16
      %v9908 = vshll.u32 %v9764, 16
      %v9910 = vrot.slane %v9908, 1
      %v9911 = vor.u32 %v9906, %v9910
      %v9913 = vshll.u32 %v9812, 16
      %v9915 = vrot.slane %v9913, 1
      %v9916 = vsel %vm2237, %v9911, %v9915
      %v9918 = vshrl.u32 %v9765, 16
      %v9920 = vshll.u32 %v9765, 16
      %v9922 = vrot.slane %v9920, 1
      %v9923 = vor.u32 %v9918, %v9922
      %v9925 = vshll.u32 %v9813, 16
      %v9927 = vrot.slane %v9925, 1
      %v9928 = vsel %vm2237, %v9923, %v9927
      %v9930 = vshrl.u32 %v9766, 16
      %v9932 = vshll.u32 %v9766, 16
      %v9934 = vrot.slane %v9932, 1
      %v9935 = vor.u32 %v9930, %v9934
      %v9937 = vshll.u32 %v9814, 16
      %v9939 = vrot.slane %v9937, 1
      %v9940 = vsel %vm2237, %v9935, %v9939
      %v9942 = vshrl.u32 %v9767, 16
      %v9944 = vshll.u32 %v9767, 16
      %v9946 = vrot.slane %v9944, 1
      %v9947 = vor.u32 %v9942, %v9946
      %v9949 = vshll.u32 %v9815, 16
      %v9951 = vrot.slane %v9949, 1
      %v9952 = vsel %vm2237, %v9947, %v9951
      %v9954 = vshrl.u32 %v9768, 16
      %v9956 = vshll.u32 %v9768, 16
      %v9958 = vrot.slane %v9956, 1
      %v9959 = vor.u32 %v9954, %v9958
      %v9961 = vshll.u32 %v9816, 16
      %v9963 = vrot.slane %v9961, 1
      %v9964 = vsel %vm2237, %v9959, %v9963
      %v9966 = vshrl.u32 %v9769, 16
      %v9968 = vshll.u32 %v9769, 16
      %v9970 = vrot.slane %v9968, 1
      %v9971 = vor.u32 %v9966, %v9970
      %v9973 = vshll.u32 %v9817, 16
      %v9975 = vrot.slane %v9973, 1
      %v9976 = vsel %vm2237, %v9971, %v9975
      %v9978 = vshrl.u32 %v9770, 16
      %v9980 = vshll.u32 %v9770, 16
      %v9982 = vrot.slane %v9980, 1
      %v9983 = vor.u32 %v9978, %v9982
      %v9985 = vshll.u32 %v9818, 16
      %v9987 = vrot.slane %v9985, 1
      %v9988 = vsel %vm2237, %v9983, %v9987
      %v9990 = vshrl.u32 %v9771, 16
      %v9992 = vshll.u32 %v9771, 16
      %v9994 = vrot.slane %v9992, 1
      %v9995 = vor.u32 %v9990, %v9994
      %v9997 = vshll.u32 %v9819, 16
      %v9999 = vrot.slane %v9997, 1
      %v10000 = vsel %vm2237, %v9995, %v9999
      %v10002 = vshrl.u32 %v9772, 16
      %v10004 = vshll.u32 %v9772, 16
      %v10006 = vrot.slane %v10004, 1
      %v10007 = vor.u32 %v10002, %v10006
      %v10009 = vshll.u32 %v9820, 16
      %v10011 = vrot.slane %v10009, 1
      %v10012 = vsel %vm2237, %v10007, %v10011
      %10013 = vrot.lane.b32.xlu0 %v9832, 4
      %v10014 = vpop.permute.xlu0 %10013
      %10015 = vrot.lane.b32.xlu0 %v9844, 4
      %v10016 = vpop.permute.xlu0 %10015
      %10017 = vrot.lane.b32.xlu0 %v9856, 4
      %v10018 = vpop.permute.xlu0 %10017
      %10019 = vrot.lane.b32.xlu0 %v9868, 4
      %v10020 = vpop.permute.xlu0 %10019
      %10021 = vrot.lane.b32.xlu0 %v9880, 4
      %v10022 = vpop.permute.xlu0 %10021
      %10023 = vrot.lane.b32.xlu0 %v9892, 4
      %v10024 = vpop.permute.xlu0 %10023
      %10025 = vrot.lane.b32.xlu0 %v9904, 4
      %v10026 = vpop.permute.xlu0 %10025
      %10027 = vrot.lane.b32.xlu0 %v9916, 4
      %v10028 = vpop.permute.xlu0 %10027
      %10029 = vrot.lane.b32.xlu0 %v9928, 4
      %v10030 = vpop.permute.xlu0 %10029
      %10031 = vrot.lane.b32.xlu0 %v9940, 4
      %v10032 = vpop.permute.xlu0 %10031
      %10033 = vrot.lane.b32.xlu0 %v9952, 4
      %v10034 = vpop.permute.xlu0 %10033
      %10035 = vrot.lane.b32.xlu0 %v9964, 4
      %v10036 = vpop.permute.xlu0 %10035
      %10037 = vrot.lane.b32.xlu0 %v9976, 4
      %v10038 = vpop.permute.xlu0 %10037
      %10039 = vrot.lane.b32.xlu0 %v9988, 4
      %v10040 = vpop.permute.xlu0 %10039
      %10041 = vrot.lane.b32.xlu0 %v10000, 4
      %v10042 = vpop.permute.xlu0 %10041
      %10043 = vrot.lane.b32.xlu0 %v10012, 4
      %v10044 = vpop.permute.xlu0 %10043
      %v10045 = vrot.slane %v9757, 1
      %v10046 = vrot.slane %v9805, 1
      %v10047 = vsel %vm2462, %v10045, %v10046
      %v10048 = vrot.slane %v9758, 1
      %v10049 = vrot.slane %v9806, 1
      %v10050 = vsel %vm2462, %v10048, %v10049
      %v10051 = vrot.slane %v9759, 1
      %v10052 = vrot.slane %v9807, 1
      %v10053 = vsel %vm2462, %v10051, %v10052
      %v10054 = vrot.slane %v9760, 1
      %v10055 = vrot.slane %v9808, 1
      %v10056 = vsel %vm2462, %v10054, %v10055
      %v10057 = vrot.slane %v9761, 1
      %v10058 = vrot.slane %v9809, 1
      %v10059 = vsel %vm2462, %v10057, %v10058
      %v10060 = vrot.slane %v9762, 1
      %v10061 = vrot.slane %v9810, 1
      %v10062 = vsel %vm2462, %v10060, %v10061
      %v10063 = vrot.slane %v9763, 1
      %v10064 = vrot.slane %v9811, 1
      %v10065 = vsel %vm2462, %v10063, %v10064
      %v10066 = vrot.slane %v9764, 1
      %v10067 = vrot.slane %v9812, 1
      %v10068 = vsel %vm2462, %v10066, %v10067
      %v10069 = vrot.slane %v9765, 1
      %v10070 = vrot.slane %v9813, 1
      %v10071 = vsel %vm2462, %v10069, %v10070
      %v10072 = vrot.slane %v9766, 1
      %v10073 = vrot.slane %v9814, 1
      %v10074 = vsel %vm2462, %v10072, %v10073
      %v10075 = vrot.slane %v9767, 1
      %v10076 = vrot.slane %v9815, 1
      %v10077 = vsel %vm2462, %v10075, %v10076
      %v10078 = vrot.slane %v9768, 1
      %v10079 = vrot.slane %v9816, 1
      %v10080 = vsel %vm2462, %v10078, %v10079
      %v10081 = vrot.slane %v9769, 1
      %v10082 = vrot.slane %v9817, 1
      %v10083 = vsel %vm2462, %v10081, %v10082
      %v10084 = vrot.slane %v9770, 1
      %v10085 = vrot.slane %v9818, 1
      %v10086 = vsel %vm2462, %v10084, %v10085
      %v10087 = vrot.slane %v9771, 1
      %v10088 = vrot.slane %v9819, 1
      %v10089 = vsel %vm2462, %v10087, %v10088
      %v10090 = vrot.slane %v9772, 1
      %v10091 = vrot.slane %v9820, 1
      %v10092 = vsel %vm2462, %v10090, %v10091
      %10093 = vrot.lane.b32.xlu0 %v10047, 8
      %v10094 = vpop.permute.xlu0 %10093
      %10095 = vrot.lane.b32.xlu0 %v10050, 8
      %v10096 = vpop.permute.xlu0 %10095
      %10097 = vrot.lane.b32.xlu0 %v10053, 8
      %v10098 = vpop.permute.xlu0 %10097
      %10099 = vrot.lane.b32.xlu0 %v10056, 8
      %v10100 = vpop.permute.xlu0 %10099
      %10101 = vrot.lane.b32.xlu0 %v10059, 8
      %v10102 = vpop.permute.xlu0 %10101
      %10103 = vrot.lane.b32.xlu0 %v10062, 8
      %v10104 = vpop.permute.xlu0 %10103
      %10105 = vrot.lane.b32.xlu0 %v10065, 8
      %v10106 = vpop.permute.xlu0 %10105
      %10107 = vrot.lane.b32.xlu0 %v10068, 8
      %v10108 = vpop.permute.xlu0 %10107
      %10109 = vrot.lane.b32.xlu0 %v10071, 8
      %v10110 = vpop.permute.xlu0 %10109
      %10111 = vrot.lane.b32.xlu0 %v10074, 8
      %v10112 = vpop.permute.xlu0 %10111
      %10113 = vrot.lane.b32.xlu0 %v10077, 8
      %v10114 = vpop.permute.xlu0 %10113
      %10115 = vrot.lane.b32.xlu0 %v10080, 8
      %v10116 = vpop.permute.xlu0 %10115
      %10117 = vrot.lane.b32.xlu0 %v10083, 8
      %v10118 = vpop.permute.xlu0 %10117
      %10119 = vrot.lane.b32.xlu0 %v10086, 8
      %v10120 = vpop.permute.xlu0 %10119
      %10121 = vrot.lane.b32.xlu0 %v10089, 8
      %v10122 = vpop.permute.xlu0 %10121
      %10123 = vrot.lane.b32.xlu0 %v10092, 8
      %v10124 = vpop.permute.xlu0 %10123
      %v10126 = vsel %vm1385, %v9757, %v10014
      %v10128 = vsel %vm1385, %v9758, %v10016
      %v10130 = vsel %vm1385, %v9759, %v10018
      %v10132 = vsel %vm1385, %v9760, %v10020
      %v10134 = vsel %vm1385, %v9761, %v10022
      %v10136 = vsel %vm1385, %v9762, %v10024
      %v10138 = vsel %vm1385, %v9763, %v10026
      %v10140 = vsel %vm1385, %v9764, %v10028
      %v10142 = vsel %vm1385, %v9765, %v10030
      %v10144 = vsel %vm1385, %v9766, %v10032
      %v10146 = vsel %vm1385, %v9767, %v10034
      %v10148 = vsel %vm1385, %v9768, %v10036
      %v10150 = vsel %vm1385, %v9769, %v10038
      %v10152 = vsel %vm1385, %v9770, %v10040
      %v10154 = vsel %vm1385, %v9771, %v10042
      %v10156 = vsel %vm1385, %v9772, %v10044
      %v10158 = vsel %vm2543, %v10126, %v10094
      %v10160 = vsel %vm2543, %v10128, %v10096
      %v10162 = vsel %vm2543, %v10130, %v10098
      %v10164 = vsel %vm2543, %v10132, %v10100
      %v10166 = vsel %vm2543, %v10134, %v10102
      %v10168 = vsel %vm2543, %v10136, %v10104
      %v10170 = vsel %vm2543, %v10138, %v10106
      %v10172 = vsel %vm2543, %v10140, %v10108
      %v10174 = vsel %vm2543, %v10142, %v10110
      %v10176 = vsel %vm2543, %v10144, %v10112
      %v10178 = vsel %vm2543, %v10146, %v10114
      %v10180 = vsel %vm2543, %v10148, %v10116
      %v10182 = vsel %vm2543, %v10150, %v10118
      %v10184 = vsel %vm2543, %v10152, %v10120
      %v10186 = vsel %vm2543, %v10154, %v10122
      %v10188 = vsel %vm2543, %v10156, %v10124
      %v10189 = vld [vmem:[%s4] sm:$0xf]
      %v10190 = vld [vmem:[%s4 + $0x4] sm:$0x3]
      %v10193 = vunpack.c.l.b16 %v10189
      %v10194 = vunpack.c.l.b16 %v10190
      %v10195 = vpack.c.b16 %v10194, %v10193
      %v10196 = vsel %vm6606, %v10158, 0
      %v10198 = vsel %vm6606, %v10160, 0
      %v10200 = vsel %vm6606, %v10162, 0
      %v10202 = vsel %vm6606, %v10164, 0
      %v10204 = vsel %vm6606, %v10166, 0
      %v10206 = vsel %vm6606, %v10168, 0
      %v10208 = vsel %vm6606, %v10170, 0
      %v10210 = vsel %vm6606, %v10172, 0
      %v10212 = vsel %vm6606, %v10174, 0
      %v10214 = vsel %vm6606, %v10176, 0
      %v10216 = vsel %vm6606, %v10178, 0
      %v10218 = vsel %vm6606, %v10180, 0
      %v10220 = vsel %vm6606, %v10182, 0
      %v10222 = vsel %vm6606, %v10184, 0
      %v10224 = vsel %vm6606, %v10186, 0
      %v10226 = vsel %vm6606, %v10188, 0
      %v10229 = vsel %vm6619, %v10195, 0
      %10231 = vmatpush.bf16.msra.mxu0 0
      %10232 = vmatpush.bf16.msra.mxu0 0
      %10233 = vmatpush.bf16.msra.mxu0 0
      %10234 = vmatpush.bf16.msra.mxu0 0
      %10235 = vmatpush.bf16.msra.mxu0 0
      %10236 = vmatpush.bf16.msra.mxu0 0
      %10237 = vmatpush.bf16.msra.mxu0 0
      %10238 = vmatpush.bf16.msra.mxu0 %v10229
      %10239 = vmatmul.bf16.gmra.mxu0 %v10196
      %v10240 = vpop.f32.mrf.mxu0
      %v10241 = vadd.f32 0.0, %v10240
      %v10242 = vpop.f32.mrf.mxu0
      %v10243 = vadd.f32 0.0, %v10242
      %10244 = vmatmul.bf16.gmra.mxu0 %v10198
      %v10245 = vpop.f32.mrf.mxu0
      %v10246 = vadd.f32 0.0, %v10245
      %v10247 = vpop.f32.mrf.mxu0
      %v10248 = vadd.f32 0.0, %v10247
      %10249 = vmatmul.bf16.gmra.mxu0 %v10200
      %v10250 = vpop.f32.mrf.mxu0
      %v10251 = vadd.f32 0.0, %v10250
      %v10252 = vpop.f32.mrf.mxu0
      %v10253 = vadd.f32 0.0, %v10252
      %10254 = vmatmul.bf16.gmra.mxu0 %v10202
      %v10255 = vpop.f32.mrf.mxu0
      %v10256 = vadd.f32 0.0, %v10255
      %v10257 = vpop.f32.mrf.mxu0
      %v10258 = vadd.f32 0.0, %v10257
      %10259 = vmatmul.bf16.gmra.mxu0 %v10204
      %v10260 = vpop.f32.mrf.mxu0
      %v10261 = vadd.f32 0.0, %v10260
      %v10262 = vpop.f32.mrf.mxu0
      %v10263 = vadd.f32 0.0, %v10262
      %10264 = vmatmul.bf16.gmra.mxu0 %v10206
      %v10265 = vpop.f32.mrf.mxu0
      %v10266 = vadd.f32 0.0, %v10265
      %v10267 = vpop.f32.mrf.mxu0
      %v10268 = vadd.f32 0.0, %v10267
      %10269 = vmatmul.bf16.gmra.mxu0 %v10208
      %v10270 = vpop.f32.mrf.mxu0
      %v10271 = vadd.f32 0.0, %v10270
      %v10272 = vpop.f32.mrf.mxu0
      %v10273 = vadd.f32 0.0, %v10272
      %10274 = vmatmul.bf16.gmra.mxu0 %v10210
      %v10275 = vpop.f32.mrf.mxu0
      %v10276 = vadd.f32 0.0, %v10275
      %v10277 = vpop.f32.mrf.mxu0
      %v10278 = vadd.f32 0.0, %v10277
      %10279 = vmatmul.bf16.gmra.mxu0 %v10212
      %v10280 = vpop.f32.mrf.mxu0
      %v10281 = vadd.f32 0.0, %v10280
      %v10282 = vpop.f32.mrf.mxu0
      %v10283 = vadd.f32 0.0, %v10282
      %10284 = vmatmul.bf16.gmra.mxu0 %v10214
      %v10285 = vpop.f32.mrf.mxu0
      %v10286 = vadd.f32 0.0, %v10285
      %v10287 = vpop.f32.mrf.mxu0
      %v10288 = vadd.f32 0.0, %v10287
      %10289 = vmatmul.bf16.gmra.mxu0 %v10216
      %v10290 = vpop.f32.mrf.mxu0
      %v10291 = vadd.f32 0.0, %v10290
      %v10292 = vpop.f32.mrf.mxu0
      %v10293 = vadd.f32 0.0, %v10292
      %10294 = vmatmul.bf16.gmra.mxu0 %v10218
      %v10295 = vpop.f32.mrf.mxu0
      %v10296 = vadd.f32 0.0, %v10295
      %v10297 = vpop.f32.mrf.mxu0
      %v10298 = vadd.f32 0.0, %v10297
      %10299 = vmatmul.bf16.gmra.mxu0 %v10220
      %v10300 = vpop.f32.mrf.mxu0
      %v10301 = vadd.f32 0.0, %v10300
      %v10302 = vpop.f32.mrf.mxu0
      %v10303 = vadd.f32 0.0, %v10302
      %10304 = vmatmul.bf16.gmra.mxu0 %v10222
      %v10305 = vpop.f32.mrf.mxu0
      %v10306 = vadd.f32 0.0, %v10305
      %v10307 = vpop.f32.mrf.mxu0
      %v10308 = vadd.f32 0.0, %v10307
      %10309 = vmatmul.bf16.gmra.mxu0 %v10224
      %v10310 = vpop.f32.mrf.mxu0
      %v10311 = vadd.f32 0.0, %v10310
      %v10312 = vpop.f32.mrf.mxu0
      %v10313 = vadd.f32 0.0, %v10312
      %10314 = vmatmul.bf16.gmra.mxu0 %v10226
      %v10315 = vpop.f32.mrf.mxu0
      %v10316 = vadd.f32 0.0, %v10315
      %v10317 = vpop.f32.mrf.mxu0
      %v10318 = vadd.f32 0.0, %v10317
      %10319 = vdwg.mxu0
      %v10352 = vrot.slane %v10241, 2
      %v10353 = vrot.slane %v10241, 4
      %v10354 = vrot.slane %v10241, 6
      %v10355 = vrot.slane %v10243, 2
      %v10356 = vrot.slane %v10243, 4
      %v10357 = vrot.slane %v10243, 6
      %v10358 = vrot.slane %v10246, 2
      %v10359 = vrot.slane %v10246, 4
      %v10360 = vrot.slane %v10246, 6
      %v10361 = vrot.slane %v10248, 2
      %v10362 = vrot.slane %v10248, 4
      %v10363 = vrot.slane %v10248, 6
      %v10364 = vrot.slane %v10251, 2
      %v10365 = vrot.slane %v10251, 4
      %v10366 = vrot.slane %v10251, 6
      %v10367 = vrot.slane %v10253, 2
      %v10368 = vrot.slane %v10253, 4
      %v10369 = vrot.slane %v10253, 6
      %v10370 = vrot.slane %v10256, 2
      %v10371 = vrot.slane %v10256, 4
      %v10372 = vrot.slane %v10256, 6
      %v10373 = vrot.slane %v10258, 2
      %v10374 = vrot.slane %v10258, 4
      %v10375 = vrot.slane %v10258, 6
      %v10376 = vrot.slane %v10261, 2
      %v10377 = vrot.slane %v10261, 4
      %v10378 = vrot.slane %v10261, 6
      %v10379 = vrot.slane %v10263, 2
      %v10380 = vrot.slane %v10263, 4
      %v10381 = vrot.slane %v10263, 6
      %v10382 = vrot.slane %v10266, 2
      %v10383 = vrot.slane %v10266, 4
      %v10384 = vrot.slane %v10266, 6
      %v10385 = vrot.slane %v10268, 2
      %v10386 = vrot.slane %v10268, 4
      %v10387 = vrot.slane %v10268, 6
      %v10388 = vrot.slane %v10271, 2
      %v10389 = vrot.slane %v10271, 4
      %v10390 = vrot.slane %v10271, 6
      %v10391 = vrot.slane %v10273, 2
      %v10392 = vrot.slane %v10273, 4
      %v10393 = vrot.slane %v10273, 6
      %v10394 = vrot.slane %v10276, 2
      %v10395 = vrot.slane %v10276, 4
      %v10396 = vrot.slane %v10276, 6
      %v10397 = vrot.slane %v10278, 2
      %v10398 = vrot.slane %v10278, 4
      %v10399 = vrot.slane %v10278, 6
      %v10400 = vrot.slane %v10281, 2
      %v10401 = vrot.slane %v10281, 4
      %v10402 = vrot.slane %v10281, 6
      %v10403 = vrot.slane %v10283, 2
      %v10404 = vrot.slane %v10283, 4
      %v10405 = vrot.slane %v10283, 6
      %v10406 = vrot.slane %v10286, 2
      %v10407 = vrot.slane %v10286, 4
      %v10408 = vrot.slane %v10286, 6
      %v10409 = vrot.slane %v10288, 2
      %v10410 = vrot.slane %v10288, 4
      %v10411 = vrot.slane %v10288, 6
      %v10412 = vrot.slane %v10291, 2
      %v10413 = vrot.slane %v10291, 4
      %v10414 = vrot.slane %v10291, 6
      %v10415 = vrot.slane %v10293, 2
      %v10416 = vrot.slane %v10293, 4
      %v10417 = vrot.slane %v10293, 6
      %v10418 = vrot.slane %v10296, 2
      %v10419 = vrot.slane %v10296, 4
      %v10420 = vrot.slane %v10296, 6
      %v10421 = vrot.slane %v10298, 2
      %v10422 = vrot.slane %v10298, 4
      %v10423 = vrot.slane %v10298, 6
      %v10424 = vrot.slane %v10301, 2
      %v10425 = vrot.slane %v10301, 4
      %v10426 = vrot.slane %v10301, 6
      %v10427 = vrot.slane %v10303, 2
      %v10428 = vrot.slane %v10303, 4
      %v10429 = vrot.slane %v10303, 6
      %v10430 = vrot.slane %v10306, 2
      %v10431 = vrot.slane %v10306, 4
      %v10432 = vrot.slane %v10306, 6
      %v10433 = vrot.slane %v10308, 2
      %v10434 = vrot.slane %v10308, 4
      %v10435 = vrot.slane %v10308, 6
      %v10436 = vrot.slane %v10311, 2
      %v10437 = vrot.slane %v10311, 4
      %v10438 = vrot.slane %v10311, 6
      %v10439 = vrot.slane %v10313, 2
      %v10440 = vrot.slane %v10313, 4
      %v10441 = vrot.slane %v10313, 6
      %v10442 = vrot.slane %v10316, 2
      %v10443 = vrot.slane %v10316, 4
      %v10444 = vrot.slane %v10316, 6
      %v10445 = vrot.slane %v10318, 2
      %v10446 = vrot.slane %v10318, 4
      %v10447 = vrot.slane %v10318, 6
      %v10544 = vadd.f32 %v9517, %v10241
      %v10545 = vadd.f32 %v9518, %v10352
      %v10546 = vadd.f32 %v9519, %v10353
      %v10547 = vadd.f32 %v9520, %v10354
      %v10548 = vadd.f32 %v9521, %v10243
      %v10549 = vadd.f32 %v9522, %v10355
      %v10550 = vadd.f32 %v9523, %v10356
      %v10551 = vadd.f32 %v9524, %v10357
      %v10552 = vadd.f32 %v9517, %v10246
      %v10553 = vadd.f32 %v9518, %v10358
      %v10554 = vadd.f32 %v9519, %v10359
      %v10555 = vadd.f32 %v9520, %v10360
      %v10556 = vadd.f32 %v9521, %v10248
      %v10557 = vadd.f32 %v9522, %v10361
      %v10558 = vadd.f32 %v9523, %v10362
      %v10559 = vadd.f32 %v9524, %v10363
      %v10560 = vadd.f32 %v9525, %v10251
      %v10561 = vadd.f32 %v9526, %v10364
      %v10562 = vadd.f32 %v9527, %v10365
      %v10563 = vadd.f32 %v9528, %v10366
      %v10564 = vadd.f32 %v9529, %v10253
      %v10565 = vadd.f32 %v9530, %v10367
      %v10566 = vadd.f32 %v9531, %v10368
      %v10567 = vadd.f32 %v9532, %v10369
      %v10568 = vadd.f32 %v9525, %v10256
      %v10569 = vadd.f32 %v9526, %v10370
      %v10570 = vadd.f32 %v9527, %v10371
      %v10571 = vadd.f32 %v9528, %v10372
      %v10572 = vadd.f32 %v9529, %v10258
      %v10573 = vadd.f32 %v9530, %v10373
      %v10574 = vadd.f32 %v9531, %v10374
      %v10575 = vadd.f32 %v9532, %v10375
      %v10576 = vadd.f32 %v9533, %v10261
      %v10577 = vadd.f32 %v9534, %v10376
      %v10578 = vadd.f32 %v9535, %v10377
      %v10579 = vadd.f32 %v9536, %v10378
      %v10580 = vadd.f32 %v9537, %v10263
      %v10581 = vadd.f32 %v9538, %v10379
      %v10582 = vadd.f32 %v9539, %v10380
      %v10583 = vadd.f32 %v9540, %v10381
      %v10584 = vadd.f32 %v9533, %v10266
      %v10585 = vadd.f32 %v9534, %v10382
      %v10586 = vadd.f32 %v9535, %v10383
      %v10587 = vadd.f32 %v9536, %v10384
      %v10588 = vadd.f32 %v9537, %v10268
      %v10589 = vadd.f32 %v9538, %v10385
      %v10590 = vadd.f32 %v9539, %v10386
      %v10591 = vadd.f32 %v9540, %v10387
      %v10592 = vadd.f32 %v9541, %v10271
      %v10593 = vadd.f32 %v9542, %v10388
      %v10594 = vadd.f32 %v9543, %v10389
      %v10595 = vadd.f32 %v9544, %v10390
      %v10596 = vadd.f32 %v9545, %v10273
      %v10597 = vadd.f32 %v9546, %v10391
      %v10598 = vadd.f32 %v9547, %v10392
      %v10599 = vadd.f32 %v9548, %v10393
      %v10600 = vadd.f32 %v9541, %v10276
      %v10601 = vadd.f32 %v9542, %v10394
      %v10602 = vadd.f32 %v9543, %v10395
      %v10603 = vadd.f32 %v9544, %v10396
      %v10604 = vadd.f32 %v9545, %v10278
      %v10605 = vadd.f32 %v9546, %v10397
      %v10606 = vadd.f32 %v9547, %v10398
      %v10607 = vadd.f32 %v9548, %v10399
      %v10608 = vadd.f32 %v9549, %v10281
      %v10609 = vadd.f32 %v9550, %v10400
      %v10610 = vadd.f32 %v9551, %v10401
      %v10611 = vadd.f32 %v9552, %v10402
      %v10612 = vadd.f32 %v9553, %v10283
      %v10613 = vadd.f32 %v9554, %v10403
      %v10614 = vadd.f32 %v9555, %v10404
      %v10615 = vadd.f32 %v9556, %v10405
      %v10616 = vadd.f32 %v9549, %v10286
      %v10617 = vadd.f32 %v9550, %v10406
      %v10618 = vadd.f32 %v9551, %v10407
      %v10619 = vadd.f32 %v9552, %v10408
      %v10620 = vadd.f32 %v9553, %v10288
      %v10621 = vadd.f32 %v9554, %v10409
      %v10622 = vadd.f32 %v9555, %v10410
      %v10623 = vadd.f32 %v9556, %v10411
      %v10624 = vadd.f32 %v9557, %v10291
      %v10625 = vadd.f32 %v9558, %v10412
      %v10626 = vadd.f32 %v9559, %v10413
      %v10627 = vadd.f32 %v9560, %v10414
      %v10628 = vadd.f32 %v9561, %v10293
      %v10629 = vadd.f32 %v9562, %v10415
      %v10630 = vadd.f32 %v9563, %v10416
      %v10631 = vadd.f32 %v9564, %v10417
      %v10632 = vadd.f32 %v9557, %v10296
      %v10633 = vadd.f32 %v9558, %v10418
      %v10634 = vadd.f32 %v9559, %v10419
      %v10635 = vadd.f32 %v9560, %v10420
      %v10636 = vadd.f32 %v9561, %v10298
      %v10637 = vadd.f32 %v9562, %v10421
      %v10638 = vadd.f32 %v9563, %v10422
      %v10639 = vadd.f32 %v9564, %v10423
      %v10640 = vadd.f32 %v9565, %v10301
      %v10641 = vadd.f32 %v9566, %v10424
      %v10642 = vadd.f32 %v9567, %v10425
      %v10643 = vadd.f32 %v9568, %v10426
      %v10644 = vadd.f32 %v9569, %v10303
      %v10645 = vadd.f32 %v9570, %v10427
      %v10646 = vadd.f32 %v9571, %v10428
      %v10647 = vadd.f32 %v9572, %v10429
      %v10648 = vadd.f32 %v9565, %v10306
      %v10649 = vadd.f32 %v9566, %v10430
      %v10650 = vadd.f32 %v9567, %v10431
      %v10651 = vadd.f32 %v9568, %v10432
      %v10652 = vadd.f32 %v9569, %v10308
      %v10653 = vadd.f32 %v9570, %v10433
      %v10654 = vadd.f32 %v9571, %v10434
      %v10655 = vadd.f32 %v9572, %v10435
      %v10656 = vadd.f32 %v9573, %v10311
      %v10657 = vadd.f32 %v9574, %v10436
      %v10658 = vadd.f32 %v9575, %v10437
      %v10659 = vadd.f32 %v9576, %v10438
      %v10660 = vadd.f32 %v9577, %v10313
      %v10661 = vadd.f32 %v9578, %v10439
      %v10662 = vadd.f32 %v9579, %v10440
      %v10663 = vadd.f32 %v9580, %v10441
      %v10664 = vadd.f32 %v9573, %v10316
      %v10665 = vadd.f32 %v9574, %v10442
      %v10666 = vadd.f32 %v9575, %v10443
      %v10667 = vadd.f32 %v9576, %v10444
      %v10668 = vadd.f32 %v9577, %v10318
      %v10669 = vadd.f32 %v9578, %v10445
      %v10670 = vadd.f32 %v9579, %v10446
      %v10671 = vadd.f32 %v9580, %v10447
      %v10672 = vld [vmem:[%s8892] sm:$0xf]
      %v10673 = vld [vmem:[%s8892 + $0x4] sm:$0xf]
      %v10674 = vld [vmem:[%s8892 + $0x8] sm:$0x1]
      %v10675 = vld [vmem:[%s8892 + $0xc] sm:$0xf]
      %v10676 = vld [vmem:[%s8892 + $0x10] sm:$0xf]
      %v10677 = vld [vmem:[%s8892 + $0x14] sm:$0x1]
      %v10678 = vld [vmem:[%s8892 + $0x18] sm:$0xf]
      %v10679 = vld [vmem:[%s8892 + $0x1c] sm:$0xf]
      %v10680 = vld [vmem:[%s8892 + $0x20] sm:$0x1]
      %v10681 = vld [vmem:[%s8892 + $0x24] sm:$0xf]
      %v10682 = vld [vmem:[%s8892 + $0x28] sm:$0xf]
      %v10683 = vld [vmem:[%s8892 + $0x2c] sm:$0x1]
      %v10684 = vld [vmem:[%s8892 + $0x30] sm:$0xf]
      %v10685 = vld [vmem:[%s8892 + $0x34] sm:$0xf]
      %v10686 = vld [vmem:[%s8892 + $0x38] sm:$0x1]
      %v10687 = vld [vmem:[%s8892 + $0x3c] sm:$0xf]
      %v10688 = vld [vmem:[%s8892 + $0x40] sm:$0xf]
      %v10689 = vld [vmem:[%s8892 + $0x44] sm:$0x1]
      %v10690 = vld [vmem:[%s8892 + $0x48] sm:$0xf]
      %v10691 = vld [vmem:[%s8892 + $0x4c] sm:$0xf]
      %v10692 = vld [vmem:[%s8892 + $0x50] sm:$0x1]
      %v10693 = vld [vmem:[%s8892 + $0x54] sm:$0xf]
      %v10694 = vld [vmem:[%s8892 + $0x58] sm:$0xf]
      %v10695 = vld [vmem:[%s8892 + $0x5c] sm:$0x1]
      %v10696 = vld [vmem:[%s8892 + $0x60] sm:$0xf]
      %v10697 = vld [vmem:[%s8892 + $0x64] sm:$0xf]
      %v10698 = vld [vmem:[%s8892 + $0x68] sm:$0x1]
      %v10699 = vld [vmem:[%s8892 + $0x6c] sm:$0xf]
      %v10700 = vld [vmem:[%s8892 + $0x70] sm:$0xf]
      %v10701 = vld [vmem:[%s8892 + $0x74] sm:$0x1]
      %v10702 = vld [vmem:[%s8892 + $0x78] sm:$0xf]
      %v10703 = vld [vmem:[%s8892 + $0x7c] sm:$0xf]
      %v10704 = vld [vmem:[%s8892 + $0x80] sm:$0x1]
      %v10705 = vld [vmem:[%s8892 + $0x84] sm:$0xf]
      %v10706 = vld [vmem:[%s8892 + $0x88] sm:$0xf]
      %v10707 = vld [vmem:[%s8892 + $0x8c] sm:$0x1]
      %v10708 = vld [vmem:[%s8892 + $0x90] sm:$0xf]
      %v10709 = vld [vmem:[%s8892 + $0x94] sm:$0xf]
      %v10710 = vld [vmem:[%s8892 + $0x98] sm:$0x1]
      %v10711 = vld [vmem:[%s8892 + $0x9c] sm:$0xf]
      %v10712 = vld [vmem:[%s8892 + $0xa0] sm:$0xf]
      %v10713 = vld [vmem:[%s8892 + $0xa4] sm:$0x1]
      %v10714 = vld [vmem:[%s8892 + $0xa8] sm:$0xf]
      %v10715 = vld [vmem:[%s8892 + $0xac] sm:$0xf]
      %v10716 = vld [vmem:[%s8892 + $0xb0] sm:$0x1]
      %v10717 = vld [vmem:[%s8892 + $0xb4] sm:$0xf]
      %v10718 = vld [vmem:[%s8892 + $0xb8] sm:$0xf]
      %v10719 = vld [vmem:[%s8892 + $0xbc] sm:$0x1]
      %v10752 = vunpack.c.l.b16 %v10672
      %v10753 = vunpack.c.l.b16 %v10673
      %v10754 = vunpack.c.l.b16 %v10675
      %v10755 = vunpack.c.l.b16 %v10676
      %v10756 = vunpack.c.l.b16 %v10678
      %v10757 = vunpack.c.l.b16 %v10679
      %v10758 = vunpack.c.l.b16 %v10681
      %v10759 = vunpack.c.l.b16 %v10682
      %v10760 = vunpack.c.l.b16 %v10684
      %v10761 = vunpack.c.l.b16 %v10685
      %v10762 = vunpack.c.l.b16 %v10687
      %v10763 = vunpack.c.l.b16 %v10688
      %v10764 = vunpack.c.l.b16 %v10690
      %v10765 = vunpack.c.l.b16 %v10691
      %v10766 = vunpack.c.l.b16 %v10693
      %v10767 = vunpack.c.l.b16 %v10694
      %v10768 = vunpack.c.l.b16 %v10696
      %v10769 = vunpack.c.l.b16 %v10697
      %v10770 = vunpack.c.l.b16 %v10699
      %v10771 = vunpack.c.l.b16 %v10700
      %v10772 = vunpack.c.l.b16 %v10702
      %v10773 = vunpack.c.l.b16 %v10703
      %v10774 = vunpack.c.l.b16 %v10705
      %v10775 = vunpack.c.l.b16 %v10706
      %v10776 = vunpack.c.l.b16 %v10708
      %v10777 = vunpack.c.l.b16 %v10709
      %v10778 = vunpack.c.l.b16 %v10711
      %v10779 = vunpack.c.l.b16 %v10712
      %v10780 = vunpack.c.l.b16 %v10714
      %v10781 = vunpack.c.l.b16 %v10715
      %v10782 = vunpack.c.l.b16 %v10717
      %v10783 = vunpack.c.l.b16 %v10718
      %v10784 = vpack.c.b16 %v10753, %v10752
      %v10785 = vpack.c.b16 %v10755, %v10754
      %v10786 = vpack.c.b16 %v10757, %v10756
      %v10787 = vpack.c.b16 %v10759, %v10758
      %v10788 = vpack.c.b16 %v10761, %v10760
      %v10789 = vpack.c.b16 %v10763, %v10762
      %v10790 = vpack.c.b16 %v10765, %v10764
      %v10791 = vpack.c.b16 %v10767, %v10766
      %v10792 = vpack.c.b16 %v10769, %v10768
      %v10793 = vpack.c.b16 %v10771, %v10770
      %v10794 = vpack.c.b16 %v10773, %v10772
      %v10795 = vpack.c.b16 %v10775, %v10774
      %v10796 = vpack.c.b16 %v10777, %v10776
      %v10797 = vpack.c.b16 %v10779, %v10778
      %v10798 = vpack.c.b16 %v10781, %v10780
      %v10799 = vpack.c.b16 %v10783, %v10782
      %v10816 = vunpack.c.l.b16 %v10674
      %v10817 = vunpack.c.l.b16 %v10677
      %v10818 = vunpack.c.l.b16 %v10680
      %v10819 = vunpack.c.l.b16 %v10683
      %v10820 = vunpack.c.l.b16 %v10686
      %v10821 = vunpack.c.l.b16 %v10689
      %v10822 = vunpack.c.l.b16 %v10692
      %v10823 = vunpack.c.l.b16 %v10695
      %v10824 = vunpack.c.l.b16 %v10698
      %v10825 = vunpack.c.l.b16 %v10701
      %v10826 = vunpack.c.l.b16 %v10704
      %v10827 = vunpack.c.l.b16 %v10707
      %v10828 = vunpack.c.l.b16 %v10710
      %v10829 = vunpack.c.l.b16 %v10713
      %v10830 = vunpack.c.l.b16 %v10716
      %v10831 = vunpack.c.l.b16 %v10719
      %v10832 = vpack.c.b16 %v10816, %v10816
      %v10833 = vpack.c.b16 %v10817, %v10817
      %v10834 = vpack.c.b16 %v10818, %v10818
      %v10835 = vpack.c.b16 %v10819, %v10819
      %v10836 = vpack.c.b16 %v10820, %v10820
      %v10837 = vpack.c.b16 %v10821, %v10821
      %v10838 = vpack.c.b16 %v10822, %v10822
      %v10839 = vpack.c.b16 %v10823, %v10823
      %v10840 = vpack.c.b16 %v10824, %v10824
      %v10841 = vpack.c.b16 %v10825, %v10825
      %v10842 = vpack.c.b16 %v10826, %v10826
      %v10843 = vpack.c.b16 %v10827, %v10827
      %v10844 = vpack.c.b16 %v10828, %v10828
      %v10845 = vpack.c.b16 %v10829, %v10829
      %v10846 = vpack.c.b16 %v10830, %v10830
      %v10847 = vpack.c.b16 %v10831, %v10831
      %v10849 = vshrl.u32 %v10784, 16
      %v10851 = vshll.u32 %v10784, 16
      %v10853 = vrot.slane %v10851, 1
      %v10854 = vor.u32 %v10849, %v10853
      %v10856 = vshll.u32 %v10832, 16
      %v10858 = vrot.slane %v10856, 1
      %v10859 = vsel %vm2237, %v10854, %v10858
      %v10861 = vshrl.u32 %v10785, 16
      %v10863 = vshll.u32 %v10785, 16
      %v10865 = vrot.slane %v10863, 1
      %v10866 = vor.u32 %v10861, %v10865
      %v10868 = vshll.u32 %v10833, 16
      %v10870 = vrot.slane %v10868, 1
      %v10871 = vsel %vm2237, %v10866, %v10870
      %v10873 = vshrl.u32 %v10786, 16
      %v10875 = vshll.u32 %v10786, 16
      %v10877 = vrot.slane %v10875, 1
      %v10878 = vor.u32 %v10873, %v10877
      %v10880 = vshll.u32 %v10834, 16
      %v10882 = vrot.slane %v10880, 1
      %v10883 = vsel %vm2237, %v10878, %v10882
      %v10885 = vshrl.u32 %v10787, 16
      %v10887 = vshll.u32 %v10787, 16
      %v10889 = vrot.slane %v10887, 1
      %v10890 = vor.u32 %v10885, %v10889
      %v10892 = vshll.u32 %v10835, 16
      %v10894 = vrot.slane %v10892, 1
      %v10895 = vsel %vm2237, %v10890, %v10894
      %v10897 = vshrl.u32 %v10788, 16
      %v10899 = vshll.u32 %v10788, 16
      %v10901 = vrot.slane %v10899, 1
      %v10902 = vor.u32 %v10897, %v10901
      %v10904 = vshll.u32 %v10836, 16
      %v10906 = vrot.slane %v10904, 1
      %v10907 = vsel %vm2237, %v10902, %v10906
      %v10909 = vshrl.u32 %v10789, 16
      %v10911 = vshll.u32 %v10789, 16
      %v10913 = vrot.slane %v10911, 1
      %v10914 = vor.u32 %v10909, %v10913
      %v10916 = vshll.u32 %v10837, 16
      %v10918 = vrot.slane %v10916, 1
      %v10919 = vsel %vm2237, %v10914, %v10918
      %v10921 = vshrl.u32 %v10790, 16
      %v10923 = vshll.u32 %v10790, 16
      %v10925 = vrot.slane %v10923, 1
      %v10926 = vor.u32 %v10921, %v10925
      %v10928 = vshll.u32 %v10838, 16
      %v10930 = vrot.slane %v10928, 1
      %v10931 = vsel %vm2237, %v10926, %v10930
      %v10933 = vshrl.u32 %v10791, 16
      %v10935 = vshll.u32 %v10791, 16
      %v10937 = vrot.slane %v10935, 1
      %v10938 = vor.u32 %v10933, %v10937
      %v10940 = vshll.u32 %v10839, 16
      %v10942 = vrot.slane %v10940, 1
      %v10943 = vsel %vm2237, %v10938, %v10942
      %v10945 = vshrl.u32 %v10792, 16
      %v10947 = vshll.u32 %v10792, 16
      %v10949 = vrot.slane %v10947, 1
      %v10950 = vor.u32 %v10945, %v10949
      %v10952 = vshll.u32 %v10840, 16
      %v10954 = vrot.slane %v10952, 1
      %v10955 = vsel %vm2237, %v10950, %v10954
      %v10957 = vshrl.u32 %v10793, 16
      %v10959 = vshll.u32 %v10793, 16
      %v10961 = vrot.slane %v10959, 1
      %v10962 = vor.u32 %v10957, %v10961
      %v10964 = vshll.u32 %v10841, 16
      %v10966 = vrot.slane %v10964, 1
      %v10967 = vsel %vm2237, %v10962, %v10966
      %v10969 = vshrl.u32 %v10794, 16
      %v10971 = vshll.u32 %v10794, 16
      %v10973 = vrot.slane %v10971, 1
      %v10974 = vor.u32 %v10969, %v10973
      %v10976 = vshll.u32 %v10842, 16
      %v10978 = vrot.slane %v10976, 1
      %v10979 = vsel %vm2237, %v10974, %v10978
      %v10981 = vshrl.u32 %v10795, 16
      %v10983 = vshll.u32 %v10795, 16
      %v10985 = vrot.slane %v10983, 1
      %v10986 = vor.u32 %v10981, %v10985
      %v10988 = vshll.u32 %v10843, 16
      %v10990 = vrot.slane %v10988, 1
      %v10991 = vsel %vm2237, %v10986, %v10990
      %v10993 = vshrl.u32 %v10796, 16
      %v10995 = vshll.u32 %v10796, 16
      %v10997 = vrot.slane %v10995, 1
      %v10998 = vor.u32 %v10993, %v10997
      %v11000 = vshll.u32 %v10844, 16
      %v11002 = vrot.slane %v11000, 1
      %v11003 = vsel %vm2237, %v10998, %v11002
      %v11005 = vshrl.u32 %v10797, 16
      %v11007 = vshll.u32 %v10797, 16
      %v11009 = vrot.slane %v11007, 1
      %v11010 = vor.u32 %v11005, %v11009
      %v11012 = vshll.u32 %v10845, 16
      %v11014 = vrot.slane %v11012, 1
      %v11015 = vsel %vm2237, %v11010, %v11014
      %v11017 = vshrl.u32 %v10798, 16
      %v11019 = vshll.u32 %v10798, 16
      %v11021 = vrot.slane %v11019, 1
      %v11022 = vor.u32 %v11017, %v11021
      %v11024 = vshll.u32 %v10846, 16
      %v11026 = vrot.slane %v11024, 1
      %v11027 = vsel %vm2237, %v11022, %v11026
      %v11029 = vshrl.u32 %v10799, 16
      %v11031 = vshll.u32 %v10799, 16
      %v11033 = vrot.slane %v11031, 1
      %v11034 = vor.u32 %v11029, %v11033
      %v11036 = vshll.u32 %v10847, 16
      %v11038 = vrot.slane %v11036, 1
      %v11039 = vsel %vm2237, %v11034, %v11038
      %11040 = vrot.lane.b32.xlu0 %v10859, 4
      %v11041 = vpop.permute.xlu0 %11040
      %11042 = vrot.lane.b32.xlu0 %v10871, 4
      %v11043 = vpop.permute.xlu0 %11042
      %11044 = vrot.lane.b32.xlu0 %v10883, 4
      %v11045 = vpop.permute.xlu0 %11044
      %11046 = vrot.lane.b32.xlu0 %v10895, 4
      %v11047 = vpop.permute.xlu0 %11046
      %11048 = vrot.lane.b32.xlu0 %v10907, 4
      %v11049 = vpop.permute.xlu0 %11048
      %11050 = vrot.lane.b32.xlu0 %v10919, 4
      %v11051 = vpop.permute.xlu0 %11050
      %11052 = vrot.lane.b32.xlu0 %v10931, 4
      %v11053 = vpop.permute.xlu0 %11052
      %11054 = vrot.lane.b32.xlu0 %v10943, 4
      %v11055 = vpop.permute.xlu0 %11054
      %11056 = vrot.lane.b32.xlu0 %v10955, 4
      %v11057 = vpop.permute.xlu0 %11056
      %11058 = vrot.lane.b32.xlu0 %v10967, 4
      %v11059 = vpop.permute.xlu0 %11058
      %11060 = vrot.lane.b32.xlu0 %v10979, 4
      %v11061 = vpop.permute.xlu0 %11060
      %11062 = vrot.lane.b32.xlu0 %v10991, 4
      %v11063 = vpop.permute.xlu0 %11062
      %11064 = vrot.lane.b32.xlu0 %v11003, 4
      %v11065 = vpop.permute.xlu0 %11064
      %11066 = vrot.lane.b32.xlu0 %v11015, 4
      %v11067 = vpop.permute.xlu0 %11066
      %11068 = vrot.lane.b32.xlu0 %v11027, 4
      %v11069 = vpop.permute.xlu0 %11068
      %11070 = vrot.lane.b32.xlu0 %v11039, 4
      %v11071 = vpop.permute.xlu0 %11070
      %v11072 = vrot.slane %v10784, 1
      %v11073 = vrot.slane %v10832, 1
      %v11074 = vsel %vm2462, %v11072, %v11073
      %v11075 = vrot.slane %v10785, 1
      %v11076 = vrot.slane %v10833, 1
      %v11077 = vsel %vm2462, %v11075, %v11076
      %v11078 = vrot.slane %v10786, 1
      %v11079 = vrot.slane %v10834, 1
      %v11080 = vsel %vm2462, %v11078, %v11079
      %v11081 = vrot.slane %v10787, 1
      %v11082 = vrot.slane %v10835, 1
      %v11083 = vsel %vm2462, %v11081, %v11082
      %v11084 = vrot.slane %v10788, 1
      %v11085 = vrot.slane %v10836, 1
      %v11086 = vsel %vm2462, %v11084, %v11085
      %v11087 = vrot.slane %v10789, 1
      %v11088 = vrot.slane %v10837, 1
      %v11089 = vsel %vm2462, %v11087, %v11088
      %v11090 = vrot.slane %v10790, 1
      %v11091 = vrot.slane %v10838, 1
      %v11092 = vsel %vm2462, %v11090, %v11091
      %v11093 = vrot.slane %v10791, 1
      %v11094 = vrot.slane %v10839, 1
      %v11095 = vsel %vm2462, %v11093, %v11094
      %v11096 = vrot.slane %v10792, 1
      %v11097 = vrot.slane %v10840, 1
      %v11098 = vsel %vm2462, %v11096, %v11097
      %v11099 = vrot.slane %v10793, 1
      %v11100 = vrot.slane %v10841, 1
      %v11101 = vsel %vm2462, %v11099, %v11100
      %v11102 = vrot.slane %v10794, 1
      %v11103 = vrot.slane %v10842, 1
      %v11104 = vsel %vm2462, %v11102, %v11103
      %v11105 = vrot.slane %v10795, 1
      %v11106 = vrot.slane %v10843, 1
      %v11107 = vsel %vm2462, %v11105, %v11106
      %v11108 = vrot.slane %v10796, 1
      %v11109 = vrot.slane %v10844, 1
      %v11110 = vsel %vm2462, %v11108, %v11109
      %v11111 = vrot.slane %v10797, 1
      %v11112 = vrot.slane %v10845, 1
      %v11113 = vsel %vm2462, %v11111, %v11112
      %v11114 = vrot.slane %v10798, 1
      %v11115 = vrot.slane %v10846, 1
      %v11116 = vsel %vm2462, %v11114, %v11115
      %v11117 = vrot.slane %v10799, 1
      %v11118 = vrot.slane %v10847, 1
      %v11119 = vsel %vm2462, %v11117, %v11118
      %11120 = vrot.lane.b32.xlu0 %v11074, 8
      %v11121 = vpop.permute.xlu0 %11120
      %11122 = vrot.lane.b32.xlu0 %v11077, 8
      %v11123 = vpop.permute.xlu0 %11122
      %11124 = vrot.lane.b32.xlu0 %v11080, 8
      %v11125 = vpop.permute.xlu0 %11124
      %11126 = vrot.lane.b32.xlu0 %v11083, 8
      %v11127 = vpop.permute.xlu0 %11126
      %11128 = vrot.lane.b32.xlu0 %v11086, 8
      %v11129 = vpop.permute.xlu0 %11128
      %11130 = vrot.lane.b32.xlu0 %v11089, 8
      %v11131 = vpop.permute.xlu0 %11130
      %11132 = vrot.lane.b32.xlu0 %v11092, 8
      %v11133 = vpop.permute.xlu0 %11132
      %11134 = vrot.lane.b32.xlu0 %v11095, 8
      %v11135 = vpop.permute.xlu0 %11134
      %11136 = vrot.lane.b32.xlu0 %v11098, 8
      %v11137 = vpop.permute.xlu0 %11136
      %11138 = vrot.lane.b32.xlu0 %v11101, 8
      %v11139 = vpop.permute.xlu0 %11138
      %11140 = vrot.lane.b32.xlu0 %v11104, 8
      %v11141 = vpop.permute.xlu0 %11140
      %11142 = vrot.lane.b32.xlu0 %v11107, 8
      %v11143 = vpop.permute.xlu0 %11142
      %11144 = vrot.lane.b32.xlu0 %v11110, 8
      %v11145 = vpop.permute.xlu0 %11144
      %11146 = vrot.lane.b32.xlu0 %v11113, 8
      %v11147 = vpop.permute.xlu0 %11146
      %11148 = vrot.lane.b32.xlu0 %v11116, 8
      %v11149 = vpop.permute.xlu0 %11148
      %11150 = vrot.lane.b32.xlu0 %v11119, 8
      %v11151 = vpop.permute.xlu0 %11150
      %v11153 = vsel %vm1385, %v10784, %v11041
      %v11155 = vsel %vm1385, %v10785, %v11043
      %v11157 = vsel %vm1385, %v10786, %v11045
      %v11159 = vsel %vm1385, %v10787, %v11047
      %v11161 = vsel %vm1385, %v10788, %v11049
      %v11163 = vsel %vm1385, %v10789, %v11051
      %v11165 = vsel %vm1385, %v10790, %v11053
      %v11167 = vsel %vm1385, %v10791, %v11055
      %v11169 = vsel %vm1385, %v10792, %v11057
      %v11171 = vsel %vm1385, %v10793, %v11059
      %v11173 = vsel %vm1385, %v10794, %v11061
      %v11175 = vsel %vm1385, %v10795, %v11063
      %v11177 = vsel %vm1385, %v10796, %v11065
      %v11179 = vsel %vm1385, %v10797, %v11067
      %v11181 = vsel %vm1385, %v10798, %v11069
      %v11183 = vsel %vm1385, %v10799, %v11071
      %v11185 = vsel %vm2543, %v11153, %v11121
      %v11187 = vsel %vm2543, %v11155, %v11123
      %v11189 = vsel %vm2543, %v11157, %v11125
      %v11191 = vsel %vm2543, %v11159, %v11127
      %v11193 = vsel %vm2543, %v11161, %v11129
      %v11195 = vsel %vm2543, %v11163, %v11131
      %v11197 = vsel %vm2543, %v11165, %v11133
      %v11199 = vsel %vm2543, %v11167, %v11135
      %v11201 = vsel %vm2543, %v11169, %v11137
      %v11203 = vsel %vm2543, %v11171, %v11139
      %v11205 = vsel %vm2543, %v11173, %v11141
      %v11207 = vsel %vm2543, %v11175, %v11143
      %v11209 = vsel %vm2543, %v11177, %v11145
      %v11211 = vsel %vm2543, %v11179, %v11147
      %v11213 = vsel %vm2543, %v11181, %v11149
      %v11215 = vsel %vm2543, %v11183, %v11151
      %v11216 = vld [vmem:[%s4 + $0x4] sm:$0xc]
      %v11217 = vld [vmem:[%s4 + $0x8] sm:$0xf]
      %v11220 = vunpack.c.l.b16 %v11216
      %v11221 = vunpack.c.l.b16 %v11217
      %v11222 = vpack.c.b16 %v11221, %v11220
      %v11223 = vrot.slane %v11222, 2
      %v11224 = vsel %vm6606, %v11185, 0
      %v11226 = vsel %vm6606, %v11187, 0
      %v11228 = vsel %vm6606, %v11189, 0
      %v11230 = vsel %vm6606, %v11191, 0
      %v11232 = vsel %vm6606, %v11193, 0
      %v11234 = vsel %vm6606, %v11195, 0
      %v11236 = vsel %vm6606, %v11197, 0
      %v11238 = vsel %vm6606, %v11199, 0
      %v11240 = vsel %vm6606, %v11201, 0
      %v11242 = vsel %vm6606, %v11203, 0
      %v11244 = vsel %vm6606, %v11205, 0
      %v11246 = vsel %vm6606, %v11207, 0
      %v11248 = vsel %vm6606, %v11209, 0
      %v11250 = vsel %vm6606, %v11211, 0
      %v11252 = vsel %vm6606, %v11213, 0
      %v11254 = vsel %vm6606, %v11215, 0
      %v11257 = vsel %vm6619, %v11223, 0
      %11259 = vmatpush.bf16.msra.mxu0 0
      %11260 = vmatpush.bf16.msra.mxu0 0
      %11261 = vmatpush.bf16.msra.mxu0 0
      %11262 = vmatpush.bf16.msra.mxu0 0
      %11263 = vmatpush.bf16.msra.mxu0 0
      %11264 = vmatpush.bf16.msra.mxu0 0
      %11265 = vmatpush.bf16.msra.mxu0 0
      %11266 = vmatpush.bf16.msra.mxu0 %v11257
      %11267 = vmatmul.bf16.gmra.mxu0 %v11224
      %v11268 = vpop.f32.mrf.mxu0
      %v11269 = vadd.f32 0.0, %v11268
      %v11270 = vpop.f32.mrf.mxu0
      %v11271 = vadd.f32 0.0, %v11270
      %11272 = vmatmul.bf16.gmra.mxu0 %v11226
      %v11273 = vpop.f32.mrf.mxu0
      %v11274 = vadd.f32 0.0, %v11273
      %v11275 = vpop.f32.mrf.mxu0
      %v11276 = vadd.f32 0.0, %v11275
      %11277 = vmatmul.bf16.gmra.mxu0 %v11228
      %v11278 = vpop.f32.mrf.mxu0
      %v11279 = vadd.f32 0.0, %v11278
      %v11280 = vpop.f32.mrf.mxu0
      %v11281 = vadd.f32 0.0, %v11280
      %11282 = vmatmul.bf16.gmra.mxu0 %v11230
      %v11283 = vpop.f32.mrf.mxu0
      %v11284 = vadd.f32 0.0, %v11283
      %v11285 = vpop.f32.mrf.mxu0
      %v11286 = vadd.f32 0.0, %v11285
      %11287 = vmatmul.bf16.gmra.mxu0 %v11232
      %v11288 = vpop.f32.mrf.mxu0
      %v11289 = vadd.f32 0.0, %v11288
      %v11290 = vpop.f32.mrf.mxu0
      %v11291 = vadd.f32 0.0, %v11290
      %11292 = vmatmul.bf16.gmra.mxu0 %v11234
      %v11293 = vpop.f32.mrf.mxu0
      %v11294 = vadd.f32 0.0, %v11293
      %v11295 = vpop.f32.mrf.mxu0
      %v11296 = vadd.f32 0.0, %v11295
      %11297 = vmatmul.bf16.gmra.mxu0 %v11236
      %v11298 = vpop.f32.mrf.mxu0
      %v11299 = vadd.f32 0.0, %v11298
      %v11300 = vpop.f32.mrf.mxu0
      %v11301 = vadd.f32 0.0, %v11300
      %11302 = vmatmul.bf16.gmra.mxu0 %v11238
      %v11303 = vpop.f32.mrf.mxu0
      %v11304 = vadd.f32 0.0, %v11303
      %v11305 = vpop.f32.mrf.mxu0
      %v11306 = vadd.f32 0.0, %v11305
      %11307 = vmatmul.bf16.gmra.mxu0 %v11240
      %v11308 = vpop.f32.mrf.mxu0
      %v11309 = vadd.f32 0.0, %v11308
      %v11310 = vpop.f32.mrf.mxu0
      %v11311 = vadd.f32 0.0, %v11310
      %11312 = vmatmul.bf16.gmra.mxu0 %v11242
      %v11313 = vpop.f32.mrf.mxu0
      %v11314 = vadd.f32 0.0, %v11313
      %v11315 = vpop.f32.mrf.mxu0
      %v11316 = vadd.f32 0.0, %v11315
      %11317 = vmatmul.bf16.gmra.mxu0 %v11244
      %v11318 = vpop.f32.mrf.mxu0
      %v11319 = vadd.f32 0.0, %v11318
      %v11320 = vpop.f32.mrf.mxu0
      %v11321 = vadd.f32 0.0, %v11320
      %11322 = vmatmul.bf16.gmra.mxu0 %v11246
      %v11323 = vpop.f32.mrf.mxu0
      %v11324 = vadd.f32 0.0, %v11323
      %v11325 = vpop.f32.mrf.mxu0
      %v11326 = vadd.f32 0.0, %v11325
      %11327 = vmatmul.bf16.gmra.mxu0 %v11248
      %v11328 = vpop.f32.mrf.mxu0
      %v11329 = vadd.f32 0.0, %v11328
      %v11330 = vpop.f32.mrf.mxu0
      %v11331 = vadd.f32 0.0, %v11330
      %11332 = vmatmul.bf16.gmra.mxu0 %v11250
      %v11333 = vpop.f32.mrf.mxu0
      %v11334 = vadd.f32 0.0, %v11333
      %v11335 = vpop.f32.mrf.mxu0
      %v11336 = vadd.f32 0.0, %v11335
      %11337 = vmatmul.bf16.gmra.mxu0 %v11252
      %v11338 = vpop.f32.mrf.mxu0
      %v11339 = vadd.f32 0.0, %v11338
      %v11340 = vpop.f32.mrf.mxu0
      %v11341 = vadd.f32 0.0, %v11340
      %11342 = vmatmul.bf16.gmra.mxu0 %v11254
      %v11343 = vpop.f32.mrf.mxu0
      %v11344 = vadd.f32 0.0, %v11343
      %v11345 = vpop.f32.mrf.mxu0
      %v11346 = vadd.f32 0.0, %v11345
      %11347 = vdwg.mxu0
      %v11380 = vrot.slane %v11269, 2
      %v11381 = vrot.slane %v11269, 4
      %v11382 = vrot.slane %v11269, 6
      %v11383 = vrot.slane %v11271, 2
      %v11384 = vrot.slane %v11271, 4
      %v11385 = vrot.slane %v11271, 6
      %v11386 = vrot.slane %v11274, 2
      %v11387 = vrot.slane %v11274, 4
      %v11388 = vrot.slane %v11274, 6
      %v11389 = vrot.slane %v11276, 2
      %v11390 = vrot.slane %v11276, 4
      %v11391 = vrot.slane %v11276, 6
      %v11392 = vrot.slane %v11279, 2
      %v11393 = vrot.slane %v11279, 4
      %v11394 = vrot.slane %v11279, 6
      %v11395 = vrot.slane %v11281, 2
      %v11396 = vrot.slane %v11281, 4
      %v11397 = vrot.slane %v11281, 6
      %v11398 = vrot.slane %v11284, 2
      %v11399 = vrot.slane %v11284, 4
      %v11400 = vrot.slane %v11284, 6
      %v11401 = vrot.slane %v11286, 2
      %v11402 = vrot.slane %v11286, 4
      %v11403 = vrot.slane %v11286, 6
      %v11404 = vrot.slane %v11289, 2
      %v11405 = vrot.slane %v11289, 4
      %v11406 = vrot.slane %v11289, 6
      %v11407 = vrot.slane %v11291, 2
      %v11408 = vrot.slane %v11291, 4
      %v11409 = vrot.slane %v11291, 6
      %v11410 = vrot.slane %v11294, 2
      %v11411 = vrot.slane %v11294, 4
      %v11412 = vrot.slane %v11294, 6
      %v11413 = vrot.slane %v11296, 2
      %v11414 = vrot.slane %v11296, 4
      %v11415 = vrot.slane %v11296, 6
      %v11416 = vrot.slane %v11299, 2
      %v11417 = vrot.slane %v11299, 4
      %v11418 = vrot.slane %v11299, 6
      %v11419 = vrot.slane %v11301, 2
      %v11420 = vrot.slane %v11301, 4
      %v11421 = vrot.slane %v11301, 6
      %v11422 = vrot.slane %v11304, 2
      %v11423 = vrot.slane %v11304, 4
      %v11424 = vrot.slane %v11304, 6
      %v11425 = vrot.slane %v11306, 2
      %v11426 = vrot.slane %v11306, 4
      %v11427 = vrot.slane %v11306, 6
      %v11428 = vrot.slane %v11309, 2
      %v11429 = vrot.slane %v11309, 4
      %v11430 = vrot.slane %v11309, 6
      %v11431 = vrot.slane %v11311, 2
      %v11432 = vrot.slane %v11311, 4
      %v11433 = vrot.slane %v11311, 6
      %v11434 = vrot.slane %v11314, 2
      %v11435 = vrot.slane %v11314, 4
      %v11436 = vrot.slane %v11314, 6
      %v11437 = vrot.slane %v11316, 2
      %v11438 = vrot.slane %v11316, 4
      %v11439 = vrot.slane %v11316, 6
      %v11440 = vrot.slane %v11319, 2
      %v11441 = vrot.slane %v11319, 4
      %v11442 = vrot.slane %v11319, 6
      %v11443 = vrot.slane %v11321, 2
      %v11444 = vrot.slane %v11321, 4
      %v11445 = vrot.slane %v11321, 6
      %v11446 = vrot.slane %v11324, 2
      %v11447 = vrot.slane %v11324, 4
      %v11448 = vrot.slane %v11324, 6
      %v11449 = vrot.slane %v11326, 2
      %v11450 = vrot.slane %v11326, 4
      %v11451 = vrot.slane %v11326, 6
      %v11452 = vrot.slane %v11329, 2
      %v11453 = vrot.slane %v11329, 4
      %v11454 = vrot.slane %v11329, 6
      %v11455 = vrot.slane %v11331, 2
      %v11456 = vrot.slane %v11331, 4
      %v11457 = vrot.slane %v11331, 6
      %v11458 = vrot.slane %v11334, 2
      %v11459 = vrot.slane %v11334, 4
      %v11460 = vrot.slane %v11334, 6
      %v11461 = vrot.slane %v11336, 2
      %v11462 = vrot.slane %v11336, 4
      %v11463 = vrot.slane %v11336, 6
      %v11464 = vrot.slane %v11339, 2
      %v11465 = vrot.slane %v11339, 4
      %v11466 = vrot.slane %v11339, 6
      %v11467 = vrot.slane %v11341, 2
      %v11468 = vrot.slane %v11341, 4
      %v11469 = vrot.slane %v11341, 6
      %v11470 = vrot.slane %v11344, 2
      %v11471 = vrot.slane %v11344, 4
      %v11472 = vrot.slane %v11344, 6
      %v11473 = vrot.slane %v11346, 2
      %v11474 = vrot.slane %v11346, 4
      %v11475 = vrot.slane %v11346, 6
      %v11572 = vadd.f32 %v10544, %v11269
      %v11573 = vadd.f32 %v10545, %v11380
      %v11574 = vadd.f32 %v10546, %v11381
      %v11575 = vadd.f32 %v10547, %v11382
      %v11576 = vadd.f32 %v10548, %v11271
      %v11577 = vadd.f32 %v10549, %v11383
      %v11578 = vadd.f32 %v10550, %v11384
      %v11579 = vadd.f32 %v10551, %v11385
      %v11580 = vadd.f32 %v10552, %v11274
      %v11581 = vadd.f32 %v10553, %v11386
      %v11582 = vadd.f32 %v10554, %v11387
      %v11583 = vadd.f32 %v10555, %v11388
      %v11584 = vadd.f32 %v10556, %v11276
      %v11585 = vadd.f32 %v10557, %v11389
      %v11586 = vadd.f32 %v10558, %v11390
      %v11587 = vadd.f32 %v10559, %v11391
      %v11588 = vadd.f32 %v10560, %v11279
      %v11589 = vadd.f32 %v10561, %v11392
      %v11590 = vadd.f32 %v10562, %v11393
      %v11591 = vadd.f32 %v10563, %v11394
      %v11592 = vadd.f32 %v10564, %v11281
      %v11593 = vadd.f32 %v10565, %v11395
      %v11594 = vadd.f32 %v10566, %v11396
      %v11595 = vadd.f32 %v10567, %v11397
      %v11596 = vadd.f32 %v10568, %v11284
      %v11597 = vadd.f32 %v10569, %v11398
      %v11598 = vadd.f32 %v10570, %v11399
      %v11599 = vadd.f32 %v10571, %v11400
      %v11600 = vadd.f32 %v10572, %v11286
      %v11601 = vadd.f32 %v10573, %v11401
      %v11602 = vadd.f32 %v10574, %v11402
      %v11603 = vadd.f32 %v10575, %v11403
      %v11604 = vadd.f32 %v10576, %v11289
      %v11605 = vadd.f32 %v10577, %v11404
      %v11606 = vadd.f32 %v10578, %v11405
      %v11607 = vadd.f32 %v10579, %v11406
      %v11608 = vadd.f32 %v10580, %v11291
      %v11609 = vadd.f32 %v10581, %v11407
      %v11610 = vadd.f32 %v10582, %v11408
      %v11611 = vadd.f32 %v10583, %v11409
      %v11612 = vadd.f32 %v10584, %v11294
      %v11613 = vadd.f32 %v10585, %v11410
      %v11614 = vadd.f32 %v10586, %v11411
      %v11615 = vadd.f32 %v10587, %v11412
      %v11616 = vadd.f32 %v10588, %v11296
      %v11617 = vadd.f32 %v10589, %v11413
      %v11618 = vadd.f32 %v10590, %v11414
      %v11619 = vadd.f32 %v10591, %v11415
      %v11620 = vadd.f32 %v10592, %v11299
      %v11621 = vadd.f32 %v10593, %v11416
      %v11622 = vadd.f32 %v10594, %v11417
      %v11623 = vadd.f32 %v10595, %v11418
      %v11624 = vadd.f32 %v10596, %v11301
      %v11625 = vadd.f32 %v10597, %v11419
      %v11626 = vadd.f32 %v10598, %v11420
      %v11627 = vadd.f32 %v10599, %v11421
      %v11628 = vadd.f32 %v10600, %v11304
      %v11629 = vadd.f32 %v10601, %v11422
      %v11630 = vadd.f32 %v10602, %v11423
      %v11631 = vadd.f32 %v10603, %v11424
      %v11632 = vadd.f32 %v10604, %v11306
      %v11633 = vadd.f32 %v10605, %v11425
      %v11634 = vadd.f32 %v10606, %v11426
      %v11635 = vadd.f32 %v10607, %v11427
      %v11636 = vadd.f32 %v10608, %v11309
      %v11637 = vadd.f32 %v10609, %v11428
      %v11638 = vadd.f32 %v10610, %v11429
      %v11639 = vadd.f32 %v10611, %v11430
      %v11640 = vadd.f32 %v10612, %v11311
      %v11641 = vadd.f32 %v10613, %v11431
      %v11642 = vadd.f32 %v10614, %v11432
      %v11643 = vadd.f32 %v10615, %v11433
      %v11644 = vadd.f32 %v10616, %v11314
      %v11645 = vadd.f32 %v10617, %v11434
      %v11646 = vadd.f32 %v10618, %v11435
      %v11647 = vadd.f32 %v10619, %v11436
      %v11648 = vadd.f32 %v10620, %v11316
      %v11649 = vadd.f32 %v10621, %v11437
      %v11650 = vadd.f32 %v10622, %v11438
      %v11651 = vadd.f32 %v10623, %v11439
      %v11652 = vadd.f32 %v10624, %v11319
      %v11653 = vadd.f32 %v10625, %v11440
      %v11654 = vadd.f32 %v10626, %v11441
      %v11655 = vadd.f32 %v10627, %v11442
      %v11656 = vadd.f32 %v10628, %v11321
      %v11657 = vadd.f32 %v10629, %v11443
      %v11658 = vadd.f32 %v10630, %v11444
      %v11659 = vadd.f32 %v10631, %v11445
      %v11660 = vadd.f32 %v10632, %v11324
      %v11661 = vadd.f32 %v10633, %v11446
      %v11662 = vadd.f32 %v10634, %v11447
      %v11663 = vadd.f32 %v10635, %v11448
      %v11664 = vadd.f32 %v10636, %v11326
      %v11665 = vadd.f32 %v10637, %v11449
      %v11666 = vadd.f32 %v10638, %v11450
      %v11667 = vadd.f32 %v10639, %v11451
      %v11668 = vadd.f32 %v10640, %v11329
      %v11669 = vadd.f32 %v10641, %v11452
      %v11670 = vadd.f32 %v10642, %v11453
      %v11671 = vadd.f32 %v10643, %v11454
      %v11672 = vadd.f32 %v10644, %v11331
      %v11673 = vadd.f32 %v10645, %v11455
      %v11674 = vadd.f32 %v10646, %v11456
      %v11675 = vadd.f32 %v10647, %v11457
      %v11676 = vadd.f32 %v10648, %v11334
      %v11677 = vadd.f32 %v10649, %v11458
      %v11678 = vadd.f32 %v10650, %v11459
      %v11679 = vadd.f32 %v10651, %v11460
      %v11680 = vadd.f32 %v10652, %v11336
      %v11681 = vadd.f32 %v10653, %v11461
      %v11682 = vadd.f32 %v10654, %v11462
      %v11683 = vadd.f32 %v10655, %v11463
      %v11684 = vadd.f32 %v10656, %v11339
      %v11685 = vadd.f32 %v10657, %v11464
      %v11686 = vadd.f32 %v10658, %v11465
      %v11687 = vadd.f32 %v10659, %v11466
      %v11688 = vadd.f32 %v10660, %v11341
      %v11689 = vadd.f32 %v10661, %v11467
      %v11690 = vadd.f32 %v10662, %v11468
      %v11691 = vadd.f32 %v10663, %v11469
      %v11692 = vadd.f32 %v10664, %v11344
      %v11693 = vadd.f32 %v10665, %v11470
      %v11694 = vadd.f32 %v10666, %v11471
      %v11695 = vadd.f32 %v10667, %v11472
      %v11696 = vadd.f32 %v10668, %v11346
      %v11697 = vadd.f32 %v10669, %v11473
      %v11698 = vadd.f32 %v10670, %v11474
      %v11699 = vadd.f32 %v10671, %v11475
      %s11700 = scalar_lea.vmem [#allocation4], 24
      %v11701 = vld [vmem:[%s11700] sm:$0xf]
      %v11702 = vld [vmem:[%s11700 + $0x4] sm:$0xf]
      %v11703 = vld [vmem:[%s11700 + $0x8] sm:$0x1]
      %v11704 = vld [vmem:[%s11700 + $0xc] sm:$0xf]
      %v11705 = vld [vmem:[%s11700 + $0x10] sm:$0xf]
      %v11706 = vld [vmem:[%s11700 + $0x14] sm:$0x1]
      %v11707 = vld [vmem:[%s11700 + $0x18] sm:$0xf]
      %v11708 = vld [vmem:[%s11700 + $0x1c] sm:$0xf]
      %v11709 = vld [vmem:[%s11700 + $0x20] sm:$0x1]
      %v11710 = vld [vmem:[%s11700 + $0x24] sm:$0xf]
      %v11711 = vld [vmem:[%s11700 + $0x28] sm:$0xf]
      %v11712 = vld [vmem:[%s11700 + $0x2c] sm:$0x1]
      %v11713 = vld [vmem:[%s11700 + $0x30] sm:$0xf]
      %v11714 = vld [vmem:[%s11700 + $0x34] sm:$0xf]
      %v11715 = vld [vmem:[%s11700 + $0x38] sm:$0x1]
      %v11716 = vld [vmem:[%s11700 + $0x3c] sm:$0xf]
      %v11717 = vld [vmem:[%s11700 + $0x40] sm:$0xf]
      %v11718 = vld [vmem:[%s11700 + $0x44] sm:$0x1]
      %v11719 = vld [vmem:[%s11700 + $0x48] sm:$0xf]
      %v11720 = vld [vmem:[%s11700 + $0x4c] sm:$0xf]
      %v11721 = vld [vmem:[%s11700 + $0x50] sm:$0x1]
      %v11722 = vld [vmem:[%s11700 + $0x54] sm:$0xf]
      %v11723 = vld [vmem:[%s11700 + $0x58] sm:$0xf]
      %v11724 = vld [vmem:[%s11700 + $0x5c] sm:$0x1]
      %v11725 = vld [vmem:[%s11700 + $0x60] sm:$0xf]
      %v11726 = vld [vmem:[%s11700 + $0x64] sm:$0xf]
      %v11727 = vld [vmem:[%s11700 + $0x68] sm:$0x1]
      %v11728 = vld [vmem:[%s11700 + $0x6c] sm:$0xf]
      %v11729 = vld [vmem:[%s11700 + $0x70] sm:$0xf]
      %v11730 = vld [vmem:[%s11700 + $0x74] sm:$0x1]
      %v11731 = vld [vmem:[%s11700 + $0x78] sm:$0xf]
      %v11732 = vld [vmem:[%s11700 + $0x7c] sm:$0xf]
      %v11733 = vld [vmem:[%s11700 + $0x80] sm:$0x1]
      %v11734 = vld [vmem:[%s11700 + $0x84] sm:$0xf]
      %v11735 = vld [vmem:[%s11700 + $0x88] sm:$0xf]
      %v11736 = vld [vmem:[%s11700 + $0x8c] sm:$0x1]
      %v11737 = vld [vmem:[%s11700 + $0x90] sm:$0xf]
      %v11738 = vld [vmem:[%s11700 + $0x94] sm:$0xf]
      %v11739 = vld [vmem:[%s11700 + $0x98] sm:$0x1]
      %v11740 = vld [vmem:[%s11700 + $0x9c] sm:$0xf]
      %v11741 = vld [vmem:[%s11700 + $0xa0] sm:$0xf]
      %v11742 = vld [vmem:[%s11700 + $0xa4] sm:$0x1]
      %v11743 = vld [vmem:[%s11700 + $0xa8] sm:$0xf]
      %v11744 = vld [vmem:[%s11700 + $0xac] sm:$0xf]
      %v11745 = vld [vmem:[%s11700 + $0xb0] sm:$0x1]
      %v11746 = vld [vmem:[%s11700 + $0xb4] sm:$0xf]
      %v11747 = vld [vmem:[%s11700 + $0xb8] sm:$0xf]
      %v11748 = vld [vmem:[%s11700 + $0xbc] sm:$0x1]
      %v11781 = vunpack.c.l.b16 %v11701
      %v11782 = vunpack.c.l.b16 %v11702
      %v11783 = vunpack.c.l.b16 %v11704
      %v11784 = vunpack.c.l.b16 %v11705
      %v11785 = vunpack.c.l.b16 %v11707
      %v11786 = vunpack.c.l.b16 %v11708
      %v11787 = vunpack.c.l.b16 %v11710
      %v11788 = vunpack.c.l.b16 %v11711
      %v11789 = vunpack.c.l.b16 %v11713
      %v11790 = vunpack.c.l.b16 %v11714
      %v11791 = vunpack.c.l.b16 %v11716
      %v11792 = vunpack.c.l.b16 %v11717
      %v11793 = vunpack.c.l.b16 %v11719
      %v11794 = vunpack.c.l.b16 %v11720
      %v11795 = vunpack.c.l.b16 %v11722
      %v11796 = vunpack.c.l.b16 %v11723
      %v11797 = vunpack.c.l.b16 %v11725
      %v11798 = vunpack.c.l.b16 %v11726
      %v11799 = vunpack.c.l.b16 %v11728
      %v11800 = vunpack.c.l.b16 %v11729
      %v11801 = vunpack.c.l.b16 %v11731
      %v11802 = vunpack.c.l.b16 %v11732
      %v11803 = vunpack.c.l.b16 %v11734
      %v11804 = vunpack.c.l.b16 %v11735
      %v11805 = vunpack.c.l.b16 %v11737
      %v11806 = vunpack.c.l.b16 %v11738
      %v11807 = vunpack.c.l.b16 %v11740
      %v11808 = vunpack.c.l.b16 %v11741
      %v11809 = vunpack.c.l.b16 %v11743
      %v11810 = vunpack.c.l.b16 %v11744
      %v11811 = vunpack.c.l.b16 %v11746
      %v11812 = vunpack.c.l.b16 %v11747
      %v11813 = vpack.c.b16 %v11782, %v11781
      %v11814 = vpack.c.b16 %v11784, %v11783
      %v11815 = vpack.c.b16 %v11786, %v11785
      %v11816 = vpack.c.b16 %v11788, %v11787
      %v11817 = vpack.c.b16 %v11790, %v11789
      %v11818 = vpack.c.b16 %v11792, %v11791
      %v11819 = vpack.c.b16 %v11794, %v11793
      %v11820 = vpack.c.b16 %v11796, %v11795
      %v11821 = vpack.c.b16 %v11798, %v11797
      %v11822 = vpack.c.b16 %v11800, %v11799
      %v11823 = vpack.c.b16 %v11802, %v11801
      %v11824 = vpack.c.b16 %v11804, %v11803
      %v11825 = vpack.c.b16 %v11806, %v11805
      %v11826 = vpack.c.b16 %v11808, %v11807
      %v11827 = vpack.c.b16 %v11810, %v11809
      %v11828 = vpack.c.b16 %v11812, %v11811
      %v11845 = vunpack.c.l.b16 %v11703
      %v11846 = vunpack.c.l.b16 %v11706
      %v11847 = vunpack.c.l.b16 %v11709
      %v11848 = vunpack.c.l.b16 %v11712
      %v11849 = vunpack.c.l.b16 %v11715
      %v11850 = vunpack.c.l.b16 %v11718
      %v11851 = vunpack.c.l.b16 %v11721
      %v11852 = vunpack.c.l.b16 %v11724
      %v11853 = vunpack.c.l.b16 %v11727
      %v11854 = vunpack.c.l.b16 %v11730
      %v11855 = vunpack.c.l.b16 %v11733
      %v11856 = vunpack.c.l.b16 %v11736
      %v11857 = vunpack.c.l.b16 %v11739
      %v11858 = vunpack.c.l.b16 %v11742
      %v11859 = vunpack.c.l.b16 %v11745
      %v11860 = vunpack.c.l.b16 %v11748
      %v11861 = vpack.c.b16 %v11845, %v11845
      %v11862 = vpack.c.b16 %v11846, %v11846
      %v11863 = vpack.c.b16 %v11847, %v11847
      %v11864 = vpack.c.b16 %v11848, %v11848
      %v11865 = vpack.c.b16 %v11849, %v11849
      %v11866 = vpack.c.b16 %v11850, %v11850
      %v11867 = vpack.c.b16 %v11851, %v11851
      %v11868 = vpack.c.b16 %v11852, %v11852
      %v11869 = vpack.c.b16 %v11853, %v11853
      %v11870 = vpack.c.b16 %v11854, %v11854
      %v11871 = vpack.c.b16 %v11855, %v11855
      %v11872 = vpack.c.b16 %v11856, %v11856
      %v11873 = vpack.c.b16 %v11857, %v11857
      %v11874 = vpack.c.b16 %v11858, %v11858
      %v11875 = vpack.c.b16 %v11859, %v11859
      %v11876 = vpack.c.b16 %v11860, %v11860
      %v11878 = vshrl.u32 %v11813, 16
      %v11880 = vshll.u32 %v11813, 16
      %v11882 = vrot.slane %v11880, 1
      %v11883 = vor.u32 %v11878, %v11882
      %v11885 = vshll.u32 %v11861, 16
      %v11887 = vrot.slane %v11885, 1
      %v11888 = vsel %vm2237, %v11883, %v11887
      %v11890 = vshrl.u32 %v11814, 16
      %v11892 = vshll.u32 %v11814, 16
      %v11894 = vrot.slane %v11892, 1
      %v11895 = vor.u32 %v11890, %v11894
      %v11897 = vshll.u32 %v11862, 16
      %v11899 = vrot.slane %v11897, 1
      %v11900 = vsel %vm2237, %v11895, %v11899
      %v11902 = vshrl.u32 %v11815, 16
      %v11904 = vshll.u32 %v11815, 16
      %v11906 = vrot.slane %v11904, 1
      %v11907 = vor.u32 %v11902, %v11906
      %v11909 = vshll.u32 %v11863, 16
      %v11911 = vrot.slane %v11909, 1
      %v11912 = vsel %vm2237, %v11907, %v11911
      %v11914 = vshrl.u32 %v11816, 16
      %v11916 = vshll.u32 %v11816, 16
      %v11918 = vrot.slane %v11916, 1
      %v11919 = vor.u32 %v11914, %v11918
      %v11921 = vshll.u32 %v11864, 16
      %v11923 = vrot.slane %v11921, 1
      %v11924 = vsel %vm2237, %v11919, %v11923
      %v11926 = vshrl.u32 %v11817, 16
      %v11928 = vshll.u32 %v11817, 16
      %v11930 = vrot.slane %v11928, 1
      %v11931 = vor.u32 %v11926, %v11930
      %v11933 = vshll.u32 %v11865, 16
      %v11935 = vrot.slane %v11933, 1
      %v11936 = vsel %vm2237, %v11931, %v11935
      %v11938 = vshrl.u32 %v11818, 16
      %v11940 = vshll.u32 %v11818, 16
      %v11942 = vrot.slane %v11940, 1
      %v11943 = vor.u32 %v11938, %v11942
      %v11945 = vshll.u32 %v11866, 16
      %v11947 = vrot.slane %v11945, 1
      %v11948 = vsel %vm2237, %v11943, %v11947
      %v11950 = vshrl.u32 %v11819, 16
      %v11952 = vshll.u32 %v11819, 16
      %v11954 = vrot.slane %v11952, 1
      %v11955 = vor.u32 %v11950, %v11954
      %v11957 = vshll.u32 %v11867, 16
      %v11959 = vrot.slane %v11957, 1
      %v11960 = vsel %vm2237, %v11955, %v11959
      %v11962 = vshrl.u32 %v11820, 16
      %v11964 = vshll.u32 %v11820, 16
      %v11966 = vrot.slane %v11964, 1
      %v11967 = vor.u32 %v11962, %v11966
      %v11969 = vshll.u32 %v11868, 16
      %v11971 = vrot.slane %v11969, 1
      %v11972 = vsel %vm2237, %v11967, %v11971
      %v11974 = vshrl.u32 %v11821, 16
      %v11976 = vshll.u32 %v11821, 16
      %v11978 = vrot.slane %v11976, 1
      %v11979 = vor.u32 %v11974, %v11978
      %v11981 = vshll.u32 %v11869, 16
      %v11983 = vrot.slane %v11981, 1
      %v11984 = vsel %vm2237, %v11979, %v11983
      %v11986 = vshrl.u32 %v11822, 16
      %v11988 = vshll.u32 %v11822, 16
      %v11990 = vrot.slane %v11988, 1
      %v11991 = vor.u32 %v11986, %v11990
      %v11993 = vshll.u32 %v11870, 16
      %v11995 = vrot.slane %v11993, 1
      %v11996 = vsel %vm2237, %v11991, %v11995
      %v11998 = vshrl.u32 %v11823, 16
      %v12000 = vshll.u32 %v11823, 16
      %v12002 = vrot.slane %v12000, 1
      %v12003 = vor.u32 %v11998, %v12002
      %v12005 = vshll.u32 %v11871, 16
      %v12007 = vrot.slane %v12005, 1
      %v12008 = vsel %vm2237, %v12003, %v12007
      %v12010 = vshrl.u32 %v11824, 16
      %v12012 = vshll.u32 %v11824, 16
      %v12014 = vrot.slane %v12012, 1
      %v12015 = vor.u32 %v12010, %v12014
      %v12017 = vshll.u32 %v11872, 16
      %v12019 = vrot.slane %v12017, 1
      %v12020 = vsel %vm2237, %v12015, %v12019
      %v12022 = vshrl.u32 %v11825, 16
      %v12024 = vshll.u32 %v11825, 16
      %v12026 = vrot.slane %v12024, 1
      %v12027 = vor.u32 %v12022, %v12026
      %v12029 = vshll.u32 %v11873, 16
      %v12031 = vrot.slane %v12029, 1
      %v12032 = vsel %vm2237, %v12027, %v12031
      %v12034 = vshrl.u32 %v11826, 16
      %v12036 = vshll.u32 %v11826, 16
      %v12038 = vrot.slane %v12036, 1
      %v12039 = vor.u32 %v12034, %v12038
      %v12041 = vshll.u32 %v11874, 16
      %v12043 = vrot.slane %v12041, 1
      %v12044 = vsel %vm2237, %v12039, %v12043
      %v12046 = vshrl.u32 %v11827, 16
      %v12048 = vshll.u32 %v11827, 16
      %v12050 = vrot.slane %v12048, 1
      %v12051 = vor.u32 %v12046, %v12050
      %v12053 = vshll.u32 %v11875, 16
      %v12055 = vrot.slane %v12053, 1
      %v12056 = vsel %vm2237, %v12051, %v12055
      %v12058 = vshrl.u32 %v11828, 16
      %v12060 = vshll.u32 %v11828, 16
      %v12062 = vrot.slane %v12060, 1
      %v12063 = vor.u32 %v12058, %v12062
      %v12065 = vshll.u32 %v11876, 16
      %v12067 = vrot.slane %v12065, 1
      %v12068 = vsel %vm2237, %v12063, %v12067
      %12069 = vrot.lane.b32.xlu0 %v11888, 4
      %v12070 = vpop.permute.xlu0 %12069
      %12071 = vrot.lane.b32.xlu0 %v11900, 4
      %v12072 = vpop.permute.xlu0 %12071
      %12073 = vrot.lane.b32.xlu0 %v11912, 4
      %v12074 = vpop.permute.xlu0 %12073
      %12075 = vrot.lane.b32.xlu0 %v11924, 4
      %v12076 = vpop.permute.xlu0 %12075
      %12077 = vrot.lane.b32.xlu0 %v11936, 4
      %v12078 = vpop.permute.xlu0 %12077
      %12079 = vrot.lane.b32.xlu0 %v11948, 4
      %v12080 = vpop.permute.xlu0 %12079
      %12081 = vrot.lane.b32.xlu0 %v11960, 4
      %v12082 = vpop.permute.xlu0 %12081
      %12083 = vrot.lane.b32.xlu0 %v11972, 4
      %v12084 = vpop.permute.xlu0 %12083
      %12085 = vrot.lane.b32.xlu0 %v11984, 4
      %v12086 = vpop.permute.xlu0 %12085
      %12087 = vrot.lane.b32.xlu0 %v11996, 4
      %v12088 = vpop.permute.xlu0 %12087
      %12089 = vrot.lane.b32.xlu0 %v12008, 4
      %v12090 = vpop.permute.xlu0 %12089
      %12091 = vrot.lane.b32.xlu0 %v12020, 4
      %v12092 = vpop.permute.xlu0 %12091
      %12093 = vrot.lane.b32.xlu0 %v12032, 4
      %v12094 = vpop.permute.xlu0 %12093
      %12095 = vrot.lane.b32.xlu0 %v12044, 4
      %v12096 = vpop.permute.xlu0 %12095
      %12097 = vrot.lane.b32.xlu0 %v12056, 4
      %v12098 = vpop.permute.xlu0 %12097
      %12099 = vrot.lane.b32.xlu0 %v12068, 4
      %v12100 = vpop.permute.xlu0 %12099
      %v12101 = vrot.slane %v11813, 1
      %v12102 = vrot.slane %v11861, 1
      %v12103 = vsel %vm2462, %v12101, %v12102
      %v12104 = vrot.slane %v11814, 1
      %v12105 = vrot.slane %v11862, 1
      %v12106 = vsel %vm2462, %v12104, %v12105
      %v12107 = vrot.slane %v11815, 1
      %v12108 = vrot.slane %v11863, 1
      %v12109 = vsel %vm2462, %v12107, %v12108
      %v12110 = vrot.slane %v11816, 1
      %v12111 = vrot.slane %v11864, 1
      %v12112 = vsel %vm2462, %v12110, %v12111
      %v12113 = vrot.slane %v11817, 1
      %v12114 = vrot.slane %v11865, 1
      %v12115 = vsel %vm2462, %v12113, %v12114
      %v12116 = vrot.slane %v11818, 1
      %v12117 = vrot.slane %v11866, 1
      %v12118 = vsel %vm2462, %v12116, %v12117
      %v12119 = vrot.slane %v11819, 1
      %v12120 = vrot.slane %v11867, 1
      %v12121 = vsel %vm2462, %v12119, %v12120
      %v12122 = vrot.slane %v11820, 1
      %v12123 = vrot.slane %v11868, 1
      %v12124 = vsel %vm2462, %v12122, %v12123
      %v12125 = vrot.slane %v11821, 1
      %v12126 = vrot.slane %v11869, 1
      %v12127 = vsel %vm2462, %v12125, %v12126
      %v12128 = vrot.slane %v11822, 1
      %v12129 = vrot.slane %v11870, 1
      %v12130 = vsel %vm2462, %v12128, %v12129
      %v12131 = vrot.slane %v11823, 1
      %v12132 = vrot.slane %v11871, 1
      %v12133 = vsel %vm2462, %v12131, %v12132
      %v12134 = vrot.slane %v11824, 1
      %v12135 = vrot.slane %v11872, 1
      %v12136 = vsel %vm2462, %v12134, %v12135
      %v12137 = vrot.slane %v11825, 1
      %v12138 = vrot.slane %v11873, 1
      %v12139 = vsel %vm2462, %v12137, %v12138
      %v12140 = vrot.slane %v11826, 1
      %v12141 = vrot.slane %v11874, 1
      %v12142 = vsel %vm2462, %v12140, %v12141
      %v12143 = vrot.slane %v11827, 1
      %v12144 = vrot.slane %v11875, 1
      %v12145 = vsel %vm2462, %v12143, %v12144
      %v12146 = vrot.slane %v11828, 1
      %v12147 = vrot.slane %v11876, 1
      %v12148 = vsel %vm2462, %v12146, %v12147
      %12149 = vrot.lane.b32.xlu0 %v12103, 8
      %v12150 = vpop.permute.xlu0 %12149
      %12151 = vrot.lane.b32.xlu0 %v12106, 8
      %v12152 = vpop.permute.xlu0 %12151
      %12153 = vrot.lane.b32.xlu0 %v12109, 8
      %v12154 = vpop.permute.xlu0 %12153
      %12155 = vrot.lane.b32.xlu0 %v12112, 8
      %v12156 = vpop.permute.xlu0 %12155
      %12157 = vrot.lane.b32.xlu0 %v12115, 8
      %v12158 = vpop.permute.xlu0 %12157
      %12159 = vrot.lane.b32.xlu0 %v12118, 8
      %v12160 = vpop.permute.xlu0 %12159
      %12161 = vrot.lane.b32.xlu0 %v12121, 8
      %v12162 = vpop.permute.xlu0 %12161
      %12163 = vrot.lane.b32.xlu0 %v12124, 8
      %v12164 = vpop.permute.xlu0 %12163
      %12165 = vrot.lane.b32.xlu0 %v12127, 8
      %v12166 = vpop.permute.xlu0 %12165
      %12167 = vrot.lane.b32.xlu0 %v12130, 8
      %v12168 = vpop.permute.xlu0 %12167
      %12169 = vrot.lane.b32.xlu0 %v12133, 8
      %v12170 = vpop.permute.xlu0 %12169
      %12171 = vrot.lane.b32.xlu0 %v12136, 8
      %v12172 = vpop.permute.xlu0 %12171
      %12173 = vrot.lane.b32.xlu0 %v12139, 8
      %v12174 = vpop.permute.xlu0 %12173
      %12175 = vrot.lane.b32.xlu0 %v12142, 8
      %v12176 = vpop.permute.xlu0 %12175
      %12177 = vrot.lane.b32.xlu0 %v12145, 8
      %v12178 = vpop.permute.xlu0 %12177
      %12179 = vrot.lane.b32.xlu0 %v12148, 8
      %v12180 = vpop.permute.xlu0 %12179
      %v12182 = vsel %vm1385, %v11813, %v12070
      %v12184 = vsel %vm1385, %v11814, %v12072
      %v12186 = vsel %vm1385, %v11815, %v12074
      %v12188 = vsel %vm1385, %v11816, %v12076
      %v12190 = vsel %vm1385, %v11817, %v12078
      %v12192 = vsel %vm1385, %v11818, %v12080
      %v12194 = vsel %vm1385, %v11819, %v12082
      %v12196 = vsel %vm1385, %v11820, %v12084
      %v12198 = vsel %vm1385, %v11821, %v12086
      %v12200 = vsel %vm1385, %v11822, %v12088
      %v12202 = vsel %vm1385, %v11823, %v12090
      %v12204 = vsel %vm1385, %v11824, %v12092
      %v12206 = vsel %vm1385, %v11825, %v12094
      %v12208 = vsel %vm1385, %v11826, %v12096
      %v12210 = vsel %vm1385, %v11827, %v12098
      %v12212 = vsel %vm1385, %v11828, %v12100
      %v12214 = vsel %vm2543, %v12182, %v12150
      %v12216 = vsel %vm2543, %v12184, %v12152
      %v12218 = vsel %vm2543, %v12186, %v12154
      %v12220 = vsel %vm2543, %v12188, %v12156
      %v12222 = vsel %vm2543, %v12190, %v12158
      %v12224 = vsel %vm2543, %v12192, %v12160
      %v12226 = vsel %vm2543, %v12194, %v12162
      %v12228 = vsel %vm2543, %v12196, %v12164
      %v12230 = vsel %vm2543, %v12198, %v12166
      %v12232 = vsel %vm2543, %v12200, %v12168
      %v12234 = vsel %vm2543, %v12202, %v12170
      %v12236 = vsel %vm2543, %v12204, %v12172
      %v12238 = vsel %vm2543, %v12206, %v12174
      %v12240 = vsel %vm2543, %v12208, %v12176
      %v12242 = vsel %vm2543, %v12210, %v12178
      %v12244 = vsel %vm2543, %v12212, %v12180
      %v12245 = vld [vmem:[%s4 + $0xc] sm:$0xf]
      %v12246 = vld [vmem:[%s4 + $0x10] sm:$0x3]
      %v12249 = vunpack.c.l.b16 %v12245
      %v12250 = vunpack.c.l.b16 %v12246
      %v12251 = vpack.c.b16 %v12250, %v12249
      %v12252 = vsel %vm6606, %v12214, 0
      %v12254 = vsel %vm6606, %v12216, 0
      %v12256 = vsel %vm6606, %v12218, 0
      %v12258 = vsel %vm6606, %v12220, 0
      %v12260 = vsel %vm6606, %v12222, 0
      %v12262 = vsel %vm6606, %v12224, 0
      %v12264 = vsel %vm6606, %v12226, 0
      %v12266 = vsel %vm6606, %v12228, 0
      %v12268 = vsel %vm6606, %v12230, 0
      %v12270 = vsel %vm6606, %v12232, 0
      %v12272 = vsel %vm6606, %v12234, 0
      %v12274 = vsel %vm6606, %v12236, 0
      %v12276 = vsel %vm6606, %v12238, 0
      %v12278 = vsel %vm6606, %v12240, 0
      %v12280 = vsel %vm6606, %v12242, 0
      %v12282 = vsel %vm6606, %v12244, 0
      %v12285 = vsel %vm6619, %v12251, 0
      %12287 = vmatpush.bf16.msra.mxu0 0
      %12288 = vmatpush.bf16.msra.mxu0 0
      %12289 = vmatpush.bf16.msra.mxu0 0
      %12290 = vmatpush.bf16.msra.mxu0 0
      %12291 = vmatpush.bf16.msra.mxu0 0
      %12292 = vmatpush.bf16.msra.mxu0 0
      %12293 = vmatpush.bf16.msra.mxu0 0
      %12294 = vmatpush.bf16.msra.mxu0 %v12285
      %12295 = vmatmul.bf16.gmra.mxu0 %v12252
      %v12296 = vpop.f32.mrf.mxu0
      %v12297 = vadd.f32 0.0, %v12296
      %v12298 = vpop.f32.mrf.mxu0
      %v12299 = vadd.f32 0.0, %v12298
      %12300 = vmatmul.bf16.gmra.mxu0 %v12254
      %v12301 = vpop.f32.mrf.mxu0
      %v12302 = vadd.f32 0.0, %v12301
      %v12303 = vpop.f32.mrf.mxu0
      %v12304 = vadd.f32 0.0, %v12303
      %12305 = vmatmul.bf16.gmra.mxu0 %v12256
      %v12306 = vpop.f32.mrf.mxu0
      %v12307 = vadd.f32 0.0, %v12306
      %v12308 = vpop.f32.mrf.mxu0
      %v12309 = vadd.f32 0.0, %v12308
      %12310 = vmatmul.bf16.gmra.mxu0 %v12258
      %v12311 = vpop.f32.mrf.mxu0
      %v12312 = vadd.f32 0.0, %v12311
      %v12313 = vpop.f32.mrf.mxu0
      %v12314 = vadd.f32 0.0, %v12313
      %12315 = vmatmul.bf16.gmra.mxu0 %v12260
      %v12316 = vpop.f32.mrf.mxu0
      %v12317 = vadd.f32 0.0, %v12316
      %v12318 = vpop.f32.mrf.mxu0
      %v12319 = vadd.f32 0.0, %v12318
      %12320 = vmatmul.bf16.gmra.mxu0 %v12262
      %v12321 = vpop.f32.mrf.mxu0
      %v12322 = vadd.f32 0.0, %v12321
      %v12323 = vpop.f32.mrf.mxu0
      %v12324 = vadd.f32 0.0, %v12323
      %12325 = vmatmul.bf16.gmra.mxu0 %v12264
      %v12326 = vpop.f32.mrf.mxu0
      %v12327 = vadd.f32 0.0, %v12326
      %v12328 = vpop.f32.mrf.mxu0
      %v12329 = vadd.f32 0.0, %v12328
      %12330 = vmatmul.bf16.gmra.mxu0 %v12266
      %v12331 = vpop.f32.mrf.mxu0
      %v12332 = vadd.f32 0.0, %v12331
      %v12333 = vpop.f32.mrf.mxu0
      %v12334 = vadd.f32 0.0, %v12333
      %12335 = vmatmul.bf16.gmra.mxu0 %v12268
      %v12336 = vpop.f32.mrf.mxu0
      %v12337 = vadd.f32 0.0, %v12336
      %v12338 = vpop.f32.mrf.mxu0
      %v12339 = vadd.f32 0.0, %v12338
      %12340 = vmatmul.bf16.gmra.mxu0 %v12270
      %v12341 = vpop.f32.mrf.mxu0
      %v12342 = vadd.f32 0.0, %v12341
      %v12343 = vpop.f32.mrf.mxu0
      %v12344 = vadd.f32 0.0, %v12343
      %12345 = vmatmul.bf16.gmra.mxu0 %v12272
      %v12346 = vpop.f32.mrf.mxu0
      %v12347 = vadd.f32 0.0, %v12346
      %v12348 = vpop.f32.mrf.mxu0
      %v12349 = vadd.f32 0.0, %v12348
      %12350 = vmatmul.bf16.gmra.mxu0 %v12274
      %v12351 = vpop.f32.mrf.mxu0
      %v12352 = vadd.f32 0.0, %v12351
      %v12353 = vpop.f32.mrf.mxu0
      %v12354 = vadd.f32 0.0, %v12353
      %12355 = vmatmul.bf16.gmra.mxu0 %v12276
      %v12356 = vpop.f32.mrf.mxu0
      %v12357 = vadd.f32 0.0, %v12356
      %v12358 = vpop.f32.mrf.mxu0
      %v12359 = vadd.f32 0.0, %v12358
      %12360 = vmatmul.bf16.gmra.mxu0 %v12278
      %v12361 = vpop.f32.mrf.mxu0
      %v12362 = vadd.f32 0.0, %v12361
      %v12363 = vpop.f32.mrf.mxu0
      %v12364 = vadd.f32 0.0, %v12363
      %12365 = vmatmul.bf16.gmra.mxu0 %v12280
      %v12366 = vpop.f32.mrf.mxu0
      %v12367 = vadd.f32 0.0, %v12366
      %v12368 = vpop.f32.mrf.mxu0
      %v12369 = vadd.f32 0.0, %v12368
      %12370 = vmatmul.bf16.gmra.mxu0 %v12282
      %v12371 = vpop.f32.mrf.mxu0
      %v12372 = vadd.f32 0.0, %v12371
      %v12373 = vpop.f32.mrf.mxu0
      %v12374 = vadd.f32 0.0, %v12373
      %12375 = vdwg.mxu0
      %v12408 = vrot.slane %v12297, 2
      %v12409 = vrot.slane %v12297, 4
      %v12410 = vrot.slane %v12297, 6
      %v12411 = vrot.slane %v12299, 2
      %v12412 = vrot.slane %v12299, 4
      %v12413 = vrot.slane %v12299, 6
      %v12414 = vrot.slane %v12302, 2
      %v12415 = vrot.slane %v12302, 4
      %v12416 = vrot.slane %v12302, 6
      %v12417 = vrot.slane %v12304, 2
      %v12418 = vrot.slane %v12304, 4
      %v12419 = vrot.slane %v12304, 6
      %v12420 = vrot.slane %v12307, 2
      %v12421 = vrot.slane %v12307, 4
      %v12422 = vrot.slane %v12307, 6
      %v12423 = vrot.slane %v12309, 2
      %v12424 = vrot.slane %v12309, 4
      %v12425 = vrot.slane %v12309, 6
      %v12426 = vrot.slane %v12312, 2
      %v12427 = vrot.slane %v12312, 4
      %v12428 = vrot.slane %v12312, 6
      %v12429 = vrot.slane %v12314, 2
      %v12430 = vrot.slane %v12314, 4
      %v12431 = vrot.slane %v12314, 6
      %v12432 = vrot.slane %v12317, 2
      %v12433 = vrot.slane %v12317, 4
      %v12434 = vrot.slane %v12317, 6
      %v12435 = vrot.slane %v12319, 2
      %v12436 = vrot.slane %v12319, 4
      %v12437 = vrot.slane %v12319, 6
      %v12438 = vrot.slane %v12322, 2
      %v12439 = vrot.slane %v12322, 4
      %v12440 = vrot.slane %v12322, 6
      %v12441 = vrot.slane %v12324, 2
      %v12442 = vrot.slane %v12324, 4
      %v12443 = vrot.slane %v12324, 6
      %v12444 = vrot.slane %v12327, 2
      %v12445 = vrot.slane %v12327, 4
      %v12446 = vrot.slane %v12327, 6
      %v12447 = vrot.slane %v12329, 2
      %v12448 = vrot.slane %v12329, 4
      %v12449 = vrot.slane %v12329, 6
      %v12450 = vrot.slane %v12332, 2
      %v12451 = vrot.slane %v12332, 4
      %v12452 = vrot.slane %v12332, 6
      %v12453 = vrot.slane %v12334, 2
      %v12454 = vrot.slane %v12334, 4
      %v12455 = vrot.slane %v12334, 6
      %v12456 = vrot.slane %v12337, 2
      %v12457 = vrot.slane %v12337, 4
      %v12458 = vrot.slane %v12337, 6
      %v12459 = vrot.slane %v12339, 2
      %v12460 = vrot.slane %v12339, 4
      %v12461 = vrot.slane %v12339, 6
      %v12462 = vrot.slane %v12342, 2
      %v12463 = vrot.slane %v12342, 4
      %v12464 = vrot.slane %v12342, 6
      %v12465 = vrot.slane %v12344, 2
      %v12466 = vrot.slane %v12344, 4
      %v12467 = vrot.slane %v12344, 6
      %v12468 = vrot.slane %v12347, 2
      %v12469 = vrot.slane %v12347, 4
      %v12470 = vrot.slane %v12347, 6
      %v12471 = vrot.slane %v12349, 2
      %v12472 = vrot.slane %v12349, 4
      %v12473 = vrot.slane %v12349, 6
      %v12474 = vrot.slane %v12352, 2
      %v12475 = vrot.slane %v12352, 4
      %v12476 = vrot.slane %v12352, 6
      %v12477 = vrot.slane %v12354, 2
      %v12478 = vrot.slane %v12354, 4
      %v12479 = vrot.slane %v12354, 6
      %v12480 = vrot.slane %v12357, 2
      %v12481 = vrot.slane %v12357, 4
      %v12482 = vrot.slane %v12357, 6
      %v12483 = vrot.slane %v12359, 2
      %v12484 = vrot.slane %v12359, 4
      %v12485 = vrot.slane %v12359, 6
      %v12486 = vrot.slane %v12362, 2
      %v12487 = vrot.slane %v12362, 4
      %v12488 = vrot.slane %v12362, 6
      %v12489 = vrot.slane %v12364, 2
      %v12490 = vrot.slane %v12364, 4
      %v12491 = vrot.slane %v12364, 6
      %v12492 = vrot.slane %v12367, 2
      %v12493 = vrot.slane %v12367, 4
      %v12494 = vrot.slane %v12367, 6
      %v12495 = vrot.slane %v12369, 2
      %v12496 = vrot.slane %v12369, 4
      %v12497 = vrot.slane %v12369, 6
      %v12498 = vrot.slane %v12372, 2
      %v12499 = vrot.slane %v12372, 4
      %v12500 = vrot.slane %v12372, 6
      %v12501 = vrot.slane %v12374, 2
      %v12502 = vrot.slane %v12374, 4
      %v12503 = vrot.slane %v12374, 6
      %v12600 = vadd.f32 %v11572, %v12297
      %v12601 = vadd.f32 %v11573, %v12408
      %v12602 = vadd.f32 %v11574, %v12409
      %v12603 = vadd.f32 %v11575, %v12410
      %v12604 = vadd.f32 %v11576, %v12299
      %v12605 = vadd.f32 %v11577, %v12411
      %v12606 = vadd.f32 %v11578, %v12412
      %v12607 = vadd.f32 %v11579, %v12413
      %v12608 = vadd.f32 %v11580, %v12302
      %v12609 = vadd.f32 %v11581, %v12414
      %v12610 = vadd.f32 %v11582, %v12415
      %v12611 = vadd.f32 %v11583, %v12416
      %v12612 = vadd.f32 %v11584, %v12304
      %v12613 = vadd.f32 %v11585, %v12417
      %v12614 = vadd.f32 %v11586, %v12418
      %v12615 = vadd.f32 %v11587, %v12419
      %v12616 = vadd.f32 %v11588, %v12307
      %v12617 = vadd.f32 %v11589, %v12420
      %v12618 = vadd.f32 %v11590, %v12421
      %v12619 = vadd.f32 %v11591, %v12422
      %v12620 = vadd.f32 %v11592, %v12309
      %v12621 = vadd.f32 %v11593, %v12423
      %v12622 = vadd.f32 %v11594, %v12424
      %v12623 = vadd.f32 %v11595, %v12425
      %v12624 = vadd.f32 %v11596, %v12312
      %v12625 = vadd.f32 %v11597, %v12426
      %v12626 = vadd.f32 %v11598, %v12427
      %v12627 = vadd.f32 %v11599, %v12428
      %v12628 = vadd.f32 %v11600, %v12314
      %v12629 = vadd.f32 %v11601, %v12429
      %v12630 = vadd.f32 %v11602, %v12430
      %v12631 = vadd.f32 %v11603, %v12431
      %v12632 = vadd.f32 %v11604, %v12317
      %v12633 = vadd.f32 %v11605, %v12432
      %v12634 = vadd.f32 %v11606, %v12433
      %v12635 = vadd.f32 %v11607, %v12434
      %v12636 = vadd.f32 %v11608, %v12319
      %v12637 = vadd.f32 %v11609, %v12435
      %v12638 = vadd.f32 %v11610, %v12436
      %v12639 = vadd.f32 %v11611, %v12437
      %v12640 = vadd.f32 %v11612, %v12322
      %v12641 = vadd.f32 %v11613, %v12438
      %v12642 = vadd.f32 %v11614, %v12439
      %v12643 = vadd.f32 %v11615, %v12440
      %v12644 = vadd.f32 %v11616, %v12324
      %v12645 = vadd.f32 %v11617, %v12441
      %v12646 = vadd.f32 %v11618, %v12442
      %v12647 = vadd.f32 %v11619, %v12443
      %v12648 = vadd.f32 %v11620, %v12327
      %v12649 = vadd.f32 %v11621, %v12444
      %v12650 = vadd.f32 %v11622, %v12445
      %v12651 = vadd.f32 %v11623, %v12446
      %v12652 = vadd.f32 %v11624, %v12329
      %v12653 = vadd.f32 %v11625, %v12447
      %v12654 = vadd.f32 %v11626, %v12448
      %v12655 = vadd.f32 %v11627, %v12449
      %v12656 = vadd.f32 %v11628, %v12332
      %v12657 = vadd.f32 %v11629, %v12450
      %v12658 = vadd.f32 %v11630, %v12451
      %v12659 = vadd.f32 %v11631, %v12452
      %v12660 = vadd.f32 %v11632, %v12334
      %v12661 = vadd.f32 %v11633, %v12453
      %v12662 = vadd.f32 %v11634, %v12454
      %v12663 = vadd.f32 %v11635, %v12455
      %v12664 = vadd.f32 %v11636, %v12337
      %v12665 = vadd.f32 %v11637, %v12456
      %v12666 = vadd.f32 %v11638, %v12457
      %v12667 = vadd.f32 %v11639, %v12458
      %v12668 = vadd.f32 %v11640, %v12339
      %v12669 = vadd.f32 %v11641, %v12459
      %v12670 = vadd.f32 %v11642, %v12460
      %v12671 = vadd.f32 %v11643, %v12461
      %v12672 = vadd.f32 %v11644, %v12342
      %v12673 = vadd.f32 %v11645, %v12462
      %v12674 = vadd.f32 %v11646, %v12463
      %v12675 = vadd.f32 %v11647, %v12464
      %v12676 = vadd.f32 %v11648, %v12344
      %v12677 = vadd.f32 %v11649, %v12465
      %v12678 = vadd.f32 %v11650, %v12466
      %v12679 = vadd.f32 %v11651, %v12467
      %v12680 = vadd.f32 %v11652, %v12347
      %v12681 = vadd.f32 %v11653, %v12468
      %v12682 = vadd.f32 %v11654, %v12469
      %v12683 = vadd.f32 %v11655, %v12470
      %v12684 = vadd.f32 %v11656, %v12349
      %v12685 = vadd.f32 %v11657, %v12471
      %v12686 = vadd.f32 %v11658, %v12472
      %v12687 = vadd.f32 %v11659, %v12473
      %v12688 = vadd.f32 %v11660, %v12352
      %v12689 = vadd.f32 %v11661, %v12474
      %v12690 = vadd.f32 %v11662, %v12475
      %v12691 = vadd.f32 %v11663, %v12476
      %v12692 = vadd.f32 %v11664, %v12354
      %v12693 = vadd.f32 %v11665, %v12477
      %v12694 = vadd.f32 %v11666, %v12478
      %v12695 = vadd.f32 %v11667, %v12479
      %v12696 = vadd.f32 %v11668, %v12357
      %v12697 = vadd.f32 %v11669, %v12480
      %v12698 = vadd.f32 %v11670, %v12481
      %v12699 = vadd.f32 %v11671, %v12482
      %v12700 = vadd.f32 %v11672, %v12359
      %v12701 = vadd.f32 %v11673, %v12483
      %v12702 = vadd.f32 %v11674, %v12484
      %v12703 = vadd.f32 %v11675, %v12485
      %v12704 = vadd.f32 %v11676, %v12362
      %v12705 = vadd.f32 %v11677, %v12486
      %v12706 = vadd.f32 %v11678, %v12487
      %v12707 = vadd.f32 %v11679, %v12488
      %v12708 = vadd.f32 %v11680, %v12364
      %v12709 = vadd.f32 %v11681, %v12489
      %v12710 = vadd.f32 %v11682, %v12490
      %v12711 = vadd.f32 %v11683, %v12491
      %v12712 = vadd.f32 %v11684, %v12367
      %v12713 = vadd.f32 %v11685, %v12492
      %v12714 = vadd.f32 %v11686, %v12493
      %v12715 = vadd.f32 %v11687, %v12494
      %v12716 = vadd.f32 %v11688, %v12369
      %v12717 = vadd.f32 %v11689, %v12495
      %v12718 = vadd.f32 %v11690, %v12496
      %v12719 = vadd.f32 %v11691, %v12497
      %v12720 = vadd.f32 %v11692, %v12372
      %v12721 = vadd.f32 %v11693, %v12498
      %v12722 = vadd.f32 %v11694, %v12499
      %v12723 = vadd.f32 %v11695, %v12500
      %v12724 = vadd.f32 %v11696, %v12374
      %v12725 = vadd.f32 %v11697, %v12501
      %v12726 = vadd.f32 %v11698, %v12502
      %v12727 = vadd.f32 %v11699, %v12503
      %v12728 = vld [vmem:[%s9] sm:$0x1]
      %v12729 = vperm.slane %v12728, 0
      %v12731 = vrot.slane %v12729, 2
      %v12732 = vrot.slane %v12729, 4
      %v12733 = vrot.slane %v12729, 6
      %v12737 = vmul.f32 %v12600, %v12729
      %v12738 = vmul.f32 %v12601, %v12731
      %v12739 = vmul.f32 %v12602, %v12732
      %v12740 = vmul.f32 %v12603, %v12733
      %v12741 = vmul.f32 %v12604, %v12729
      %v12742 = vmul.f32 %v12605, %v12731
      %v12743 = vmul.f32 %v12606, %v12732
      %v12744 = vmul.f32 %v12607, %v12733
      %v12745 = vmul.f32 %v12608, %v12729
      %v12746 = vmul.f32 %v12609, %v12731
      %v12747 = vmul.f32 %v12610, %v12732
      %v12748 = vmul.f32 %v12611, %v12733
      %v12749 = vmul.f32 %v12612, %v12729
      %v12750 = vmul.f32 %v12613, %v12731
      %v12751 = vmul.f32 %v12614, %v12732
      %v12752 = vmul.f32 %v12615, %v12733
      %v12753 = vmul.f32 %v12616, %v12729
      %v12754 = vmul.f32 %v12617, %v12731
      %v12755 = vmul.f32 %v12618, %v12732
      %v12756 = vmul.f32 %v12619, %v12733
      %v12757 = vmul.f32 %v12620, %v12729
      %v12758 = vmul.f32 %v12621, %v12731
      %v12759 = vmul.f32 %v12622, %v12732
      %v12760 = vmul.f32 %v12623, %v12733
      %v12761 = vmul.f32 %v12624, %v12729
      %v12762 = vmul.f32 %v12625, %v12731
      %v12763 = vmul.f32 %v12626, %v12732
      %v12764 = vmul.f32 %v12627, %v12733
      %v12765 = vmul.f32 %v12628, %v12729
      %v12766 = vmul.f32 %v12629, %v12731
      %v12767 = vmul.f32 %v12630, %v12732
      %v12768 = vmul.f32 %v12631, %v12733
      %v12769 = vmul.f32 %v12632, %v12729
      %v12770 = vmul.f32 %v12633, %v12731
      %v12771 = vmul.f32 %v12634, %v12732
      %v12772 = vmul.f32 %v12635, %v12733
      %v12773 = vmul.f32 %v12636, %v12729
      %v12774 = vmul.f32 %v12637, %v12731
      %v12775 = vmul.f32 %v12638, %v12732
      %v12776 = vmul.f32 %v12639, %v12733
      %v12777 = vmul.f32 %v12640, %v12729
      %v12778 = vmul.f32 %v12641, %v12731
      %v12779 = vmul.f32 %v12642, %v12732
      %v12780 = vmul.f32 %v12643, %v12733
      %v12781 = vmul.f32 %v12644, %v12729
      %v12782 = vmul.f32 %v12645, %v12731
      %v12783 = vmul.f32 %v12646, %v12732
      %v12784 = vmul.f32 %v12647, %v12733
      %v12785 = vmul.f32 %v12648, %v12729
      %v12786 = vmul.f32 %v12649, %v12731
      %v12787 = vmul.f32 %v12650, %v12732
      %v12788 = vmul.f32 %v12651, %v12733
      %v12789 = vmul.f32 %v12652, %v12729
      %v12790 = vmul.f32 %v12653, %v12731
      %v12791 = vmul.f32 %v12654, %v12732
      %v12792 = vmul.f32 %v12655, %v12733
      %v12793 = vmul.f32 %v12656, %v12729
      %v12794 = vmul.f32 %v12657, %v12731
      %v12795 = vmul.f32 %v12658, %v12732
      %v12796 = vmul.f32 %v12659, %v12733
      %v12797 = vmul.f32 %v12660, %v12729
      %v12798 = vmul.f32 %v12661, %v12731
      %v12799 = vmul.f32 %v12662, %v12732
      %v12800 = vmul.f32 %v12663, %v12733
      %v12801 = vmul.f32 %v12664, %v12729
      %v12802 = vmul.f32 %v12665, %v12731
      %v12803 = vmul.f32 %v12666, %v12732
      %v12804 = vmul.f32 %v12667, %v12733
      %v12805 = vmul.f32 %v12668, %v12729
      %v12806 = vmul.f32 %v12669, %v12731
      %v12807 = vmul.f32 %v12670, %v12732
      %v12808 = vmul.f32 %v12671, %v12733
      %v12809 = vmul.f32 %v12672, %v12729
      %v12810 = vmul.f32 %v12673, %v12731
      %v12811 = vmul.f32 %v12674, %v12732
      %v12812 = vmul.f32 %v12675, %v12733
      %v12813 = vmul.f32 %v12676, %v12729
      %v12814 = vmul.f32 %v12677, %v12731
      %v12815 = vmul.f32 %v12678, %v12732
      %v12816 = vmul.f32 %v12679, %v12733
      %v12817 = vmul.f32 %v12680, %v12729
      %v12818 = vmul.f32 %v12681, %v12731
      %v12819 = vmul.f32 %v12682, %v12732
      %v12820 = vmul.f32 %v12683, %v12733
      %v12821 = vmul.f32 %v12684, %v12729
      %v12822 = vmul.f32 %v12685, %v12731
      %v12823 = vmul.f32 %v12686, %v12732
      %v12824 = vmul.f32 %v12687, %v12733
      %v12825 = vmul.f32 %v12688, %v12729
      %v12826 = vmul.f32 %v12689, %v12731
      %v12827 = vmul.f32 %v12690, %v12732
      %v12828 = vmul.f32 %v12691, %v12733
      %v12829 = vmul.f32 %v12692, %v12729
      %v12830 = vmul.f32 %v12693, %v12731
      %v12831 = vmul.f32 %v12694, %v12732
      %v12832 = vmul.f32 %v12695, %v12733
      %v12833 = vmul.f32 %v12696, %v12729
      %v12834 = vmul.f32 %v12697, %v12731
      %v12835 = vmul.f32 %v12698, %v12732
      %v12836 = vmul.f32 %v12699, %v12733
      %v12837 = vmul.f32 %v12700, %v12729
      %v12838 = vmul.f32 %v12701, %v12731
      %v12839 = vmul.f32 %v12702, %v12732
      %v12840 = vmul.f32 %v12703, %v12733
      %v12841 = vmul.f32 %v12704, %v12729
      %v12842 = vmul.f32 %v12705, %v12731
      %v12843 = vmul.f32 %v12706, %v12732
      %v12844 = vmul.f32 %v12707, %v12733
      %v12845 = vmul.f32 %v12708, %v12729
      %v12846 = vmul.f32 %v12709, %v12731
      %v12847 = vmul.f32 %v12710, %v12732
      %v12848 = vmul.f32 %v12711, %v12733
      %v12849 = vmul.f32 %v12712, %v12729
      %v12850 = vmul.f32 %v12713, %v12731
      %v12851 = vmul.f32 %v12714, %v12732
      %v12852 = vmul.f32 %v12715, %v12733
      %v12853 = vmul.f32 %v12716, %v12729
      %v12854 = vmul.f32 %v12717, %v12731
      %v12855 = vmul.f32 %v12718, %v12732
      %v12856 = vmul.f32 %v12719, %v12733
      %v12857 = vmul.f32 %v12720, %v12729
      %v12858 = vmul.f32 %v12721, %v12731
      %v12859 = vmul.f32 %v12722, %v12732
      %v12860 = vmul.f32 %v12723, %v12733
      %v12861 = vmul.f32 %v12724, %v12729
      %v12862 = vmul.f32 %v12725, %v12731
      %v12863 = vmul.f32 %v12726, %v12732
      %v12864 = vmul.f32 %v12727, %v12733
      %v12865 = vld [vmem:[%s9 + $0x1] sm:$0x1]
      %v12866 = vperm.slane %v12865, 0
      %v12868 = vrot.slane %v12866, 2
      %v12869 = vrot.slane %v12866, 4
      %v12870 = vrot.slane %v12866, 6
      %v12874 = vadd.f32 %v12737, %v12866
      %v12875 = vadd.f32 %v12738, %v12868
      %v12876 = vadd.f32 %v12739, %v12869
      %v12877 = vadd.f32 %v12740, %v12870
      %v12878 = vadd.f32 %v12741, %v12866
      %v12879 = vadd.f32 %v12742, %v12868
      %v12880 = vadd.f32 %v12743, %v12869
      %v12881 = vadd.f32 %v12744, %v12870
      %v12882 = vadd.f32 %v12745, %v12866
      %v12883 = vadd.f32 %v12746, %v12868
      %v12884 = vadd.f32 %v12747, %v12869
      %v12885 = vadd.f32 %v12748, %v12870
      %v12886 = vadd.f32 %v12749, %v12866
      %v12887 = vadd.f32 %v12750, %v12868
      %v12888 = vadd.f32 %v12751, %v12869
      %v12889 = vadd.f32 %v12752, %v12870
      %v12890 = vadd.f32 %v12753, %v12866
      %v12891 = vadd.f32 %v12754, %v12868
      %v12892 = vadd.f32 %v12755, %v12869
      %v12893 = vadd.f32 %v12756, %v12870
      %v12894 = vadd.f32 %v12757, %v12866
      %v12895 = vadd.f32 %v12758, %v12868
      %v12896 = vadd.f32 %v12759, %v12869
      %v12897 = vadd.f32 %v12760, %v12870
      %v12898 = vadd.f32 %v12761, %v12866
      %v12899 = vadd.f32 %v12762, %v12868
      %v12900 = vadd.f32 %v12763, %v12869
      %v12901 = vadd.f32 %v12764, %v12870
      %v12902 = vadd.f32 %v12765, %v12866
      %v12903 = vadd.f32 %v12766, %v12868
      %v12904 = vadd.f32 %v12767, %v12869
      %v12905 = vadd.f32 %v12768, %v12870
      %v12906 = vadd.f32 %v12769, %v12866
      %v12907 = vadd.f32 %v12770, %v12868
      %v12908 = vadd.f32 %v12771, %v12869
      %v12909 = vadd.f32 %v12772, %v12870
      %v12910 = vadd.f32 %v12773, %v12866
      %v12911 = vadd.f32 %v12774, %v12868
      %v12912 = vadd.f32 %v12775, %v12869
      %v12913 = vadd.f32 %v12776, %v12870
      %v12914 = vadd.f32 %v12777, %v12866
      %v12915 = vadd.f32 %v12778, %v12868
      %v12916 = vadd.f32 %v12779, %v12869
      %v12917 = vadd.f32 %v12780, %v12870
      %v12918 = vadd.f32 %v12781, %v12866
      %v12919 = vadd.f32 %v12782, %v12868
      %v12920 = vadd.f32 %v12783, %v12869
      %v12921 = vadd.f32 %v12784, %v12870
      %v12922 = vadd.f32 %v12785, %v12866
      %v12923 = vadd.f32 %v12786, %v12868
      %v12924 = vadd.f32 %v12787, %v12869
      %v12925 = vadd.f32 %v12788, %v12870
      %v12926 = vadd.f32 %v12789, %v12866
      %v12927 = vadd.f32 %v12790, %v12868
      %v12928 = vadd.f32 %v12791, %v12869
      %v12929 = vadd.f32 %v12792, %v12870
      %v12930 = vadd.f32 %v12793, %v12866
      %v12931 = vadd.f32 %v12794, %v12868
      %v12932 = vadd.f32 %v12795, %v12869
      %v12933 = vadd.f32 %v12796, %v12870
      %v12934 = vadd.f32 %v12797, %v12866
      %v12935 = vadd.f32 %v12798, %v12868
      %v12936 = vadd.f32 %v12799, %v12869
      %v12937 = vadd.f32 %v12800, %v12870
      %v12938 = vadd.f32 %v12801, %v12866
      %v12939 = vadd.f32 %v12802, %v12868
      %v12940 = vadd.f32 %v12803, %v12869
      %v12941 = vadd.f32 %v12804, %v12870
      %v12942 = vadd.f32 %v12805, %v12866
      %v12943 = vadd.f32 %v12806, %v12868
      %v12944 = vadd.f32 %v12807, %v12869
      %v12945 = vadd.f32 %v12808, %v12870
      %v12946 = vadd.f32 %v12809, %v12866
      %v12947 = vadd.f32 %v12810, %v12868
      %v12948 = vadd.f32 %v12811, %v12869
      %v12949 = vadd.f32 %v12812, %v12870
      %v12950 = vadd.f32 %v12813, %v12866
      %v12951 = vadd.f32 %v12814, %v12868
      %v12952 = vadd.f32 %v12815, %v12869
      %v12953 = vadd.f32 %v12816, %v12870
      %v12954 = vadd.f32 %v12817, %v12866
      %v12955 = vadd.f32 %v12818, %v12868
      %v12956 = vadd.f32 %v12819, %v12869
      %v12957 = vadd.f32 %v12820, %v12870
      %v12958 = vadd.f32 %v12821, %v12866
      %v12959 = vadd.f32 %v12822, %v12868
      %v12960 = vadd.f32 %v12823, %v12869
      %v12961 = vadd.f32 %v12824, %v12870
      %v12962 = vadd.f32 %v12825, %v12866
      %v12963 = vadd.f32 %v12826, %v12868
      %v12964 = vadd.f32 %v12827, %v12869
      %v12965 = vadd.f32 %v12828, %v12870
      %v12966 = vadd.f32 %v12829, %v12866
      %v12967 = vadd.f32 %v12830, %v12868
      %v12968 = vadd.f32 %v12831, %v12869
      %v12969 = vadd.f32 %v12832, %v12870
      %v12970 = vadd.f32 %v12833, %v12866
      %v12971 = vadd.f32 %v12834, %v12868
      %v12972 = vadd.f32 %v12835, %v12869
      %v12973 = vadd.f32 %v12836, %v12870
      %v12974 = vadd.f32 %v12837, %v12866
      %v12975 = vadd.f32 %v12838, %v12868
      %v12976 = vadd.f32 %v12839, %v12869
      %v12977 = vadd.f32 %v12840, %v12870
      %v12978 = vadd.f32 %v12841, %v12866
      %v12979 = vadd.f32 %v12842, %v12868
      %v12980 = vadd.f32 %v12843, %v12869
      %v12981 = vadd.f32 %v12844, %v12870
      %v12982 = vadd.f32 %v12845, %v12866
      %v12983 = vadd.f32 %v12846, %v12868
      %v12984 = vadd.f32 %v12847, %v12869
      %v12985 = vadd.f32 %v12848, %v12870
      %v12986 = vadd.f32 %v12849, %v12866
      %v12987 = vadd.f32 %v12850, %v12868
      %v12988 = vadd.f32 %v12851, %v12869
      %v12989 = vadd.f32 %v12852, %v12870
      %v12990 = vadd.f32 %v12853, %v12866
      %v12991 = vadd.f32 %v12854, %v12868
      %v12992 = vadd.f32 %v12855, %v12869
      %v12993 = vadd.f32 %v12856, %v12870
      %v12994 = vadd.f32 %v12857, %v12866
      %v12995 = vadd.f32 %v12858, %v12868
      %v12996 = vadd.f32 %v12859, %v12869
      %v12997 = vadd.f32 %v12860, %v12870
      %v12998 = vadd.f32 %v12861, %v12866
      %v12999 = vadd.f32 %v12862, %v12868
      %v13000 = vadd.f32 %v12863, %v12869
      %v13001 = vadd.f32 %v12864, %v12870
      %v13002 = vmax.f32 %v12874, 0.0
      %v13003 = vmax.f32 %v12875, 0.0
      %v13004 = vmax.f32 %v12876, 0.0
      %v13005 = vmax.f32 %v12877, 0.0
      %v13006 = vmax.f32 %v12878, 0.0
      %v13007 = vmax.f32 %v12879, 0.0
      %v13008 = vmax.f32 %v12880, 0.0
      %v13009 = vmax.f32 %v12881, 0.0
      %v13010 = vmax.f32 %v12882, 0.0
      %v13011 = vmax.f32 %v12883, 0.0
      %v13012 = vmax.f32 %v12884, 0.0
      %v13013 = vmax.f32 %v12885, 0.0
      %v13014 = vmax.f32 %v12886, 0.0
      %v13015 = vmax.f32 %v12887, 0.0
      %v13016 = vmax.f32 %v12888, 0.0
      %v13017 = vmax.f32 %v12889, 0.0
      %v13018 = vmax.f32 %v12890, 0.0
      %v13019 = vmax.f32 %v12891, 0.0
      %v13020 = vmax.f32 %v12892, 0.0
      %v13021 = vmax.f32 %v12893, 0.0
      %v13022 = vmax.f32 %v12894, 0.0
      %v13023 = vmax.f32 %v12895, 0.0
      %v13024 = vmax.f32 %v12896, 0.0
      %v13025 = vmax.f32 %v12897, 0.0
      %v13026 = vmax.f32 %v12898, 0.0
      %v13027 = vmax.f32 %v12899, 0.0
      %v13028 = vmax.f32 %v12900, 0.0
      %v13029 = vmax.f32 %v12901, 0.0
      %v13030 = vmax.f32 %v12902, 0.0
      %v13031 = vmax.f32 %v12903, 0.0
      %v13032 = vmax.f32 %v12904, 0.0
      %v13033 = vmax.f32 %v12905, 0.0
      %v13034 = vmax.f32 %v12906, 0.0
      %v13035 = vmax.f32 %v12907, 0.0
      %v13036 = vmax.f32 %v12908, 0.0
      %v13037 = vmax.f32 %v12909, 0.0
      %v13038 = vmax.f32 %v12910, 0.0
      %v13039 = vmax.f32 %v12911, 0.0
      %v13040 = vmax.f32 %v12912, 0.0
      %v13041 = vmax.f32 %v12913, 0.0
      %v13042 = vmax.f32 %v12914, 0.0
      %v13043 = vmax.f32 %v12915, 0.0
      %v13044 = vmax.f32 %v12916, 0.0
      %v13045 = vmax.f32 %v12917, 0.0
      %v13046 = vmax.f32 %v12918, 0.0
      %v13047 = vmax.f32 %v12919, 0.0
      %v13048 = vmax.f32 %v12920, 0.0
      %v13049 = vmax.f32 %v12921, 0.0
      %v13050 = vmax.f32 %v12922, 0.0
      %v13051 = vmax.f32 %v12923, 0.0
      %v13052 = vmax.f32 %v12924, 0.0
      %v13053 = vmax.f32 %v12925, 0.0
      %v13054 = vmax.f32 %v12926, 0.0
      %v13055 = vmax.f32 %v12927, 0.0
      %v13056 = vmax.f32 %v12928, 0.0
      %v13057 = vmax.f32 %v12929, 0.0
      %v13058 = vmax.f32 %v12930, 0.0
      %v13059 = vmax.f32 %v12931, 0.0
      %v13060 = vmax.f32 %v12932, 0.0
      %v13061 = vmax.f32 %v12933, 0.0
      %v13062 = vmax.f32 %v12934, 0.0
      %v13063 = vmax.f32 %v12935, 0.0
      %v13064 = vmax.f32 %v12936, 0.0
      %v13065 = vmax.f32 %v12937, 0.0
      %v13066 = vmax.f32 %v12938, 0.0
      %v13067 = vmax.f32 %v12939, 0.0
      %v13068 = vmax.f32 %v12940, 0.0
      %v13069 = vmax.f32 %v12941, 0.0
      %v13070 = vmax.f32 %v12942, 0.0
      %v13071 = vmax.f32 %v12943, 0.0
      %v13072 = vmax.f32 %v12944, 0.0
      %v13073 = vmax.f32 %v12945, 0.0
      %v13074 = vmax.f32 %v12946, 0.0
      %v13075 = vmax.f32 %v12947, 0.0
      %v13076 = vmax.f32 %v12948, 0.0
      %v13077 = vmax.f32 %v12949, 0.0
      %v13078 = vmax.f32 %v12950, 0.0
      %v13079 = vmax.f32 %v12951, 0.0
      %v13080 = vmax.f32 %v12952, 0.0
      %v13081 = vmax.f32 %v12953, 0.0
      %v13082 = vmax.f32 %v12954, 0.0
      %v13083 = vmax.f32 %v12955, 0.0
      %v13084 = vmax.f32 %v12956, 0.0
      %v13085 = vmax.f32 %v12957, 0.0
      %v13086 = vmax.f32 %v12958, 0.0
      %v13087 = vmax.f32 %v12959, 0.0
      %v13088 = vmax.f32 %v12960, 0.0
      %v13089 = vmax.f32 %v12961, 0.0
      %v13090 = vmax.f32 %v12962, 0.0
      %v13091 = vmax.f32 %v12963, 0.0
      %v13092 = vmax.f32 %v12964, 0.0
      %v13093 = vmax.f32 %v12965, 0.0
      %v13094 = vmax.f32 %v12966, 0.0
      %v13095 = vmax.f32 %v12967, 0.0
      %v13096 = vmax.f32 %v12968, 0.0
      %v13097 = vmax.f32 %v12969, 0.0
      %v13098 = vmax.f32 %v12970, 0.0
      %v13099 = vmax.f32 %v12971, 0.0
      %v13100 = vmax.f32 %v12972, 0.0
      %v13101 = vmax.f32 %v12973, 0.0
      %v13102 = vmax.f32 %v12974, 0.0
      %v13103 = vmax.f32 %v12975, 0.0
      %v13104 = vmax.f32 %v12976, 0.0
      %v13105 = vmax.f32 %v12977, 0.0
      %v13106 = vmax.f32 %v12978, 0.0
      %v13107 = vmax.f32 %v12979, 0.0
      %v13108 = vmax.f32 %v12980, 0.0
      %v13109 = vmax.f32 %v12981, 0.0
      %v13110 = vmax.f32 %v12982, 0.0
      %v13111 = vmax.f32 %v12983, 0.0
      %v13112 = vmax.f32 %v12984, 0.0
      %v13113 = vmax.f32 %v12985, 0.0
      %v13114 = vmax.f32 %v12986, 0.0
      %v13115 = vmax.f32 %v12987, 0.0
      %v13116 = vmax.f32 %v12988, 0.0
      %v13117 = vmax.f32 %v12989, 0.0
      %v13118 = vmax.f32 %v12990, 0.0
      %v13119 = vmax.f32 %v12991, 0.0
      %v13120 = vmax.f32 %v12992, 0.0
      %v13121 = vmax.f32 %v12993, 0.0
      %v13122 = vmax.f32 %v12994, 0.0
      %v13123 = vmax.f32 %v12995, 0.0
      %v13124 = vmax.f32 %v12996, 0.0
      %v13125 = vmax.f32 %v12997, 0.0
      %v13126 = vmax.f32 %v12998, 0.0
      %v13127 = vmax.f32 %v12999, 0.0
      %v13128 = vmax.f32 %v13000, 0.0
      %v13129 = vmax.f32 %v13001, 0.0
      %13258 = vst [vmem:[#allocation1] ss:$4 sm:$0xff] %v13002
      %s13259 = scalar_lea.vmem [#allocation1], 1
      %13260 = vst [vmem:[%s13259] ss:$4 sm:$0xff] %v13003
      %s13261 = scalar_lea.vmem [#allocation1], 2
      %13262 = vst [vmem:[%s13261] ss:$4 sm:$0xff] %v13004
      %s13263 = scalar_lea.vmem [#allocation1], 3
      %13264 = vst [vmem:[%s13263] ss:$4 sm:$0xff] %v13005
      %s13265 = scalar_lea.vmem [#allocation1], 32
      %13266 = vst [vmem:[%s13265] ss:$4 sm:$0xff] %v13006
      %s13267 = scalar_lea.vmem [#allocation1], 33
      %13268 = vst [vmem:[%s13267] ss:$4 sm:$0xff] %v13007
      %s13269 = scalar_lea.vmem [#allocation1], 34
      %13270 = vst [vmem:[%s13269] ss:$4 sm:$0xff] %v13008
      %s13271 = scalar_lea.vmem [#allocation1], 35
      %13272 = vst [vmem:[%s13271] ss:$4 sm:$0xff] %v13009
      %v13273 = vld.sshfl [vmem:[#allocation1] sm:$0xff pattern:$0x73625140]
      %v13274 = vld.sshfl [vmem:[#allocation1 + $0x20] sm:$0xff pattern:$0x73625140]
      %13275 = vst [vmem:[#allocation1] ss:$4 sm:$0xff] %v13010
      %13276 = vst [vmem:[%s13259] ss:$4 sm:$0xff] %v13011
      %13277 = vst [vmem:[%s13261] ss:$4 sm:$0xff] %v13012
      %13278 = vst [vmem:[%s13263] ss:$4 sm:$0xff] %v13013
      %13279 = vst [vmem:[%s13265] ss:$4 sm:$0xff] %v13014
      %13280 = vst [vmem:[%s13267] ss:$4 sm:$0xff] %v13015
      %13281 = vst [vmem:[%s13269] ss:$4 sm:$0xff] %v13016
      %13282 = vst [vmem:[%s13271] ss:$4 sm:$0xff] %v13017
      %v13283 = vld.sshfl [vmem:[#allocation1] sm:$0xff pattern:$0x73625140]
      %v13284 = vld.sshfl [vmem:[#allocation1 + $0x20] sm:$0xff pattern:$0x73625140]
      %13285 = vst [vmem:[#allocation1] ss:$4 sm:$0xff] %v13018
      %13286 = vst [vmem:[%s13259] ss:$4 sm:$0xff] %v13019
      %13287 = vst [vmem:[%s13261] ss:$4 sm:$0xff] %v13020
      %13288 = vst [vmem:[%s13263] ss:$4 sm:$0xff] %v13021
      %13289 = vst [vmem:[%s13265] ss:$4 sm:$0xff] %v13022
      %13290 = vst [vmem:[%s13267] ss:$4 sm:$0xff] %v13023
      %13291 = vst [vmem:[%s13269] ss:$4 sm:$0xff] %v13024
      %13292 = vst [vmem:[%s13271] ss:$4 sm:$0xff] %v13025
      %v13293 = vld.sshfl [vmem:[#allocation1] sm:$0xff pattern:$0x73625140]
      %v13294 = vld.sshfl [vmem:[#allocation1 + $0x20] sm:$0xff pattern:$0x73625140]
      %13295 = vst [vmem:[#allocation1] ss:$4 sm:$0xff] %v13026
      %13296 = vst [vmem:[%s13259] ss:$4 sm:$0xff] %v13027
      %13297 = vst [vmem:[%s13261] ss:$4 sm:$0xff] %v13028
      %13298 = vst [vmem:[%s13263] ss:$4 sm:$0xff] %v13029
      %13299 = vst [vmem:[%s13265] ss:$4 sm:$0xff] %v13030
      %13300 = vst [vmem:[%s13267] ss:$4 sm:$0xff] %v13031
      %13301 = vst [vmem:[%s13269] ss:$4 sm:$0xff] %v13032
      %13302 = vst [vmem:[%s13271] ss:$4 sm:$0xff] %v13033
      %v13303 = vld.sshfl [vmem:[#allocation1] sm:$0xff pattern:$0x73625140]
      %v13304 = vld.sshfl [vmem:[#allocation1 + $0x20] sm:$0xff pattern:$0x73625140]
      %13305 = vst [vmem:[#allocation1] ss:$4 sm:$0xff] %v13034
      %13306 = vst [vmem:[%s13259] ss:$4 sm:$0xff] %v13035
      %13307 = vst [vmem:[%s13261] ss:$4 sm:$0xff] %v13036
      %13308 = vst [vmem:[%s13263] ss:$4 sm:$0xff] %v13037
      %13309 = vst [vmem:[%s13265] ss:$4 sm:$0xff] %v13038
      %13310 = vst [vmem:[%s13267] ss:$4 sm:$0xff] %v13039
      %13311 = vst [vmem:[%s13269] ss:$4 sm:$0xff] %v13040
      %13312 = vst [vmem:[%s13271] ss:$4 sm:$0xff] %v13041
      %v13313 = vld.sshfl [vmem:[#allocation1] sm:$0xff pattern:$0x73625140]
      %v13314 = vld.sshfl [vmem:[#allocation1 + $0x20] sm:$0xff pattern:$0x73625140]
      %13315 = vst [vmem:[#allocation1] ss:$4 sm:$0xff] %v13042
      %13316 = vst [vmem:[%s13259] ss:$4 sm:$0xff] %v13043
      %13317 = vst [vmem:[%s13261] ss:$4 sm:$0xff] %v13044
      %13318 = vst [vmem:[%s13263] ss:$4 sm:$0xff] %v13045
      %13319 = vst [vmem:[%s13265] ss:$4 sm:$0xff] %v13046
      %13320 = vst [vmem:[%s13267] ss:$4 sm:$0xff] %v13047
      %13321 = vst [vmem:[%s13269] ss:$4 sm:$0xff] %v13048
      %13322 = vst [vmem:[%s13271] ss:$4 sm:$0xff] %v13049
      %v13323 = vld.sshfl [vmem:[#allocation1] sm:$0xff pattern:$0x73625140]
      %v13324 = vld.sshfl [vmem:[#allocation1 + $0x20] sm:$0xff pattern:$0x73625140]
      %13325 = vst [vmem:[#allocation1] ss:$4 sm:$0xff] %v13050
      %13326 = vst [vmem:[%s13259] ss:$4 sm:$0xff] %v13051
      %13327 = vst [vmem:[%s13261] ss:$4 sm:$0xff] %v13052
      %13328 = vst [vmem:[%s13263] ss:$4 sm:$0xff] %v13053
      %13329 = vst [vmem:[%s13265] ss:$4 sm:$0xff] %v13054
      %13330 = vst [vmem:[%s13267] ss:$4 sm:$0xff] %v13055
      %13331 = vst [vmem:[%s13269] ss:$4 sm:$0xff] %v13056
      %13332 = vst [vmem:[%s13271] ss:$4 sm:$0xff] %v13057
      %v13333 = vld.sshfl [vmem:[#allocation1] sm:$0xff pattern:$0x73625140]
      %v13334 = vld.sshfl [vmem:[#allocation1 + $0x20] sm:$0xff pattern:$0x73625140]
      %13335 = vst [vmem:[#allocation1] ss:$4 sm:$0xff] %v13058
      %13336 = vst [vmem:[%s13259] ss:$4 sm:$0xff] %v13059
      %13337 = vst [vmem:[%s13261] ss:$4 sm:$0xff] %v13060
      %13338 = vst [vmem:[%s13263] ss:$4 sm:$0xff] %v13061
      %13339 = vst [vmem:[%s13265] ss:$4 sm:$0xff] %v13062
      %13340 = vst [vmem:[%s13267] ss:$4 sm:$0xff] %v13063
      %13341 = vst [vmem:[%s13269] ss:$4 sm:$0xff] %v13064
      %13342 = vst [vmem:[%s13271] ss:$4 sm:$0xff] %v13065
      %v13343 = vld.sshfl [vmem:[#allocation1] sm:$0xff pattern:$0x73625140]
      %v13344 = vld.sshfl [vmem:[#allocation1 + $0x20] sm:$0xff pattern:$0x73625140]
      %13345 = vst [vmem:[#allocation1] ss:$4 sm:$0xff] %v13066
      %13346 = vst [vmem:[%s13259] ss:$4 sm:$0xff] %v13067
      %13347 = vst [vmem:[%s13261] ss:$4 sm:$0xff] %v13068
      %13348 = vst [vmem:[%s13263] ss:$4 sm:$0xff] %v13069
      %13349 = vst [vmem:[%s13265] ss:$4 sm:$0xff] %v13070
      %13350 = vst [vmem:[%s13267] ss:$4 sm:$0xff] %v13071
      %13351 = vst [vmem:[%s13269] ss:$4 sm:$0xff] %v13072
      %13352 = vst [vmem:[%s13271] ss:$4 sm:$0xff] %v13073
      %v13353 = vld.sshfl [vmem:[#allocation1] sm:$0xff pattern:$0x73625140]
      %v13354 = vld.sshfl [vmem:[#allocation1 + $0x20] sm:$0xff pattern:$0x73625140]
      %13355 = vst [vmem:[#allocation1] ss:$4 sm:$0xff] %v13074
      %13356 = vst [vmem:[%s13259] ss:$4 sm:$0xff] %v13075
      %13357 = vst [vmem:[%s13261] ss:$4 sm:$0xff] %v13076
      %13358 = vst [vmem:[%s13263] ss:$4 sm:$0xff] %v13077
      %13359 = vst [vmem:[%s13265] ss:$4 sm:$0xff] %v13078
      %13360 = vst [vmem:[%s13267] ss:$4 sm:$0xff] %v13079
      %13361 = vst [vmem:[%s13269] ss:$4 sm:$0xff] %v13080
      %13362 = vst [vmem:[%s13271] ss:$4 sm:$0xff] %v13081
      %v13363 = vld.sshfl [vmem:[#allocation1] sm:$0xff pattern:$0x73625140]
      %v13364 = vld.sshfl [vmem:[#allocation1 + $0x20] sm:$0xff pattern:$0x73625140]
      %13365 = vst [vmem:[#allocation1] ss:$4 sm:$0xff] %v13082
      %13366 = vst [vmem:[%s13259] ss:$4 sm:$0xff] %v13083
      %13367 = vst [vmem:[%s13261] ss:$4 sm:$0xff] %v13084
      %13368 = vst [vmem:[%s13263] ss:$4 sm:$0xff] %v13085
      %13369 = vst [vmem:[%s13265] ss:$4 sm:$0xff] %v13086
      %13370 = vst [vmem:[%s13267] ss:$4 sm:$0xff] %v13087
      %13371 = vst [vmem:[%s13269] ss:$4 sm:$0xff] %v13088
      %13372 = vst [vmem:[%s13271] ss:$4 sm:$0xff] %v13089
      %v13373 = vld.sshfl [vmem:[#allocation1] sm:$0xff pattern:$0x73625140]
      %v13374 = vld.sshfl [vmem:[#allocation1 + $0x20] sm:$0xff pattern:$0x73625140]
      %13375 = vst [vmem:[#allocation1] ss:$4 sm:$0xff] %v13090
      %13376 = vst [vmem:[%s13259] ss:$4 sm:$0xff] %v13091
      %13377 = vst [vmem:[%s13261] ss:$4 sm:$0xff] %v13092
      %13378 = vst [vmem:[%s13263] ss:$4 sm:$0xff] %v13093
      %13379 = vst [vmem:[%s13265] ss:$4 sm:$0xff] %v13094
      %13380 = vst [vmem:[%s13267] ss:$4 sm:$0xff] %v13095
      %13381 = vst [vmem:[%s13269] ss:$4 sm:$0xff] %v13096
      %13382 = vst [vmem:[%s13271] ss:$4 sm:$0xff] %v13097
      %v13383 = vld.sshfl [vmem:[#allocation1] sm:$0xff pattern:$0x73625140]
      %v13384 = vld.sshfl [vmem:[#allocation1 + $0x20] sm:$0xff pattern:$0x73625140]
      %13385 = vst [vmem:[#allocation1] ss:$4 sm:$0xff] %v13098
      %13386 = vst [vmem:[%s13259] ss:$4 sm:$0xff] %v13099
      %13387 = vst [vmem:[%s13261] ss:$4 sm:$0xff] %v13100
      %13388 = vst [vmem:[%s13263] ss:$4 sm:$0xff] %v13101
      %13389 = vst [vmem:[%s13265] ss:$4 sm:$0xff] %v13102
      %13390 = vst [vmem:[%s13267] ss:$4 sm:$0xff] %v13103
      %13391 = vst [vmem:[%s13269] ss:$4 sm:$0xff] %v13104
      %13392 = vst [vmem:[%s13271] ss:$4 sm:$0xff] %v13105
      %v13393 = vld.sshfl [vmem:[#allocation1] sm:$0xff pattern:$0x73625140]
      %v13394 = vld.sshfl [vmem:[#allocation1 + $0x20] sm:$0xff pattern:$0x73625140]
      %13395 = vst [vmem:[#allocation1] ss:$4 sm:$0xff] %v13106
      %13396 = vst [vmem:[%s13259] ss:$4 sm:$0xff] %v13107
      %13397 = vst [vmem:[%s13261] ss:$4 sm:$0xff] %v13108
      %13398 = vst [vmem:[%s13263] ss:$4 sm:$0xff] %v13109
      %13399 = vst [vmem:[%s13265] ss:$4 sm:$0xff] %v13110
      %13400 = vst [vmem:[%s13267] ss:$4 sm:$0xff] %v13111
      %13401 = vst [vmem:[%s13269] ss:$4 sm:$0xff] %v13112
      %13402 = vst [vmem:[%s13271] ss:$4 sm:$0xff] %v13113
      %v13403 = vld.sshfl [vmem:[#allocation1] sm:$0xff pattern:$0x73625140]
      %v13404 = vld.sshfl [vmem:[#allocation1 + $0x20] sm:$0xff pattern:$0x73625140]
      %13405 = vst [vmem:[#allocation1] ss:$4 sm:$0xff] %v13114
      %13406 = vst [vmem:[%s13259] ss:$4 sm:$0xff] %v13115
      %13407 = vst [vmem:[%s13261] ss:$4 sm:$0xff] %v13116
      %13408 = vst [vmem:[%s13263] ss:$4 sm:$0xff] %v13117
      %13409 = vst [vmem:[%s13265] ss:$4 sm:$0xff] %v13118
      %13410 = vst [vmem:[%s13267] ss:$4 sm:$0xff] %v13119
      %13411 = vst [vmem:[%s13269] ss:$4 sm:$0xff] %v13120
      %13412 = vst [vmem:[%s13271] ss:$4 sm:$0xff] %v13121
      %v13413 = vld.sshfl [vmem:[#allocation1] sm:$0xff pattern:$0x73625140]
      %v13414 = vld.sshfl [vmem:[#allocation1 + $0x20] sm:$0xff pattern:$0x73625140]
      %13415 = vst [vmem:[#allocation1] ss:$4 sm:$0xff] %v13122
      %13416 = vst [vmem:[%s13259] ss:$4 sm:$0xff] %v13123
      %13417 = vst [vmem:[%s13261] ss:$4 sm:$0xff] %v13124
      %13418 = vst [vmem:[%s13263] ss:$4 sm:$0xff] %v13125
      %13419 = vst [vmem:[%s13265] ss:$4 sm:$0xff] %v13126
      %13420 = vst [vmem:[%s13267] ss:$4 sm:$0xff] %v13127
      %13421 = vst [vmem:[%s13269] ss:$4 sm:$0xff] %v13128
      %13422 = vst [vmem:[%s13271] ss:$4 sm:$0xff] %v13129
      %v13423 = vld.sshfl [vmem:[#allocation1] sm:$0xff pattern:$0x73625140]
      %v13424 = vld.sshfl [vmem:[#allocation1 + $0x20] sm:$0xff pattern:$0x73625140]
      %13457 = vxpose.xlu0.b32.start [1/16] %v13273, 128
      %13458 = vxpose.xlu0.b32.cont [2/16] %v13274, 128
      %13459 = vxpose.xlu0.b32.cont [3/16] %v13283, 128
      %13460 = vxpose.xlu0.b32.cont [4/16] %v13284, 128
      %13461 = vxpose.xlu0.b32.cont [5/16] %v13293, 128
      %13462 = vxpose.xlu0.b32.cont [6/16] %v13294, 128
      %13463 = vxpose.xlu0.b32.cont [7/16] %v13303, 128
      %13464 = vxpose.xlu0.b32.cont [8/16] %v13304, 128
      %13465 = vxpose.xlu0.b32.cont [9/16] %v13313, 128
      %13466 = vxpose.xlu0.b32.cont [10/16] %v13314, 128
      %13467 = vxpose.xlu0.b32.cont [11/16] %v13323, 128
      %13468 = vxpose.xlu0.b32.cont [12/16] %v13324, 128
      %13469 = vxpose.xlu0.b32.cont [13/16] %v13333, 128
      %13470 = vxpose.xlu0.b32.cont [14/16] %v13334, 128
      %13471 = vxpose.xlu0.b32.cont [15/16] %v13343, 128
      %13472 = vxpose.xlu0.b32.end [16/16] %v13344, 128
      %v13473 = vpop.trf.xlu0
      %v13474 = vpop.trf.xlu0
      %v13475 = vpop.trf.xlu0
      %v13476 = vpop.trf.xlu0
      %v13477 = vpop.trf.xlu0
      %v13478 = vpop.trf.xlu0
      %v13479 = vpop.trf.xlu0
      %v13480 = vpop.trf.xlu0
      %v13481 = vpop.trf.xlu0
      %v13482 = vpop.trf.xlu0
      %v13483 = vpop.trf.xlu0
      %v13484 = vpop.trf.xlu0
      %v13485 = vpop.trf.xlu0
      %v13486 = vpop.trf.xlu0
      %v13487 = vpop.trf.xlu0
      %v13488 = vpop.trf.xlu0
      %13489 = vxpose.xlu0.b32.start [1/16] %v13353, 128
      %13490 = vxpose.xlu0.b32.cont [2/16] %v13354, 128
      %13491 = vxpose.xlu0.b32.cont [3/16] %v13363, 128
      %13492 = vxpose.xlu0.b32.cont [4/16] %v13364, 128
      %13493 = vxpose.xlu0.b32.cont [5/16] %v13373, 128
      %13494 = vxpose.xlu0.b32.cont [6/16] %v13374, 128
      %13495 = vxpose.xlu0.b32.cont [7/16] %v13383, 128
      %13496 = vxpose.xlu0.b32.cont [8/16] %v13384, 128
      %13497 = vxpose.xlu0.b32.cont [9/16] %v13393, 128
      %13498 = vxpose.xlu0.b32.cont [10/16] %v13394, 128
      %13499 = vxpose.xlu0.b32.cont [11/16] %v13403, 128
      %13500 = vxpose.xlu0.b32.cont [12/16] %v13404, 128
      %13501 = vxpose.xlu0.b32.cont [13/16] %v13413, 128
      %13502 = vxpose.xlu0.b32.cont [14/16] %v13414, 128
      %13503 = vxpose.xlu0.b32.cont [15/16] %v13423, 128
      %13504 = vxpose.xlu0.b32.end [16/16] %v13424, 128
      %v13505 = vpop.trf.xlu0
      %v13506 = vpop.trf.xlu0
      %v13507 = vpop.trf.xlu0
      %v13508 = vpop.trf.xlu0
      %v13509 = vpop.trf.xlu0
      %v13510 = vpop.trf.xlu0
      %v13511 = vpop.trf.xlu0
      %v13512 = vpop.trf.xlu0
      %v13513 = vpop.trf.xlu0
      %v13514 = vpop.trf.xlu0
      %v13515 = vpop.trf.xlu0
      %v13516 = vpop.trf.xlu0
      %v13517 = vpop.trf.xlu0
      %v13518 = vpop.trf.xlu0
      %v13519 = vpop.trf.xlu0
      %v13520 = vpop.trf.xlu0
      %v13521 = vpack.c.bf16 %v13505, %v13473
      %v13523 = vrot.slane %v13521, 2
      %vm13524 = vcmask 1041408
      %v13527 = vsel %vm13524, %v13521, %v13523
      %13529 = vst [vmem:[%s440] sm:$0xf] %v13527
      %p13530 = scmp.lt.s32.totalorder %s24, 1
      %s13531 = scalar_select %p13530, %s24, 1
      %s13532 = smul.addr %s13531, 2
      %s13533 = smul.addr %s13532, 2
      %s13534 = scalar_lea.vmem %s11, %s13533
      %p13535 = scmp.lt.s32.totalorder %s24, 1
      %s13536 = scalar_select %p13535, %s24, 1
      %s13537 = smul.addr %s13536, 2
      %s13538 = scalar_lea.vmem %s12, %s13537
      // Predicated region
      $region65: #{_lambda_.1} parent=63 // pred_check
        %p13539 = pneg %p283
      $region66: #{_lambda_.1} parent=63 // pred_check_branch
        %13541 = sbr.rel (%p13539) target = $region68
      $region67: #{_lambda_.1} parent=63 // pred_region
        _
      $region68: #{_lambda_.1} parent=63 // pred_fallthru
        _
      // Predicated region
      $region69: #{_lambda_.1} parent=63 // pred_check
        %p13542 = pneg %p309
      $region70: #{_lambda_.1} parent=63 // pred_check_branch
        %13544 = sbr.rel (%p13542) target = $region72
      $region71: #{_lambda_.1} parent=63 // pred_region
        _
      $region72: #{_lambda_.1} parent=63 // pred_fallthru
        _
    $region64: #{_lambda_.1} parent=5 // pred_fallthru
      _
    %p13545 = scmp.le.s32.totalorder 2, %s19
    // Predicated region
    $region73: #{_lambda_.1} parent=5 // pred_check
      %p13546 = pneg %p13545
    $region74: #{_lambda_.1} parent=5 // pred_check_branch
      %13548 = sbr.rel (%p13546) target = $region76
    $region75: #{_lambda_.1} parent=5 // pred_region
      %s13549 = ssub.s32 %s19, 2
      // Predicated region
      $region77: #{_lambda_.1} parent=75 // pred_check
        %p13550 = pneg %p289
      $region78: #{_lambda_.1} parent=75 // pred_check_branch
        %13552 = sbr.rel (%p13550) target = $region80
      $region79: #{_lambda_.1} parent=75 // pred_region
        %p13553 = scmp.lt.s32.totalorder %s25, 1
        %s13554 = scalar_select %p13553, %s25, 1
        %s13555 = smul.addr %s13554, 2
        %s13556 = smul.addr %s13555, 2
        %s13557 = scalar_lea.vmem %s11, %s13556
      $region80: #{_lambda_.1} parent=75 // pred_fallthru
        _
      // Predicated region
      $region81: #{_lambda_.1} parent=75 // pred_check
        %p13558 = pneg %p315
      $region82: #{_lambda_.1} parent=75 // pred_check_branch
        %13560 = sbr.rel (%p13558) target = $region84
      $region83: #{_lambda_.1} parent=75 // pred_region
        %p13561 = scmp.lt.s32.totalorder %s25, 1
        %s13562 = scalar_select %p13561, %s25, 1
        %s13563 = smul.addr %s13562, 2
        %s13564 = scalar_lea.vmem %s12, %s13563
      $region84: #{_lambda_.1} parent=75 // pred_fallthru
        _
    $region76: #{_lambda_.1} parent=5 // pred_fallthru
      _
  $region6: #{_lambda_.1} parent=0 // loop_footer
    %s23 = sadd.s32 1, %s19
  $region7: #{_lambda_.1} parent=0 // loop_footer_branch
    %18 = sbr.rel target = $region3
  $region8: #{_lambda_.1} parent=0 // loop_exit
    _

</llo_original>
